<compile_context>
chip_gen: v6e
topology: v6e:2x2x1
jax: 0.10.0
libtpu: 0.0.40
codegen_flags: <defaults>
</compile_context>

<pallas_src>
import functools
import math

import jax
import jax.numpy as jnp
import numpy as np
from jax import lax
from jax.experimental import pallas as pl

F32 = jnp.float32
BF16 = jnp.bfloat16
_LN_EPS = 1e-5                 # nn.LayerNorm default eps
_INV_SQRT2 = 0.7071067811865476
_SEG = 128                     # padded lane width of Q/K/V segments & outputs
_NEG_INF = -1e30


def _erf_f32(x):
  # float32 erf rational approximation (~1e-7 abs error) -> exact erf-based
  # GELU matching F.gelu(approximate='none').
  alpha = (-2.72614225801306e-10, 2.77068142495902e-08, -2.10102402082508e-06,
           -5.69250639462346e-05, -7.34990630326855e-04, -2.95459980854025e-03,
           -1.60960333262415e-02)
  beta = (-1.45660718464996e-05, -2.13374055278905e-04, -1.68282697438203e-03,
          -7.37332916720468e-03, -1.42647390514189e-02)
  x = jnp.clip(x, -4.0, 4.0)
  x2 = x * x
  p = alpha[0] * x2 + alpha[1]
  for c in alpha[2:]:
    p = p * x2 + c
  q = beta[0] * x2 + beta[1]
  for c in beta[2:]:
    q = q * x2 + c
  return x * p / q


def _gelu_exact(x):
  return 0.5 * x * (1.0 + _erf_f32(x * _INV_SQRT2))


def _mm(a, b):
  # bf16 operands (native MXU path), f32 accumulation.
  return jnp.dot(a.astype(BF16), b.astype(BF16), preferred_element_type=F32)


def _mm_nt(a, b):
  # a @ b^T, contracted over the last dim of both (NT matmul).
  return lax.dot_general(a.astype(BF16), b.astype(BF16),
                         (((1,), (1,)), ((), ())),
                         preferred_element_type=F32)


# ------------------------------ fused kernel ---------------------------------

def _attention(x, wqkv, bqkv, wo, bo, num_heads, n_batch):
  """Multi-head self-attention with batch AND heads folded into the M dim.

  x:    (M, E) f32, rows ordered (seq, batch) with batch fastest (M = L*N).
  wqkv: (E, 3*128) bf16, Q/K/V segments column-padded to start at 0/128/256.
  wo:   (128, E) bf16 (zero rows beyond E).
  """
  m, e = x.shape
  dh = e // num_heads
  hm = num_heads * m
  scale = 1.0 / math.sqrt(dh)

  qkv = _mm(x, wqkv) + bqkv                        # (M, 3*128) f32
  q = qkv[:, 0:_SEG] * scale                       # 128-aligned value slices
  k = qkv[:, _SEG:2 * _SEG]
  v = qkv[:, 2 * _SEG:3 * _SEG]

  # Zero-expand heads along sublanes: block h keeps only lanes [h*dh,(h+1)*dh).
  lane = lax.broadcasted_iota(jnp.int32, (m, _SEG), 1)

  def expand(a):
    parts = [jnp.where((lane >= h * dh) & (lane < (h + 1) * dh), a, 0.0)
             for h in range(num_heads)]
    return jnp.concatenate(parts, axis=0) if num_heads > 1 else parts[0]

  qh, kh, vh = expand(q), expand(k), expand(v)     # (H*M, 128)

  # Block-diagonal validity mask: same head AND same batch element.
  # m and n_batch are powers of two (asserted in the wrapper) -> shifts/ANDs.
  row = lax.broadcasted_iota(jnp.int32, (hm, hm), 0)
  col = lax.broadcasted_iota(jnp.int32, (hm, hm), 1)
  lm = m.bit_length() - 1
  valid = jnp.logical_and((row >> lm) == (col >> lm),
                          (row & (n_batch - 1)) == (col & (n_batch - 1)))

  s = _mm_nt(qh, kh)                               # ONE (H*M,H*M) score matmul
  s = jnp.where(valid, s, _NEG_INF)
  s = s - jnp.max(s, axis=-1, keepdims=True)
  p = jnp.exp(s)
  p = p * pl.reciprocal(jnp.sum(p, axis=-1, keepdims=True), approx=True)
  pv = _mm(p, vh)                                  # ONE (H*M,128) P@V matmul
  # Collapse the head blocks: block h is nonzero only in head-h lanes, so the
  # sum over blocks reproduces the concatenated-heads layout (M, 128).
  out = pv[0:m, :]
  for h in range(1, num_heads):
    out = out + pv[h * m:(h + 1) * m, :]
  return _mm(out, wo) + bo                         # (M, E)


def _block(x, wrefs, num_heads, n_batch):
  """TransformerBlock: MHA -> residual+LayerNorm -> FeedForward (GELU)."""
  wqkv, bqkv, wo, bo, ln_g, ln_b, w1, b1, w2, b2 = (r[...] for r in wrefs)
  attn = _attention(x, wqkv, bqkv, wo, bo, num_heads, n_batch)
  z = x + attn
  mu = jnp.mean(z, axis=-1, keepdims=True)
  d = z - mu
  var = jnp.mean(d * d, axis=-1, keepdims=True)
  y = d * lax.rsqrt(var + _LN_EPS) * ln_g + ln_b   # f32 elementwise
  h = _gelu_exact(_mm(y, w1) + b1)
  return _mm(h, w2) + b2
  # NOTE: the PyTorch TransformerBlock defines norm2 but never applies it.


_BLOCK_KEYS = ("wqkv", "bqkv", "wo", "bo", "ln_g", "ln_b", "w1", "b1", "w2", "b2")


def _fused_fwd_kernel(*refs, heads, n_enc, n_batch):
  nb = len(heads)
  x_ref, emb_w, emb_b = refs[0], refs[1], refs[2]
  off = 3
  block_refs = [refs[off + 10 * i: off + 10 * (i + 1)] for i in range(nb)]
  off += 10 * nb
  cls_w, cls_b, rec_w, rec_b = refs[off:off + 4]
  recon_ref, preds_ref = refs[off + 4], refs[off + 5]

  h = _mm(x_ref[...], emb_w[...]) + emb_b[...]     # embedding (M, d_emb)
  for i, nh in enumerate(heads):
    h = _block(h, block_refs[i], nh, n_batch)
    if i == n_enc - 1:
      # SequenceClassifier == token-wise Linear(d_output, 1); weights are
      # column-padded to 128 lanes -> lane-dense (M,128) slab, unmasked store.
      preds_ref[...] = _mm(h, cls_w[...]) + cls_b[...]
  recon_ref[...] = _mm(h, rec_w[...]) + rec_b[...]  # lane-dense (M,128) slab


def transformer_dr_forward(kparams, x):
  l, n, d_in = x.shape
  m = l * n
  assert m & (m - 1) == 0 and n & (n - 1) == 0, "L*N and N must be powers of 2"
  blocks = kparams["blocks"]
  heads = tuple(b["num_heads"] for b in blocks)

  x2 = x.reshape(m, d_in)                          # free contiguous reshape

  flat = [x2, kparams["emb_w"], kparams["emb_b"]]
  for b in blocks:
    flat.extend(b[k] for k in _BLOCK_KEYS)
  flat.extend([kparams["cls_w"], kparams["cls_b"],
               kparams["rec_w"], kparams["rec_b"]])

  kernel = functools.partial(_fused_fwd_kernel, heads=heads,
                             n_enc=kparams["n_enc"], n_batch=n)
  recon_slab, preds_slab = pl.pallas_call(
      kernel,
      out_shape=(jax.ShapeDtypeStruct((m, _SEG), F32),
                 jax.ShapeDtypeStruct((m, _SEG), F32)),
  )(*flat)
  recon = recon_slab[:, :d_in].reshape(l, n, d_in)
  preds = preds_slab[:, :1].reshape(l, n, 1)
  return recon, preds


# --------------------------- parameter construction --------------------------

def _uniform(key, shape, fan_in):
  bound = 1.0 / math.sqrt(fan_in)
  return jax.random.uniform(key, shape, F32, -bound, bound)


def _linear_params(key, fan_in, fan_out):
  kw, kb = jax.random.split(key)
  return (_uniform(kw, (fan_in, fan_out), fan_in),
          _uniform(kb, (1, fan_out), fan_in))


def _block_params(key, d_in, d_hidden, d_out, num_heads):
  ks = jax.random.split(key, 6)
  w1, b1 = _linear_params(ks[4], d_in, d_hidden)
  w2, b2 = _linear_params(ks[5], d_hidden, d_out)
  return dict(
      wqkv=_uniform(ks[0], (d_in, 3 * d_in), d_in),    # packed [Wq|Wk|Wv]
      bqkv=_uniform(ks[1], (1, 3 * d_in), d_in),
      wo=_uniform(ks[2], (d_in, d_in), d_in),
      bo=_uniform(ks[3], (1, d_in), d_in),
      ln_g=jnp.ones((1, d_in), F32),
      ln_b=jnp.zeros((1, d_in), F32),
      w1=w1, b1=b1, w2=w2, b2=b2,
      num_heads=num_heads,
  )


def init_transformer_dr(key, d_input, d_embedding, d_hidden, d_output,
                        num_blocks):
  keys = jax.random.split(key, 2 * (num_blocks + 1) + 3)
  ki = iter(keys)
  params = {}
  params["emb_w"], params["emb_b"] = _linear_params(next(ki), d_input,
                                                    d_embedding)
  blocks = []
  for i in range(num_blocks):                          # encoder
    blocks.append(_block_params(next(ki), d_embedding // 2 ** i, d_hidden,
                                d_embedding // 2 ** (i + 1), num_heads=4))
  blocks.append(_block_params(next(ki), d_embedding // 2 ** num_blocks,
                              d_hidden, d_output, num_heads=4))
  params["n_enc"] = num_blocks + 1

  blocks.append(_block_params(next(ki), d_output, d_hidden,                 # decoder
                              d_embedding // 2 ** num_blocks, num_heads=1))
  for i in range(num_blocks):
    blocks.append(_block_params(next(ki), d_embedding // 2 ** (num_blocks - i),
                                d_hidden,
                                d_embedding // 2 ** (num_blocks - i - 1),
                                num_heads=4))
  params["blocks"] = blocks

  params["cls_w"], params["cls_b"] = _linear_params(next(ki), d_output, 1)
  params["rec_w"], params["rec_b"] = _linear_params(next(ki), d_embedding,
                                                    d_input)
  return params


def prepare_kernel_params(params):
  """Host-side prep (once): pad Q/K/V segments, out-proj rows and the
  classifier/reconstruction columns to 128-lane alignment, and pre-cast every
  matmul weight to bf16 (biases / LayerNorm stay f32)."""
  def pad_cols(w):
    return jnp.pad(w, ((0, 0), (0, _SEG - w.shape[1])))

  out = dict(n_enc=params["n_enc"],
             emb_w=params["emb_w"].astype(BF16), emb_b=params["emb_b"],
             cls_w=pad_cols(params["cls_w"]).astype(BF16),
             cls_b=pad_cols(params["cls_b"]),
             rec_w=pad_cols(params["rec_w"]).astype(BF16),
             rec_b=pad_cols(params["rec_b"]))
  blocks = []
  for b in params["blocks"]:
    e = b["wo"].shape[0]
    wqkv = jnp.concatenate(
        [pad_cols(b["wqkv"][:, i * e:(i + 1) * e]) for i in range(3)], axis=1)
    bqkv = jnp.concatenate(
        [pad_cols(b["bqkv"][:, i * e:(i + 1) * e]) for i in range(3)], axis=1)
    blocks.append(dict(
        wqkv=wqkv.astype(BF16),                                   # (E, 384)
        bqkv=bqkv,                                                # (1, 384) f32
        wo=jnp.pad(b["wo"], ((0, _SEG - e), (0, 0))).astype(BF16),  # (128, E)
        bo=b["bo"], ln_g=b["ln_g"], ln_b=b["ln_b"],
        w1=b["w1"].astype(BF16), b1=b["b1"],
        w2=b["w2"].astype(BF16), b2=b["b2"],
        num_heads=b["num_heads"]))
  out["blocks"] = blocks
  return out


# --------------------------- pure-JAX reference ------------------------------

def _ref_attention(x, p):
  l, n, e = x.shape
  h = p["num_heads"]
  dh = e // h
  qkv = x @ p["wqkv"] + p["bqkv"][0]
  q = qkv[..., :e].reshape(l, n, h, dh)
  k = qkv[..., e:2 * e].reshape(l, n, h, dh)
  v = qkv[..., 2 * e:].reshape(l, n, h, dh)
  s = jnp.einsum("lnhd,mnhd->nhlm", q, k) / math.sqrt(dh)
  a = jax.nn.softmax(s, axis=-1)
  o = jnp.einsum("nhlm,mnhd->lnhd", a, v).reshape(l, n, e)
  return o @ p["wo"] + p["bo"][0]


def _ref_layernorm(x, g, b):
  mu = jnp.mean(x, axis=-1, keepdims=True)
  var = jnp.mean((x - mu) ** 2, axis=-1, keepdims=True)
  return (x - mu) / jnp.sqrt(var + _LN_EPS) * g[0] + b[0]


def _ref_block(x, p):
  attn = _ref_attention(x, p)
  y = _ref_layernorm(x + attn, p["ln_g"], p["ln_b"])
  h = y @ p["w1"] + p["b1"][0]
  h = 0.5 * h * (1.0 + jax.scipy.special.erf(h * _INV_SQRT2))
  return h @ p["w2"] + p["b2"][0]


def _ref_forward(params, x):
  h = x @ params["emb_w"] + params["emb_b"][0]
  preds = None
  for i, blk in enumerate(params["blocks"]):
    h = _ref_block(h, blk)
    if i == params["n_enc"] - 1:
      preds = h @ params["cls_w"] + params["cls_b"][0]
  recon = h @ params["rec_w"] + params["rec_b"][0]
  return recon, preds


# ----------------------------------- main ------------------------------------

if __name__ == "__main__":
  d_input, d_embedding, d_hidden, d_output, num_blocks = 12, 64, 32, 16, 2
  seq_len, batch = 8, 2

  key = jax.random.PRNGKey(0)
  k_params, k_x = jax.random.split(key)
  params = init_transformer_dr(k_params, d_input, d_embedding, d_hidden,
                               d_output, num_blocks)
  kparams = prepare_kernel_params(params)
  x = jax.random.normal(k_x, (seq_len, batch, d_input), F32)

  recon, preds = transformer_dr_forward(kparams, x)
  jax.block_until_ready((recon, preds))

  assert recon.shape == (seq_len, batch, d_input)
  assert preds.shape == (seq_len, batch, 1)

  recon_ref, preds_ref = _ref_forward(params, x)
  np.testing.assert_allclose(np.asarray(recon), np.asarray(recon_ref),
                             rtol=5e-2, atol=5e-2)
  np.testing.assert_allclose(np.asarray(preds), np.asarray(preds_ref),
                             rtol=5e-2, atol=5e-2)

  print("KERNEL_OK")
</pallas_src>

<mosaic_0001>
module attributes {stable_mosaic.version = 11 : i64} {
  func.func @_fused_fwd_kernel(%arg0: memref<16x12xf32, #tpu.memory_space<vmem>>, %arg1: memref<12x64xbf16, #tpu.memory_space<vmem>>, %arg2: memref<1x64xf32, #tpu.memory_space<vmem>>, %arg3: memref<64x384xbf16, #tpu.memory_space<vmem>>, %arg4: memref<1x384xf32, #tpu.memory_space<vmem>>, %arg5: memref<128x64xbf16, #tpu.memory_space<vmem>>, %arg6: memref<1x64xf32, #tpu.memory_space<vmem>>, %arg7: memref<1x64xf32, #tpu.memory_space<vmem>>, %arg8: memref<1x64xf32, #tpu.memory_space<vmem>>, %arg9: memref<64x32xbf16, #tpu.memory_space<vmem>>, %arg10: memref<1x32xf32, #tpu.memory_space<vmem>>, %arg11: memref<32x32xbf16, #tpu.memory_space<vmem>>, %arg12: memref<1x32xf32, #tpu.memory_space<vmem>>, %arg13: memref<32x384xbf16, #tpu.memory_space<vmem>>, %arg14: memref<1x384xf32, #tpu.memory_space<vmem>>, %arg15: memref<128x32xbf16, #tpu.memory_space<vmem>>, %arg16: memref<1x32xf32, #tpu.memory_space<vmem>>, %arg17: memref<1x32xf32, #tpu.memory_space<vmem>>, %arg18: memref<1x32xf32, #tpu.memory_space<vmem>>, %arg19: memref<32x32xbf16, #tpu.memory_space<vmem>>, %arg20: memref<1x32xf32, #tpu.memory_space<vmem>>, %arg21: memref<32x16xbf16, #tpu.memory_space<vmem>>, %arg22: memref<1x16xf32, #tpu.memory_space<vmem>>, %arg23: memref<16x384xbf16, #tpu.memory_space<vmem>>, %arg24: memref<1x384xf32, #tpu.memory_space<vmem>>, %arg25: memref<128x16xbf16, #tpu.memory_space<vmem>>, %arg26: memref<1x16xf32, #tpu.memory_space<vmem>>, %arg27: memref<1x16xf32, #tpu.memory_space<vmem>>, %arg28: memref<1x16xf32, #tpu.memory_space<vmem>>, %arg29: memref<16x32xbf16, #tpu.memory_space<vmem>>, %arg30: memref<1x32xf32, #tpu.memory_space<vmem>>, %arg31: memref<32x16xbf16, #tpu.memory_space<vmem>>, %arg32: memref<1x16xf32, #tpu.memory_space<vmem>>, %arg33: memref<16x384xbf16, #tpu.memory_space<vmem>>, %arg34: memref<1x384xf32, #tpu.memory_space<vmem>>, %arg35: memref<128x16xbf16, #tpu.memory_space<vmem>>, %arg36: memref<1x16xf32, #tpu.memory_space<vmem>>, %arg37: memref<1x16xf32, #tpu.memory_space<vmem>>, %arg38: memref<1x16xf32, #tpu.memory_space<vmem>>, %arg39: memref<16x32xbf16, #tpu.memory_space<vmem>>, %arg40: memref<1x32xf32, #tpu.memory_space<vmem>>, %arg41: memref<32x16xbf16, #tpu.memory_space<vmem>>, %arg42: memref<1x16xf32, #tpu.memory_space<vmem>>, %arg43: memref<16x384xbf16, #tpu.memory_space<vmem>>, %arg44: memref<1x384xf32, #tpu.memory_space<vmem>>, %arg45: memref<128x16xbf16, #tpu.memory_space<vmem>>, %arg46: memref<1x16xf32, #tpu.memory_space<vmem>>, %arg47: memref<1x16xf32, #tpu.memory_space<vmem>>, %arg48: memref<1x16xf32, #tpu.memory_space<vmem>>, %arg49: memref<16x32xbf16, #tpu.memory_space<vmem>>, %arg50: memref<1x32xf32, #tpu.memory_space<vmem>>, %arg51: memref<32x32xbf16, #tpu.memory_space<vmem>>, %arg52: memref<1x32xf32, #tpu.memory_space<vmem>>, %arg53: memref<32x384xbf16, #tpu.memory_space<vmem>>, %arg54: memref<1x384xf32, #tpu.memory_space<vmem>>, %arg55: memref<128x32xbf16, #tpu.memory_space<vmem>>, %arg56: memref<1x32xf32, #tpu.memory_space<vmem>>, %arg57: memref<1x32xf32, #tpu.memory_space<vmem>>, %arg58: memref<1x32xf32, #tpu.memory_space<vmem>>, %arg59: memref<32x32xbf16, #tpu.memory_space<vmem>>, %arg60: memref<1x32xf32, #tpu.memory_space<vmem>>, %arg61: memref<32x64xbf16, #tpu.memory_space<vmem>>, %arg62: memref<1x64xf32, #tpu.memory_space<vmem>>, %arg63: memref<16x128xbf16, #tpu.memory_space<vmem>>, %arg64: memref<1x128xf32, #tpu.memory_space<vmem>>, %arg65: memref<64x128xbf16, #tpu.memory_space<vmem>>, %arg66: memref<1x128xf32, #tpu.memory_space<vmem>>, %arg67: memref<16x128xf32, #tpu.memory_space<vmem>>, %arg68: memref<16x128xf32, #tpu.memory_space<vmem>>) attributes {dimension_semantics = [], scalar_prefetch = 0 : i64, scratch_operands = 0 : i64, tpu.core_type = #tpu.core_type<tc>} {
    %c0 = arith.constant 0 : index
    %c0_0 = arith.constant 0 : index
    %0 = vector.load %arg0[%c0, %c0_0] : memref<16x12xf32, #tpu.memory_space<vmem>>, vector<16x12xf32>
    %c0_1 = arith.constant 0 : index
    %c0_2 = arith.constant 0 : index
    %1 = vector.load %arg1[%c0_1, %c0_2] : memref<12x64xbf16, #tpu.memory_space<vmem>>, vector<12x64xbf16>
    %2 = arith.truncf %0 : vector<16x12xf32> to vector<16x12xbf16>
    %cst = arith.constant dense<0.000000e+00> : vector<16x64xf32>
    %3 = tpu.matmul %2, %1, %cst {dimension_numbers = #tpu.dot_dimension_numbers<[1], [0], [0], [1], [0, 0, 1, 1], [], []>} : vector<16x12xbf16>, vector<12x64xbf16>, vector<16x64xf32> -> vector<16x64xf32>
    %c0_3 = arith.constant 0 : index
    %c0_4 = arith.constant 0 : index
    %4 = vector.load %arg2[%c0_3, %c0_4] : memref<1x64xf32, #tpu.memory_space<vmem>>, vector<1x64xf32>
    %5 = vector.broadcast %4 : vector<1x64xf32> to vector<16x64xf32>
    %6 = arith.addf %3, %5 : vector<16x64xf32>
    %c0_5 = arith.constant 0 : index
    %c0_6 = arith.constant 0 : index
    %7 = vector.load %arg3[%c0_5, %c0_6] : memref<64x384xbf16, #tpu.memory_space<vmem>>, vector<64x384xbf16>
    %c0_7 = arith.constant 0 : index
    %c0_8 = arith.constant 0 : index
    %8 = vector.load %arg4[%c0_7, %c0_8] : memref<1x384xf32, #tpu.memory_space<vmem>>, vector<1x384xf32>
    %c0_9 = arith.constant 0 : index
    %c0_10 = arith.constant 0 : index
    %9 = vector.load %arg5[%c0_9, %c0_10] : memref<128x64xbf16, #tpu.memory_space<vmem>>, vector<128x64xbf16>
    %c0_11 = arith.constant 0 : index
    %c0_12 = arith.constant 0 : index
    %10 = vector.load %arg6[%c0_11, %c0_12] : memref<1x64xf32, #tpu.memory_space<vmem>>, vector<1x64xf32>
    %c0_13 = arith.constant 0 : index
    %c0_14 = arith.constant 0 : index
    %11 = vector.load %arg7[%c0_13, %c0_14] : memref<1x64xf32, #tpu.memory_space<vmem>>, vector<1x64xf32>
    %c0_15 = arith.constant 0 : index
    %c0_16 = arith.constant 0 : index
    %12 = vector.load %arg8[%c0_15, %c0_16] : memref<1x64xf32, #tpu.memory_space<vmem>>, vector<1x64xf32>
    %c0_17 = arith.constant 0 : index
    %c0_18 = arith.constant 0 : index
    %13 = vector.load %arg9[%c0_17, %c0_18] : memref<64x32xbf16, #tpu.memory_space<vmem>>, vector<64x32xbf16>
    %c0_19 = arith.constant 0 : index
    %c0_20 = arith.constant 0 : index
    %14 = vector.load %arg10[%c0_19, %c0_20] : memref<1x32xf32, #tpu.memory_space<vmem>>, vector<1x32xf32>
    %c0_21 = arith.constant 0 : index
    %c0_22 = arith.constant 0 : index
    %15 = vector.load %arg11[%c0_21, %c0_22] : memref<32x32xbf16, #tpu.memory_space<vmem>>, vector<32x32xbf16>
    %c0_23 = arith.constant 0 : index
    %c0_24 = arith.constant 0 : index
    %16 = vector.load %arg12[%c0_23, %c0_24] : memref<1x32xf32, #tpu.memory_space<vmem>>, vector<1x32xf32>
    %17 = arith.truncf %6 : vector<16x64xf32> to vector<16x64xbf16>
    %cst_25 = arith.constant dense<0.000000e+00> : vector<16x384xf32>
    %18 = tpu.matmul %17, %7, %cst_25 {dimension_numbers = #tpu.dot_dimension_numbers<[1], [0], [0], [1], [0, 0, 1, 1], [], []>} : vector<16x64xbf16>, vector<64x384xbf16>, vector<16x384xf32> -> vector<16x384xf32>
    %19 = vector.broadcast %8 : vector<1x384xf32> to vector<16x384xf32>
    %20 = arith.addf %18, %19 : vector<16x384xf32>
    %21 = vector.extract_strided_slice %20 {offsets = [0, 0], sizes = [16, 128], strides = [1, 1]} : vector<16x384xf32> to vector<16x128xf32>
    %cst_26 = arith.constant 2.500000e-01 : f32
    %22 = vector.broadcast %cst_26 : f32 to vector<16x128xf32>
    %23 = arith.mulf %21, %22 : vector<16x128xf32>
    %24 = vector.extract_strided_slice %20 {offsets = [0, 128], sizes = [16, 128], strides = [1, 1]} : vector<16x384xf32> to vector<16x128xf32>
    %25 = vector.extract_strided_slice %20 {offsets = [0, 256], sizes = [16, 128], strides = [1, 1]} : vector<16x384xf32> to vector<16x128xf32>
    %26 = tpu.iota {dimensions = array<i32: 1>} : vector<16x128xi32>
    %c0_i32 = arith.constant 0 : i32
    %27 = vector.broadcast %c0_i32 : i32 to vector<16x128xi32>
    %28 = arith.cmpi sge, %26, %27 : vector<16x128xi32>
    %c16_i32 = arith.constant 16 : i32
    %29 = vector.broadcast %c16_i32 : i32 to vector<16x128xi32>
    %30 = arith.cmpi slt, %26, %29 : vector<16x128xi32>
    %31 = arith.andi %28, %30 : vector<16x128xi1>
    %cst_27 = arith.constant 0.000000e+00 : f32
    %32 = vector.broadcast %cst_27 : f32 to vector<16x128xf32>
    %33 = arith.select %31, %23, %32 : vector<16x128xi1>, vector<16x128xf32>
    %c16_i32_28 = arith.constant 16 : i32
    %34 = vector.broadcast %c16_i32_28 : i32 to vector<16x128xi32>
    %35 = arith.cmpi sge, %26, %34 : vector<16x128xi32>
    %c32_i32 = arith.constant 32 : i32
    %36 = vector.broadcast %c32_i32 : i32 to vector<16x128xi32>
    %37 = arith.cmpi slt, %26, %36 : vector<16x128xi32>
    %38 = arith.andi %35, %37 : vector<16x128xi1>
    %cst_29 = arith.constant 0.000000e+00 : f32
    %39 = vector.broadcast %cst_29 : f32 to vector<16x128xf32>
    %40 = arith.select %38, %23, %39 : vector<16x128xi1>, vector<16x128xf32>
    %c32_i32_30 = arith.constant 32 : i32
    %41 = vector.broadcast %c32_i32_30 : i32 to vector<16x128xi32>
    %42 = arith.cmpi sge, %26, %41 : vector<16x128xi32>
    %c48_i32 = arith.constant 48 : i32
    %43 = vector.broadcast %c48_i32 : i32 to vector<16x128xi32>
    %44 = arith.cmpi slt, %26, %43 : vector<16x128xi32>
    %45 = arith.andi %42, %44 : vector<16x128xi1>
    %cst_31 = arith.constant 0.000000e+00 : f32
    %46 = vector.broadcast %cst_31 : f32 to vector<16x128xf32>
    %47 = arith.select %45, %23, %46 : vector<16x128xi1>, vector<16x128xf32>
    %c48_i32_32 = arith.constant 48 : i32
    %48 = vector.broadcast %c48_i32_32 : i32 to vector<16x128xi32>
    %49 = arith.cmpi sge, %26, %48 : vector<16x128xi32>
    %c64_i32 = arith.constant 64 : i32
    %50 = vector.broadcast %c64_i32 : i32 to vector<16x128xi32>
    %51 = arith.cmpi slt, %26, %50 : vector<16x128xi32>
    %52 = arith.andi %49, %51 : vector<16x128xi1>
    %cst_33 = arith.constant 0.000000e+00 : f32
    %53 = vector.broadcast %cst_33 : f32 to vector<16x128xf32>
    %54 = arith.select %52, %23, %53 : vector<16x128xi1>, vector<16x128xf32>
    %55 = tpu.concatenate %33, %40, %47, %54 in 0 : vector<16x128xf32>, vector<16x128xf32>, vector<16x128xf32>, vector<16x128xf32> -> vector<64x128xf32>
    %c0_i32_34 = arith.constant 0 : i32
    %56 = vector.broadcast %c0_i32_34 : i32 to vector<16x128xi32>
    %57 = arith.cmpi sge, %26, %56 : vector<16x128xi32>
    %c16_i32_35 = arith.constant 16 : i32
    %58 = vector.broadcast %c16_i32_35 : i32 to vector<16x128xi32>
    %59 = arith.cmpi slt, %26, %58 : vector<16x128xi32>
    %60 = arith.andi %57, %59 : vector<16x128xi1>
    %cst_36 = arith.constant 0.000000e+00 : f32
    %61 = vector.broadcast %cst_36 : f32 to vector<16x128xf32>
    %62 = arith.select %60, %24, %61 : vector<16x128xi1>, vector<16x128xf32>
    %c16_i32_37 = arith.constant 16 : i32
    %63 = vector.broadcast %c16_i32_37 : i32 to vector<16x128xi32>
    %64 = arith.cmpi sge, %26, %63 : vector<16x128xi32>
    %c32_i32_38 = arith.constant 32 : i32
    %65 = vector.broadcast %c32_i32_38 : i32 to vector<16x128xi32>
    %66 = arith.cmpi slt, %26, %65 : vector<16x128xi32>
    %67 = arith.andi %64, %66 : vector<16x128xi1>
    %cst_39 = arith.constant 0.000000e+00 : f32
    %68 = vector.broadcast %cst_39 : f32 to vector<16x128xf32>
    %69 = arith.select %67, %24, %68 : vector<16x128xi1>, vector<16x128xf32>
    %c32_i32_40 = arith.constant 32 : i32
    %70 = vector.broadcast %c32_i32_40 : i32 to vector<16x128xi32>
    %71 = arith.cmpi sge, %26, %70 : vector<16x128xi32>
    %c48_i32_41 = arith.constant 48 : i32
    %72 = vector.broadcast %c48_i32_41 : i32 to vector<16x128xi32>
    %73 = arith.cmpi slt, %26, %72 : vector<16x128xi32>
    %74 = arith.andi %71, %73 : vector<16x128xi1>
    %cst_42 = arith.constant 0.000000e+00 : f32
    %75 = vector.broadcast %cst_42 : f32 to vector<16x128xf32>
    %76 = arith.select %74, %24, %75 : vector<16x128xi1>, vector<16x128xf32>
    %c48_i32_43 = arith.constant 48 : i32
    %77 = vector.broadcast %c48_i32_43 : i32 to vector<16x128xi32>
    %78 = arith.cmpi sge, %26, %77 : vector<16x128xi32>
    %c64_i32_44 = arith.constant 64 : i32
    %79 = vector.broadcast %c64_i32_44 : i32 to vector<16x128xi32>
    %80 = arith.cmpi slt, %26, %79 : vector<16x128xi32>
    %81 = arith.andi %78, %80 : vector<16x128xi1>
    %cst_45 = arith.constant 0.000000e+00 : f32
    %82 = vector.broadcast %cst_45 : f32 to vector<16x128xf32>
    %83 = arith.select %81, %24, %82 : vector<16x128xi1>, vector<16x128xf32>
    %84 = tpu.concatenate %62, %69, %76, %83 in 0 : vector<16x128xf32>, vector<16x128xf32>, vector<16x128xf32>, vector<16x128xf32> -> vector<64x128xf32>
    %c0_i32_46 = arith.constant 0 : i32
    %85 = vector.broadcast %c0_i32_46 : i32 to vector<16x128xi32>
    %86 = arith.cmpi sge, %26, %85 : vector<16x128xi32>
    %c16_i32_47 = arith.constant 16 : i32
    %87 = vector.broadcast %c16_i32_47 : i32 to vector<16x128xi32>
    %88 = arith.cmpi slt, %26, %87 : vector<16x128xi32>
    %89 = arith.andi %86, %88 : vector<16x128xi1>
    %cst_48 = arith.constant 0.000000e+00 : f32
    %90 = vector.broadcast %cst_48 : f32 to vector<16x128xf32>
    %91 = arith.select %89, %25, %90 : vector<16x128xi1>, vector<16x128xf32>
    %c16_i32_49 = arith.constant 16 : i32
    %92 = vector.broadcast %c16_i32_49 : i32 to vector<16x128xi32>
    %93 = arith.cmpi sge, %26, %92 : vector<16x128xi32>
    %c32_i32_50 = arith.constant 32 : i32
    %94 = vector.broadcast %c32_i32_50 : i32 to vector<16x128xi32>
    %95 = arith.cmpi slt, %26, %94 : vector<16x128xi32>
    %96 = arith.andi %93, %95 : vector<16x128xi1>
    %cst_51 = arith.constant 0.000000e+00 : f32
    %97 = vector.broadcast %cst_51 : f32 to vector<16x128xf32>
    %98 = arith.select %96, %25, %97 : vector<16x128xi1>, vector<16x128xf32>
    %c32_i32_52 = arith.constant 32 : i32
    %99 = vector.broadcast %c32_i32_52 : i32 to vector<16x128xi32>
    %100 = arith.cmpi sge, %26, %99 : vector<16x128xi32>
    %c48_i32_53 = arith.constant 48 : i32
    %101 = vector.broadcast %c48_i32_53 : i32 to vector<16x128xi32>
    %102 = arith.cmpi slt, %26, %101 : vector<16x128xi32>
    %103 = arith.andi %100, %102 : vector<16x128xi1>
    %cst_54 = arith.constant 0.000000e+00 : f32
    %104 = vector.broadcast %cst_54 : f32 to vector<16x128xf32>
    %105 = arith.select %103, %25, %104 : vector<16x128xi1>, vector<16x128xf32>
    %c48_i32_55 = arith.constant 48 : i32
    %106 = vector.broadcast %c48_i32_55 : i32 to vector<16x128xi32>
    %107 = arith.cmpi sge, %26, %106 : vector<16x128xi32>
    %c64_i32_56 = arith.constant 64 : i32
    %108 = vector.broadcast %c64_i32_56 : i32 to vector<16x128xi32>
    %109 = arith.cmpi slt, %26, %108 : vector<16x128xi32>
    %110 = arith.andi %107, %109 : vector<16x128xi1>
    %cst_57 = arith.constant 0.000000e+00 : f32
    %111 = vector.broadcast %cst_57 : f32 to vector<16x128xf32>
    %112 = arith.select %110, %25, %111 : vector<16x128xi1>, vector<16x128xf32>
    %113 = tpu.concatenate %91, %98, %105, %112 in 0 : vector<16x128xf32>, vector<16x128xf32>, vector<16x128xf32>, vector<16x128xf32> -> vector<64x128xf32>
    %114 = tpu.iota {dimensions = array<i32: 0>} : vector<64x64xi32>
    %115 = tpu.iota {dimensions = array<i32: 1>} : vector<64x64xi32>
    %c4_i32 = arith.constant 4 : i32
    %116 = vector.broadcast %c4_i32 : i32 to vector<64x64xi32>
    %117 = arith.shrsi %114, %116 : vector<64x64xi32>
    %c4_i32_58 = arith.constant 4 : i32
    %118 = vector.broadcast %c4_i32_58 : i32 to vector<64x64xi32>
    %119 = arith.shrsi %115, %118 : vector<64x64xi32>
    %120 = arith.cmpi eq, %117, %119 : vector<64x64xi32>
    %c1_i32 = arith.constant 1 : i32
    %121 = vector.broadcast %c1_i32 : i32 to vector<64x64xi32>
    %122 = arith.andi %114, %121 : vector<64x64xi32>
    %c1_i32_59 = arith.constant 1 : i32
    %123 = vector.broadcast %c1_i32_59 : i32 to vector<64x64xi32>
    %124 = arith.andi %115, %123 : vector<64x64xi32>
    %125 = arith.cmpi eq, %122, %124 : vector<64x64xi32>
    %126 = arith.andi %120, %125 : vector<64x64xi1>
    %127 = arith.truncf %55 : vector<64x128xf32> to vector<64x128xbf16>
    %128 = arith.truncf %84 : vector<64x128xf32> to vector<64x128xbf16>
    %cst_60 = arith.constant dense<0.000000e+00> : vector<64x64xf32>
    %129 = tpu.matmul %127, %128, %cst_60 {dimension_numbers = #tpu.dot_dimension_numbers<[1], [1], [0], [0], [0, 0, 1, 0], [], []>} : vector<64x128xbf16>, vector<64x128xbf16>, vector<64x64xf32> -> vector<64x64xf32>
    %cst_61 = arith.constant -1.000000e+30 : f32
    %130 = vector.broadcast %cst_61 : f32 to vector<64x64xf32>
    %131 = arith.select %126, %129, %130 : vector<64x64xi1>, vector<64x64xf32>
    %cst_62 = arith.constant dense<0xFF800000> : vector<64xf32>
    %132 = vector.multi_reduction <maximumf>, %131, %cst_62 [1] : vector<64x64xf32> to vector<64xf32>
    %133 = vector.shape_cast %132 : vector<64xf32> to vector<64x1xf32>
    %134 = vector.broadcast %133 : vector<64x1xf32> to vector<64x64xf32>
    %135 = arith.subf %131, %134 : vector<64x64xf32>
    %136 = math.exp %135 : vector<64x64xf32>
    %cst_63 = arith.constant dense<0.000000e+00> : vector<64xf32>
    %137 = vector.multi_reduction <add>, %136, %cst_63 [1] : vector<64x64xf32> to vector<64xf32>
    %138 = vector.shape_cast %137 : vector<64xf32> to vector<64x1xf32>
    %139 = tpu.reciprocal %138 {approx = true} : vector<64x1xf32> -> vector<64x1xf32>
    %140 = vector.broadcast %139 : vector<64x1xf32> to vector<64x64xf32>
    %141 = arith.mulf %136, %140 : vector<64x64xf32>
    %142 = arith.truncf %141 : vector<64x64xf32> to vector<64x64xbf16>
    %143 = arith.truncf %113 : vector<64x128xf32> to vector<64x128xbf16>
    %cst_64 = arith.constant dense<0.000000e+00> : vector<64x128xf32>
    %144 = tpu.matmul %142, %143, %cst_64 {dimension_numbers = #tpu.dot_dimension_numbers<[1], [0], [0], [1], [0, 0, 1, 1], [], []>} : vector<64x64xbf16>, vector<64x128xbf16>, vector<64x128xf32> -> vector<64x128xf32>
    %145 = vector.extract_strided_slice %144 {offsets = [0, 0], sizes = [16, 128], strides = [1, 1]} : vector<64x128xf32> to vector<16x128xf32>
    %146 = vector.extract_strided_slice %144 {offsets = [16, 0], sizes = [16, 128], strides = [1, 1]} : vector<64x128xf32> to vector<16x128xf32>
    %147 = arith.addf %145, %146 : vector<16x128xf32>
    %148 = vector.extract_strided_slice %144 {offsets = [32, 0], sizes = [16, 128], strides = [1, 1]} : vector<64x128xf32> to vector<16x128xf32>
    %149 = arith.addf %147, %148 : vector<16x128xf32>
    %150 = vector.extract_strided_slice %144 {offsets = [48, 0], sizes = [16, 128], strides = [1, 1]} : vector<64x128xf32> to vector<16x128xf32>
    %151 = arith.addf %149, %150 : vector<16x128xf32>
    %152 = arith.truncf %151 : vector<16x128xf32> to vector<16x128xbf16>
    %cst_65 = arith.constant dense<0.000000e+00> : vector<16x64xf32>
    %153 = tpu.matmul %152, %9, %cst_65 {dimension_numbers = #tpu.dot_dimension_numbers<[1], [0], [0], [1], [0, 0, 1, 1], [], []>} : vector<16x128xbf16>, vector<128x64xbf16>, vector<16x64xf32> -> vector<16x64xf32>
    %154 = vector.broadcast %10 : vector<1x64xf32> to vector<16x64xf32>
    %155 = arith.addf %153, %154 : vector<16x64xf32>
    %156 = arith.addf %6, %155 : vector<16x64xf32>
    %cst_66 = arith.constant dense<0.000000e+00> : vector<16xf32>
    %157 = vector.multi_reduction <add>, %156, %cst_66 [1] : vector<16x64xf32> to vector<16xf32>
    %158 = vector.shape_cast %157 : vector<16xf32> to vector<16x1xf32>
    %cst_67 = arith.constant 6.400000e+01 : f32
    %159 = vector.broadcast %cst_67 : f32 to vector<16x1xf32>
    %160 = arith.divf %158, %159 : vector<16x1xf32>
    %161 = vector.broadcast %160 : vector<16x1xf32> to vector<16x64xf32>
    %162 = arith.subf %156, %161 : vector<16x64xf32>
    %163 = arith.mulf %162, %162 : vector<16x64xf32>
    %cst_68 = arith.constant dense<0.000000e+00> : vector<16xf32>
    %164 = vector.multi_reduction <add>, %163, %cst_68 [1] : vector<16x64xf32> to vector<16xf32>
    %165 = vector.shape_cast %164 : vector<16xf32> to vector<16x1xf32>
    %cst_69 = arith.constant 6.400000e+01 : f32
    %166 = vector.broadcast %cst_69 : f32 to vector<16x1xf32>
    %167 = arith.divf %165, %166 : vector<16x1xf32>
    %cst_70 = arith.constant 9.99999974E-6 : f32
    %168 = vector.broadcast %cst_70 : f32 to vector<16x1xf32>
    %169 = arith.addf %167, %168 : vector<16x1xf32>
    %170 = math.rsqrt %169 : vector<16x1xf32>
    %171 = vector.broadcast %170 : vector<16x1xf32> to vector<16x64xf32>
    %172 = arith.mulf %162, %171 : vector<16x64xf32>
    %173 = vector.broadcast %11 : vector<1x64xf32> to vector<16x64xf32>
    %174 = arith.mulf %172, %173 : vector<16x64xf32>
    %175 = vector.broadcast %12 : vector<1x64xf32> to vector<16x64xf32>
    %176 = arith.addf %174, %175 : vector<16x64xf32>
    %177 = arith.truncf %176 : vector<16x64xf32> to vector<16x64xbf16>
    %cst_71 = arith.constant dense<0.000000e+00> : vector<16x32xf32>
    %178 = tpu.matmul %177, %13, %cst_71 {dimension_numbers = #tpu.dot_dimension_numbers<[1], [0], [0], [1], [0, 0, 1, 1], [], []>} : vector<16x64xbf16>, vector<64x32xbf16>, vector<16x32xf32> -> vector<16x32xf32>
    %179 = vector.broadcast %14 : vector<1x32xf32> to vector<16x32xf32>
    %180 = arith.addf %178, %179 : vector<16x32xf32>
    %cst_72 = arith.constant 5.000000e-01 : f32
    %181 = vector.broadcast %cst_72 : f32 to vector<16x32xf32>
    %182 = arith.mulf %181, %180 : vector<16x32xf32>
    %cst_73 = arith.constant 0.707106769 : f32
    %183 = vector.broadcast %cst_73 : f32 to vector<16x32xf32>
    %184 = arith.mulf %180, %183 : vector<16x32xf32>
    %cst_74 = arith.constant -4.000000e+00 : f32
    %cst_75 = arith.constant 4.000000e+00 : f32
    %185 = vector.broadcast %cst_74 : f32 to vector<16x32xf32>
    %186 = arith.maximumf %185, %184 : vector<16x32xf32>
    %187 = vector.broadcast %cst_75 : f32 to vector<16x32xf32>
    %188 = arith.minimumf %187, %186 : vector<16x32xf32>
    %189 = arith.mulf %188, %188 : vector<16x32xf32>
    %cst_76 = arith.constant -2.72614237E-10 : f32
    %190 = vector.broadcast %cst_76 : f32 to vector<16x32xf32>
    %191 = arith.mulf %190, %189 : vector<16x32xf32>
    %cst_77 = arith.constant 2.77068146E-8 : f32
    %192 = vector.broadcast %cst_77 : f32 to vector<16x32xf32>
    %193 = arith.addf %191, %192 : vector<16x32xf32>
    %194 = arith.mulf %193, %189 : vector<16x32xf32>
    %cst_78 = arith.constant -2.10102394E-6 : f32
    %195 = vector.broadcast %cst_78 : f32 to vector<16x32xf32>
    %196 = arith.addf %194, %195 : vector<16x32xf32>
    %197 = arith.mulf %196, %189 : vector<16x32xf32>
    %cst_79 = arith.constant -5.69250624E-5 : f32
    %198 = vector.broadcast %cst_79 : f32 to vector<16x32xf32>
    %199 = arith.addf %197, %198 : vector<16x32xf32>
    %200 = arith.mulf %199, %189 : vector<16x32xf32>
    %cst_80 = arith.constant -7.34990637E-4 : f32
    %201 = vector.broadcast %cst_80 : f32 to vector<16x32xf32>
    %202 = arith.addf %200, %201 : vector<16x32xf32>
    %203 = arith.mulf %202, %189 : vector<16x32xf32>
    %cst_81 = arith.constant -2.954600e-03 : f32
    %204 = vector.broadcast %cst_81 : f32 to vector<16x32xf32>
    %205 = arith.addf %203, %204 : vector<16x32xf32>
    %206 = arith.mulf %205, %189 : vector<16x32xf32>
    %cst_82 = arith.constant -0.0160960332 : f32
    %207 = vector.broadcast %cst_82 : f32 to vector<16x32xf32>
    %208 = arith.addf %206, %207 : vector<16x32xf32>
    %cst_83 = arith.constant -1.45660715E-5 : f32
    %209 = vector.broadcast %cst_83 : f32 to vector<16x32xf32>
    %210 = arith.mulf %209, %189 : vector<16x32xf32>
    %cst_84 = arith.constant -2.13374049E-4 : f32
    %211 = vector.broadcast %cst_84 : f32 to vector<16x32xf32>
    %212 = arith.addf %210, %211 : vector<16x32xf32>
    %213 = arith.mulf %212, %189 : vector<16x32xf32>
    %cst_85 = arith.constant -0.00168282702 : f32
    %214 = vector.broadcast %cst_85 : f32 to vector<16x32xf32>
    %215 = arith.addf %213, %214 : vector<16x32xf32>
    %216 = arith.mulf %215, %189 : vector<16x32xf32>
    %cst_86 = arith.constant -0.00737332925 : f32
    %217 = vector.broadcast %cst_86 : f32 to vector<16x32xf32>
    %218 = arith.addf %216, %217 : vector<16x32xf32>
    %219 = arith.mulf %218, %189 : vector<16x32xf32>
    %cst_87 = arith.constant -0.0142647391 : f32
    %220 = vector.broadcast %cst_87 : f32 to vector<16x32xf32>
    %221 = arith.addf %219, %220 : vector<16x32xf32>
    %222 = arith.mulf %188, %208 : vector<16x32xf32>
    %223 = arith.divf %222, %221 : vector<16x32xf32>
    %cst_88 = arith.constant 1.000000e+00 : f32
    %224 = vector.broadcast %cst_88 : f32 to vector<16x32xf32>
    %225 = arith.addf %224, %223 : vector<16x32xf32>
    %226 = arith.mulf %182, %225 : vector<16x32xf32>
    %227 = arith.truncf %226 : vector<16x32xf32> to vector<16x32xbf16>
    %cst_89 = arith.constant dense<0.000000e+00> : vector<16x32xf32>
    %228 = tpu.matmul %227, %15, %cst_89 {dimension_numbers = #tpu.dot_dimension_numbers<[1], [0], [0], [1], [0, 0, 1, 1], [], []>} : vector<16x32xbf16>, vector<32x32xbf16>, vector<16x32xf32> -> vector<16x32xf32>
    %229 = vector.broadcast %16 : vector<1x32xf32> to vector<16x32xf32>
    %230 = arith.addf %228, %229 : vector<16x32xf32>
    %c0_90 = arith.constant 0 : index
    %c0_91 = arith.constant 0 : index
    %231 = vector.load %arg13[%c0_90, %c0_91] : memref<32x384xbf16, #tpu.memory_space<vmem>>, vector<32x384xbf16>
    %c0_92 = arith.constant 0 : index
    %c0_93 = arith.constant 0 : index
    %232 = vector.load %arg14[%c0_92, %c0_93] : memref<1x384xf32, #tpu.memory_space<vmem>>, vector<1x384xf32>
    %c0_94 = arith.constant 0 : index
    %c0_95 = arith.constant 0 : index
    %233 = vector.load %arg15[%c0_94, %c0_95] : memref<128x32xbf16, #tpu.memory_space<vmem>>, vector<128x32xbf16>
    %c0_96 = arith.constant 0 : index
    %c0_97 = arith.constant 0 : index
    %234 = vector.load %arg16[%c0_96, %c0_97] : memref<1x32xf32, #tpu.memory_space<vmem>>, vector<1x32xf32>
    %c0_98 = arith.constant 0 : index
    %c0_99 = arith.constant 0 : index
    %235 = vector.load %arg17[%c0_98, %c0_99] : memref<1x32xf32, #tpu.memory_space<vmem>>, vector<1x32xf32>
    %c0_100 = arith.constant 0 : index
    %c0_101 = arith.constant 0 : index
    %236 = vector.load %arg18[%c0_100, %c0_101] : memref<1x32xf32, #tpu.memory_space<vmem>>, vector<1x32xf32>
    %c0_102 = arith.constant 0 : index
    %c0_103 = arith.constant 0 : index
    %237 = vector.load %arg19[%c0_102, %c0_103] : memref<32x32xbf16, #tpu.memory_space<vmem>>, vector<32x32xbf16>
    %c0_104 = arith.constant 0 : index
    %c0_105 = arith.constant 0 : index
    %238 = vector.load %arg20[%c0_104, %c0_105] : memref<1x32xf32, #tpu.memory_space<vmem>>, vector<1x32xf32>
    %c0_106 = arith.constant 0 : index
    %c0_107 = arith.constant 0 : index
    %239 = vector.load %arg21[%c0_106, %c0_107] : memref<32x16xbf16, #tpu.memory_space<vmem>>, vector<32x16xbf16>
    %c0_108 = arith.constant 0 : index
    %c0_109 = arith.constant 0 : index
    %240 = vector.load %arg22[%c0_108, %c0_109] : memref<1x16xf32, #tpu.memory_space<vmem>>, vector<1x16xf32>
    %241 = arith.truncf %230 : vector<16x32xf32> to vector<16x32xbf16>
    %cst_110 = arith.constant dense<0.000000e+00> : vector<16x384xf32>
    %242 = tpu.matmul %241, %231, %cst_110 {dimension_numbers = #tpu.dot_dimension_numbers<[1], [0], [0], [1], [0, 0, 1, 1], [], []>} : vector<16x32xbf16>, vector<32x384xbf16>, vector<16x384xf32> -> vector<16x384xf32>
    %243 = vector.broadcast %232 : vector<1x384xf32> to vector<16x384xf32>
    %244 = arith.addf %242, %243 : vector<16x384xf32>
    %245 = vector.extract_strided_slice %244 {offsets = [0, 0], sizes = [16, 128], strides = [1, 1]} : vector<16x384xf32> to vector<16x128xf32>
    %cst_111 = arith.constant 0.353553385 : f32
    %246 = vector.broadcast %cst_111 : f32 to vector<16x128xf32>
    %247 = arith.mulf %245, %246 : vector<16x128xf32>
    %248 = vector.extract_strided_slice %244 {offsets = [0, 128], sizes = [16, 128], strides = [1, 1]} : vector<16x384xf32> to vector<16x128xf32>
    %249 = vector.extract_strided_slice %244 {offsets = [0, 256], sizes = [16, 128], strides = [1, 1]} : vector<16x384xf32> to vector<16x128xf32>
    %250 = tpu.iota {dimensions = array<i32: 1>} : vector<16x128xi32>
    %c0_i32_112 = arith.constant 0 : i32
    %251 = vector.broadcast %c0_i32_112 : i32 to vector<16x128xi32>
    %252 = arith.cmpi sge, %250, %251 : vector<16x128xi32>
    %c8_i32 = arith.constant 8 : i32
    %253 = vector.broadcast %c8_i32 : i32 to vector<16x128xi32>
    %254 = arith.cmpi slt, %250, %253 : vector<16x128xi32>
    %255 = arith.andi %252, %254 : vector<16x128xi1>
    %cst_113 = arith.constant 0.000000e+00 : f32
    %256 = vector.broadcast %cst_113 : f32 to vector<16x128xf32>
    %257 = arith.select %255, %247, %256 : vector<16x128xi1>, vector<16x128xf32>
    %c8_i32_114 = arith.constant 8 : i32
    %258 = vector.broadcast %c8_i32_114 : i32 to vector<16x128xi32>
    %259 = arith.cmpi sge, %250, %258 : vector<16x128xi32>
    %c16_i32_115 = arith.constant 16 : i32
    %260 = vector.broadcast %c16_i32_115 : i32 to vector<16x128xi32>
    %261 = arith.cmpi slt, %250, %260 : vector<16x128xi32>
    %262 = arith.andi %259, %261 : vector<16x128xi1>
    %cst_116 = arith.constant 0.000000e+00 : f32
    %263 = vector.broadcast %cst_116 : f32 to vector<16x128xf32>
    %264 = arith.select %262, %247, %263 : vector<16x128xi1>, vector<16x128xf32>
    %c16_i32_117 = arith.constant 16 : i32
    %265 = vector.broadcast %c16_i32_117 : i32 to vector<16x128xi32>
    %266 = arith.cmpi sge, %250, %265 : vector<16x128xi32>
    %c24_i32 = arith.constant 24 : i32
    %267 = vector.broadcast %c24_i32 : i32 to vector<16x128xi32>
    %268 = arith.cmpi slt, %250, %267 : vector<16x128xi32>
    %269 = arith.andi %266, %268 : vector<16x128xi1>
    %cst_118 = arith.constant 0.000000e+00 : f32
    %270 = vector.broadcast %cst_118 : f32 to vector<16x128xf32>
    %271 = arith.select %269, %247, %270 : vector<16x128xi1>, vector<16x128xf32>
    %c24_i32_119 = arith.constant 24 : i32
    %272 = vector.broadcast %c24_i32_119 : i32 to vector<16x128xi32>
    %273 = arith.cmpi sge, %250, %272 : vector<16x128xi32>
    %c32_i32_120 = arith.constant 32 : i32
    %274 = vector.broadcast %c32_i32_120 : i32 to vector<16x128xi32>
    %275 = arith.cmpi slt, %250, %274 : vector<16x128xi32>
    %276 = arith.andi %273, %275 : vector<16x128xi1>
    %cst_121 = arith.constant 0.000000e+00 : f32
    %277 = vector.broadcast %cst_121 : f32 to vector<16x128xf32>
    %278 = arith.select %276, %247, %277 : vector<16x128xi1>, vector<16x128xf32>
    %279 = tpu.concatenate %257, %264, %271, %278 in 0 : vector<16x128xf32>, vector<16x128xf32>, vector<16x128xf32>, vector<16x128xf32> -> vector<64x128xf32>
    %c0_i32_122 = arith.constant 0 : i32
    %280 = vector.broadcast %c0_i32_122 : i32 to vector<16x128xi32>
    %281 = arith.cmpi sge, %250, %280 : vector<16x128xi32>
    %c8_i32_123 = arith.constant 8 : i32
    %282 = vector.broadcast %c8_i32_123 : i32 to vector<16x128xi32>
    %283 = arith.cmpi slt, %250, %282 : vector<16x128xi32>
    %284 = arith.andi %281, %283 : vector<16x128xi1>
    %cst_124 = arith.constant 0.000000e+00 : f32
    %285 = vector.broadcast %cst_124 : f32 to vector<16x128xf32>
    %286 = arith.select %284, %248, %285 : vector<16x128xi1>, vector<16x128xf32>
    %c8_i32_125 = arith.constant 8 : i32
    %287 = vector.broadcast %c8_i32_125 : i32 to vector<16x128xi32>
    %288 = arith.cmpi sge, %250, %287 : vector<16x128xi32>
    %c16_i32_126 = arith.constant 16 : i32
    %289 = vector.broadcast %c16_i32_126 : i32 to vector<16x128xi32>
    %290 = arith.cmpi slt, %250, %289 : vector<16x128xi32>
    %291 = arith.andi %288, %290 : vector<16x128xi1>
    %cst_127 = arith.constant 0.000000e+00 : f32
    %292 = vector.broadcast %cst_127 : f32 to vector<16x128xf32>
    %293 = arith.select %291, %248, %292 : vector<16x128xi1>, vector<16x128xf32>
    %c16_i32_128 = arith.constant 16 : i32
    %294 = vector.broadcast %c16_i32_128 : i32 to vector<16x128xi32>
    %295 = arith.cmpi sge, %250, %294 : vector<16x128xi32>
    %c24_i32_129 = arith.constant 24 : i32
    %296 = vector.broadcast %c24_i32_129 : i32 to vector<16x128xi32>
    %297 = arith.cmpi slt, %250, %296 : vector<16x128xi32>
    %298 = arith.andi %295, %297 : vector<16x128xi1>
    %cst_130 = arith.constant 0.000000e+00 : f32
    %299 = vector.broadcast %cst_130 : f32 to vector<16x128xf32>
    %300 = arith.select %298, %248, %299 : vector<16x128xi1>, vector<16x128xf32>
    %c24_i32_131 = arith.constant 24 : i32
    %301 = vector.broadcast %c24_i32_131 : i32 to vector<16x128xi32>
    %302 = arith.cmpi sge, %250, %301 : vector<16x128xi32>
    %c32_i32_132 = arith.constant 32 : i32
    %303 = vector.broadcast %c32_i32_132 : i32 to vector<16x128xi32>
    %304 = arith.cmpi slt, %250, %303 : vector<16x128xi32>
    %305 = arith.andi %302, %304 : vector<16x128xi1>
    %cst_133 = arith.constant 0.000000e+00 : f32
    %306 = vector.broadcast %cst_133 : f32 to vector<16x128xf32>
    %307 = arith.select %305, %248, %306 : vector<16x128xi1>, vector<16x128xf32>
    %308 = tpu.concatenate %286, %293, %300, %307 in 0 : vector<16x128xf32>, vector<16x128xf32>, vector<16x128xf32>, vector<16x128xf32> -> vector<64x128xf32>
    %c0_i32_134 = arith.constant 0 : i32
    %309 = vector.broadcast %c0_i32_134 : i32 to vector<16x128xi32>
    %310 = arith.cmpi sge, %250, %309 : vector<16x128xi32>
    %c8_i32_135 = arith.constant 8 : i32
    %311 = vector.broadcast %c8_i32_135 : i32 to vector<16x128xi32>
    %312 = arith.cmpi slt, %250, %311 : vector<16x128xi32>
    %313 = arith.andi %310, %312 : vector<16x128xi1>
    %cst_136 = arith.constant 0.000000e+00 : f32
    %314 = vector.broadcast %cst_136 : f32 to vector<16x128xf32>
    %315 = arith.select %313, %249, %314 : vector<16x128xi1>, vector<16x128xf32>
    %c8_i32_137 = arith.constant 8 : i32
    %316 = vector.broadcast %c8_i32_137 : i32 to vector<16x128xi32>
    %317 = arith.cmpi sge, %250, %316 : vector<16x128xi32>
    %c16_i32_138 = arith.constant 16 : i32
    %318 = vector.broadcast %c16_i32_138 : i32 to vector<16x128xi32>
    %319 = arith.cmpi slt, %250, %318 : vector<16x128xi32>
    %320 = arith.andi %317, %319 : vector<16x128xi1>
    %cst_139 = arith.constant 0.000000e+00 : f32
    %321 = vector.broadcast %cst_139 : f32 to vector<16x128xf32>
    %322 = arith.select %320, %249, %321 : vector<16x128xi1>, vector<16x128xf32>
    %c16_i32_140 = arith.constant 16 : i32
    %323 = vector.broadcast %c16_i32_140 : i32 to vector<16x128xi32>
    %324 = arith.cmpi sge, %250, %323 : vector<16x128xi32>
    %c24_i32_141 = arith.constant 24 : i32
    %325 = vector.broadcast %c24_i32_141 : i32 to vector<16x128xi32>
    %326 = arith.cmpi slt, %250, %325 : vector<16x128xi32>
    %327 = arith.andi %324, %326 : vector<16x128xi1>
    %cst_142 = arith.constant 0.000000e+00 : f32
    %328 = vector.broadcast %cst_142 : f32 to vector<16x128xf32>
    %329 = arith.select %327, %249, %328 : vector<16x128xi1>, vector<16x128xf32>
    %c24_i32_143 = arith.constant 24 : i32
    %330 = vector.broadcast %c24_i32_143 : i32 to vector<16x128xi32>
    %331 = arith.cmpi sge, %250, %330 : vector<16x128xi32>
    %c32_i32_144 = arith.constant 32 : i32
    %332 = vector.broadcast %c32_i32_144 : i32 to vector<16x128xi32>
    %333 = arith.cmpi slt, %250, %332 : vector<16x128xi32>
    %334 = arith.andi %331, %333 : vector<16x128xi1>
    %cst_145 = arith.constant 0.000000e+00 : f32
    %335 = vector.broadcast %cst_145 : f32 to vector<16x128xf32>
    %336 = arith.select %334, %249, %335 : vector<16x128xi1>, vector<16x128xf32>
    %337 = tpu.concatenate %315, %322, %329, %336 in 0 : vector<16x128xf32>, vector<16x128xf32>, vector<16x128xf32>, vector<16x128xf32> -> vector<64x128xf32>
    %338 = tpu.iota {dimensions = array<i32: 0>} : vector<64x64xi32>
    %339 = tpu.iota {dimensions = array<i32: 1>} : vector<64x64xi32>
    %c4_i32_146 = arith.constant 4 : i32
    %340 = vector.broadcast %c4_i32_146 : i32 to vector<64x64xi32>
    %341 = arith.shrsi %338, %340 : vector<64x64xi32>
    %c4_i32_147 = arith.constant 4 : i32
    %342 = vector.broadcast %c4_i32_147 : i32 to vector<64x64xi32>
    %343 = arith.shrsi %339, %342 : vector<64x64xi32>
    %344 = arith.cmpi eq, %341, %343 : vector<64x64xi32>
    %c1_i32_148 = arith.constant 1 : i32
    %345 = vector.broadcast %c1_i32_148 : i32 to vector<64x64xi32>
    %346 = arith.andi %338, %345 : vector<64x64xi32>
    %c1_i32_149 = arith.constant 1 : i32
    %347 = vector.broadcast %c1_i32_149 : i32 to vector<64x64xi32>
    %348 = arith.andi %339, %347 : vector<64x64xi32>
    %349 = arith.cmpi eq, %346, %348 : vector<64x64xi32>
    %350 = arith.andi %344, %349 : vector<64x64xi1>
    %351 = arith.truncf %279 : vector<64x128xf32> to vector<64x128xbf16>
    %352 = arith.truncf %308 : vector<64x128xf32> to vector<64x128xbf16>
    %cst_150 = arith.constant dense<0.000000e+00> : vector<64x64xf32>
    %353 = tpu.matmul %351, %352, %cst_150 {dimension_numbers = #tpu.dot_dimension_numbers<[1], [1], [0], [0], [0, 0, 1, 0], [], []>} : vector<64x128xbf16>, vector<64x128xbf16>, vector<64x64xf32> -> vector<64x64xf32>
    %cst_151 = arith.constant -1.000000e+30 : f32
    %354 = vector.broadcast %cst_151 : f32 to vector<64x64xf32>
    %355 = arith.select %350, %353, %354 : vector<64x64xi1>, vector<64x64xf32>
    %cst_152 = arith.constant dense<0xFF800000> : vector<64xf32>
    %356 = vector.multi_reduction <maximumf>, %355, %cst_152 [1] : vector<64x64xf32> to vector<64xf32>
    %357 = vector.shape_cast %356 : vector<64xf32> to vector<64x1xf32>
    %358 = vector.broadcast %357 : vector<64x1xf32> to vector<64x64xf32>
    %359 = arith.subf %355, %358 : vector<64x64xf32>
    %360 = math.exp %359 : vector<64x64xf32>
    %cst_153 = arith.constant dense<0.000000e+00> : vector<64xf32>
    %361 = vector.multi_reduction <add>, %360, %cst_153 [1] : vector<64x64xf32> to vector<64xf32>
    %362 = vector.shape_cast %361 : vector<64xf32> to vector<64x1xf32>
    %363 = tpu.reciprocal %362 {approx = true} : vector<64x1xf32> -> vector<64x1xf32>
    %364 = vector.broadcast %363 : vector<64x1xf32> to vector<64x64xf32>
    %365 = arith.mulf %360, %364 : vector<64x64xf32>
    %366 = arith.truncf %365 : vector<64x64xf32> to vector<64x64xbf16>
    %367 = arith.truncf %337 : vector<64x128xf32> to vector<64x128xbf16>
    %cst_154 = arith.constant dense<0.000000e+00> : vector<64x128xf32>
    %368 = tpu.matmul %366, %367, %cst_154 {dimension_numbers = #tpu.dot_dimension_numbers<[1], [0], [0], [1], [0, 0, 1, 1], [], []>} : vector<64x64xbf16>, vector<64x128xbf16>, vector<64x128xf32> -> vector<64x128xf32>
    %369 = vector.extract_strided_slice %368 {offsets = [0, 0], sizes = [16, 128], strides = [1, 1]} : vector<64x128xf32> to vector<16x128xf32>
    %370 = vector.extract_strided_slice %368 {offsets = [16, 0], sizes = [16, 128], strides = [1, 1]} : vector<64x128xf32> to vector<16x128xf32>
    %371 = arith.addf %369, %370 : vector<16x128xf32>
    %372 = vector.extract_strided_slice %368 {offsets = [32, 0], sizes = [16, 128], strides = [1, 1]} : vector<64x128xf32> to vector<16x128xf32>
    %373 = arith.addf %371, %372 : vector<16x128xf32>
    %374 = vector.extract_strided_slice %368 {offsets = [48, 0], sizes = [16, 128], strides = [1, 1]} : vector<64x128xf32> to vector<16x128xf32>
    %375 = arith.addf %373, %374 : vector<16x128xf32>
    %376 = arith.truncf %375 : vector<16x128xf32> to vector<16x128xbf16>
    %cst_155 = arith.constant dense<0.000000e+00> : vector<16x32xf32>
    %377 = tpu.matmul %376, %233, %cst_155 {dimension_numbers = #tpu.dot_dimension_numbers<[1], [0], [0], [1], [0, 0, 1, 1], [], []>} : vector<16x128xbf16>, vector<128x32xbf16>, vector<16x32xf32> -> vector<16x32xf32>
    %378 = vector.broadcast %234 : vector<1x32xf32> to vector<16x32xf32>
    %379 = arith.addf %377, %378 : vector<16x32xf32>
    %380 = arith.addf %230, %379 : vector<16x32xf32>
    %cst_156 = arith.constant dense<0.000000e+00> : vector<16xf32>
    %381 = vector.multi_reduction <add>, %380, %cst_156 [1] : vector<16x32xf32> to vector<16xf32>
    %382 = vector.shape_cast %381 : vector<16xf32> to vector<16x1xf32>
    %cst_157 = arith.constant 3.200000e+01 : f32
    %383 = vector.broadcast %cst_157 : f32 to vector<16x1xf32>
    %384 = arith.divf %382, %383 : vector<16x1xf32>
    %385 = vector.broadcast %384 : vector<16x1xf32> to vector<16x32xf32>
    %386 = arith.subf %380, %385 : vector<16x32xf32>
    %387 = arith.mulf %386, %386 : vector<16x32xf32>
    %cst_158 = arith.constant dense<0.000000e+00> : vector<16xf32>
    %388 = vector.multi_reduction <add>, %387, %cst_158 [1] : vector<16x32xf32> to vector<16xf32>
    %389 = vector.shape_cast %388 : vector<16xf32> to vector<16x1xf32>
    %cst_159 = arith.constant 3.200000e+01 : f32
    %390 = vector.broadcast %cst_159 : f32 to vector<16x1xf32>
    %391 = arith.divf %389, %390 : vector<16x1xf32>
    %cst_160 = arith.constant 9.99999974E-6 : f32
    %392 = vector.broadcast %cst_160 : f32 to vector<16x1xf32>
    %393 = arith.addf %391, %392 : vector<16x1xf32>
    %394 = math.rsqrt %393 : vector<16x1xf32>
    %395 = vector.broadcast %394 : vector<16x1xf32> to vector<16x32xf32>
    %396 = arith.mulf %386, %395 : vector<16x32xf32>
    %397 = vector.broadcast %235 : vector<1x32xf32> to vector<16x32xf32>
    %398 = arith.mulf %396, %397 : vector<16x32xf32>
    %399 = vector.broadcast %236 : vector<1x32xf32> to vector<16x32xf32>
    %400 = arith.addf %398, %399 : vector<16x32xf32>
    %401 = arith.truncf %400 : vector<16x32xf32> to vector<16x32xbf16>
    %cst_161 = arith.constant dense<0.000000e+00> : vector<16x32xf32>
    %402 = tpu.matmul %401, %237, %cst_161 {dimension_numbers = #tpu.dot_dimension_numbers<[1], [0], [0], [1], [0, 0, 1, 1], [], []>} : vector<16x32xbf16>, vector<32x32xbf16>, vector<16x32xf32> -> vector<16x32xf32>
    %403 = vector.broadcast %238 : vector<1x32xf32> to vector<16x32xf32>
    %404 = arith.addf %402, %403 : vector<16x32xf32>
    %cst_162 = arith.constant 5.000000e-01 : f32
    %405 = vector.broadcast %cst_162 : f32 to vector<16x32xf32>
    %406 = arith.mulf %405, %404 : vector<16x32xf32>
    %cst_163 = arith.constant 0.707106769 : f32
    %407 = vector.broadcast %cst_163 : f32 to vector<16x32xf32>
    %408 = arith.mulf %404, %407 : vector<16x32xf32>
    %cst_164 = arith.constant -4.000000e+00 : f32
    %cst_165 = arith.constant 4.000000e+00 : f32
    %409 = vector.broadcast %cst_164 : f32 to vector<16x32xf32>
    %410 = arith.maximumf %409, %408 : vector<16x32xf32>
    %411 = vector.broadcast %cst_165 : f32 to vector<16x32xf32>
    %412 = arith.minimumf %411, %410 : vector<16x32xf32>
    %413 = arith.mulf %412, %412 : vector<16x32xf32>
    %cst_166 = arith.constant -2.72614237E-10 : f32
    %414 = vector.broadcast %cst_166 : f32 to vector<16x32xf32>
    %415 = arith.mulf %414, %413 : vector<16x32xf32>
    %cst_167 = arith.constant 2.77068146E-8 : f32
    %416 = vector.broadcast %cst_167 : f32 to vector<16x32xf32>
    %417 = arith.addf %415, %416 : vector<16x32xf32>
    %418 = arith.mulf %417, %413 : vector<16x32xf32>
    %cst_168 = arith.constant -2.10102394E-6 : f32
    %419 = vector.broadcast %cst_168 : f32 to vector<16x32xf32>
    %420 = arith.addf %418, %419 : vector<16x32xf32>
    %421 = arith.mulf %420, %413 : vector<16x32xf32>
    %cst_169 = arith.constant -5.69250624E-5 : f32
    %422 = vector.broadcast %cst_169 : f32 to vector<16x32xf32>
    %423 = arith.addf %421, %422 : vector<16x32xf32>
    %424 = arith.mulf %423, %413 : vector<16x32xf32>
    %cst_170 = arith.constant -7.34990637E-4 : f32
    %425 = vector.broadcast %cst_170 : f32 to vector<16x32xf32>
    %426 = arith.addf %424, %425 : vector<16x32xf32>
    %427 = arith.mulf %426, %413 : vector<16x32xf32>
    %cst_171 = arith.constant -2.954600e-03 : f32
    %428 = vector.broadcast %cst_171 : f32 to vector<16x32xf32>
    %429 = arith.addf %427, %428 : vector<16x32xf32>
    %430 = arith.mulf %429, %413 : vector<16x32xf32>
    %cst_172 = arith.constant -0.0160960332 : f32
    %431 = vector.broadcast %cst_172 : f32 to vector<16x32xf32>
    %432 = arith.addf %430, %431 : vector<16x32xf32>
    %cst_173 = arith.constant -1.45660715E-5 : f32
    %433 = vector.broadcast %cst_173 : f32 to vector<16x32xf32>
    %434 = arith.mulf %433, %413 : vector<16x32xf32>
    %cst_174 = arith.constant -2.13374049E-4 : f32
    %435 = vector.broadcast %cst_174 : f32 to vector<16x32xf32>
    %436 = arith.addf %434, %435 : vector<16x32xf32>
    %437 = arith.mulf %436, %413 : vector<16x32xf32>
    %cst_175 = arith.constant -0.00168282702 : f32
    %438 = vector.broadcast %cst_175 : f32 to vector<16x32xf32>
    %439 = arith.addf %437, %438 : vector<16x32xf32>
    %440 = arith.mulf %439, %413 : vector<16x32xf32>
    %cst_176 = arith.constant -0.00737332925 : f32
    %441 = vector.broadcast %cst_176 : f32 to vector<16x32xf32>
    %442 = arith.addf %440, %441 : vector<16x32xf32>
    %443 = arith.mulf %442, %413 : vector<16x32xf32>
    %cst_177 = arith.constant -0.0142647391 : f32
    %444 = vector.broadcast %cst_177 : f32 to vector<16x32xf32>
    %445 = arith.addf %443, %444 : vector<16x32xf32>
    %446 = arith.mulf %412, %432 : vector<16x32xf32>
    %447 = arith.divf %446, %445 : vector<16x32xf32>
    %cst_178 = arith.constant 1.000000e+00 : f32
    %448 = vector.broadcast %cst_178 : f32 to vector<16x32xf32>
    %449 = arith.addf %448, %447 : vector<16x32xf32>
    %450 = arith.mulf %406, %449 : vector<16x32xf32>
    %451 = arith.truncf %450 : vector<16x32xf32> to vector<16x32xbf16>
    %cst_179 = arith.constant dense<0.000000e+00> : vector<16x16xf32>
    %452 = tpu.matmul %451, %239, %cst_179 {dimension_numbers = #tpu.dot_dimension_numbers<[1], [0], [0], [1], [0, 0, 1, 1], [], []>} : vector<16x32xbf16>, vector<32x16xbf16>, vector<16x16xf32> -> vector<16x16xf32>
    %453 = vector.broadcast %240 : vector<1x16xf32> to vector<16x16xf32>
    %454 = arith.addf %452, %453 : vector<16x16xf32>
    %c0_180 = arith.constant 0 : index
    %c0_181 = arith.constant 0 : index
    %455 = vector.load %arg23[%c0_180, %c0_181] : memref<16x384xbf16, #tpu.memory_space<vmem>>, vector<16x384xbf16>
    %c0_182 = arith.constant 0 : index
    %c0_183 = arith.constant 0 : index
    %456 = vector.load %arg24[%c0_182, %c0_183] : memref<1x384xf32, #tpu.memory_space<vmem>>, vector<1x384xf32>
    %c0_184 = arith.constant 0 : index
    %c0_185 = arith.constant 0 : index
    %457 = vector.load %arg25[%c0_184, %c0_185] : memref<128x16xbf16, #tpu.memory_space<vmem>>, vector<128x16xbf16>
    %c0_186 = arith.constant 0 : index
    %c0_187 = arith.constant 0 : index
    %458 = vector.load %arg26[%c0_186, %c0_187] : memref<1x16xf32, #tpu.memory_space<vmem>>, vector<1x16xf32>
    %c0_188 = arith.constant 0 : index
    %c0_189 = arith.constant 0 : index
    %459 = vector.load %arg27[%c0_188, %c0_189] : memref<1x16xf32, #tpu.memory_space<vmem>>, vector<1x16xf32>
    %c0_190 = arith.constant 0 : index
    %c0_191 = arith.constant 0 : index
    %460 = vector.load %arg28[%c0_190, %c0_191] : memref<1x16xf32, #tpu.memory_space<vmem>>, vector<1x16xf32>
    %c0_192 = arith.constant 0 : index
    %c0_193 = arith.constant 0 : index
    %461 = vector.load %arg29[%c0_192, %c0_193] : memref<16x32xbf16, #tpu.memory_space<vmem>>, vector<16x32xbf16>
    %c0_194 = arith.constant 0 : index
    %c0_195 = arith.constant 0 : index
    %462 = vector.load %arg30[%c0_194, %c0_195] : memref<1x32xf32, #tpu.memory_space<vmem>>, vector<1x32xf32>
    %c0_196 = arith.constant 0 : index
    %c0_197 = arith.constant 0 : index
    %463 = vector.load %arg31[%c0_196, %c0_197] : memref<32x16xbf16, #tpu.memory_space<vmem>>, vector<32x16xbf16>
    %c0_198 = arith.constant 0 : index
    %c0_199 = arith.constant 0 : index
    %464 = vector.load %arg32[%c0_198, %c0_199] : memref<1x16xf32, #tpu.memory_space<vmem>>, vector<1x16xf32>
    %465 = arith.truncf %454 : vector<16x16xf32> to vector<16x16xbf16>
    %cst_200 = arith.constant dense<0.000000e+00> : vector<16x384xf32>
    %466 = tpu.matmul %465, %455, %cst_200 {dimension_numbers = #tpu.dot_dimension_numbers<[1], [0], [0], [1], [0, 0, 1, 1], [], []>} : vector<16x16xbf16>, vector<16x384xbf16>, vector<16x384xf32> -> vector<16x384xf32>
    %467 = vector.broadcast %456 : vector<1x384xf32> to vector<16x384xf32>
    %468 = arith.addf %466, %467 : vector<16x384xf32>
    %469 = vector.extract_strided_slice %468 {offsets = [0, 0], sizes = [16, 128], strides = [1, 1]} : vector<16x384xf32> to vector<16x128xf32>
    %cst_201 = arith.constant 5.000000e-01 : f32
    %470 = vector.broadcast %cst_201 : f32 to vector<16x128xf32>
    %471 = arith.mulf %469, %470 : vector<16x128xf32>
    %472 = vector.extract_strided_slice %468 {offsets = [0, 128], sizes = [16, 128], strides = [1, 1]} : vector<16x384xf32> to vector<16x128xf32>
    %473 = vector.extract_strided_slice %468 {offsets = [0, 256], sizes = [16, 128], strides = [1, 1]} : vector<16x384xf32> to vector<16x128xf32>
    %474 = tpu.iota {dimensions = array<i32: 1>} : vector<16x128xi32>
    %c0_i32_202 = arith.constant 0 : i32
    %475 = vector.broadcast %c0_i32_202 : i32 to vector<16x128xi32>
    %476 = arith.cmpi sge, %474, %475 : vector<16x128xi32>
    %c4_i32_203 = arith.constant 4 : i32
    %477 = vector.broadcast %c4_i32_203 : i32 to vector<16x128xi32>
    %478 = arith.cmpi slt, %474, %477 : vector<16x128xi32>
    %479 = arith.andi %476, %478 : vector<16x128xi1>
    %cst_204 = arith.constant 0.000000e+00 : f32
    %480 = vector.broadcast %cst_204 : f32 to vector<16x128xf32>
    %481 = arith.select %479, %471, %480 : vector<16x128xi1>, vector<16x128xf32>
    %c4_i32_205 = arith.constant 4 : i32
    %482 = vector.broadcast %c4_i32_205 : i32 to vector<16x128xi32>
    %483 = arith.cmpi sge, %474, %482 : vector<16x128xi32>
    %c8_i32_206 = arith.constant 8 : i32
    %484 = vector.broadcast %c8_i32_206 : i32 to vector<16x128xi32>
    %485 = arith.cmpi slt, %474, %484 : vector<16x128xi32>
    %486 = arith.andi %483, %485 : vector<16x128xi1>
    %cst_207 = arith.constant 0.000000e+00 : f32
    %487 = vector.broadcast %cst_207 : f32 to vector<16x128xf32>
    %488 = arith.select %486, %471, %487 : vector<16x128xi1>, vector<16x128xf32>
    %c8_i32_208 = arith.constant 8 : i32
    %489 = vector.broadcast %c8_i32_208 : i32 to vector<16x128xi32>
    %490 = arith.cmpi sge, %474, %489 : vector<16x128xi32>
    %c12_i32 = arith.constant 12 : i32
    %491 = vector.broadcast %c12_i32 : i32 to vector<16x128xi32>
    %492 = arith.cmpi slt, %474, %491 : vector<16x128xi32>
    %493 = arith.andi %490, %492 : vector<16x128xi1>
    %cst_209 = arith.constant 0.000000e+00 : f32
    %494 = vector.broadcast %cst_209 : f32 to vector<16x128xf32>
    %495 = arith.select %493, %471, %494 : vector<16x128xi1>, vector<16x128xf32>
    %c12_i32_210 = arith.constant 12 : i32
    %496 = vector.broadcast %c12_i32_210 : i32 to vector<16x128xi32>
    %497 = arith.cmpi sge, %474, %496 : vector<16x128xi32>
    %c16_i32_211 = arith.constant 16 : i32
    %498 = vector.broadcast %c16_i32_211 : i32 to vector<16x128xi32>
    %499 = arith.cmpi slt, %474, %498 : vector<16x128xi32>
    %500 = arith.andi %497, %499 : vector<16x128xi1>
    %cst_212 = arith.constant 0.000000e+00 : f32
    %501 = vector.broadcast %cst_212 : f32 to vector<16x128xf32>
    %502 = arith.select %500, %471, %501 : vector<16x128xi1>, vector<16x128xf32>
    %503 = tpu.concatenate %481, %488, %495, %502 in 0 : vector<16x128xf32>, vector<16x128xf32>, vector<16x128xf32>, vector<16x128xf32> -> vector<64x128xf32>
    %c0_i32_213 = arith.constant 0 : i32
    %504 = vector.broadcast %c0_i32_213 : i32 to vector<16x128xi32>
    %505 = arith.cmpi sge, %474, %504 : vector<16x128xi32>
    %c4_i32_214 = arith.constant 4 : i32
    %506 = vector.broadcast %c4_i32_214 : i32 to vector<16x128xi32>
    %507 = arith.cmpi slt, %474, %506 : vector<16x128xi32>
    %508 = arith.andi %505, %507 : vector<16x128xi1>
    %cst_215 = arith.constant 0.000000e+00 : f32
    %509 = vector.broadcast %cst_215 : f32 to vector<16x128xf32>
    %510 = arith.select %508, %472, %509 : vector<16x128xi1>, vector<16x128xf32>
    %c4_i32_216 = arith.constant 4 : i32
    %511 = vector.broadcast %c4_i32_216 : i32 to vector<16x128xi32>
    %512 = arith.cmpi sge, %474, %511 : vector<16x128xi32>
    %c8_i32_217 = arith.constant 8 : i32
    %513 = vector.broadcast %c8_i32_217 : i32 to vector<16x128xi32>
    %514 = arith.cmpi slt, %474, %513 : vector<16x128xi32>
    %515 = arith.andi %512, %514 : vector<16x128xi1>
    %cst_218 = arith.constant 0.000000e+00 : f32
    %516 = vector.broadcast %cst_218 : f32 to vector<16x128xf32>
    %517 = arith.select %515, %472, %516 : vector<16x128xi1>, vector<16x128xf32>
    %c8_i32_219 = arith.constant 8 : i32
    %518 = vector.broadcast %c8_i32_219 : i32 to vector<16x128xi32>
    %519 = arith.cmpi sge, %474, %518 : vector<16x128xi32>
    %c12_i32_220 = arith.constant 12 : i32
    %520 = vector.broadcast %c12_i32_220 : i32 to vector<16x128xi32>
    %521 = arith.cmpi slt, %474, %520 : vector<16x128xi32>
    %522 = arith.andi %519, %521 : vector<16x128xi1>
    %cst_221 = arith.constant 0.000000e+00 : f32
    %523 = vector.broadcast %cst_221 : f32 to vector<16x128xf32>
    %524 = arith.select %522, %472, %523 : vector<16x128xi1>, vector<16x128xf32>
    %c12_i32_222 = arith.constant 12 : i32
    %525 = vector.broadcast %c12_i32_222 : i32 to vector<16x128xi32>
    %526 = arith.cmpi sge, %474, %525 : vector<16x128xi32>
    %c16_i32_223 = arith.constant 16 : i32
    %527 = vector.broadcast %c16_i32_223 : i32 to vector<16x128xi32>
    %528 = arith.cmpi slt, %474, %527 : vector<16x128xi32>
    %529 = arith.andi %526, %528 : vector<16x128xi1>
    %cst_224 = arith.constant 0.000000e+00 : f32
    %530 = vector.broadcast %cst_224 : f32 to vector<16x128xf32>
    %531 = arith.select %529, %472, %530 : vector<16x128xi1>, vector<16x128xf32>
    %532 = tpu.concatenate %510, %517, %524, %531 in 0 : vector<16x128xf32>, vector<16x128xf32>, vector<16x128xf32>, vector<16x128xf32> -> vector<64x128xf32>
    %c0_i32_225 = arith.constant 0 : i32
    %533 = vector.broadcast %c0_i32_225 : i32 to vector<16x128xi32>
    %534 = arith.cmpi sge, %474, %533 : vector<16x128xi32>
    %c4_i32_226 = arith.constant 4 : i32
    %535 = vector.broadcast %c4_i32_226 : i32 to vector<16x128xi32>
    %536 = arith.cmpi slt, %474, %535 : vector<16x128xi32>
    %537 = arith.andi %534, %536 : vector<16x128xi1>
    %cst_227 = arith.constant 0.000000e+00 : f32
    %538 = vector.broadcast %cst_227 : f32 to vector<16x128xf32>
    %539 = arith.select %537, %473, %538 : vector<16x128xi1>, vector<16x128xf32>
    %c4_i32_228 = arith.constant 4 : i32
    %540 = vector.broadcast %c4_i32_228 : i32 to vector<16x128xi32>
    %541 = arith.cmpi sge, %474, %540 : vector<16x128xi32>
    %c8_i32_229 = arith.constant 8 : i32
    %542 = vector.broadcast %c8_i32_229 : i32 to vector<16x128xi32>
    %543 = arith.cmpi slt, %474, %542 : vector<16x128xi32>
    %544 = arith.andi %541, %543 : vector<16x128xi1>
    %cst_230 = arith.constant 0.000000e+00 : f32
    %545 = vector.broadcast %cst_230 : f32 to vector<16x128xf32>
    %546 = arith.select %544, %473, %545 : vector<16x128xi1>, vector<16x128xf32>
    %c8_i32_231 = arith.constant 8 : i32
    %547 = vector.broadcast %c8_i32_231 : i32 to vector<16x128xi32>
    %548 = arith.cmpi sge, %474, %547 : vector<16x128xi32>
    %c12_i32_232 = arith.constant 12 : i32
    %549 = vector.broadcast %c12_i32_232 : i32 to vector<16x128xi32>
    %550 = arith.cmpi slt, %474, %549 : vector<16x128xi32>
    %551 = arith.andi %548, %550 : vector<16x128xi1>
    %cst_233 = arith.constant 0.000000e+00 : f32
    %552 = vector.broadcast %cst_233 : f32 to vector<16x128xf32>
    %553 = arith.select %551, %473, %552 : vector<16x128xi1>, vector<16x128xf32>
    %c12_i32_234 = arith.constant 12 : i32
    %554 = vector.broadcast %c12_i32_234 : i32 to vector<16x128xi32>
    %555 = arith.cmpi sge, %474, %554 : vector<16x128xi32>
    %c16_i32_235 = arith.constant 16 : i32
    %556 = vector.broadcast %c16_i32_235 : i32 to vector<16x128xi32>
    %557 = arith.cmpi slt, %474, %556 : vector<16x128xi32>
    %558 = arith.andi %555, %557 : vector<16x128xi1>
    %cst_236 = arith.constant 0.000000e+00 : f32
    %559 = vector.broadcast %cst_236 : f32 to vector<16x128xf32>
    %560 = arith.select %558, %473, %559 : vector<16x128xi1>, vector<16x128xf32>
    %561 = tpu.concatenate %539, %546, %553, %560 in 0 : vector<16x128xf32>, vector<16x128xf32>, vector<16x128xf32>, vector<16x128xf32> -> vector<64x128xf32>
    %562 = tpu.iota {dimensions = array<i32: 0>} : vector<64x64xi32>
    %563 = tpu.iota {dimensions = array<i32: 1>} : vector<64x64xi32>
    %c4_i32_237 = arith.constant 4 : i32
    %564 = vector.broadcast %c4_i32_237 : i32 to vector<64x64xi32>
    %565 = arith.shrsi %562, %564 : vector<64x64xi32>
    %c4_i32_238 = arith.constant 4 : i32
    %566 = vector.broadcast %c4_i32_238 : i32 to vector<64x64xi32>
    %567 = arith.shrsi %563, %566 : vector<64x64xi32>
    %568 = arith.cmpi eq, %565, %567 : vector<64x64xi32>
    %c1_i32_239 = arith.constant 1 : i32
    %569 = vector.broadcast %c1_i32_239 : i32 to vector<64x64xi32>
    %570 = arith.andi %562, %569 : vector<64x64xi32>
    %c1_i32_240 = arith.constant 1 : i32
    %571 = vector.broadcast %c1_i32_240 : i32 to vector<64x64xi32>
    %572 = arith.andi %563, %571 : vector<64x64xi32>
    %573 = arith.cmpi eq, %570, %572 : vector<64x64xi32>
    %574 = arith.andi %568, %573 : vector<64x64xi1>
    %575 = arith.truncf %503 : vector<64x128xf32> to vector<64x128xbf16>
    %576 = arith.truncf %532 : vector<64x128xf32> to vector<64x128xbf16>
    %cst_241 = arith.constant dense<0.000000e+00> : vector<64x64xf32>
    %577 = tpu.matmul %575, %576, %cst_241 {dimension_numbers = #tpu.dot_dimension_numbers<[1], [1], [0], [0], [0, 0, 1, 0], [], []>} : vector<64x128xbf16>, vector<64x128xbf16>, vector<64x64xf32> -> vector<64x64xf32>
    %cst_242 = arith.constant -1.000000e+30 : f32
    %578 = vector.broadcast %cst_242 : f32 to vector<64x64xf32>
    %579 = arith.select %574, %577, %578 : vector<64x64xi1>, vector<64x64xf32>
    %cst_243 = arith.constant dense<0xFF800000> : vector<64xf32>
    %580 = vector.multi_reduction <maximumf>, %579, %cst_243 [1] : vector<64x64xf32> to vector<64xf32>
    %581 = vector.shape_cast %580 : vector<64xf32> to vector<64x1xf32>
    %582 = vector.broadcast %581 : vector<64x1xf32> to vector<64x64xf32>
    %583 = arith.subf %579, %582 : vector<64x64xf32>
    %584 = math.exp %583 : vector<64x64xf32>
    %cst_244 = arith.constant dense<0.000000e+00> : vector<64xf32>
    %585 = vector.multi_reduction <add>, %584, %cst_244 [1] : vector<64x64xf32> to vector<64xf32>
    %586 = vector.shape_cast %585 : vector<64xf32> to vector<64x1xf32>
    %587 = tpu.reciprocal %586 {approx = true} : vector<64x1xf32> -> vector<64x1xf32>
    %588 = vector.broadcast %587 : vector<64x1xf32> to vector<64x64xf32>
    %589 = arith.mulf %584, %588 : vector<64x64xf32>
    %590 = arith.truncf %589 : vector<64x64xf32> to vector<64x64xbf16>
    %591 = arith.truncf %561 : vector<64x128xf32> to vector<64x128xbf16>
    %cst_245 = arith.constant dense<0.000000e+00> : vector<64x128xf32>
    %592 = tpu.matmul %590, %591, %cst_245 {dimension_numbers = #tpu.dot_dimension_numbers<[1], [0], [0], [1], [0, 0, 1, 1], [], []>} : vector<64x64xbf16>, vector<64x128xbf16>, vector<64x128xf32> -> vector<64x128xf32>
    %593 = vector.extract_strided_slice %592 {offsets = [0, 0], sizes = [16, 128], strides = [1, 1]} : vector<64x128xf32> to vector<16x128xf32>
    %594 = vector.extract_strided_slice %592 {offsets = [16, 0], sizes = [16, 128], strides = [1, 1]} : vector<64x128xf32> to vector<16x128xf32>
    %595 = arith.addf %593, %594 : vector<16x128xf32>
    %596 = vector.extract_strided_slice %592 {offsets = [32, 0], sizes = [16, 128], strides = [1, 1]} : vector<64x128xf32> to vector<16x128xf32>
    %597 = arith.addf %595, %596 : vector<16x128xf32>
    %598 = vector.extract_strided_slice %592 {offsets = [48, 0], sizes = [16, 128], strides = [1, 1]} : vector<64x128xf32> to vector<16x128xf32>
    %599 = arith.addf %597, %598 : vector<16x128xf32>
    %600 = arith.truncf %599 : vector<16x128xf32> to vector<16x128xbf16>
    %cst_246 = arith.constant dense<0.000000e+00> : vector<16x16xf32>
    %601 = tpu.matmul %600, %457, %cst_246 {dimension_numbers = #tpu.dot_dimension_numbers<[1], [0], [0], [1], [0, 0, 1, 1], [], []>} : vector<16x128xbf16>, vector<128x16xbf16>, vector<16x16xf32> -> vector<16x16xf32>
    %602 = vector.broadcast %458 : vector<1x16xf32> to vector<16x16xf32>
    %603 = arith.addf %601, %602 : vector<16x16xf32>
    %604 = arith.addf %454, %603 : vector<16x16xf32>
    %cst_247 = arith.constant dense<0.000000e+00> : vector<16xf32>
    %605 = vector.multi_reduction <add>, %604, %cst_247 [1] : vector<16x16xf32> to vector<16xf32>
    %606 = vector.shape_cast %605 : vector<16xf32> to vector<16x1xf32>
    %cst_248 = arith.constant 1.600000e+01 : f32
    %607 = vector.broadcast %cst_248 : f32 to vector<16x1xf32>
    %608 = arith.divf %606, %607 : vector<16x1xf32>
    %609 = vector.broadcast %608 : vector<16x1xf32> to vector<16x16xf32>
    %610 = arith.subf %604, %609 : vector<16x16xf32>
    %611 = arith.mulf %610, %610 : vector<16x16xf32>
    %cst_249 = arith.constant dense<0.000000e+00> : vector<16xf32>
    %612 = vector.multi_reduction <add>, %611, %cst_249 [1] : vector<16x16xf32> to vector<16xf32>
    %613 = vector.shape_cast %612 : vector<16xf32> to vector<16x1xf32>
    %cst_250 = arith.constant 1.600000e+01 : f32
    %614 = vector.broadcast %cst_250 : f32 to vector<16x1xf32>
    %615 = arith.divf %613, %614 : vector<16x1xf32>
    %cst_251 = arith.constant 9.99999974E-6 : f32
    %616 = vector.broadcast %cst_251 : f32 to vector<16x1xf32>
    %617 = arith.addf %615, %616 : vector<16x1xf32>
    %618 = math.rsqrt %617 : vector<16x1xf32>
    %619 = vector.broadcast %618 : vector<16x1xf32> to vector<16x16xf32>
    %620 = arith.mulf %610, %619 : vector<16x16xf32>
    %621 = vector.broadcast %459 : vector<1x16xf32> to vector<16x16xf32>
    %622 = arith.mulf %620, %621 : vector<16x16xf32>
    %623 = vector.broadcast %460 : vector<1x16xf32> to vector<16x16xf32>
    %624 = arith.addf %622, %623 : vector<16x16xf32>
    %625 = arith.truncf %624 : vector<16x16xf32> to vector<16x16xbf16>
    %cst_252 = arith.constant dense<0.000000e+00> : vector<16x32xf32>
    %626 = tpu.matmul %625, %461, %cst_252 {dimension_numbers = #tpu.dot_dimension_numbers<[1], [0], [0], [1], [0, 0, 1, 1], [], []>} : vector<16x16xbf16>, vector<16x32xbf16>, vector<16x32xf32> -> vector<16x32xf32>
    %627 = vector.broadcast %462 : vector<1x32xf32> to vector<16x32xf32>
    %628 = arith.addf %626, %627 : vector<16x32xf32>
    %cst_253 = arith.constant 5.000000e-01 : f32
    %629 = vector.broadcast %cst_253 : f32 to vector<16x32xf32>
    %630 = arith.mulf %629, %628 : vector<16x32xf32>
    %cst_254 = arith.constant 0.707106769 : f32
    %631 = vector.broadcast %cst_254 : f32 to vector<16x32xf32>
    %632 = arith.mulf %628, %631 : vector<16x32xf32>
    %cst_255 = arith.constant -4.000000e+00 : f32
    %cst_256 = arith.constant 4.000000e+00 : f32
    %633 = vector.broadcast %cst_255 : f32 to vector<16x32xf32>
    %634 = arith.maximumf %633, %632 : vector<16x32xf32>
    %635 = vector.broadcast %cst_256 : f32 to vector<16x32xf32>
    %636 = arith.minimumf %635, %634 : vector<16x32xf32>
    %637 = arith.mulf %636, %636 : vector<16x32xf32>
    %cst_257 = arith.constant -2.72614237E-10 : f32
    %638 = vector.broadcast %cst_257 : f32 to vector<16x32xf32>
    %639 = arith.mulf %638, %637 : vector<16x32xf32>
    %cst_258 = arith.constant 2.77068146E-8 : f32
    %640 = vector.broadcast %cst_258 : f32 to vector<16x32xf32>
    %641 = arith.addf %639, %640 : vector<16x32xf32>
    %642 = arith.mulf %641, %637 : vector<16x32xf32>
    %cst_259 = arith.constant -2.10102394E-6 : f32
    %643 = vector.broadcast %cst_259 : f32 to vector<16x32xf32>
    %644 = arith.addf %642, %643 : vector<16x32xf32>
    %645 = arith.mulf %644, %637 : vector<16x32xf32>
    %cst_260 = arith.constant -5.69250624E-5 : f32
    %646 = vector.broadcast %cst_260 : f32 to vector<16x32xf32>
    %647 = arith.addf %645, %646 : vector<16x32xf32>
    %648 = arith.mulf %647, %637 : vector<16x32xf32>
    %cst_261 = arith.constant -7.34990637E-4 : f32
    %649 = vector.broadcast %cst_261 : f32 to vector<16x32xf32>
    %650 = arith.addf %648, %649 : vector<16x32xf32>
    %651 = arith.mulf %650, %637 : vector<16x32xf32>
    %cst_262 = arith.constant -2.954600e-03 : f32
    %652 = vector.broadcast %cst_262 : f32 to vector<16x32xf32>
    %653 = arith.addf %651, %652 : vector<16x32xf32>
    %654 = arith.mulf %653, %637 : vector<16x32xf32>
    %cst_263 = arith.constant -0.0160960332 : f32
    %655 = vector.broadcast %cst_263 : f32 to vector<16x32xf32>
    %656 = arith.addf %654, %655 : vector<16x32xf32>
    %cst_264 = arith.constant -1.45660715E-5 : f32
    %657 = vector.broadcast %cst_264 : f32 to vector<16x32xf32>
    %658 = arith.mulf %657, %637 : vector<16x32xf32>
    %cst_265 = arith.constant -2.13374049E-4 : f32
    %659 = vector.broadcast %cst_265 : f32 to vector<16x32xf32>
    %660 = arith.addf %658, %659 : vector<16x32xf32>
    %661 = arith.mulf %660, %637 : vector<16x32xf32>
    %cst_266 = arith.constant -0.00168282702 : f32
    %662 = vector.broadcast %cst_266 : f32 to vector<16x32xf32>
    %663 = arith.addf %661, %662 : vector<16x32xf32>
    %664 = arith.mulf %663, %637 : vector<16x32xf32>
    %cst_267 = arith.constant -0.00737332925 : f32
    %665 = vector.broadcast %cst_267 : f32 to vector<16x32xf32>
    %666 = arith.addf %664, %665 : vector<16x32xf32>
    %667 = arith.mulf %666, %637 : vector<16x32xf32>
    %cst_268 = arith.constant -0.0142647391 : f32
    %668 = vector.broadcast %cst_268 : f32 to vector<16x32xf32>
    %669 = arith.addf %667, %668 : vector<16x32xf32>
    %670 = arith.mulf %636, %656 : vector<16x32xf32>
    %671 = arith.divf %670, %669 : vector<16x32xf32>
    %cst_269 = arith.constant 1.000000e+00 : f32
    %672 = vector.broadcast %cst_269 : f32 to vector<16x32xf32>
    %673 = arith.addf %672, %671 : vector<16x32xf32>
    %674 = arith.mulf %630, %673 : vector<16x32xf32>
    %675 = arith.truncf %674 : vector<16x32xf32> to vector<16x32xbf16>
    %cst_270 = arith.constant dense<0.000000e+00> : vector<16x16xf32>
    %676 = tpu.matmul %675, %463, %cst_270 {dimension_numbers = #tpu.dot_dimension_numbers<[1], [0], [0], [1], [0, 0, 1, 1], [], []>} : vector<16x32xbf16>, vector<32x16xbf16>, vector<16x16xf32> -> vector<16x16xf32>
    %677 = vector.broadcast %464 : vector<1x16xf32> to vector<16x16xf32>
    %678 = arith.addf %676, %677 : vector<16x16xf32>
    %c0_271 = arith.constant 0 : index
    %c0_272 = arith.constant 0 : index
    %679 = vector.load %arg63[%c0_271, %c0_272] : memref<16x128xbf16, #tpu.memory_space<vmem>>, vector<16x128xbf16>
    %680 = arith.truncf %678 : vector<16x16xf32> to vector<16x16xbf16>
    %cst_273 = arith.constant dense<0.000000e+00> : vector<16x128xf32>
    %681 = tpu.matmul %680, %679, %cst_273 {dimension_numbers = #tpu.dot_dimension_numbers<[1], [0], [0], [1], [0, 0, 1, 1], [], []>} : vector<16x16xbf16>, vector<16x128xbf16>, vector<16x128xf32> -> vector<16x128xf32>
    %c0_274 = arith.constant 0 : index
    %c0_275 = arith.constant 0 : index
    %682 = vector.load %arg64[%c0_274, %c0_275] : memref<1x128xf32, #tpu.memory_space<vmem>>, vector<1x128xf32>
    %683 = vector.broadcast %682 : vector<1x128xf32> to vector<16x128xf32>
    %684 = arith.addf %681, %683 : vector<16x128xf32>
    %c0_276 = arith.constant 0 : index
    %c0_277 = arith.constant 0 : index
    %685 = vector.load %arg68[%c0_276, %c0_277] : memref<16x128xf32, #tpu.memory_space<vmem>>, vector<16x128xf32>
    tpu.vector_store %arg68[%c0_276, %c0_277], %684 {strides = array<i32>} : memref<16x128xf32, #tpu.memory_space<vmem>>, vector<16x128xf32>,
    %c0_278 = arith.constant 0 : index
    %c0_279 = arith.constant 0 : index
    %686 = vector.load %arg33[%c0_278, %c0_279] : memref<16x384xbf16, #tpu.memory_space<vmem>>, vector<16x384xbf16>
    %c0_280 = arith.constant 0 : index
    %c0_281 = arith.constant 0 : index
    %687 = vector.load %arg34[%c0_280, %c0_281] : memref<1x384xf32, #tpu.memory_space<vmem>>, vector<1x384xf32>
    %c0_282 = arith.constant 0 : index
    %c0_283 = arith.constant 0 : index
    %688 = vector.load %arg35[%c0_282, %c0_283] : memref<128x16xbf16, #tpu.memory_space<vmem>>, vector<128x16xbf16>
    %c0_284 = arith.constant 0 : index
    %c0_285 = arith.constant 0 : index
    %689 = vector.load %arg36[%c0_284, %c0_285] : memref<1x16xf32, #tpu.memory_space<vmem>>, vector<1x16xf32>
    %c0_286 = arith.constant 0 : index
    %c0_287 = arith.constant 0 : index
    %690 = vector.load %arg37[%c0_286, %c0_287] : memref<1x16xf32, #tpu.memory_space<vmem>>, vector<1x16xf32>
    %c0_288 = arith.constant 0 : index
    %c0_289 = arith.constant 0 : index
    %691 = vector.load %arg38[%c0_288, %c0_289] : memref<1x16xf32, #tpu.memory_space<vmem>>, vector<1x16xf32>
    %c0_290 = arith.constant 0 : index
    %c0_291 = arith.constant 0 : index
    %692 = vector.load %arg39[%c0_290, %c0_291] : memref<16x32xbf16, #tpu.memory_space<vmem>>, vector<16x32xbf16>
    %c0_292 = arith.constant 0 : index
    %c0_293 = arith.constant 0 : index
    %693 = vector.load %arg40[%c0_292, %c0_293] : memref<1x32xf32, #tpu.memory_space<vmem>>, vector<1x32xf32>
    %c0_294 = arith.constant 0 : index
    %c0_295 = arith.constant 0 : index
    %694 = vector.load %arg41[%c0_294, %c0_295] : memref<32x16xbf16, #tpu.memory_space<vmem>>, vector<32x16xbf16>
    %c0_296 = arith.constant 0 : index
    %c0_297 = arith.constant 0 : index
    %695 = vector.load %arg42[%c0_296, %c0_297] : memref<1x16xf32, #tpu.memory_space<vmem>>, vector<1x16xf32>
    %696 = arith.truncf %678 : vector<16x16xf32> to vector<16x16xbf16>
    %cst_298 = arith.constant dense<0.000000e+00> : vector<16x384xf32>
    %697 = tpu.matmul %696, %686, %cst_298 {dimension_numbers = #tpu.dot_dimension_numbers<[1], [0], [0], [1], [0, 0, 1, 1], [], []>} : vector<16x16xbf16>, vector<16x384xbf16>, vector<16x384xf32> -> vector<16x384xf32>
    %698 = vector.broadcast %687 : vector<1x384xf32> to vector<16x384xf32>
    %699 = arith.addf %697, %698 : vector<16x384xf32>
    %700 = vector.extract_strided_slice %699 {offsets = [0, 0], sizes = [16, 128], strides = [1, 1]} : vector<16x384xf32> to vector<16x128xf32>
    %cst_299 = arith.constant 2.500000e-01 : f32
    %701 = vector.broadcast %cst_299 : f32 to vector<16x128xf32>
    %702 = arith.mulf %700, %701 : vector<16x128xf32>
    %703 = vector.extract_strided_slice %699 {offsets = [0, 128], sizes = [16, 128], strides = [1, 1]} : vector<16x384xf32> to vector<16x128xf32>
    %704 = vector.extract_strided_slice %699 {offsets = [0, 256], sizes = [16, 128], strides = [1, 1]} : vector<16x384xf32> to vector<16x128xf32>
    %705 = tpu.iota {dimensions = array<i32: 1>} : vector<16x128xi32>
    %c0_i32_300 = arith.constant 0 : i32
    %706 = vector.broadcast %c0_i32_300 : i32 to vector<16x128xi32>
    %707 = arith.cmpi sge, %705, %706 : vector<16x128xi32>
    %c16_i32_301 = arith.constant 16 : i32
    %708 = vector.broadcast %c16_i32_301 : i32 to vector<16x128xi32>
    %709 = arith.cmpi slt, %705, %708 : vector<16x128xi32>
    %710 = arith.andi %707, %709 : vector<16x128xi1>
    %cst_302 = arith.constant 0.000000e+00 : f32
    %711 = vector.broadcast %cst_302 : f32 to vector<16x128xf32>
    %712 = arith.select %710, %702, %711 : vector<16x128xi1>, vector<16x128xf32>
    %c0_i32_303 = arith.constant 0 : i32
    %713 = vector.broadcast %c0_i32_303 : i32 to vector<16x128xi32>
    %714 = arith.cmpi sge, %705, %713 : vector<16x128xi32>
    %c16_i32_304 = arith.constant 16 : i32
    %715 = vector.broadcast %c16_i32_304 : i32 to vector<16x128xi32>
    %716 = arith.cmpi slt, %705, %715 : vector<16x128xi32>
    %717 = arith.andi %714, %716 : vector<16x128xi1>
    %cst_305 = arith.constant 0.000000e+00 : f32
    %718 = vector.broadcast %cst_305 : f32 to vector<16x128xf32>
    %719 = arith.select %717, %703, %718 : vector<16x128xi1>, vector<16x128xf32>
    %c0_i32_306 = arith.constant 0 : i32
    %720 = vector.broadcast %c0_i32_306 : i32 to vector<16x128xi32>
    %721 = arith.cmpi sge, %705, %720 : vector<16x128xi32>
    %c16_i32_307 = arith.constant 16 : i32
    %722 = vector.broadcast %c16_i32_307 : i32 to vector<16x128xi32>
    %723 = arith.cmpi slt, %705, %722 : vector<16x128xi32>
    %724 = arith.andi %721, %723 : vector<16x128xi1>
    %cst_308 = arith.constant 0.000000e+00 : f32
    %725 = vector.broadcast %cst_308 : f32 to vector<16x128xf32>
    %726 = arith.select %724, %704, %725 : vector<16x128xi1>, vector<16x128xf32>
    %727 = tpu.iota {dimensions = array<i32: 0>} : vector<16x16xi32>
    %728 = tpu.iota {dimensions = array<i32: 1>} : vector<16x16xi32>
    %c4_i32_309 = arith.constant 4 : i32
    %729 = vector.broadcast %c4_i32_309 : i32 to vector<16x16xi32>
    %730 = arith.shrsi %727, %729 : vector<16x16xi32>
    %c4_i32_310 = arith.constant 4 : i32
    %731 = vector.broadcast %c4_i32_310 : i32 to vector<16x16xi32>
    %732 = arith.shrsi %728, %731 : vector<16x16xi32>
    %733 = arith.cmpi eq, %730, %732 : vector<16x16xi32>
    %c1_i32_311 = arith.constant 1 : i32
    %734 = vector.broadcast %c1_i32_311 : i32 to vector<16x16xi32>
    %735 = arith.andi %727, %734 : vector<16x16xi32>
    %c1_i32_312 = arith.constant 1 : i32
    %736 = vector.broadcast %c1_i32_312 : i32 to vector<16x16xi32>
    %737 = arith.andi %728, %736 : vector<16x16xi32>
    %738 = arith.cmpi eq, %735, %737 : vector<16x16xi32>
    %739 = arith.andi %733, %738 : vector<16x16xi1>
    %740 = arith.truncf %712 : vector<16x128xf32> to vector<16x128xbf16>
    %741 = arith.truncf %719 : vector<16x128xf32> to vector<16x128xbf16>
    %cst_313 = arith.constant dense<0.000000e+00> : vector<16x16xf32>
    %742 = tpu.matmul %740, %741, %cst_313 {dimension_numbers = #tpu.dot_dimension_numbers<[1], [1], [0], [0], [0, 0, 1, 0], [], []>} : vector<16x128xbf16>, vector<16x128xbf16>, vector<16x16xf32> -> vector<16x16xf32>
    %cst_314 = arith.constant -1.000000e+30 : f32
    %743 = vector.broadcast %cst_314 : f32 to vector<16x16xf32>
    %744 = arith.select %739, %742, %743 : vector<16x16xi1>, vector<16x16xf32>
    %cst_315 = arith.constant dense<0xFF800000> : vector<16xf32>
    %745 = vector.multi_reduction <maximumf>, %744, %cst_315 [1] : vector<16x16xf32> to vector<16xf32>
    %746 = vector.shape_cast %745 : vector<16xf32> to vector<16x1xf32>
    %747 = vector.broadcast %746 : vector<16x1xf32> to vector<16x16xf32>
    %748 = arith.subf %744, %747 : vector<16x16xf32>
    %749 = math.exp %748 : vector<16x16xf32>
    %cst_316 = arith.constant dense<0.000000e+00> : vector<16xf32>
    %750 = vector.multi_reduction <add>, %749, %cst_316 [1] : vector<16x16xf32> to vector<16xf32>
    %751 = vector.shape_cast %750 : vector<16xf32> to vector<16x1xf32>
    %752 = tpu.reciprocal %751 {approx = true} : vector<16x1xf32> -> vector<16x1xf32>
    %753 = vector.broadcast %752 : vector<16x1xf32> to vector<16x16xf32>
    %754 = arith.mulf %749, %753 : vector<16x16xf32>
    %755 = arith.truncf %754 : vector<16x16xf32> to vector<16x16xbf16>
    %756 = arith.truncf %726 : vector<16x128xf32> to vector<16x128xbf16>
    %cst_317 = arith.constant dense<0.000000e+00> : vector<16x128xf32>
    %757 = tpu.matmul %755, %756, %cst_317 {dimension_numbers = #tpu.dot_dimension_numbers<[1], [0], [0], [1], [0, 0, 1, 1], [], []>} : vector<16x16xbf16>, vector<16x128xbf16>, vector<16x128xf32> -> vector<16x128xf32>
    %758 = arith.truncf %757 : vector<16x128xf32> to vector<16x128xbf16>
    %cst_318 = arith.constant dense<0.000000e+00> : vector<16x16xf32>
    %759 = tpu.matmul %758, %688, %cst_318 {dimension_numbers = #tpu.dot_dimension_numbers<[1], [0], [0], [1], [0, 0, 1, 1], [], []>} : vector<16x128xbf16>, vector<128x16xbf16>, vector<16x16xf32> -> vector<16x16xf32>
    %760 = vector.broadcast %689 : vector<1x16xf32> to vector<16x16xf32>
    %761 = arith.addf %759, %760 : vector<16x16xf32>
    %762 = arith.addf %678, %761 : vector<16x16xf32>
    %cst_319 = arith.constant dense<0.000000e+00> : vector<16xf32>
    %763 = vector.multi_reduction <add>, %762, %cst_319 [1] : vector<16x16xf32> to vector<16xf32>
    %764 = vector.shape_cast %763 : vector<16xf32> to vector<16x1xf32>
    %cst_320 = arith.constant 1.600000e+01 : f32
    %765 = vector.broadcast %cst_320 : f32 to vector<16x1xf32>
    %766 = arith.divf %764, %765 : vector<16x1xf32>
    %767 = vector.broadcast %766 : vector<16x1xf32> to vector<16x16xf32>
    %768 = arith.subf %762, %767 : vector<16x16xf32>
    %769 = arith.mulf %768, %768 : vector<16x16xf32>
    %cst_321 = arith.constant dense<0.000000e+00> : vector<16xf32>
    %770 = vector.multi_reduction <add>, %769, %cst_321 [1] : vector<16x16xf32> to vector<16xf32>
    %771 = vector.shape_cast %770 : vector<16xf32> to vector<16x1xf32>
    %cst_322 = arith.constant 1.600000e+01 : f32
    %772 = vector.broadcast %cst_322 : f32 to vector<16x1xf32>
    %773 = arith.divf %771, %772 : vector<16x1xf32>
    %cst_323 = arith.constant 9.99999974E-6 : f32
    %774 = vector.broadcast %cst_323 : f32 to vector<16x1xf32>
    %775 = arith.addf %773, %774 : vector<16x1xf32>
    %776 = math.rsqrt %775 : vector<16x1xf32>
    %777 = vector.broadcast %776 : vector<16x1xf32> to vector<16x16xf32>
    %778 = arith.mulf %768, %777 : vector<16x16xf32>
    %779 = vector.broadcast %690 : vector<1x16xf32> to vector<16x16xf32>
    %780 = arith.mulf %778, %779 : vector<16x16xf32>
    %781 = vector.broadcast %691 : vector<1x16xf32> to vector<16x16xf32>
    %782 = arith.addf %780, %781 : vector<16x16xf32>
    %783 = arith.truncf %782 : vector<16x16xf32> to vector<16x16xbf16>
    %cst_324 = arith.constant dense<0.000000e+00> : vector<16x32xf32>
    %784 = tpu.matmul %783, %692, %cst_324 {dimension_numbers = #tpu.dot_dimension_numbers<[1], [0], [0], [1], [0, 0, 1, 1], [], []>} : vector<16x16xbf16>, vector<16x32xbf16>, vector<16x32xf32> -> vector<16x32xf32>
    %785 = vector.broadcast %693 : vector<1x32xf32> to vector<16x32xf32>
    %786 = arith.addf %784, %785 : vector<16x32xf32>
    %cst_325 = arith.constant 5.000000e-01 : f32
    %787 = vector.broadcast %cst_325 : f32 to vector<16x32xf32>
    %788 = arith.mulf %787, %786 : vector<16x32xf32>
    %cst_326 = arith.constant 0.707106769 : f32
    %789 = vector.broadcast %cst_326 : f32 to vector<16x32xf32>
    %790 = arith.mulf %786, %789 : vector<16x32xf32>
    %cst_327 = arith.constant -4.000000e+00 : f32
    %cst_328 = arith.constant 4.000000e+00 : f32
    %791 = vector.broadcast %cst_327 : f32 to vector<16x32xf32>
    %792 = arith.maximumf %791, %790 : vector<16x32xf32>
    %793 = vector.broadcast %cst_328 : f32 to vector<16x32xf32>
    %794 = arith.minimumf %793, %792 : vector<16x32xf32>
    %795 = arith.mulf %794, %794 : vector<16x32xf32>
    %cst_329 = arith.constant -2.72614237E-10 : f32
    %796 = vector.broadcast %cst_329 : f32 to vector<16x32xf32>
    %797 = arith.mulf %796, %795 : vector<16x32xf32>
    %cst_330 = arith.constant 2.77068146E-8 : f32
    %798 = vector.broadcast %cst_330 : f32 to vector<16x32xf32>
    %799 = arith.addf %797, %798 : vector<16x32xf32>
    %800 = arith.mulf %799, %795 : vector<16x32xf32>
    %cst_331 = arith.constant -2.10102394E-6 : f32
    %801 = vector.broadcast %cst_331 : f32 to vector<16x32xf32>
    %802 = arith.addf %800, %801 : vector<16x32xf32>
    %803 = arith.mulf %802, %795 : vector<16x32xf32>
    %cst_332 = arith.constant -5.69250624E-5 : f32
    %804 = vector.broadcast %cst_332 : f32 to vector<16x32xf32>
    %805 = arith.addf %803, %804 : vector<16x32xf32>
    %806 = arith.mulf %805, %795 : vector<16x32xf32>
    %cst_333 = arith.constant -7.34990637E-4 : f32
    %807 = vector.broadcast %cst_333 : f32 to vector<16x32xf32>
    %808 = arith.addf %806, %807 : vector<16x32xf32>
    %809 = arith.mulf %808, %795 : vector<16x32xf32>
    %cst_334 = arith.constant -2.954600e-03 : f32
    %810 = vector.broadcast %cst_334 : f32 to vector<16x32xf32>
    %811 = arith.addf %809, %810 : vector<16x32xf32>
    %812 = arith.mulf %811, %795 : vector<16x32xf32>
    %cst_335 = arith.constant -0.0160960332 : f32
    %813 = vector.broadcast %cst_335 : f32 to vector<16x32xf32>
    %814 = arith.addf %812, %813 : vector<16x32xf32>
    %cst_336 = arith.constant -1.45660715E-5 : f32
    %815 = vector.broadcast %cst_336 : f32 to vector<16x32xf32>
    %816 = arith.mulf %815, %795 : vector<16x32xf32>
    %cst_337 = arith.constant -2.13374049E-4 : f32
    %817 = vector.broadcast %cst_337 : f32 to vector<16x32xf32>
    %818 = arith.addf %816, %817 : vector<16x32xf32>
    %819 = arith.mulf %818, %795 : vector<16x32xf32>
    %cst_338 = arith.constant -0.00168282702 : f32
    %820 = vector.broadcast %cst_338 : f32 to vector<16x32xf32>
    %821 = arith.addf %819, %820 : vector<16x32xf32>
    %822 = arith.mulf %821, %795 : vector<16x32xf32>
    %cst_339 = arith.constant -0.00737332925 : f32
    %823 = vector.broadcast %cst_339 : f32 to vector<16x32xf32>
    %824 = arith.addf %822, %823 : vector<16x32xf32>
    %825 = arith.mulf %824, %795 : vector<16x32xf32>
    %cst_340 = arith.constant -0.0142647391 : f32
    %826 = vector.broadcast %cst_340 : f32 to vector<16x32xf32>
    %827 = arith.addf %825, %826 : vector<16x32xf32>
    %828 = arith.mulf %794, %814 : vector<16x32xf32>
    %829 = arith.divf %828, %827 : vector<16x32xf32>
    %cst_341 = arith.constant 1.000000e+00 : f32
    %830 = vector.broadcast %cst_341 : f32 to vector<16x32xf32>
    %831 = arith.addf %830, %829 : vector<16x32xf32>
    %832 = arith.mulf %788, %831 : vector<16x32xf32>
    %833 = arith.truncf %832 : vector<16x32xf32> to vector<16x32xbf16>
    %cst_342 = arith.constant dense<0.000000e+00> : vector<16x16xf32>
    %834 = tpu.matmul %833, %694, %cst_342 {dimension_numbers = #tpu.dot_dimension_numbers<[1], [0], [0], [1], [0, 0, 1, 1], [], []>} : vector<16x32xbf16>, vector<32x16xbf16>, vector<16x16xf32> -> vector<16x16xf32>
    %835 = vector.broadcast %695 : vector<1x16xf32> to vector<16x16xf32>
    %836 = arith.addf %834, %835 : vector<16x16xf32>
    %c0_343 = arith.constant 0 : index
    %c0_344 = arith.constant 0 : index
    %837 = vector.load %arg43[%c0_343, %c0_344] : memref<16x384xbf16, #tpu.memory_space<vmem>>, vector<16x384xbf16>
    %c0_345 = arith.constant 0 : index
    %c0_346 = arith.constant 0 : index
    %838 = vector.load %arg44[%c0_345, %c0_346] : memref<1x384xf32, #tpu.memory_space<vmem>>, vector<1x384xf32>
    %c0_347 = arith.constant 0 : index
    %c0_348 = arith.constant 0 : index
    %839 = vector.load %arg45[%c0_347, %c0_348] : memref<128x16xbf16, #tpu.memory_space<vmem>>, vector<128x16xbf16>
    %c0_349 = arith.constant 0 : index
    %c0_350 = arith.constant 0 : index
    %840 = vector.load %arg46[%c0_349, %c0_350] : memref<1x16xf32, #tpu.memory_space<vmem>>, vector<1x16xf32>
    %c0_351 = arith.constant 0 : index
    %c0_352 = arith.constant 0 : index
    %841 = vector.load %arg47[%c0_351, %c0_352] : memref<1x16xf32, #tpu.memory_space<vmem>>, vector<1x16xf32>
    %c0_353 = arith.constant 0 : index
    %c0_354 = arith.constant 0 : index
    %842 = vector.load %arg48[%c0_353, %c0_354] : memref<1x16xf32, #tpu.memory_space<vmem>>, vector<1x16xf32>
    %c0_355 = arith.constant 0 : index
    %c0_356 = arith.constant 0 : index
    %843 = vector.load %arg49[%c0_355, %c0_356] : memref<16x32xbf16, #tpu.memory_space<vmem>>, vector<16x32xbf16>
    %c0_357 = arith.constant 0 : index
    %c0_358 = arith.constant 0 : index
    %844 = vector.load %arg50[%c0_357, %c0_358] : memref<1x32xf32, #tpu.memory_space<vmem>>, vector<1x32xf32>
    %c0_359 = arith.constant 0 : index
    %c0_360 = arith.constant 0 : index
    %845 = vector.load %arg51[%c0_359, %c0_360] : memref<32x32xbf16, #tpu.memory_space<vmem>>, vector<32x32xbf16>
    %c0_361 = arith.constant 0 : index
    %c0_362 = arith.constant 0 : index
    %846 = vector.load %arg52[%c0_361, %c0_362] : memref<1x32xf32, #tpu.memory_space<vmem>>, vector<1x32xf32>
    %847 = arith.truncf %836 : vector<16x16xf32> to vector<16x16xbf16>
    %cst_363 = arith.constant dense<0.000000e+00> : vector<16x384xf32>
    %848 = tpu.matmul %847, %837, %cst_363 {dimension_numbers = #tpu.dot_dimension_numbers<[1], [0], [0], [1], [0, 0, 1, 1], [], []>} : vector<16x16xbf16>, vector<16x384xbf16>, vector<16x384xf32> -> vector<16x384xf32>
    %849 = vector.broadcast %838 : vector<1x384xf32> to vector<16x384xf32>
    %850 = arith.addf %848, %849 : vector<16x384xf32>
    %851 = vector.extract_strided_slice %850 {offsets = [0, 0], sizes = [16, 128], strides = [1, 1]} : vector<16x384xf32> to vector<16x128xf32>
    %cst_364 = arith.constant 5.000000e-01 : f32
    %852 = vector.broadcast %cst_364 : f32 to vector<16x128xf32>
    %853 = arith.mulf %851, %852 : vector<16x128xf32>
    %854 = vector.extract_strided_slice %850 {offsets = [0, 128], sizes = [16, 128], strides = [1, 1]} : vector<16x384xf32> to vector<16x128xf32>
    %855 = vector.extract_strided_slice %850 {offsets = [0, 256], sizes = [16, 128], strides = [1, 1]} : vector<16x384xf32> to vector<16x128xf32>
    %856 = tpu.iota {dimensions = array<i32: 1>} : vector<16x128xi32>
    %c0_i32_365 = arith.constant 0 : i32
    %857 = vector.broadcast %c0_i32_365 : i32 to vector<16x128xi32>
    %858 = arith.cmpi sge, %856, %857 : vector<16x128xi32>
    %c4_i32_366 = arith.constant 4 : i32
    %859 = vector.broadcast %c4_i32_366 : i32 to vector<16x128xi32>
    %860 = arith.cmpi slt, %856, %859 : vector<16x128xi32>
    %861 = arith.andi %858, %860 : vector<16x128xi1>
    %cst_367 = arith.constant 0.000000e+00 : f32
    %862 = vector.broadcast %cst_367 : f32 to vector<16x128xf32>
    %863 = arith.select %861, %853, %862 : vector<16x128xi1>, vector<16x128xf32>
    %c4_i32_368 = arith.constant 4 : i32
    %864 = vector.broadcast %c4_i32_368 : i32 to vector<16x128xi32>
    %865 = arith.cmpi sge, %856, %864 : vector<16x128xi32>
    %c8_i32_369 = arith.constant 8 : i32
    %866 = vector.broadcast %c8_i32_369 : i32 to vector<16x128xi32>
    %867 = arith.cmpi slt, %856, %866 : vector<16x128xi32>
    %868 = arith.andi %865, %867 : vector<16x128xi1>
    %cst_370 = arith.constant 0.000000e+00 : f32
    %869 = vector.broadcast %cst_370 : f32 to vector<16x128xf32>
    %870 = arith.select %868, %853, %869 : vector<16x128xi1>, vector<16x128xf32>
    %c8_i32_371 = arith.constant 8 : i32
    %871 = vector.broadcast %c8_i32_371 : i32 to vector<16x128xi32>
    %872 = arith.cmpi sge, %856, %871 : vector<16x128xi32>
    %c12_i32_372 = arith.constant 12 : i32
    %873 = vector.broadcast %c12_i32_372 : i32 to vector<16x128xi32>
    %874 = arith.cmpi slt, %856, %873 : vector<16x128xi32>
    %875 = arith.andi %872, %874 : vector<16x128xi1>
    %cst_373 = arith.constant 0.000000e+00 : f32
    %876 = vector.broadcast %cst_373 : f32 to vector<16x128xf32>
    %877 = arith.select %875, %853, %876 : vector<16x128xi1>, vector<16x128xf32>
    %c12_i32_374 = arith.constant 12 : i32
    %878 = vector.broadcast %c12_i32_374 : i32 to vector<16x128xi32>
    %879 = arith.cmpi sge, %856, %878 : vector<16x128xi32>
    %c16_i32_375 = arith.constant 16 : i32
    %880 = vector.broadcast %c16_i32_375 : i32 to vector<16x128xi32>
    %881 = arith.cmpi slt, %856, %880 : vector<16x128xi32>
    %882 = arith.andi %879, %881 : vector<16x128xi1>
    %cst_376 = arith.constant 0.000000e+00 : f32
    %883 = vector.broadcast %cst_376 : f32 to vector<16x128xf32>
    %884 = arith.select %882, %853, %883 : vector<16x128xi1>, vector<16x128xf32>
    %885 = tpu.concatenate %863, %870, %877, %884 in 0 : vector<16x128xf32>, vector<16x128xf32>, vector<16x128xf32>, vector<16x128xf32> -> vector<64x128xf32>
    %c0_i32_377 = arith.constant 0 : i32
    %886 = vector.broadcast %c0_i32_377 : i32 to vector<16x128xi32>
    %887 = arith.cmpi sge, %856, %886 : vector<16x128xi32>
    %c4_i32_378 = arith.constant 4 : i32
    %888 = vector.broadcast %c4_i32_378 : i32 to vector<16x128xi32>
    %889 = arith.cmpi slt, %856, %888 : vector<16x128xi32>
    %890 = arith.andi %887, %889 : vector<16x128xi1>
    %cst_379 = arith.constant 0.000000e+00 : f32
    %891 = vector.broadcast %cst_379 : f32 to vector<16x128xf32>
    %892 = arith.select %890, %854, %891 : vector<16x128xi1>, vector<16x128xf32>
    %c4_i32_380 = arith.constant 4 : i32
    %893 = vector.broadcast %c4_i32_380 : i32 to vector<16x128xi32>
    %894 = arith.cmpi sge, %856, %893 : vector<16x128xi32>
    %c8_i32_381 = arith.constant 8 : i32
    %895 = vector.broadcast %c8_i32_381 : i32 to vector<16x128xi32>
    %896 = arith.cmpi slt, %856, %895 : vector<16x128xi32>
    %897 = arith.andi %894, %896 : vector<16x128xi1>
    %cst_382 = arith.constant 0.000000e+00 : f32
    %898 = vector.broadcast %cst_382 : f32 to vector<16x128xf32>
    %899 = arith.select %897, %854, %898 : vector<16x128xi1>, vector<16x128xf32>
    %c8_i32_383 = arith.constant 8 : i32
    %900 = vector.broadcast %c8_i32_383 : i32 to vector<16x128xi32>
    %901 = arith.cmpi sge, %856, %900 : vector<16x128xi32>
    %c12_i32_384 = arith.constant 12 : i32
    %902 = vector.broadcast %c12_i32_384 : i32 to vector<16x128xi32>
    %903 = arith.cmpi slt, %856, %902 : vector<16x128xi32>
    %904 = arith.andi %901, %903 : vector<16x128xi1>
    %cst_385 = arith.constant 0.000000e+00 : f32
    %905 = vector.broadcast %cst_385 : f32 to vector<16x128xf32>
    %906 = arith.select %904, %854, %905 : vector<16x128xi1>, vector<16x128xf32>
    %c12_i32_386 = arith.constant 12 : i32
    %907 = vector.broadcast %c12_i32_386 : i32 to vector<16x128xi32>
    %908 = arith.cmpi sge, %856, %907 : vector<16x128xi32>
    %c16_i32_387 = arith.constant 16 : i32
    %909 = vector.broadcast %c16_i32_387 : i32 to vector<16x128xi32>
    %910 = arith.cmpi slt, %856, %909 : vector<16x128xi32>
    %911 = arith.andi %908, %910 : vector<16x128xi1>
    %cst_388 = arith.constant 0.000000e+00 : f32
    %912 = vector.broadcast %cst_388 : f32 to vector<16x128xf32>
    %913 = arith.select %911, %854, %912 : vector<16x128xi1>, vector<16x128xf32>
    %914 = tpu.concatenate %892, %899, %906, %913 in 0 : vector<16x128xf32>, vector<16x128xf32>, vector<16x128xf32>, vector<16x128xf32> -> vector<64x128xf32>
    %c0_i32_389 = arith.constant 0 : i32
    %915 = vector.broadcast %c0_i32_389 : i32 to vector<16x128xi32>
    %916 = arith.cmpi sge, %856, %915 : vector<16x128xi32>
    %c4_i32_390 = arith.constant 4 : i32
    %917 = vector.broadcast %c4_i32_390 : i32 to vector<16x128xi32>
    %918 = arith.cmpi slt, %856, %917 : vector<16x128xi32>
    %919 = arith.andi %916, %918 : vector<16x128xi1>
    %cst_391 = arith.constant 0.000000e+00 : f32
    %920 = vector.broadcast %cst_391 : f32 to vector<16x128xf32>
    %921 = arith.select %919, %855, %920 : vector<16x128xi1>, vector<16x128xf32>
    %c4_i32_392 = arith.constant 4 : i32
    %922 = vector.broadcast %c4_i32_392 : i32 to vector<16x128xi32>
    %923 = arith.cmpi sge, %856, %922 : vector<16x128xi32>
    %c8_i32_393 = arith.constant 8 : i32
    %924 = vector.broadcast %c8_i32_393 : i32 to vector<16x128xi32>
    %925 = arith.cmpi slt, %856, %924 : vector<16x128xi32>
    %926 = arith.andi %923, %925 : vector<16x128xi1>
    %cst_394 = arith.constant 0.000000e+00 : f32
    %927 = vector.broadcast %cst_394 : f32 to vector<16x128xf32>
    %928 = arith.select %926, %855, %927 : vector<16x128xi1>, vector<16x128xf32>
    %c8_i32_395 = arith.constant 8 : i32
    %929 = vector.broadcast %c8_i32_395 : i32 to vector<16x128xi32>
    %930 = arith.cmpi sge, %856, %929 : vector<16x128xi32>
    %c12_i32_396 = arith.constant 12 : i32
    %931 = vector.broadcast %c12_i32_396 : i32 to vector<16x128xi32>
    %932 = arith.cmpi slt, %856, %931 : vector<16x128xi32>
    %933 = arith.andi %930, %932 : vector<16x128xi1>
    %cst_397 = arith.constant 0.000000e+00 : f32
    %934 = vector.broadcast %cst_397 : f32 to vector<16x128xf32>
    %935 = arith.select %933, %855, %934 : vector<16x128xi1>, vector<16x128xf32>
    %c12_i32_398 = arith.constant 12 : i32
    %936 = vector.broadcast %c12_i32_398 : i32 to vector<16x128xi32>
    %937 = arith.cmpi sge, %856, %936 : vector<16x128xi32>
    %c16_i32_399 = arith.constant 16 : i32
    %938 = vector.broadcast %c16_i32_399 : i32 to vector<16x128xi32>
    %939 = arith.cmpi slt, %856, %938 : vector<16x128xi32>
    %940 = arith.andi %937, %939 : vector<16x128xi1>
    %cst_400 = arith.constant 0.000000e+00 : f32
    %941 = vector.broadcast %cst_400 : f32 to vector<16x128xf32>
    %942 = arith.select %940, %855, %941 : vector<16x128xi1>, vector<16x128xf32>
    %943 = tpu.concatenate %921, %928, %935, %942 in 0 : vector<16x128xf32>, vector<16x128xf32>, vector<16x128xf32>, vector<16x128xf32> -> vector<64x128xf32>
    %944 = tpu.iota {dimensions = array<i32: 0>} : vector<64x64xi32>
    %945 = tpu.iota {dimensions = array<i32: 1>} : vector<64x64xi32>
    %c4_i32_401 = arith.constant 4 : i32
    %946 = vector.broadcast %c4_i32_401 : i32 to vector<64x64xi32>
    %947 = arith.shrsi %944, %946 : vector<64x64xi32>
    %c4_i32_402 = arith.constant 4 : i32
    %948 = vector.broadcast %c4_i32_402 : i32 to vector<64x64xi32>
    %949 = arith.shrsi %945, %948 : vector<64x64xi32>
    %950 = arith.cmpi eq, %947, %949 : vector<64x64xi32>
    %c1_i32_403 = arith.constant 1 : i32
    %951 = vector.broadcast %c1_i32_403 : i32 to vector<64x64xi32>
    %952 = arith.andi %944, %951 : vector<64x64xi32>
    %c1_i32_404 = arith.constant 1 : i32
    %953 = vector.broadcast %c1_i32_404 : i32 to vector<64x64xi32>
    %954 = arith.andi %945, %953 : vector<64x64xi32>
    %955 = arith.cmpi eq, %952, %954 : vector<64x64xi32>
    %956 = arith.andi %950, %955 : vector<64x64xi1>
    %957 = arith.truncf %885 : vector<64x128xf32> to vector<64x128xbf16>
    %958 = arith.truncf %914 : vector<64x128xf32> to vector<64x128xbf16>
    %cst_405 = arith.constant dense<0.000000e+00> : vector<64x64xf32>
    %959 = tpu.matmul %957, %958, %cst_405 {dimension_numbers = #tpu.dot_dimension_numbers<[1], [1], [0], [0], [0, 0, 1, 0], [], []>} : vector<64x128xbf16>, vector<64x128xbf16>, vector<64x64xf32> -> vector<64x64xf32>
    %cst_406 = arith.constant -1.000000e+30 : f32
    %960 = vector.broadcast %cst_406 : f32 to vector<64x64xf32>
    %961 = arith.select %956, %959, %960 : vector<64x64xi1>, vector<64x64xf32>
    %cst_407 = arith.constant dense<0xFF800000> : vector<64xf32>
    %962 = vector.multi_reduction <maximumf>, %961, %cst_407 [1] : vector<64x64xf32> to vector<64xf32>
    %963 = vector.shape_cast %962 : vector<64xf32> to vector<64x1xf32>
    %964 = vector.broadcast %963 : vector<64x1xf32> to vector<64x64xf32>
    %965 = arith.subf %961, %964 : vector<64x64xf32>
    %966 = math.exp %965 : vector<64x64xf32>
    %cst_408 = arith.constant dense<0.000000e+00> : vector<64xf32>
    %967 = vector.multi_reduction <add>, %966, %cst_408 [1] : vector<64x64xf32> to vector<64xf32>
    %968 = vector.shape_cast %967 : vector<64xf32> to vector<64x1xf32>
    %969 = tpu.reciprocal %968 {approx = true} : vector<64x1xf32> -> vector<64x1xf32>
    %970 = vector.broadcast %969 : vector<64x1xf32> to vector<64x64xf32>
    %971 = arith.mulf %966, %970 : vector<64x64xf32>
    %972 = arith.truncf %971 : vector<64x64xf32> to vector<64x64xbf16>
    %973 = arith.truncf %943 : vector<64x128xf32> to vector<64x128xbf16>
    %cst_409 = arith.constant dense<0.000000e+00> : vector<64x128xf32>
    %974 = tpu.matmul %972, %973, %cst_409 {dimension_numbers = #tpu.dot_dimension_numbers<[1], [0], [0], [1], [0, 0, 1, 1], [], []>} : vector<64x64xbf16>, vector<64x128xbf16>, vector<64x128xf32> -> vector<64x128xf32>
    %975 = vector.extract_strided_slice %974 {offsets = [0, 0], sizes = [16, 128], strides = [1, 1]} : vector<64x128xf32> to vector<16x128xf32>
    %976 = vector.extract_strided_slice %974 {offsets = [16, 0], sizes = [16, 128], strides = [1, 1]} : vector<64x128xf32> to vector<16x128xf32>
    %977 = arith.addf %975, %976 : vector<16x128xf32>
    %978 = vector.extract_strided_slice %974 {offsets = [32, 0], sizes = [16, 128], strides = [1, 1]} : vector<64x128xf32> to vector<16x128xf32>
    %979 = arith.addf %977, %978 : vector<16x128xf32>
    %980 = vector.extract_strided_slice %974 {offsets = [48, 0], sizes = [16, 128], strides = [1, 1]} : vector<64x128xf32> to vector<16x128xf32>
    %981 = arith.addf %979, %980 : vector<16x128xf32>
    %982 = arith.truncf %981 : vector<16x128xf32> to vector<16x128xbf16>
    %cst_410 = arith.constant dense<0.000000e+00> : vector<16x16xf32>
    %983 = tpu.matmul %982, %839, %cst_410 {dimension_numbers = #tpu.dot_dimension_numbers<[1], [0], [0], [1], [0, 0, 1, 1], [], []>} : vector<16x128xbf16>, vector<128x16xbf16>, vector<16x16xf32> -> vector<16x16xf32>
    %984 = vector.broadcast %840 : vector<1x16xf32> to vector<16x16xf32>
    %985 = arith.addf %983, %984 : vector<16x16xf32>
    %986 = arith.addf %836, %985 : vector<16x16xf32>
    %cst_411 = arith.constant dense<0.000000e+00> : vector<16xf32>
    %987 = vector.multi_reduction <add>, %986, %cst_411 [1] : vector<16x16xf32> to vector<16xf32>
    %988 = vector.shape_cast %987 : vector<16xf32> to vector<16x1xf32>
    %cst_412 = arith.constant 1.600000e+01 : f32
    %989 = vector.broadcast %cst_412 : f32 to vector<16x1xf32>
    %990 = arith.divf %988, %989 : vector<16x1xf32>
    %991 = vector.broadcast %990 : vector<16x1xf32> to vector<16x16xf32>
    %992 = arith.subf %986, %991 : vector<16x16xf32>
    %993 = arith.mulf %992, %992 : vector<16x16xf32>
    %cst_413 = arith.constant dense<0.000000e+00> : vector<16xf32>
    %994 = vector.multi_reduction <add>, %993, %cst_413 [1] : vector<16x16xf32> to vector<16xf32>
    %995 = vector.shape_cast %994 : vector<16xf32> to vector<16x1xf32>
    %cst_414 = arith.constant 1.600000e+01 : f32
    %996 = vector.broadcast %cst_414 : f32 to vector<16x1xf32>
    %997 = arith.divf %995, %996 : vector<16x1xf32>
    %cst_415 = arith.constant 9.99999974E-6 : f32
    %998 = vector.broadcast %cst_415 : f32 to vector<16x1xf32>
    %999 = arith.addf %997, %998 : vector<16x1xf32>
    %1000 = math.rsqrt %999 : vector<16x1xf32>
    %1001 = vector.broadcast %1000 : vector<16x1xf32> to vector<16x16xf32>
    %1002 = arith.mulf %992, %1001 : vector<16x16xf32>
    %1003 = vector.broadcast %841 : vector<1x16xf32> to vector<16x16xf32>
    %1004 = arith.mulf %1002, %1003 : vector<16x16xf32>
    %1005 = vector.broadcast %842 : vector<1x16xf32> to vector<16x16xf32>
    %1006 = arith.addf %1004, %1005 : vector<16x16xf32>
    %1007 = arith.truncf %1006 : vector<16x16xf32> to vector<16x16xbf16>
    %cst_416 = arith.constant dense<0.000000e+00> : vector<16x32xf32>
    %1008 = tpu.matmul %1007, %843, %cst_416 {dimension_numbers = #tpu.dot_dimension_numbers<[1], [0], [0], [1], [0, 0, 1, 1], [], []>} : vector<16x16xbf16>, vector<16x32xbf16>, vector<16x32xf32> -> vector<16x32xf32>
    %1009 = vector.broadcast %844 : vector<1x32xf32> to vector<16x32xf32>
    %1010 = arith.addf %1008, %1009 : vector<16x32xf32>
    %cst_417 = arith.constant 5.000000e-01 : f32
    %1011 = vector.broadcast %cst_417 : f32 to vector<16x32xf32>
    %1012 = arith.mulf %1011, %1010 : vector<16x32xf32>
    %cst_418 = arith.constant 0.707106769 : f32
    %1013 = vector.broadcast %cst_418 : f32 to vector<16x32xf32>
    %1014 = arith.mulf %1010, %1013 : vector<16x32xf32>
    %cst_419 = arith.constant -4.000000e+00 : f32
    %cst_420 = arith.constant 4.000000e+00 : f32
    %1015 = vector.broadcast %cst_419 : f32 to vector<16x32xf32>
    %1016 = arith.maximumf %1015, %1014 : vector<16x32xf32>
    %1017 = vector.broadcast %cst_420 : f32 to vector<16x32xf32>
    %1018 = arith.minimumf %1017, %1016 : vector<16x32xf32>
    %1019 = arith.mulf %1018, %1018 : vector<16x32xf32>
    %cst_421 = arith.constant -2.72614237E-10 : f32
    %1020 = vector.broadcast %cst_421 : f32 to vector<16x32xf32>
    %1021 = arith.mulf %1020, %1019 : vector<16x32xf32>
    %cst_422 = arith.constant 2.77068146E-8 : f32
    %1022 = vector.broadcast %cst_422 : f32 to vector<16x32xf32>
    %1023 = arith.addf %1021, %1022 : vector<16x32xf32>
    %1024 = arith.mulf %1023, %1019 : vector<16x32xf32>
    %cst_423 = arith.constant -2.10102394E-6 : f32
    %1025 = vector.broadcast %cst_423 : f32 to vector<16x32xf32>
    %1026 = arith.addf %1024, %1025 : vector<16x32xf32>
    %1027 = arith.mulf %1026, %1019 : vector<16x32xf32>
    %cst_424 = arith.constant -5.69250624E-5 : f32
    %1028 = vector.broadcast %cst_424 : f32 to vector<16x32xf32>
    %1029 = arith.addf %1027, %1028 : vector<16x32xf32>
    %1030 = arith.mulf %1029, %1019 : vector<16x32xf32>
    %cst_425 = arith.constant -7.34990637E-4 : f32
    %1031 = vector.broadcast %cst_425 : f32 to vector<16x32xf32>
    %1032 = arith.addf %1030, %1031 : vector<16x32xf32>
    %1033 = arith.mulf %1032, %1019 : vector<16x32xf32>
    %cst_426 = arith.constant -2.954600e-03 : f32
    %1034 = vector.broadcast %cst_426 : f32 to vector<16x32xf32>
    %1035 = arith.addf %1033, %1034 : vector<16x32xf32>
    %1036 = arith.mulf %1035, %1019 : vector<16x32xf32>
    %cst_427 = arith.constant -0.0160960332 : f32
    %1037 = vector.broadcast %cst_427 : f32 to vector<16x32xf32>
    %1038 = arith.addf %1036, %1037 : vector<16x32xf32>
    %cst_428 = arith.constant -1.45660715E-5 : f32
    %1039 = vector.broadcast %cst_428 : f32 to vector<16x32xf32>
    %1040 = arith.mulf %1039, %1019 : vector<16x32xf32>
    %cst_429 = arith.constant -2.13374049E-4 : f32
    %1041 = vector.broadcast %cst_429 : f32 to vector<16x32xf32>
    %1042 = arith.addf %1040, %1041 : vector<16x32xf32>
    %1043 = arith.mulf %1042, %1019 : vector<16x32xf32>
    %cst_430 = arith.constant -0.00168282702 : f32
    %1044 = vector.broadcast %cst_430 : f32 to vector<16x32xf32>
    %1045 = arith.addf %1043, %1044 : vector<16x32xf32>
    %1046 = arith.mulf %1045, %1019 : vector<16x32xf32>
    %cst_431 = arith.constant -0.00737332925 : f32
    %1047 = vector.broadcast %cst_431 : f32 to vector<16x32xf32>
    %1048 = arith.addf %1046, %1047 : vector<16x32xf32>
    %1049 = arith.mulf %1048, %1019 : vector<16x32xf32>
    %cst_432 = arith.constant -0.0142647391 : f32
    %1050 = vector.broadcast %cst_432 : f32 to vector<16x32xf32>
    %1051 = arith.addf %1049, %1050 : vector<16x32xf32>
    %1052 = arith.mulf %1018, %1038 : vector<16x32xf32>
    %1053 = arith.divf %1052, %1051 : vector<16x32xf32>
    %cst_433 = arith.constant 1.000000e+00 : f32
    %1054 = vector.broadcast %cst_433 : f32 to vector<16x32xf32>
    %1055 = arith.addf %1054, %1053 : vector<16x32xf32>
    %1056 = arith.mulf %1012, %1055 : vector<16x32xf32>
    %1057 = arith.truncf %1056 : vector<16x32xf32> to vector<16x32xbf16>
    %cst_434 = arith.constant dense<0.000000e+00> : vector<16x32xf32>
    %1058 = tpu.matmul %1057, %845, %cst_434 {dimension_numbers = #tpu.dot_dimension_numbers<[1], [0], [0], [1], [0, 0, 1, 1], [], []>} : vector<16x32xbf16>, vector<32x32xbf16>, vector<16x32xf32> -> vector<16x32xf32>
    %1059 = vector.broadcast %846 : vector<1x32xf32> to vector<16x32xf32>
    %1060 = arith.addf %1058, %1059 : vector<16x32xf32>
    %c0_435 = arith.constant 0 : index
    %c0_436 = arith.constant 0 : index
    %1061 = vector.load %arg53[%c0_435, %c0_436] : memref<32x384xbf16, #tpu.memory_space<vmem>>, vector<32x384xbf16>
    %c0_437 = arith.constant 0 : index
    %c0_438 = arith.constant 0 : index
    %1062 = vector.load %arg54[%c0_437, %c0_438] : memref<1x384xf32, #tpu.memory_space<vmem>>, vector<1x384xf32>
    %c0_439 = arith.constant 0 : index
    %c0_440 = arith.constant 0 : index
    %1063 = vector.load %arg55[%c0_439, %c0_440] : memref<128x32xbf16, #tpu.memory_space<vmem>>, vector<128x32xbf16>
    %c0_441 = arith.constant 0 : index
    %c0_442 = arith.constant 0 : index
    %1064 = vector.load %arg56[%c0_441, %c0_442] : memref<1x32xf32, #tpu.memory_space<vmem>>, vector<1x32xf32>
    %c0_443 = arith.constant 0 : index
    %c0_444 = arith.constant 0 : index
    %1065 = vector.load %arg57[%c0_443, %c0_444] : memref<1x32xf32, #tpu.memory_space<vmem>>, vector<1x32xf32>
    %c0_445 = arith.constant 0 : index
    %c0_446 = arith.constant 0 : index
    %1066 = vector.load %arg58[%c0_445, %c0_446] : memref<1x32xf32, #tpu.memory_space<vmem>>, vector<1x32xf32>
    %c0_447 = arith.constant 0 : index
    %c0_448 = arith.constant 0 : index
    %1067 = vector.load %arg59[%c0_447, %c0_448] : memref<32x32xbf16, #tpu.memory_space<vmem>>, vector<32x32xbf16>
    %c0_449 = arith.constant 0 : index
    %c0_450 = arith.constant 0 : index
    %1068 = vector.load %arg60[%c0_449, %c0_450] : memref<1x32xf32, #tpu.memory_space<vmem>>, vector<1x32xf32>
    %c0_451 = arith.constant 0 : index
    %c0_452 = arith.constant 0 : index
    %1069 = vector.load %arg61[%c0_451, %c0_452] : memref<32x64xbf16, #tpu.memory_space<vmem>>, vector<32x64xbf16>
    %c0_453 = arith.constant 0 : index
    %c0_454 = arith.constant 0 : index
    %1070 = vector.load %arg62[%c0_453, %c0_454] : memref<1x64xf32, #tpu.memory_space<vmem>>, vector<1x64xf32>
    %1071 = arith.truncf %1060 : vector<16x32xf32> to vector<16x32xbf16>
    %cst_455 = arith.constant dense<0.000000e+00> : vector<16x384xf32>
    %1072 = tpu.matmul %1071, %1061, %cst_455 {dimension_numbers = #tpu.dot_dimension_numbers<[1], [0], [0], [1], [0, 0, 1, 1], [], []>} : vector<16x32xbf16>, vector<32x384xbf16>, vector<16x384xf32> -> vector<16x384xf32>
    %1073 = vector.broadcast %1062 : vector<1x384xf32> to vector<16x384xf32>
    %1074 = arith.addf %1072, %1073 : vector<16x384xf32>
    %1075 = vector.extract_strided_slice %1074 {offsets = [0, 0], sizes = [16, 128], strides = [1, 1]} : vector<16x384xf32> to vector<16x128xf32>
    %cst_456 = arith.constant 0.353553385 : f32
    %1076 = vector.broadcast %cst_456 : f32 to vector<16x128xf32>
    %1077 = arith.mulf %1075, %1076 : vector<16x128xf32>
    %1078 = vector.extract_strided_slice %1074 {offsets = [0, 128], sizes = [16, 128], strides = [1, 1]} : vector<16x384xf32> to vector<16x128xf32>
    %1079 = vector.extract_strided_slice %1074 {offsets = [0, 256], sizes = [16, 128], strides = [1, 1]} : vector<16x384xf32> to vector<16x128xf32>
    %1080 = tpu.iota {dimensions = array<i32: 1>} : vector<16x128xi32>
    %c0_i32_457 = arith.constant 0 : i32
    %1081 = vector.broadcast %c0_i32_457 : i32 to vector<16x128xi32>
    %1082 = arith.cmpi sge, %1080, %1081 : vector<16x128xi32>
    %c8_i32_458 = arith.constant 8 : i32
    %1083 = vector.broadcast %c8_i32_458 : i32 to vector<16x128xi32>
    %1084 = arith.cmpi slt, %1080, %1083 : vector<16x128xi32>
    %1085 = arith.andi %1082, %1084 : vector<16x128xi1>
    %cst_459 = arith.constant 0.000000e+00 : f32
    %1086 = vector.broadcast %cst_459 : f32 to vector<16x128xf32>
    %1087 = arith.select %1085, %1077, %1086 : vector<16x128xi1>, vector<16x128xf32>
    %c8_i32_460 = arith.constant 8 : i32
    %1088 = vector.broadcast %c8_i32_460 : i32 to vector<16x128xi32>
    %1089 = arith.cmpi sge, %1080, %1088 : vector<16x128xi32>
    %c16_i32_461 = arith.constant 16 : i32
    %1090 = vector.broadcast %c16_i32_461 : i32 to vector<16x128xi32>
    %1091 = arith.cmpi slt, %1080, %1090 : vector<16x128xi32>
    %1092 = arith.andi %1089, %1091 : vector<16x128xi1>
    %cst_462 = arith.constant 0.000000e+00 : f32
    %1093 = vector.broadcast %cst_462 : f32 to vector<16x128xf32>
    %1094 = arith.select %1092, %1077, %1093 : vector<16x128xi1>, vector<16x128xf32>
    %c16_i32_463 = arith.constant 16 : i32
    %1095 = vector.broadcast %c16_i32_463 : i32 to vector<16x128xi32>
    %1096 = arith.cmpi sge, %1080, %1095 : vector<16x128xi32>
    %c24_i32_464 = arith.constant 24 : i32
    %1097 = vector.broadcast %c24_i32_464 : i32 to vector<16x128xi32>
    %1098 = arith.cmpi slt, %1080, %1097 : vector<16x128xi32>
    %1099 = arith.andi %1096, %1098 : vector<16x128xi1>
    %cst_465 = arith.constant 0.000000e+00 : f32
    %1100 = vector.broadcast %cst_465 : f32 to vector<16x128xf32>
    %1101 = arith.select %1099, %1077, %1100 : vector<16x128xi1>, vector<16x128xf32>
    %c24_i32_466 = arith.constant 24 : i32
    %1102 = vector.broadcast %c24_i32_466 : i32 to vector<16x128xi32>
    %1103 = arith.cmpi sge, %1080, %1102 : vector<16x128xi32>
    %c32_i32_467 = arith.constant 32 : i32
    %1104 = vector.broadcast %c32_i32_467 : i32 to vector<16x128xi32>
    %1105 = arith.cmpi slt, %1080, %1104 : vector<16x128xi32>
    %1106 = arith.andi %1103, %1105 : vector<16x128xi1>
    %cst_468 = arith.constant 0.000000e+00 : f32
    %1107 = vector.broadcast %cst_468 : f32 to vector<16x128xf32>
    %1108 = arith.select %1106, %1077, %1107 : vector<16x128xi1>, vector<16x128xf32>
    %1109 = tpu.concatenate %1087, %1094, %1101, %1108 in 0 : vector<16x128xf32>, vector<16x128xf32>, vector<16x128xf32>, vector<16x128xf32> -> vector<64x128xf32>
    %c0_i32_469 = arith.constant 0 : i32
    %1110 = vector.broadcast %c0_i32_469 : i32 to vector<16x128xi32>
    %1111 = arith.cmpi sge, %1080, %1110 : vector<16x128xi32>
    %c8_i32_470 = arith.constant 8 : i32
    %1112 = vector.broadcast %c8_i32_470 : i32 to vector<16x128xi32>
    %1113 = arith.cmpi slt, %1080, %1112 : vector<16x128xi32>
    %1114 = arith.andi %1111, %1113 : vector<16x128xi1>
    %cst_471 = arith.constant 0.000000e+00 : f32
    %1115 = vector.broadcast %cst_471 : f32 to vector<16x128xf32>
    %1116 = arith.select %1114, %1078, %1115 : vector<16x128xi1>, vector<16x128xf32>
    %c8_i32_472 = arith.constant 8 : i32
    %1117 = vector.broadcast %c8_i32_472 : i32 to vector<16x128xi32>
    %1118 = arith.cmpi sge, %1080, %1117 : vector<16x128xi32>
    %c16_i32_473 = arith.constant 16 : i32
    %1119 = vector.broadcast %c16_i32_473 : i32 to vector<16x128xi32>
    %1120 = arith.cmpi slt, %1080, %1119 : vector<16x128xi32>
    %1121 = arith.andi %1118, %1120 : vector<16x128xi1>
    %cst_474 = arith.constant 0.000000e+00 : f32
    %1122 = vector.broadcast %cst_474 : f32 to vector<16x128xf32>
    %1123 = arith.select %1121, %1078, %1122 : vector<16x128xi1>, vector<16x128xf32>
    %c16_i32_475 = arith.constant 16 : i32
    %1124 = vector.broadcast %c16_i32_475 : i32 to vector<16x128xi32>
    %1125 = arith.cmpi sge, %1080, %1124 : vector<16x128xi32>
    %c24_i32_476 = arith.constant 24 : i32
    %1126 = vector.broadcast %c24_i32_476 : i32 to vector<16x128xi32>
    %1127 = arith.cmpi slt, %1080, %1126 : vector<16x128xi32>
    %1128 = arith.andi %1125, %1127 : vector<16x128xi1>
    %cst_477 = arith.constant 0.000000e+00 : f32
    %1129 = vector.broadcast %cst_477 : f32 to vector<16x128xf32>
    %1130 = arith.select %1128, %1078, %1129 : vector<16x128xi1>, vector<16x128xf32>
    %c24_i32_478 = arith.constant 24 : i32
    %1131 = vector.broadcast %c24_i32_478 : i32 to vector<16x128xi32>
    %1132 = arith.cmpi sge, %1080, %1131 : vector<16x128xi32>
    %c32_i32_479 = arith.constant 32 : i32
    %1133 = vector.broadcast %c32_i32_479 : i32 to vector<16x128xi32>
    %1134 = arith.cmpi slt, %1080, %1133 : vector<16x128xi32>
    %1135 = arith.andi %1132, %1134 : vector<16x128xi1>
    %cst_480 = arith.constant 0.000000e+00 : f32
    %1136 = vector.broadcast %cst_480 : f32 to vector<16x128xf32>
    %1137 = arith.select %1135, %1078, %1136 : vector<16x128xi1>, vector<16x128xf32>
    %1138 = tpu.concatenate %1116, %1123, %1130, %1137 in 0 : vector<16x128xf32>, vector<16x128xf32>, vector<16x128xf32>, vector<16x128xf32> -> vector<64x128xf32>
    %c0_i32_481 = arith.constant 0 : i32
    %1139 = vector.broadcast %c0_i32_481 : i32 to vector<16x128xi32>
    %1140 = arith.cmpi sge, %1080, %1139 : vector<16x128xi32>
    %c8_i32_482 = arith.constant 8 : i32
    %1141 = vector.broadcast %c8_i32_482 : i32 to vector<16x128xi32>
    %1142 = arith.cmpi slt, %1080, %1141 : vector<16x128xi32>
    %1143 = arith.andi %1140, %1142 : vector<16x128xi1>
    %cst_483 = arith.constant 0.000000e+00 : f32
    %1144 = vector.broadcast %cst_483 : f32 to vector<16x128xf32>
    %1145 = arith.select %1143, %1079, %1144 : vector<16x128xi1>, vector<16x128xf32>
    %c8_i32_484 = arith.constant 8 : i32
    %1146 = vector.broadcast %c8_i32_484 : i32 to vector<16x128xi32>
    %1147 = arith.cmpi sge, %1080, %1146 : vector<16x128xi32>
    %c16_i32_485 = arith.constant 16 : i32
    %1148 = vector.broadcast %c16_i32_485 : i32 to vector<16x128xi32>
    %1149 = arith.cmpi slt, %1080, %1148 : vector<16x128xi32>
    %1150 = arith.andi %1147, %1149 : vector<16x128xi1>
    %cst_486 = arith.constant 0.000000e+00 : f32
    %1151 = vector.broadcast %cst_486 : f32 to vector<16x128xf32>
    %1152 = arith.select %1150, %1079, %1151 : vector<16x128xi1>, vector<16x128xf32>
    %c16_i32_487 = arith.constant 16 : i32
    %1153 = vector.broadcast %c16_i32_487 : i32 to vector<16x128xi32>
    %1154 = arith.cmpi sge, %1080, %1153 : vector<16x128xi32>
    %c24_i32_488 = arith.constant 24 : i32
    %1155 = vector.broadcast %c24_i32_488 : i32 to vector<16x128xi32>
    %1156 = arith.cmpi slt, %1080, %1155 : vector<16x128xi32>
    %1157 = arith.andi %1154, %1156 : vector<16x128xi1>
    %cst_489 = arith.constant 0.000000e+00 : f32
    %1158 = vector.broadcast %cst_489 : f32 to vector<16x128xf32>
    %1159 = arith.select %1157, %1079, %1158 : vector<16x128xi1>, vector<16x128xf32>
    %c24_i32_490 = arith.constant 24 : i32
    %1160 = vector.broadcast %c24_i32_490 : i32 to vector<16x128xi32>
    %1161 = arith.cmpi sge, %1080, %1160 : vector<16x128xi32>
    %c32_i32_491 = arith.constant 32 : i32
    %1162 = vector.broadcast %c32_i32_491 : i32 to vector<16x128xi32>
    %1163 = arith.cmpi slt, %1080, %1162 : vector<16x128xi32>
    %1164 = arith.andi %1161, %1163 : vector<16x128xi1>
    %cst_492 = arith.constant 0.000000e+00 : f32
    %1165 = vector.broadcast %cst_492 : f32 to vector<16x128xf32>
    %1166 = arith.select %1164, %1079, %1165 : vector<16x128xi1>, vector<16x128xf32>
    %1167 = tpu.concatenate %1145, %1152, %1159, %1166 in 0 : vector<16x128xf32>, vector<16x128xf32>, vector<16x128xf32>, vector<16x128xf32> -> vector<64x128xf32>
    %1168 = tpu.iota {dimensions = array<i32: 0>} : vector<64x64xi32>
    %1169 = tpu.iota {dimensions = array<i32: 1>} : vector<64x64xi32>
    %c4_i32_493 = arith.constant 4 : i32
    %1170 = vector.broadcast %c4_i32_493 : i32 to vector<64x64xi32>
    %1171 = arith.shrsi %1168, %1170 : vector<64x64xi32>
    %c4_i32_494 = arith.constant 4 : i32
    %1172 = vector.broadcast %c4_i32_494 : i32 to vector<64x64xi32>
    %1173 = arith.shrsi %1169, %1172 : vector<64x64xi32>
    %1174 = arith.cmpi eq, %1171, %1173 : vector<64x64xi32>
    %c1_i32_495 = arith.constant 1 : i32
    %1175 = vector.broadcast %c1_i32_495 : i32 to vector<64x64xi32>
    %1176 = arith.andi %1168, %1175 : vector<64x64xi32>
    %c1_i32_496 = arith.constant 1 : i32
    %1177 = vector.broadcast %c1_i32_496 : i32 to vector<64x64xi32>
    %1178 = arith.andi %1169, %1177 : vector<64x64xi32>
    %1179 = arith.cmpi eq, %1176, %1178 : vector<64x64xi32>
    %1180 = arith.andi %1174, %1179 : vector<64x64xi1>
    %1181 = arith.truncf %1109 : vector<64x128xf32> to vector<64x128xbf16>
    %1182 = arith.truncf %1138 : vector<64x128xf32> to vector<64x128xbf16>
    %cst_497 = arith.constant dense<0.000000e+00> : vector<64x64xf32>
    %1183 = tpu.matmul %1181, %1182, %cst_497 {dimension_numbers = #tpu.dot_dimension_numbers<[1], [1], [0], [0], [0, 0, 1, 0], [], []>} : vector<64x128xbf16>, vector<64x128xbf16>, vector<64x64xf32> -> vector<64x64xf32>
    %cst_498 = arith.constant -1.000000e+30 : f32
    %1184 = vector.broadcast %cst_498 : f32 to vector<64x64xf32>
    %1185 = arith.select %1180, %1183, %1184 : vector<64x64xi1>, vector<64x64xf32>
    %cst_499 = arith.constant dense<0xFF800000> : vector<64xf32>
    %1186 = vector.multi_reduction <maximumf>, %1185, %cst_499 [1] : vector<64x64xf32> to vector<64xf32>
    %1187 = vector.shape_cast %1186 : vector<64xf32> to vector<64x1xf32>
    %1188 = vector.broadcast %1187 : vector<64x1xf32> to vector<64x64xf32>
    %1189 = arith.subf %1185, %1188 : vector<64x64xf32>
    %1190 = math.exp %1189 : vector<64x64xf32>
    %cst_500 = arith.constant dense<0.000000e+00> : vector<64xf32>
    %1191 = vector.multi_reduction <add>, %1190, %cst_500 [1] : vector<64x64xf32> to vector<64xf32>
    %1192 = vector.shape_cast %1191 : vector<64xf32> to vector<64x1xf32>
    %1193 = tpu.reciprocal %1192 {approx = true} : vector<64x1xf32> -> vector<64x1xf32>
    %1194 = vector.broadcast %1193 : vector<64x1xf32> to vector<64x64xf32>
    %1195 = arith.mulf %1190, %1194 : vector<64x64xf32>
    %1196 = arith.truncf %1195 : vector<64x64xf32> to vector<64x64xbf16>
    %1197 = arith.truncf %1167 : vector<64x128xf32> to vector<64x128xbf16>
    %cst_501 = arith.constant dense<0.000000e+00> : vector<64x128xf32>
    %1198 = tpu.matmul %1196, %1197, %cst_501 {dimension_numbers = #tpu.dot_dimension_numbers<[1], [0], [0], [1], [0, 0, 1, 1], [], []>} : vector<64x64xbf16>, vector<64x128xbf16>, vector<64x128xf32> -> vector<64x128xf32>
    %1199 = vector.extract_strided_slice %1198 {offsets = [0, 0], sizes = [16, 128], strides = [1, 1]} : vector<64x128xf32> to vector<16x128xf32>
    %1200 = vector.extract_strided_slice %1198 {offsets = [16, 0], sizes = [16, 128], strides = [1, 1]} : vector<64x128xf32> to vector<16x128xf32>
    %1201 = arith.addf %1199, %1200 : vector<16x128xf32>
    %1202 = vector.extract_strided_slice %1198 {offsets = [32, 0], sizes = [16, 128], strides = [1, 1]} : vector<64x128xf32> to vector<16x128xf32>
    %1203 = arith.addf %1201, %1202 : vector<16x128xf32>
    %1204 = vector.extract_strided_slice %1198 {offsets = [48, 0], sizes = [16, 128], strides = [1, 1]} : vector<64x128xf32> to vector<16x128xf32>
    %1205 = arith.addf %1203, %1204 : vector<16x128xf32>
    %1206 = arith.truncf %1205 : vector<16x128xf32> to vector<16x128xbf16>
    %cst_502 = arith.constant dense<0.000000e+00> : vector<16x32xf32>
    %1207 = tpu.matmul %1206, %1063, %cst_502 {dimension_numbers = #tpu.dot_dimension_numbers<[1], [0], [0], [1], [0, 0, 1, 1], [], []>} : vector<16x128xbf16>, vector<128x32xbf16>, vector<16x32xf32> -> vector<16x32xf32>
    %1208 = vector.broadcast %1064 : vector<1x32xf32> to vector<16x32xf32>
    %1209 = arith.addf %1207, %1208 : vector<16x32xf32>
    %1210 = arith.addf %1060, %1209 : vector<16x32xf32>
    %cst_503 = arith.constant dense<0.000000e+00> : vector<16xf32>
    %1211 = vector.multi_reduction <add>, %1210, %cst_503 [1] : vector<16x32xf32> to vector<16xf32>
    %1212 = vector.shape_cast %1211 : vector<16xf32> to vector<16x1xf32>
    %cst_504 = arith.constant 3.200000e+01 : f32
    %1213 = vector.broadcast %cst_504 : f32 to vector<16x1xf32>
    %1214 = arith.divf %1212, %1213 : vector<16x1xf32>
    %1215 = vector.broadcast %1214 : vector<16x1xf32> to vector<16x32xf32>
    %1216 = arith.subf %1210, %1215 : vector<16x32xf32>
    %1217 = arith.mulf %1216, %1216 : vector<16x32xf32>
    %cst_505 = arith.constant dense<0.000000e+00> : vector<16xf32>
    %1218 = vector.multi_reduction <add>, %1217, %cst_505 [1] : vector<16x32xf32> to vector<16xf32>
    %1219 = vector.shape_cast %1218 : vector<16xf32> to vector<16x1xf32>
    %cst_506 = arith.constant 3.200000e+01 : f32
    %1220 = vector.broadcast %cst_506 : f32 to vector<16x1xf32>
    %1221 = arith.divf %1219, %1220 : vector<16x1xf32>
    %cst_507 = arith.constant 9.99999974E-6 : f32
    %1222 = vector.broadcast %cst_507 : f32 to vector<16x1xf32>
    %1223 = arith.addf %1221, %1222 : vector<16x1xf32>
    %1224 = math.rsqrt %1223 : vector<16x1xf32>
    %1225 = vector.broadcast %1224 : vector<16x1xf32> to vector<16x32xf32>
    %1226 = arith.mulf %1216, %1225 : vector<16x32xf32>
    %1227 = vector.broadcast %1065 : vector<1x32xf32> to vector<16x32xf32>
    %1228 = arith.mulf %1226, %1227 : vector<16x32xf32>
    %1229 = vector.broadcast %1066 : vector<1x32xf32> to vector<16x32xf32>
    %1230 = arith.addf %1228, %1229 : vector<16x32xf32>
    %1231 = arith.truncf %1230 : vector<16x32xf32> to vector<16x32xbf16>
    %cst_508 = arith.constant dense<0.000000e+00> : vector<16x32xf32>
    %1232 = tpu.matmul %1231, %1067, %cst_508 {dimension_numbers = #tpu.dot_dimension_numbers<[1], [0], [0], [1], [0, 0, 1, 1], [], []>} : vector<16x32xbf16>, vector<32x32xbf16>, vector<16x32xf32> -> vector<16x32xf32>
    %1233 = vector.broadcast %1068 : vector<1x32xf32> to vector<16x32xf32>
    %1234 = arith.addf %1232, %1233 : vector<16x32xf32>
    %cst_509 = arith.constant 5.000000e-01 : f32
    %1235 = vector.broadcast %cst_509 : f32 to vector<16x32xf32>
    %1236 = arith.mulf %1235, %1234 : vector<16x32xf32>
    %cst_510 = arith.constant 0.707106769 : f32
    %1237 = vector.broadcast %cst_510 : f32 to vector<16x32xf32>
    %1238 = arith.mulf %1234, %1237 : vector<16x32xf32>
    %cst_511 = arith.constant -4.000000e+00 : f32
    %cst_512 = arith.constant 4.000000e+00 : f32
    %1239 = vector.broadcast %cst_511 : f32 to vector<16x32xf32>
    %1240 = arith.maximumf %1239, %1238 : vector<16x32xf32>
    %1241 = vector.broadcast %cst_512 : f32 to vector<16x32xf32>
    %1242 = arith.minimumf %1241, %1240 : vector<16x32xf32>
    %1243 = arith.mulf %1242, %1242 : vector<16x32xf32>
    %cst_513 = arith.constant -2.72614237E-10 : f32
    %1244 = vector.broadcast %cst_513 : f32 to vector<16x32xf32>
    %1245 = arith.mulf %1244, %1243 : vector<16x32xf32>
    %cst_514 = arith.constant 2.77068146E-8 : f32
    %1246 = vector.broadcast %cst_514 : f32 to vector<16x32xf32>
    %1247 = arith.addf %1245, %1246 : vector<16x32xf32>
    %1248 = arith.mulf %1247, %1243 : vector<16x32xf32>
    %cst_515 = arith.constant -2.10102394E-6 : f32
    %1249 = vector.broadcast %cst_515 : f32 to vector<16x32xf32>
    %1250 = arith.addf %1248, %1249 : vector<16x32xf32>
    %1251 = arith.mulf %1250, %1243 : vector<16x32xf32>
    %cst_516 = arith.constant -5.69250624E-5 : f32
    %1252 = vector.broadcast %cst_516 : f32 to vector<16x32xf32>
    %1253 = arith.addf %1251, %1252 : vector<16x32xf32>
    %1254 = arith.mulf %1253, %1243 : vector<16x32xf32>
    %cst_517 = arith.constant -7.34990637E-4 : f32
    %1255 = vector.broadcast %cst_517 : f32 to vector<16x32xf32>
    %1256 = arith.addf %1254, %1255 : vector<16x32xf32>
    %1257 = arith.mulf %1256, %1243 : vector<16x32xf32>
    %cst_518 = arith.constant -2.954600e-03 : f32
    %1258 = vector.broadcast %cst_518 : f32 to vector<16x32xf32>
    %1259 = arith.addf %1257, %1258 : vector<16x32xf32>
    %1260 = arith.mulf %1259, %1243 : vector<16x32xf32>
    %cst_519 = arith.constant -0.0160960332 : f32
    %1261 = vector.broadcast %cst_519 : f32 to vector<16x32xf32>
    %1262 = arith.addf %1260, %1261 : vector<16x32xf32>
    %cst_520 = arith.constant -1.45660715E-5 : f32
    %1263 = vector.broadcast %cst_520 : f32 to vector<16x32xf32>
    %1264 = arith.mulf %1263, %1243 : vector<16x32xf32>
    %cst_521 = arith.constant -2.13374049E-4 : f32
    %1265 = vector.broadcast %cst_521 : f32 to vector<16x32xf32>
    %1266 = arith.addf %1264, %1265 : vector<16x32xf32>
    %1267 = arith.mulf %1266, %1243 : vector<16x32xf32>
    %cst_522 = arith.constant -0.00168282702 : f32
    %1268 = vector.broadcast %cst_522 : f32 to vector<16x32xf32>
    %1269 = arith.addf %1267, %1268 : vector<16x32xf32>
    %1270 = arith.mulf %1269, %1243 : vector<16x32xf32>
    %cst_523 = arith.constant -0.00737332925 : f32
    %1271 = vector.broadcast %cst_523 : f32 to vector<16x32xf32>
    %1272 = arith.addf %1270, %1271 : vector<16x32xf32>
    %1273 = arith.mulf %1272, %1243 : vector<16x32xf32>
    %cst_524 = arith.constant -0.0142647391 : f32
    %1274 = vector.broadcast %cst_524 : f32 to vector<16x32xf32>
    %1275 = arith.addf %1273, %1274 : vector<16x32xf32>
    %1276 = arith.mulf %1242, %1262 : vector<16x32xf32>
    %1277 = arith.divf %1276, %1275 : vector<16x32xf32>
    %cst_525 = arith.constant 1.000000e+00 : f32
    %1278 = vector.broadcast %cst_525 : f32 to vector<16x32xf32>
    %1279 = arith.addf %1278, %1277 : vector<16x32xf32>
    %1280 = arith.mulf %1236, %1279 : vector<16x32xf32>
    %1281 = arith.truncf %1280 : vector<16x32xf32> to vector<16x32xbf16>
    %cst_526 = arith.constant dense<0.000000e+00> : vector<16x64xf32>
    %1282 = tpu.matmul %1281, %1069, %cst_526 {dimension_numbers = #tpu.dot_dimension_numbers<[1], [0], [0], [1], [0, 0, 1, 1], [], []>} : vector<16x32xbf16>, vector<32x64xbf16>, vector<16x64xf32> -> vector<16x64xf32>
    %1283 = vector.broadcast %1070 : vector<1x64xf32> to vector<16x64xf32>
    %1284 = arith.addf %1282, %1283 : vector<16x64xf32>
    %c0_527 = arith.constant 0 : index
    %c0_528 = arith.constant 0 : index
    %1285 = vector.load %arg65[%c0_527, %c0_528] : memref<64x128xbf16, #tpu.memory_space<vmem>>, vector<64x128xbf16>
    %1286 = arith.truncf %1284 : vector<16x64xf32> to vector<16x64xbf16>
    %cst_529 = arith.constant dense<0.000000e+00> : vector<16x128xf32>
    %1287 = tpu.matmul %1286, %1285, %cst_529 {dimension_numbers = #tpu.dot_dimension_numbers<[1], [0], [0], [1], [0, 0, 1, 1], [], []>} : vector<16x64xbf16>, vector<64x128xbf16>, vector<16x128xf32> -> vector<16x128xf32>
    %c0_530 = arith.constant 0 : index
    %c0_531 = arith.constant 0 : index
    %1288 = vector.load %arg66[%c0_530, %c0_531] : memref<1x128xf32, #tpu.memory_space<vmem>>, vector<1x128xf32>
    %1289 = vector.broadcast %1288 : vector<1x128xf32> to vector<16x128xf32>
    %1290 = arith.addf %1287, %1289 : vector<16x128xf32>
    %c0_532 = arith.constant 0 : index
    %c0_533 = arith.constant 0 : index
    %1291 = vector.load %arg67[%c0_532, %c0_533] : memref<16x128xf32, #tpu.memory_space<vmem>>, vector<16x128xf32>
    tpu.vector_store %arg67[%c0_532, %c0_533], %1290 {strides = array<i32>} : memref<16x128xf32, #tpu.memory_space<vmem>>, vector<16x128xf32>,
    return
  }
}

</mosaic_0001>

<llo_original>
// kernel: tpu_custom_call.1
$region0: #{tpu_custom_call.1}
  #allocation0 [shape = 'u32[]', space=smem, size = 0x4, offset = 0x4, fixed_abs, tag = 'smem constant byte address 0x4 - core index']
  #allocation1 [shape = 'u32[144,128]{1,0:T(1,128)}', space=vmem, size = 0x12000, scoped, tag = 'internal scratch']
  %s0 = inlined_call_operand.smem [shape: u32[69], index: -1, kind: input, shape index: {}]
  %s1 = sld [smem:[%s0]]
  %s2 = scalar_lea.smem %s0, 1
  %s3 = sld [smem:[%s2]]
  %s4 = scalar_lea.smem %s0, 2
  %s5 = sld [smem:[%s4]]
  %s6 = scalar_lea.smem %s0, 3
  %s7 = sld [smem:[%s6]]
  %s8 = scalar_lea.smem %s0, 4
  %s9 = sld [smem:[%s8]]
  %s10 = scalar_lea.smem %s0, 5
  %s11 = sld [smem:[%s10]]
  %s12 = scalar_lea.smem %s0, 6
  %s13 = sld [smem:[%s12]]
  %s14 = scalar_lea.smem %s0, 7
  %s15 = sld [smem:[%s14]]
  %s16 = scalar_lea.smem %s0, 8
  %s17 = sld [smem:[%s16]]
  %s18 = scalar_lea.smem %s0, 9
  %s19 = sld [smem:[%s18]]
  %s20 = scalar_lea.smem %s0, 10
  %s21 = sld [smem:[%s20]]
  %s22 = scalar_lea.smem %s0, 11
  %s23 = sld [smem:[%s22]]
  %s24 = scalar_lea.smem %s0, 12
  %s25 = sld [smem:[%s24]]
  %s26 = scalar_lea.smem %s0, 13
  %s27 = sld [smem:[%s26]]
  %s28 = scalar_lea.smem %s0, 14
  %s29 = sld [smem:[%s28]]
  %s30 = scalar_lea.smem %s0, 15
  %s31 = sld [smem:[%s30]]
  %s32 = scalar_lea.smem %s0, 16
  %s33 = sld [smem:[%s32]]
  %s34 = scalar_lea.smem %s0, 17
  %s35 = sld [smem:[%s34]]
  %s36 = scalar_lea.smem %s0, 18
  %s37 = sld [smem:[%s36]]
  %s38 = scalar_lea.smem %s0, 19
  %s39 = sld [smem:[%s38]]
  %s40 = scalar_lea.smem %s0, 20
  %s41 = sld [smem:[%s40]]
  %s42 = scalar_lea.smem %s0, 21
  %s43 = sld [smem:[%s42]]
  %s44 = scalar_lea.smem %s0, 22
  %s45 = sld [smem:[%s44]]
  %s46 = scalar_lea.smem %s0, 23
  %s47 = sld [smem:[%s46]]
  %s48 = scalar_lea.smem %s0, 24
  %s49 = sld [smem:[%s48]]
  %s50 = scalar_lea.smem %s0, 25
  %s51 = sld [smem:[%s50]]
  %s52 = scalar_lea.smem %s0, 26
  %s53 = sld [smem:[%s52]]
  %s54 = scalar_lea.smem %s0, 27
  %s55 = sld [smem:[%s54]]
  %s56 = scalar_lea.smem %s0, 28
  %s57 = sld [smem:[%s56]]
  %s58 = scalar_lea.smem %s0, 29
  %s59 = sld [smem:[%s58]]
  %s60 = scalar_lea.smem %s0, 30
  %s61 = sld [smem:[%s60]]
  %s62 = scalar_lea.smem %s0, 31
  %s63 = sld [smem:[%s62]]
  %s64 = scalar_lea.smem %s0, 32
  %s65 = sld [smem:[%s64]]
  %s66 = scalar_lea.smem %s0, 33
  %s67 = sld [smem:[%s66]]
  %s68 = scalar_lea.smem %s0, 34
  %s69 = sld [smem:[%s68]]
  %s70 = scalar_lea.smem %s0, 35
  %s71 = sld [smem:[%s70]]
  %s72 = scalar_lea.smem %s0, 36
  %s73 = sld [smem:[%s72]]
  %s74 = scalar_lea.smem %s0, 37
  %s75 = sld [smem:[%s74]]
  %s76 = scalar_lea.smem %s0, 38
  %s77 = sld [smem:[%s76]]
  %s78 = scalar_lea.smem %s0, 39
  %s79 = sld [smem:[%s78]]
  %s80 = scalar_lea.smem %s0, 40
  %s81 = sld [smem:[%s80]]
  %s82 = scalar_lea.smem %s0, 41
  %s83 = sld [smem:[%s82]]
  %s84 = scalar_lea.smem %s0, 42
  %s85 = sld [smem:[%s84]]
  %s86 = scalar_lea.smem %s0, 43
  %s87 = sld [smem:[%s86]]
  %s88 = scalar_lea.smem %s0, 44
  %s89 = sld [smem:[%s88]]
  %s90 = scalar_lea.smem %s0, 45
  %s91 = sld [smem:[%s90]]
  %s92 = scalar_lea.smem %s0, 46
  %s93 = sld [smem:[%s92]]
  %s94 = scalar_lea.smem %s0, 47
  %s95 = sld [smem:[%s94]]
  %s96 = scalar_lea.smem %s0, 48
  %s97 = sld [smem:[%s96]]
  %s98 = scalar_lea.smem %s0, 49
  %s99 = sld [smem:[%s98]]
  %s100 = scalar_lea.smem %s0, 50
  %s101 = sld [smem:[%s100]]
  %s102 = scalar_lea.smem %s0, 51
  %s103 = sld [smem:[%s102]]
  %s104 = scalar_lea.smem %s0, 52
  %s105 = sld [smem:[%s104]]
  %s106 = scalar_lea.smem %s0, 53
  %s107 = sld [smem:[%s106]]
  %s108 = scalar_lea.smem %s0, 54
  %s109 = sld [smem:[%s108]]
  %s110 = scalar_lea.smem %s0, 55
  %s111 = sld [smem:[%s110]]
  %s112 = scalar_lea.smem %s0, 56
  %s113 = sld [smem:[%s112]]
  %s114 = scalar_lea.smem %s0, 57
  %s115 = sld [smem:[%s114]]
  %s116 = scalar_lea.smem %s0, 58
  %s117 = sld [smem:[%s116]]
  %s118 = scalar_lea.smem %s0, 59
  %s119 = sld [smem:[%s118]]
  %s120 = scalar_lea.smem %s0, 60
  %s121 = sld [smem:[%s120]]
  %s122 = scalar_lea.smem %s0, 61
  %s123 = sld [smem:[%s122]]
  %s124 = scalar_lea.smem %s0, 62
  %s125 = sld [smem:[%s124]]
  %s126 = scalar_lea.smem %s0, 63
  %s127 = sld [smem:[%s126]]
  %s128 = scalar_lea.smem %s0, 64
  %s129 = sld [smem:[%s128]]
  %s130 = scalar_lea.smem %s0, 65
  %s131 = sld [smem:[%s130]]
  %s132 = scalar_lea.smem %s0, 66
  %s133 = sld [smem:[%s132]]
  %s134 = scalar_lea.smem %s0, 67
  %s135 = sld [smem:[%s134]]
  %s136 = scalar_lea.smem %s0, 68
  %s137 = sld [smem:[%s136]]
  %138 = xla_tuple %s135, %s137
  %s139 = sld [smem:[#allocation0]]
  $region394: #{tpu_custom_call.1} parent=0
    _
  %s141 = ssub.s32 1, %s139
  %s142 = scalar_select 0, %s141, %s139
  $region1: #{tpu_custom_call.1} parent=0
    #allocation2 [shape = 'u8[512]{0}', space=vmem, size = 0x400, scoped, tag = 'input window, operand 16, single buffered']
    #allocation3 [shape = 's32[1]{0}', space=sflag, size = 0x4, scoped, tag = 'scoped memory for tpu_custom_call.1']
    #allocation4 [shape = 's32[1]{0}', space=sflag, size = 0x4, scoped, tag = 'scoped memory for tpu_custom_call.1']
    #allocation5 [shape = 'u8[512]{0}', space=vmem, size = 0x400, scoped, tag = 'input window, operand 17, single buffered']
    #allocation6 [shape = 's32[1]{0}', space=sflag, size = 0x4, scoped, tag = 'scoped memory for tpu_custom_call.1']
    #allocation7 [shape = 'u8[512]{0}', space=vmem, size = 0x400, scoped, tag = 'input window, operand 18, single buffered']
    #allocation8 [shape = 'u8[512]{0}', space=vmem, size = 0x400, scoped, tag = 'input window, operand 20, single buffered']
    #allocation9 [shape = 's32[1]{0}', space=sflag, size = 0x4, scoped, tag = 'scoped memory for tpu_custom_call.1']
    #allocation10 [shape = 'u8[512]{0}', space=vmem, size = 0x400, scoped, tag = 'input window, operand 22, single buffered']
    #allocation11 [shape = 'u8[512]{0}', space=vmem, size = 0x400, scoped, tag = 'input window, operand 26, single buffered']
    #allocation12 [shape = 's32[1]{0}', space=sflag, size = 0x4, scoped, tag = 'scoped memory for tpu_custom_call.1']
    #allocation13 [shape = 'u8[512]{0}', space=vmem, size = 0x400, scoped, tag = 'input window, operand 27, single buffered']
    #allocation14 [shape = 'u8[512]{0}', space=vmem, size = 0x400, scoped, tag = 'input window, operand 28, single buffered']
    #allocation15 [shape = 's32[1]{0}', space=sflag, size = 0x4, scoped, tag = 'scoped memory for tpu_custom_call.1']
    #allocation16 [shape = 'u8[512]{0}', space=vmem, size = 0x400, scoped, tag = 'input window, operand 30, single buffered']
    #allocation17 [shape = 'u8[512]{0}', space=vmem, size = 0x400, scoped, tag = 'input window, operand 32, single buffered']
    #allocation18 [shape = 's32[1]{0}', space=sflag, size = 0x4, scoped, tag = 'scoped memory for tpu_custom_call.1']
    #allocation19 [shape = 'u8[512]{0}', space=vmem, size = 0x400, scoped, tag = 'input window, operand 36, single buffered']
    #allocation20 [shape = 'u8[512]{0}', space=vmem, size = 0x400, scoped, tag = 'input window, operand 37, single buffered']
    #allocation21 [shape = 's32[1]{0}', space=sflag, size = 0x4, scoped, tag = 'scoped memory for tpu_custom_call.1']
    #allocation22 [shape = 'u8[512]{0}', space=vmem, size = 0x400, scoped, tag = 'input window, operand 38, single buffered']
    #allocation23 [shape = 'u8[512]{0}', space=vmem, size = 0x400, scoped, tag = 'input window, operand 40, single buffered']
    #allocation24 [shape = 's32[1]{0}', space=sflag, size = 0x4, scoped, tag = 'scoped memory for tpu_custom_call.1']
    #allocation25 [shape = 'u8[512]{0}', space=vmem, size = 0x400, scoped, tag = 'input window, operand 42, single buffered']
    #allocation26 [shape = 'u8[512]{0}', space=vmem, size = 0x400, scoped, tag = 'input window, operand 46, single buffered']
    #allocation27 [shape = 's32[1]{0}', space=sflag, size = 0x4, scoped, tag = 'scoped memory for tpu_custom_call.1']
    #allocation28 [shape = 'u8[512]{0}', space=vmem, size = 0x400, scoped, tag = 'input window, operand 47, single buffered']
    #allocation29 [shape = 'u8[512]{0}', space=vmem, size = 0x400, scoped, tag = 'input window, operand 48, single buffered']
    #allocation30 [shape = 's32[1]{0}', space=sflag, size = 0x4, scoped, tag = 'scoped memory for tpu_custom_call.1']
    #allocation31 [shape = 'u8[512]{0}', space=vmem, size = 0x400, scoped, tag = 'input window, operand 50, single buffered']
    #allocation32 [shape = 'u8[512]{0}', space=vmem, size = 0x400, scoped, tag = 'input window, operand 52, single buffered']
    #allocation33 [shape = 's32[1]{0}', space=sflag, size = 0x4, scoped, tag = 'scoped memory for tpu_custom_call.1']
    #allocation34 [shape = 'u8[512]{0}', space=vmem, size = 0x400, scoped, tag = 'input window, operand 56, single buffered']
    #allocation35 [shape = 'u8[512]{0}', space=vmem, size = 0x400, scoped, tag = 'input window, operand 57, single buffered']
    #allocation36 [shape = 's32[1]{0}', space=sflag, size = 0x4, scoped, tag = 'scoped memory for tpu_custom_call.1']
    #allocation37 [shape = 'u8[512]{0}', space=vmem, size = 0x400, scoped, tag = 'input window, operand 58, single buffered']
    #allocation38 [shape = 'u8[512]{0}', space=vmem, size = 0x400, scoped, tag = 'input window, operand 60, single buffered']
    #allocation39 [shape = 's32[1]{0}', space=sflag, size = 0x4, scoped, tag = 'scoped memory for tpu_custom_call.1']
    #allocation40 [shape = 'u8[512]{0}', space=vmem, size = 0x400, scoped, tag = 'input window, operand 62, single buffered']
    #allocation41 [shape = 'u8[512]{0}', space=vmem, size = 0x400, scoped, tag = 'input window, operand 64, single buffered']
    #allocation42 [shape = 's32[1]{0}', space=sflag, size = 0x4, scoped, tag = 'scoped memory for tpu_custom_call.1']
    #allocation43 [shape = 'u8[512]{0}', space=vmem, size = 0x400, scoped, tag = 'input window, operand 66, single buffered']
    #allocation44 [shape = 'u8[8192]{0}', space=vmem, size = 0x2000, scoped, tag = 'output window, operand 0, single buffered']
    #allocation45 [shape = 'u8[8192]{0}', space=vmem, size = 0x2000, scoped, tag = 'output window, operand 1, single buffered']
    #allocation46 [shape = 's32[1]{0}', space=sflag, size = 0x4, scoped, tag = 'scoped memory for tpu_custom_call.1']
    %143 = vsyncpa [#allocation3], 0
    %144 = vsyncpa [#allocation6], 0
    %145 = vsyncpa [#allocation9], 0
    %146 = vsyncpa [#allocation12], 0
    %147 = vsyncpa [#allocation15], 0
    %148 = vsyncpa [#allocation18], 0
    %149 = vsyncpa [#allocation21], 0
    %150 = vsyncpa [#allocation24], 0
    %151 = vsyncpa [#allocation27], 0
    %152 = vsyncpa [#allocation30], 0
    %153 = vsyncpa [#allocation33], 0
    %154 = vsyncpa [#allocation36], 0
    %155 = vsyncpa [#allocation39], 0
    %156 = vsyncpa [#allocation42], 0
    %157 = vsyncpa [#allocation4], 0
    %158 = vsyncpa [#allocation46], 0
    // Predicated region
    $region2: #{tpu_custom_call.1} parent=1 // pred_check
      _
    $region3: #{tpu_custom_call.1} parent=1 // pred_check_branch
      %160 = sbr.rel (0) target = $region5
    $region4: #{tpu_custom_call.1} parent=1 // pred_region
      _
    $region5: #{tpu_custom_call.1} parent=1 // pred_fallthru
      _
    // Predicated region
    $region6: #{tpu_custom_call.1} parent=1 // pred_check
      _
    $region7: #{tpu_custom_call.1} parent=1 // pred_check_branch
      %162 = sbr.rel (0) target = $region9
    $region8: #{tpu_custom_call.1} parent=1 // pred_region
      _
    $region9: #{tpu_custom_call.1} parent=1 // pred_fallthru
      _
    // Predicated region
    $region10: #{tpu_custom_call.1} parent=1 // pred_check
      _
    $region11: #{tpu_custom_call.1} parent=1 // pred_check_branch
      %164 = sbr.rel (0) target = $region13
    $region12: #{tpu_custom_call.1} parent=1 // pred_region
      _
    $region13: #{tpu_custom_call.1} parent=1 // pred_fallthru
      _
    // Predicated region
    $region14: #{tpu_custom_call.1} parent=1 // pred_check
      _
    $region15: #{tpu_custom_call.1} parent=1 // pred_check_branch
      %166 = sbr.rel (0) target = $region17
    $region16: #{tpu_custom_call.1} parent=1 // pred_region
      _
    $region17: #{tpu_custom_call.1} parent=1 // pred_fallthru
      _
    // Predicated region
    $region18: #{tpu_custom_call.1} parent=1 // pred_check
      _
    $region19: #{tpu_custom_call.1} parent=1 // pred_check_branch
      %168 = sbr.rel (0) target = $region21
    $region20: #{tpu_custom_call.1} parent=1 // pred_region
      _
    $region21: #{tpu_custom_call.1} parent=1 // pred_fallthru
      _
    // Predicated region
    $region22: #{tpu_custom_call.1} parent=1 // pred_check
      _
    $region23: #{tpu_custom_call.1} parent=1 // pred_check_branch
      %170 = sbr.rel (0) target = $region25
    $region24: #{tpu_custom_call.1} parent=1 // pred_region
      _
    $region25: #{tpu_custom_call.1} parent=1 // pred_fallthru
      _
    // Predicated region
    $region26: #{tpu_custom_call.1} parent=1 // pred_check
      _
    $region27: #{tpu_custom_call.1} parent=1 // pred_check_branch
      %172 = sbr.rel (0) target = $region29
    $region28: #{tpu_custom_call.1} parent=1 // pred_region
      _
    $region29: #{tpu_custom_call.1} parent=1 // pred_fallthru
      _
    // Predicated region
    $region30: #{tpu_custom_call.1} parent=1 // pred_check
      _
    $region31: #{tpu_custom_call.1} parent=1 // pred_check_branch
      %174 = sbr.rel (0) target = $region33
    $region32: #{tpu_custom_call.1} parent=1 // pred_region
      _
    $region33: #{tpu_custom_call.1} parent=1 // pred_fallthru
      _
    // Predicated region
    $region34: #{tpu_custom_call.1} parent=1 // pred_check
      _
    $region35: #{tpu_custom_call.1} parent=1 // pred_check_branch
      %176 = sbr.rel (0) target = $region37
    $region36: #{tpu_custom_call.1} parent=1 // pred_region
      _
    $region37: #{tpu_custom_call.1} parent=1 // pred_fallthru
      _
    // Predicated region
    $region38: #{tpu_custom_call.1} parent=1 // pred_check
      _
    $region39: #{tpu_custom_call.1} parent=1 // pred_check_branch
      %178 = sbr.rel (0) target = $region41
    $region40: #{tpu_custom_call.1} parent=1 // pred_region
      _
    $region41: #{tpu_custom_call.1} parent=1 // pred_fallthru
      _
    // Predicated region
    $region42: #{tpu_custom_call.1} parent=1 // pred_check
      _
    $region43: #{tpu_custom_call.1} parent=1 // pred_check_branch
      %180 = sbr.rel (0) target = $region45
    $region44: #{tpu_custom_call.1} parent=1 // pred_region
      _
    $region45: #{tpu_custom_call.1} parent=1 // pred_fallthru
      _
    // Predicated region
    $region46: #{tpu_custom_call.1} parent=1 // pred_check
      _
    $region47: #{tpu_custom_call.1} parent=1 // pred_check_branch
      %182 = sbr.rel (0) target = $region49
    $region48: #{tpu_custom_call.1} parent=1 // pred_region
      _
    $region49: #{tpu_custom_call.1} parent=1 // pred_fallthru
      _
    // Predicated region
    $region50: #{tpu_custom_call.1} parent=1 // pred_check
      _
    $region51: #{tpu_custom_call.1} parent=1 // pred_check_branch
      %184 = sbr.rel (0) target = $region53
    $region52: #{tpu_custom_call.1} parent=1 // pred_region
      _
    $region53: #{tpu_custom_call.1} parent=1 // pred_fallthru
      _
    // Predicated region
    $region54: #{tpu_custom_call.1} parent=1 // pred_check
      _
    $region55: #{tpu_custom_call.1} parent=1 // pred_check_branch
      %186 = sbr.rel (0) target = $region57
    $region56: #{tpu_custom_call.1} parent=1 // pred_region
      _
    $region57: #{tpu_custom_call.1} parent=1 // pred_fallthru
      _
    // Predicated region
    $region58: #{tpu_custom_call.1} parent=1 // pred_check
      _
    $region59: #{tpu_custom_call.1} parent=1 // pred_check_branch
      %188 = sbr.rel (0) target = $region61
    $region60: #{tpu_custom_call.1} parent=1 // pred_region
      _
    $region61: #{tpu_custom_call.1} parent=1 // pred_fallthru
      _
    // Predicated region
    $region62: #{tpu_custom_call.1} parent=1 // pred_check
      _
    $region63: #{tpu_custom_call.1} parent=1 // pred_check_branch
      %190 = sbr.rel (0) target = $region65
    $region64: #{tpu_custom_call.1} parent=1 // pred_region
      _
    $region65: #{tpu_custom_call.1} parent=1 // pred_fallthru
      _
    // Predicated region
    $region66: #{tpu_custom_call.1} parent=1 // pred_check
      _
    $region67: #{tpu_custom_call.1} parent=1 // pred_check_branch
      %192 = sbr.rel (0) target = $region69
    $region68: #{tpu_custom_call.1} parent=1 // pred_region
      %s194 = ssub.s32 16, 16
      %195 = vsyncadd [#allocation3], %s194
      %s197 = sshll.u32 [#allocation2], 4
      %s198 = int_to_ptr.vmem [resolvable:$true] %s197
      %200 = dma.hbm_to_vmem [thread:$0]  %s33, 16, %s198, [#allocation3]
    $region69: #{tpu_custom_call.1} parent=1 // pred_fallthru
      _
    // Predicated region
    $region70: #{tpu_custom_call.1} parent=1 // pred_check
      _
    $region71: #{tpu_custom_call.1} parent=1 // pred_check_branch
      %202 = sbr.rel (0) target = $region73
    $region72: #{tpu_custom_call.1} parent=1 // pred_region
      %s204 = ssub.s32 16, 16
      %205 = vsyncadd [#allocation6], %s204
      %s207 = sshll.u32 [#allocation5], 4
      %s208 = int_to_ptr.vmem [resolvable:$true] %s207
      %210 = dma.hbm_to_vmem [thread:$0]  %s35, 16, %s208, [#allocation6]
    $region73: #{tpu_custom_call.1} parent=1 // pred_fallthru
      _
    // Predicated region
    $region74: #{tpu_custom_call.1} parent=1 // pred_check
      _
    $region75: #{tpu_custom_call.1} parent=1 // pred_check_branch
      %212 = sbr.rel (0) target = $region77
    $region76: #{tpu_custom_call.1} parent=1 // pred_region
      %s214 = ssub.s32 16, 16
      %215 = vsyncadd [#allocation6], %s214
      %s217 = sshll.u32 [#allocation7], 4
      %s218 = int_to_ptr.vmem [resolvable:$true] %s217
      %220 = dma.hbm_to_vmem [thread:$0]  %s37, 16, %s218, [#allocation6]
    $region77: #{tpu_custom_call.1} parent=1 // pred_fallthru
      _
    // Predicated region
    $region78: #{tpu_custom_call.1} parent=1 // pred_check
      _
    $region79: #{tpu_custom_call.1} parent=1 // pred_check_branch
      %222 = sbr.rel (0) target = $region81
    $region80: #{tpu_custom_call.1} parent=1 // pred_region
      _
    $region81: #{tpu_custom_call.1} parent=1 // pred_fallthru
      _
    // Predicated region
    $region82: #{tpu_custom_call.1} parent=1 // pred_check
      _
    $region83: #{tpu_custom_call.1} parent=1 // pred_check_branch
      %224 = sbr.rel (0) target = $region85
    $region84: #{tpu_custom_call.1} parent=1 // pred_region
      %s226 = ssub.s32 16, 16
      %227 = vsyncadd [#allocation9], %s226
      %s229 = sshll.u32 [#allocation8], 4
      %s230 = int_to_ptr.vmem [resolvable:$true] %s229
      %232 = dma.hbm_to_vmem [thread:$0]  %s41, 16, %s230, [#allocation9]
    $region85: #{tpu_custom_call.1} parent=1 // pred_fallthru
      _
    // Predicated region
    $region86: #{tpu_custom_call.1} parent=1 // pred_check
      _
    $region87: #{tpu_custom_call.1} parent=1 // pred_check_branch
      %234 = sbr.rel (0) target = $region89
    $region88: #{tpu_custom_call.1} parent=1 // pred_region
      _
    $region89: #{tpu_custom_call.1} parent=1 // pred_fallthru
      _
    // Predicated region
    $region90: #{tpu_custom_call.1} parent=1 // pred_check
      _
    $region91: #{tpu_custom_call.1} parent=1 // pred_check_branch
      %236 = sbr.rel (0) target = $region93
    $region92: #{tpu_custom_call.1} parent=1 // pred_region
      %s238 = ssub.s32 16, 16
      %239 = vsyncadd [#allocation9], %s238
      %s241 = sshll.u32 [#allocation10], 4
      %s242 = int_to_ptr.vmem [resolvable:$true] %s241
      %244 = dma.hbm_to_vmem [thread:$0]  %s45, 16, %s242, [#allocation9]
    $region93: #{tpu_custom_call.1} parent=1 // pred_fallthru
      _
    // Predicated region
    $region94: #{tpu_custom_call.1} parent=1 // pred_check
      _
    $region95: #{tpu_custom_call.1} parent=1 // pred_check_branch
      %246 = sbr.rel (0) target = $region97
    $region96: #{tpu_custom_call.1} parent=1 // pred_region
      _
    $region97: #{tpu_custom_call.1} parent=1 // pred_fallthru
      _
    // Predicated region
    $region98: #{tpu_custom_call.1} parent=1 // pred_check
      _
    $region99: #{tpu_custom_call.1} parent=1 // pred_check_branch
      %248 = sbr.rel (0) target = $region101
    $region100: #{tpu_custom_call.1} parent=1 // pred_region
      _
    $region101: #{tpu_custom_call.1} parent=1 // pred_fallthru
      _
    // Predicated region
    $region102: #{tpu_custom_call.1} parent=1 // pred_check
      _
    $region103: #{tpu_custom_call.1} parent=1 // pred_check_branch
      %250 = sbr.rel (0) target = $region105
    $region104: #{tpu_custom_call.1} parent=1 // pred_region
      _
    $region105: #{tpu_custom_call.1} parent=1 // pred_fallthru
      _
    // Predicated region
    $region106: #{tpu_custom_call.1} parent=1 // pred_check
      _
    $region107: #{tpu_custom_call.1} parent=1 // pred_check_branch
      %252 = sbr.rel (0) target = $region109
    $region108: #{tpu_custom_call.1} parent=1 // pred_region
      %s254 = ssub.s32 16, 16
      %255 = vsyncadd [#allocation12], %s254
      %s257 = sshll.u32 [#allocation11], 4
      %s258 = int_to_ptr.vmem [resolvable:$true] %s257
      %260 = dma.hbm_to_vmem [thread:$0]  %s53, 16, %s258, [#allocation12]
    $region109: #{tpu_custom_call.1} parent=1 // pred_fallthru
      _
    // Predicated region
    $region110: #{tpu_custom_call.1} parent=1 // pred_check
      _
    $region111: #{tpu_custom_call.1} parent=1 // pred_check_branch
      %262 = sbr.rel (0) target = $region113
    $region112: #{tpu_custom_call.1} parent=1 // pred_region
      %s264 = ssub.s32 16, 16
      %265 = vsyncadd [#allocation12], %s264
      %s267 = sshll.u32 [#allocation13], 4
      %s268 = int_to_ptr.vmem [resolvable:$true] %s267
      %270 = dma.hbm_to_vmem [thread:$0]  %s55, 16, %s268, [#allocation12]
    $region113: #{tpu_custom_call.1} parent=1 // pred_fallthru
      _
    // Predicated region
    $region114: #{tpu_custom_call.1} parent=1 // pred_check
      _
    $region115: #{tpu_custom_call.1} parent=1 // pred_check_branch
      %272 = sbr.rel (0) target = $region117
    $region116: #{tpu_custom_call.1} parent=1 // pred_region
      %s274 = ssub.s32 16, 16
      %275 = vsyncadd [#allocation15], %s274
      %s277 = sshll.u32 [#allocation14], 4
      %s278 = int_to_ptr.vmem [resolvable:$true] %s277
      %280 = dma.hbm_to_vmem [thread:$0]  %s57, 16, %s278, [#allocation15]
    $region117: #{tpu_custom_call.1} parent=1 // pred_fallthru
      _
    // Predicated region
    $region118: #{tpu_custom_call.1} parent=1 // pred_check
      _
    $region119: #{tpu_custom_call.1} parent=1 // pred_check_branch
      %282 = sbr.rel (0) target = $region121
    $region120: #{tpu_custom_call.1} parent=1 // pred_region
      _
    $region121: #{tpu_custom_call.1} parent=1 // pred_fallthru
      _
    // Predicated region
    $region122: #{tpu_custom_call.1} parent=1 // pred_check
      _
    $region123: #{tpu_custom_call.1} parent=1 // pred_check_branch
      %284 = sbr.rel (0) target = $region125
    $region124: #{tpu_custom_call.1} parent=1 // pred_region
      %s286 = ssub.s32 16, 16
      %287 = vsyncadd [#allocation15], %s286
      %s289 = sshll.u32 [#allocation16], 4
      %s290 = int_to_ptr.vmem [resolvable:$true] %s289
      %292 = dma.hbm_to_vmem [thread:$0]  %s61, 16, %s290, [#allocation15]
    $region125: #{tpu_custom_call.1} parent=1 // pred_fallthru
      _
    // Predicated region
    $region126: #{tpu_custom_call.1} parent=1 // pred_check
      _
    $region127: #{tpu_custom_call.1} parent=1 // pred_check_branch
      %294 = sbr.rel (0) target = $region129
    $region128: #{tpu_custom_call.1} parent=1 // pred_region
      _
    $region129: #{tpu_custom_call.1} parent=1 // pred_fallthru
      _
    // Predicated region
    $region130: #{tpu_custom_call.1} parent=1 // pred_check
      _
    $region131: #{tpu_custom_call.1} parent=1 // pred_check_branch
      %296 = sbr.rel (0) target = $region133
    $region132: #{tpu_custom_call.1} parent=1 // pred_region
      %s298 = ssub.s32 16, 16
      %299 = vsyncadd [#allocation18], %s298
      %s301 = sshll.u32 [#allocation17], 4
      %s302 = int_to_ptr.vmem [resolvable:$true] %s301
      %304 = dma.hbm_to_vmem [thread:$0]  %s65, 16, %s302, [#allocation18]
    $region133: #{tpu_custom_call.1} parent=1 // pred_fallthru
      _
    // Predicated region
    $region134: #{tpu_custom_call.1} parent=1 // pred_check
      _
    $region135: #{tpu_custom_call.1} parent=1 // pred_check_branch
      %306 = sbr.rel (0) target = $region137
    $region136: #{tpu_custom_call.1} parent=1 // pred_region
      _
    $region137: #{tpu_custom_call.1} parent=1 // pred_fallthru
      _
    // Predicated region
    $region138: #{tpu_custom_call.1} parent=1 // pred_check
      _
    $region139: #{tpu_custom_call.1} parent=1 // pred_check_branch
      %308 = sbr.rel (0) target = $region141
    $region140: #{tpu_custom_call.1} parent=1 // pred_region
      _
    $region141: #{tpu_custom_call.1} parent=1 // pred_fallthru
      _
    // Predicated region
    $region142: #{tpu_custom_call.1} parent=1 // pred_check
      _
    $region143: #{tpu_custom_call.1} parent=1 // pred_check_branch
      %310 = sbr.rel (0) target = $region145
    $region144: #{tpu_custom_call.1} parent=1 // pred_region
      _
    $region145: #{tpu_custom_call.1} parent=1 // pred_fallthru
      _
    // Predicated region
    $region146: #{tpu_custom_call.1} parent=1 // pred_check
      _
    $region147: #{tpu_custom_call.1} parent=1 // pred_check_branch
      %312 = sbr.rel (0) target = $region149
    $region148: #{tpu_custom_call.1} parent=1 // pred_region
      %s314 = ssub.s32 16, 16
      %315 = vsyncadd [#allocation18], %s314
      %s317 = sshll.u32 [#allocation19], 4
      %s318 = int_to_ptr.vmem [resolvable:$true] %s317
      %320 = dma.hbm_to_vmem [thread:$0]  %s73, 16, %s318, [#allocation18]
    $region149: #{tpu_custom_call.1} parent=1 // pred_fallthru
      _
    // Predicated region
    $region150: #{tpu_custom_call.1} parent=1 // pred_check
      _
    $region151: #{tpu_custom_call.1} parent=1 // pred_check_branch
      %322 = sbr.rel (0) target = $region153
    $region152: #{tpu_custom_call.1} parent=1 // pred_region
      %s324 = ssub.s32 16, 16
      %325 = vsyncadd [#allocation21], %s324
      %s327 = sshll.u32 [#allocation20], 4
      %s328 = int_to_ptr.vmem [resolvable:$true] %s327
      %330 = dma.hbm_to_vmem [thread:$0]  %s75, 16, %s328, [#allocation21]
    $region153: #{tpu_custom_call.1} parent=1 // pred_fallthru
      _
    // Predicated region
    $region154: #{tpu_custom_call.1} parent=1 // pred_check
      _
    $region155: #{tpu_custom_call.1} parent=1 // pred_check_branch
      %332 = sbr.rel (0) target = $region157
    $region156: #{tpu_custom_call.1} parent=1 // pred_region
      %s334 = ssub.s32 16, 16
      %335 = vsyncadd [#allocation21], %s334
      %s337 = sshll.u32 [#allocation22], 4
      %s338 = int_to_ptr.vmem [resolvable:$true] %s337
      %340 = dma.hbm_to_vmem [thread:$0]  %s77, 16, %s338, [#allocation21]
    $region157: #{tpu_custom_call.1} parent=1 // pred_fallthru
      _
    // Predicated region
    $region158: #{tpu_custom_call.1} parent=1 // pred_check
      _
    $region159: #{tpu_custom_call.1} parent=1 // pred_check_branch
      %342 = sbr.rel (0) target = $region161
    $region160: #{tpu_custom_call.1} parent=1 // pred_region
      _
    $region161: #{tpu_custom_call.1} parent=1 // pred_fallthru
      _
    // Predicated region
    $region162: #{tpu_custom_call.1} parent=1 // pred_check
      _
    $region163: #{tpu_custom_call.1} parent=1 // pred_check_branch
      %344 = sbr.rel (0) target = $region165
    $region164: #{tpu_custom_call.1} parent=1 // pred_region
      %s346 = ssub.s32 16, 16
      %347 = vsyncadd [#allocation24], %s346
      %s349 = sshll.u32 [#allocation23], 4
      %s350 = int_to_ptr.vmem [resolvable:$true] %s349
      %352 = dma.hbm_to_vmem [thread:$0]  %s81, 16, %s350, [#allocation24]
    $region165: #{tpu_custom_call.1} parent=1 // pred_fallthru
      _
    // Predicated region
    $region166: #{tpu_custom_call.1} parent=1 // pred_check
      _
    $region167: #{tpu_custom_call.1} parent=1 // pred_check_branch
      %354 = sbr.rel (0) target = $region169
    $region168: #{tpu_custom_call.1} parent=1 // pred_region
      _
    $region169: #{tpu_custom_call.1} parent=1 // pred_fallthru
      _
    // Predicated region
    $region170: #{tpu_custom_call.1} parent=1 // pred_check
      _
    $region171: #{tpu_custom_call.1} parent=1 // pred_check_branch
      %356 = sbr.rel (0) target = $region173
    $region172: #{tpu_custom_call.1} parent=1 // pred_region
      %s358 = ssub.s32 16, 16
      %359 = vsyncadd [#allocation24], %s358
      %s361 = sshll.u32 [#allocation25], 4
      %s362 = int_to_ptr.vmem [resolvable:$true] %s361
      %364 = dma.hbm_to_vmem [thread:$0]  %s85, 16, %s362, [#allocation24]
    $region173: #{tpu_custom_call.1} parent=1 // pred_fallthru
      _
    // Predicated region
    $region174: #{tpu_custom_call.1} parent=1 // pred_check
      _
    $region175: #{tpu_custom_call.1} parent=1 // pred_check_branch
      %366 = sbr.rel (0) target = $region177
    $region176: #{tpu_custom_call.1} parent=1 // pred_region
      _
    $region177: #{tpu_custom_call.1} parent=1 // pred_fallthru
      _
    // Predicated region
    $region178: #{tpu_custom_call.1} parent=1 // pred_check
      _
    $region179: #{tpu_custom_call.1} parent=1 // pred_check_branch
      %368 = sbr.rel (0) target = $region181
    $region180: #{tpu_custom_call.1} parent=1 // pred_region
      _
    $region181: #{tpu_custom_call.1} parent=1 // pred_fallthru
      _
    // Predicated region
    $region182: #{tpu_custom_call.1} parent=1 // pred_check
      _
    $region183: #{tpu_custom_call.1} parent=1 // pred_check_branch
      %370 = sbr.rel (0) target = $region185
    $region184: #{tpu_custom_call.1} parent=1 // pred_region
      _
    $region185: #{tpu_custom_call.1} parent=1 // pred_fallthru
      _
    // Predicated region
    $region186: #{tpu_custom_call.1} parent=1 // pred_check
      _
    $region187: #{tpu_custom_call.1} parent=1 // pred_check_branch
      %372 = sbr.rel (0) target = $region189
    $region188: #{tpu_custom_call.1} parent=1 // pred_region
      %s374 = ssub.s32 16, 16
      %375 = vsyncadd [#allocation27], %s374
      %s377 = sshll.u32 [#allocation26], 4
      %s378 = int_to_ptr.vmem [resolvable:$true] %s377
      %380 = dma.hbm_to_vmem [thread:$0]  %s93, 16, %s378, [#allocation27]
    $region189: #{tpu_custom_call.1} parent=1 // pred_fallthru
      _
    // Predicated region
    $region190: #{tpu_custom_call.1} parent=1 // pred_check
      _
    $region191: #{tpu_custom_call.1} parent=1 // pred_check_branch
      %382 = sbr.rel (0) target = $region193
    $region192: #{tpu_custom_call.1} parent=1 // pred_region
      %s384 = ssub.s32 16, 16
      %385 = vsyncadd [#allocation27], %s384
      %s387 = sshll.u32 [#allocation28], 4
      %s388 = int_to_ptr.vmem [resolvable:$true] %s387
      %390 = dma.hbm_to_vmem [thread:$0]  %s95, 16, %s388, [#allocation27]
    $region193: #{tpu_custom_call.1} parent=1 // pred_fallthru
      _
    // Predicated region
    $region194: #{tpu_custom_call.1} parent=1 // pred_check
      _
    $region195: #{tpu_custom_call.1} parent=1 // pred_check_branch
      %392 = sbr.rel (0) target = $region197
    $region196: #{tpu_custom_call.1} parent=1 // pred_region
      %s394 = ssub.s32 16, 16
      %395 = vsyncadd [#allocation30], %s394
      %s397 = sshll.u32 [#allocation29], 4
      %s398 = int_to_ptr.vmem [resolvable:$true] %s397
      %400 = dma.hbm_to_vmem [thread:$0]  %s97, 16, %s398, [#allocation30]
    $region197: #{tpu_custom_call.1} parent=1 // pred_fallthru
      _
    // Predicated region
    $region198: #{tpu_custom_call.1} parent=1 // pred_check
      _
    $region199: #{tpu_custom_call.1} parent=1 // pred_check_branch
      %402 = sbr.rel (0) target = $region201
    $region200: #{tpu_custom_call.1} parent=1 // pred_region
      _
    $region201: #{tpu_custom_call.1} parent=1 // pred_fallthru
      _
    // Predicated region
    $region202: #{tpu_custom_call.1} parent=1 // pred_check
      _
    $region203: #{tpu_custom_call.1} parent=1 // pred_check_branch
      %404 = sbr.rel (0) target = $region205
    $region204: #{tpu_custom_call.1} parent=1 // pred_region
      %s406 = ssub.s32 16, 16
      %407 = vsyncadd [#allocation30], %s406
      %s409 = sshll.u32 [#allocation31], 4
      %s410 = int_to_ptr.vmem [resolvable:$true] %s409
      %412 = dma.hbm_to_vmem [thread:$0]  %s101, 16, %s410, [#allocation30]
    $region205: #{tpu_custom_call.1} parent=1 // pred_fallthru
      _
    // Predicated region
    $region206: #{tpu_custom_call.1} parent=1 // pred_check
      _
    $region207: #{tpu_custom_call.1} parent=1 // pred_check_branch
      %414 = sbr.rel (0) target = $region209
    $region208: #{tpu_custom_call.1} parent=1 // pred_region
      _
    $region209: #{tpu_custom_call.1} parent=1 // pred_fallthru
      _
    // Predicated region
    $region210: #{tpu_custom_call.1} parent=1 // pred_check
      _
    $region211: #{tpu_custom_call.1} parent=1 // pred_check_branch
      %416 = sbr.rel (0) target = $region213
    $region212: #{tpu_custom_call.1} parent=1 // pred_region
      %s418 = ssub.s32 16, 16
      %419 = vsyncadd [#allocation33], %s418
      %s421 = sshll.u32 [#allocation32], 4
      %s422 = int_to_ptr.vmem [resolvable:$true] %s421
      %424 = dma.hbm_to_vmem [thread:$0]  %s105, 16, %s422, [#allocation33]
    $region213: #{tpu_custom_call.1} parent=1 // pred_fallthru
      _
    // Predicated region
    $region214: #{tpu_custom_call.1} parent=1 // pred_check
      _
    $region215: #{tpu_custom_call.1} parent=1 // pred_check_branch
      %426 = sbr.rel (0) target = $region217
    $region216: #{tpu_custom_call.1} parent=1 // pred_region
      _
    $region217: #{tpu_custom_call.1} parent=1 // pred_fallthru
      _
    // Predicated region
    $region218: #{tpu_custom_call.1} parent=1 // pred_check
      _
    $region219: #{tpu_custom_call.1} parent=1 // pred_check_branch
      %428 = sbr.rel (0) target = $region221
    $region220: #{tpu_custom_call.1} parent=1 // pred_region
      _
    $region221: #{tpu_custom_call.1} parent=1 // pred_fallthru
      _
    // Predicated region
    $region222: #{tpu_custom_call.1} parent=1 // pred_check
      _
    $region223: #{tpu_custom_call.1} parent=1 // pred_check_branch
      %430 = sbr.rel (0) target = $region225
    $region224: #{tpu_custom_call.1} parent=1 // pred_region
      _
    $region225: #{tpu_custom_call.1} parent=1 // pred_fallthru
      _
    // Predicated region
    $region226: #{tpu_custom_call.1} parent=1 // pred_check
      _
    $region227: #{tpu_custom_call.1} parent=1 // pred_check_branch
      %432 = sbr.rel (0) target = $region229
    $region228: #{tpu_custom_call.1} parent=1 // pred_region
      %s434 = ssub.s32 16, 16
      %435 = vsyncadd [#allocation33], %s434
      %s437 = sshll.u32 [#allocation34], 4
      %s438 = int_to_ptr.vmem [resolvable:$true] %s437
      %440 = dma.hbm_to_vmem [thread:$0]  %s113, 16, %s438, [#allocation33]
    $region229: #{tpu_custom_call.1} parent=1 // pred_fallthru
      _
    // Predicated region
    $region230: #{tpu_custom_call.1} parent=1 // pred_check
      _
    $region231: #{tpu_custom_call.1} parent=1 // pred_check_branch
      %442 = sbr.rel (0) target = $region233
    $region232: #{tpu_custom_call.1} parent=1 // pred_region
      %s444 = ssub.s32 16, 16
      %445 = vsyncadd [#allocation36], %s444
      %s447 = sshll.u32 [#allocation35], 4
      %s448 = int_to_ptr.vmem [resolvable:$true] %s447
      %450 = dma.hbm_to_vmem [thread:$0]  %s115, 16, %s448, [#allocation36]
    $region233: #{tpu_custom_call.1} parent=1 // pred_fallthru
      _
    // Predicated region
    $region234: #{tpu_custom_call.1} parent=1 // pred_check
      _
    $region235: #{tpu_custom_call.1} parent=1 // pred_check_branch
      %452 = sbr.rel (0) target = $region237
    $region236: #{tpu_custom_call.1} parent=1 // pred_region
      %s454 = ssub.s32 16, 16
      %455 = vsyncadd [#allocation36], %s454
      %s457 = sshll.u32 [#allocation37], 4
      %s458 = int_to_ptr.vmem [resolvable:$true] %s457
      %460 = dma.hbm_to_vmem [thread:$0]  %s117, 16, %s458, [#allocation36]
    $region237: #{tpu_custom_call.1} parent=1 // pred_fallthru
      _
    // Predicated region
    $region238: #{tpu_custom_call.1} parent=1 // pred_check
      _
    $region239: #{tpu_custom_call.1} parent=1 // pred_check_branch
      %462 = sbr.rel (0) target = $region241
    $region240: #{tpu_custom_call.1} parent=1 // pred_region
      _
    $region241: #{tpu_custom_call.1} parent=1 // pred_fallthru
      _
    // Predicated region
    $region242: #{tpu_custom_call.1} parent=1 // pred_check
      _
    $region243: #{tpu_custom_call.1} parent=1 // pred_check_branch
      %464 = sbr.rel (0) target = $region245
    $region244: #{tpu_custom_call.1} parent=1 // pred_region
      %s466 = ssub.s32 16, 16
      %467 = vsyncadd [#allocation39], %s466
      %s469 = sshll.u32 [#allocation38], 4
      %s470 = int_to_ptr.vmem [resolvable:$true] %s469
      %472 = dma.hbm_to_vmem [thread:$0]  %s121, 16, %s470, [#allocation39]
    $region245: #{tpu_custom_call.1} parent=1 // pred_fallthru
      _
    // Predicated region
    $region246: #{tpu_custom_call.1} parent=1 // pred_check
      _
    $region247: #{tpu_custom_call.1} parent=1 // pred_check_branch
      %474 = sbr.rel (0) target = $region249
    $region248: #{tpu_custom_call.1} parent=1 // pred_region
      _
    $region249: #{tpu_custom_call.1} parent=1 // pred_fallthru
      _
    // Predicated region
    $region250: #{tpu_custom_call.1} parent=1 // pred_check
      _
    $region251: #{tpu_custom_call.1} parent=1 // pred_check_branch
      %476 = sbr.rel (0) target = $region253
    $region252: #{tpu_custom_call.1} parent=1 // pred_region
      %s478 = ssub.s32 16, 16
      %479 = vsyncadd [#allocation39], %s478
      %s481 = sshll.u32 [#allocation40], 4
      %s482 = int_to_ptr.vmem [resolvable:$true] %s481
      %484 = dma.hbm_to_vmem [thread:$0]  %s125, 16, %s482, [#allocation39]
    $region253: #{tpu_custom_call.1} parent=1 // pred_fallthru
      _
    // Predicated region
    $region254: #{tpu_custom_call.1} parent=1 // pred_check
      _
    $region255: #{tpu_custom_call.1} parent=1 // pred_check_branch
      %486 = sbr.rel (0) target = $region257
    $region256: #{tpu_custom_call.1} parent=1 // pred_region
      _
    $region257: #{tpu_custom_call.1} parent=1 // pred_fallthru
      _
    // Predicated region
    $region258: #{tpu_custom_call.1} parent=1 // pred_check
      _
    $region259: #{tpu_custom_call.1} parent=1 // pred_check_branch
      %488 = sbr.rel (0) target = $region261
    $region260: #{tpu_custom_call.1} parent=1 // pred_region
      %s490 = ssub.s32 16, 16
      %491 = vsyncadd [#allocation42], %s490
      %s493 = sshll.u32 [#allocation41], 4
      %s494 = int_to_ptr.vmem [resolvable:$true] %s493
      %496 = dma.hbm_to_vmem [thread:$0]  %s129, 16, %s494, [#allocation42]
    $region261: #{tpu_custom_call.1} parent=1 // pred_fallthru
      _
    // Predicated region
    $region262: #{tpu_custom_call.1} parent=1 // pred_check
      _
    $region263: #{tpu_custom_call.1} parent=1 // pred_check_branch
      %498 = sbr.rel (0) target = $region265
    $region264: #{tpu_custom_call.1} parent=1 // pred_region
      _
    $region265: #{tpu_custom_call.1} parent=1 // pred_fallthru
      _
    // Predicated region
    $region266: #{tpu_custom_call.1} parent=1 // pred_check
      _
    $region267: #{tpu_custom_call.1} parent=1 // pred_check_branch
      %500 = sbr.rel (0) target = $region269
    $region268: #{tpu_custom_call.1} parent=1 // pred_region
      %s502 = ssub.s32 16, 16
      %503 = vsyncadd [#allocation42], %s502
      %s505 = sshll.u32 [#allocation43], 4
      %s506 = int_to_ptr.vmem [resolvable:$true] %s505
      %508 = dma.hbm_to_vmem [thread:$0]  %s133, 16, %s506, [#allocation42]
    $region269: #{tpu_custom_call.1} parent=1 // pred_fallthru
      _
    // Predicated region
    $region270: #{tpu_custom_call.1} parent=1 // pred_check
      _
    $region271: #{tpu_custom_call.1} parent=1 // pred_check_branch
      %510 = sbr.rel (0) target = $region273
    $region272: #{tpu_custom_call.1} parent=1 // pred_region
      %511 = dma.done [#allocation3], 16
    $region273: #{tpu_custom_call.1} parent=1 // pred_fallthru
      _
    // Predicated region
    $region274: #{tpu_custom_call.1} parent=1 // pred_check
      _
    $region275: #{tpu_custom_call.1} parent=1 // pred_check_branch
      %513 = sbr.rel (0) target = $region277
    $region276: #{tpu_custom_call.1} parent=1 // pred_region
      %514 = dma.done [#allocation6], 16
    $region277: #{tpu_custom_call.1} parent=1 // pred_fallthru
      _
    // Predicated region
    $region278: #{tpu_custom_call.1} parent=1 // pred_check
      _
    $region279: #{tpu_custom_call.1} parent=1 // pred_check_branch
      %516 = sbr.rel (0) target = $region281
    $region280: #{tpu_custom_call.1} parent=1 // pred_region
      %517 = dma.done [#allocation6], 16
    $region281: #{tpu_custom_call.1} parent=1 // pred_fallthru
      _
    // Predicated region
    $region282: #{tpu_custom_call.1} parent=1 // pred_check
      _
    $region283: #{tpu_custom_call.1} parent=1 // pred_check_branch
      %519 = sbr.rel (0) target = $region285
    $region284: #{tpu_custom_call.1} parent=1 // pred_region
      %520 = dma.done [#allocation9], 16
    $region285: #{tpu_custom_call.1} parent=1 // pred_fallthru
      _
    // Predicated region
    $region286: #{tpu_custom_call.1} parent=1 // pred_check
      _
    $region287: #{tpu_custom_call.1} parent=1 // pred_check_branch
      %522 = sbr.rel (0) target = $region289
    $region288: #{tpu_custom_call.1} parent=1 // pred_region
      %523 = dma.done [#allocation9], 16
    $region289: #{tpu_custom_call.1} parent=1 // pred_fallthru
      _
    // Predicated region
    $region290: #{tpu_custom_call.1} parent=1 // pred_check
      _
    $region291: #{tpu_custom_call.1} parent=1 // pred_check_branch
      %525 = sbr.rel (0) target = $region293
    $region292: #{tpu_custom_call.1} parent=1 // pred_region
      %526 = dma.done [#allocation12], 16
    $region293: #{tpu_custom_call.1} parent=1 // pred_fallthru
      _
    // Predicated region
    $region294: #{tpu_custom_call.1} parent=1 // pred_check
      _
    $region295: #{tpu_custom_call.1} parent=1 // pred_check_branch
      %528 = sbr.rel (0) target = $region297
    $region296: #{tpu_custom_call.1} parent=1 // pred_region
      %529 = dma.done [#allocation12], 16
    $region297: #{tpu_custom_call.1} parent=1 // pred_fallthru
      _
    // Predicated region
    $region298: #{tpu_custom_call.1} parent=1 // pred_check
      _
    $region299: #{tpu_custom_call.1} parent=1 // pred_check_branch
      %531 = sbr.rel (0) target = $region301
    $region300: #{tpu_custom_call.1} parent=1 // pred_region
      %532 = dma.done [#allocation15], 16
    $region301: #{tpu_custom_call.1} parent=1 // pred_fallthru
      _
    // Predicated region
    $region302: #{tpu_custom_call.1} parent=1 // pred_check
      _
    $region303: #{tpu_custom_call.1} parent=1 // pred_check_branch
      %534 = sbr.rel (0) target = $region305
    $region304: #{tpu_custom_call.1} parent=1 // pred_region
      %535 = dma.done [#allocation15], 16
    $region305: #{tpu_custom_call.1} parent=1 // pred_fallthru
      _
    // Predicated region
    $region306: #{tpu_custom_call.1} parent=1 // pred_check
      _
    $region307: #{tpu_custom_call.1} parent=1 // pred_check_branch
      %537 = sbr.rel (0) target = $region309
    $region308: #{tpu_custom_call.1} parent=1 // pred_region
      %538 = dma.done [#allocation18], 16
    $region309: #{tpu_custom_call.1} parent=1 // pred_fallthru
      _
    // Predicated region
    $region310: #{tpu_custom_call.1} parent=1 // pred_check
      _
    $region311: #{tpu_custom_call.1} parent=1 // pred_check_branch
      %540 = sbr.rel (0) target = $region313
    $region312: #{tpu_custom_call.1} parent=1 // pred_region
      %541 = dma.done [#allocation18], 16
    $region313: #{tpu_custom_call.1} parent=1 // pred_fallthru
      _
    // Predicated region
    $region314: #{tpu_custom_call.1} parent=1 // pred_check
      _
    $region315: #{tpu_custom_call.1} parent=1 // pred_check_branch
      %543 = sbr.rel (0) target = $region317
    $region316: #{tpu_custom_call.1} parent=1 // pred_region
      %544 = dma.done [#allocation21], 16
    $region317: #{tpu_custom_call.1} parent=1 // pred_fallthru
      _
    // Predicated region
    $region318: #{tpu_custom_call.1} parent=1 // pred_check
      _
    $region319: #{tpu_custom_call.1} parent=1 // pred_check_branch
      %546 = sbr.rel (0) target = $region321
    $region320: #{tpu_custom_call.1} parent=1 // pred_region
      %547 = dma.done [#allocation21], 16
    $region321: #{tpu_custom_call.1} parent=1 // pred_fallthru
      _
    // Predicated region
    $region322: #{tpu_custom_call.1} parent=1 // pred_check
      _
    $region323: #{tpu_custom_call.1} parent=1 // pred_check_branch
      %549 = sbr.rel (0) target = $region325
    $region324: #{tpu_custom_call.1} parent=1 // pred_region
      %550 = dma.done [#allocation24], 16
    $region325: #{tpu_custom_call.1} parent=1 // pred_fallthru
      _
    // Predicated region
    $region326: #{tpu_custom_call.1} parent=1 // pred_check
      _
    $region327: #{tpu_custom_call.1} parent=1 // pred_check_branch
      %552 = sbr.rel (0) target = $region329
    $region328: #{tpu_custom_call.1} parent=1 // pred_region
      %553 = dma.done [#allocation24], 16
    $region329: #{tpu_custom_call.1} parent=1 // pred_fallthru
      _
    // Predicated region
    $region330: #{tpu_custom_call.1} parent=1 // pred_check
      _
    $region331: #{tpu_custom_call.1} parent=1 // pred_check_branch
      %555 = sbr.rel (0) target = $region333
    $region332: #{tpu_custom_call.1} parent=1 // pred_region
      %556 = dma.done [#allocation27], 16
    $region333: #{tpu_custom_call.1} parent=1 // pred_fallthru
      _
    // Predicated region
    $region334: #{tpu_custom_call.1} parent=1 // pred_check
      _
    $region335: #{tpu_custom_call.1} parent=1 // pred_check_branch
      %558 = sbr.rel (0) target = $region337
    $region336: #{tpu_custom_call.1} parent=1 // pred_region
      %559 = dma.done [#allocation27], 16
    $region337: #{tpu_custom_call.1} parent=1 // pred_fallthru
      _
    // Predicated region
    $region338: #{tpu_custom_call.1} parent=1 // pred_check
      _
    $region339: #{tpu_custom_call.1} parent=1 // pred_check_branch
      %561 = sbr.rel (0) target = $region341
    $region340: #{tpu_custom_call.1} parent=1 // pred_region
      %562 = dma.done [#allocation30], 16
    $region341: #{tpu_custom_call.1} parent=1 // pred_fallthru
      _
    // Predicated region
    $region342: #{tpu_custom_call.1} parent=1 // pred_check
      _
    $region343: #{tpu_custom_call.1} parent=1 // pred_check_branch
      %564 = sbr.rel (0) target = $region345
    $region344: #{tpu_custom_call.1} parent=1 // pred_region
      %565 = dma.done [#allocation30], 16
    $region345: #{tpu_custom_call.1} parent=1 // pred_fallthru
      _
    // Predicated region
    $region346: #{tpu_custom_call.1} parent=1 // pred_check
      _
    $region347: #{tpu_custom_call.1} parent=1 // pred_check_branch
      %567 = sbr.rel (0) target = $region349
    $region348: #{tpu_custom_call.1} parent=1 // pred_region
      %568 = dma.done [#allocation33], 16
    $region349: #{tpu_custom_call.1} parent=1 // pred_fallthru
      _
    // Predicated region
    $region350: #{tpu_custom_call.1} parent=1 // pred_check
      _
    $region351: #{tpu_custom_call.1} parent=1 // pred_check_branch
      %570 = sbr.rel (0) target = $region353
    $region352: #{tpu_custom_call.1} parent=1 // pred_region
      %571 = dma.done [#allocation33], 16
    $region353: #{tpu_custom_call.1} parent=1 // pred_fallthru
      _
    // Predicated region
    $region354: #{tpu_custom_call.1} parent=1 // pred_check
      _
    $region355: #{tpu_custom_call.1} parent=1 // pred_check_branch
      %573 = sbr.rel (0) target = $region357
    $region356: #{tpu_custom_call.1} parent=1 // pred_region
      %574 = dma.done [#allocation36], 16
    $region357: #{tpu_custom_call.1} parent=1 // pred_fallthru
      _
    // Predicated region
    $region358: #{tpu_custom_call.1} parent=1 // pred_check
      _
    $region359: #{tpu_custom_call.1} parent=1 // pred_check_branch
      %576 = sbr.rel (0) target = $region361
    $region360: #{tpu_custom_call.1} parent=1 // pred_region
      %577 = dma.done [#allocation36], 16
    $region361: #{tpu_custom_call.1} parent=1 // pred_fallthru
      _
    // Predicated region
    $region362: #{tpu_custom_call.1} parent=1 // pred_check
      _
    $region363: #{tpu_custom_call.1} parent=1 // pred_check_branch
      %579 = sbr.rel (0) target = $region365
    $region364: #{tpu_custom_call.1} parent=1 // pred_region
      %580 = dma.done [#allocation39], 16
    $region365: #{tpu_custom_call.1} parent=1 // pred_fallthru
      _
    // Predicated region
    $region366: #{tpu_custom_call.1} parent=1 // pred_check
      _
    $region367: #{tpu_custom_call.1} parent=1 // pred_check_branch
      %582 = sbr.rel (0) target = $region369
    $region368: #{tpu_custom_call.1} parent=1 // pred_region
      %583 = dma.done [#allocation39], 16
    $region369: #{tpu_custom_call.1} parent=1 // pred_fallthru
      _
    // Predicated region
    $region370: #{tpu_custom_call.1} parent=1 // pred_check
      _
    $region371: #{tpu_custom_call.1} parent=1 // pred_check_branch
      %585 = sbr.rel (0) target = $region373
    $region372: #{tpu_custom_call.1} parent=1 // pred_region
      %586 = dma.done [#allocation42], 16
    $region373: #{tpu_custom_call.1} parent=1 // pred_fallthru
      _
    // Predicated region
    $region374: #{tpu_custom_call.1} parent=1 // pred_check
      _
    $region375: #{tpu_custom_call.1} parent=1 // pred_check_branch
      %588 = sbr.rel (0) target = $region377
    $region376: #{tpu_custom_call.1} parent=1 // pred_region
      %589 = dma.done [#allocation42], 16
    $region377: #{tpu_custom_call.1} parent=1 // pred_fallthru
      _
    %v591 = vld [vmem:[%s1] sm:$0xff]
    %v592 = vld [vmem:[%s1 + $0x8] sm:$0xff]
    %v593 = vld [vmem:[%s3] sm:$0xf]
    %v594 = vld [vmem:[%s3 + $0x4] sm:$0x3]
    %v595 = vpack.c.bf16 %v592, %v591
    %v596 = vld [vmem:[%s5] sm:$0x1]
    %v598 = vlaneseq
    %v599 = vshrl.u32 %v598, 7
    %v600 = vsub.s32 0, %v599
    %v601 = vrot.slane %v596, %v600
    %v605 = vunpack.c.l.b16 %v593
    %v606 = vunpack.c.l.b16 %v594
    %v607 = vpack.c.b16 %v606, %v605
    %vm608 = vcmask 97280
    %v610 = vsel %vm608, %v595, 0
    %vm612 = vcmask 1045504
    %v614 = vsel %vm612, %v607, 0
    %616 = vmatprep.subr.bf16.mxu0 0
    %617 = vmatpush1.bf16.msra.mxu0 0
    %618 = vmatprep.subr.bf16.mxu0 0
    %619 = vmatpush1.bf16.msra.mxu0 0
    %620 = vmatprep.subr.bf16.mxu0 0
    %621 = vmatpush1.bf16.msra.mxu0 0
    %622 = vmatprep.subr.bf16.mxu0 0
    %623 = vmatpush1.bf16.msra.mxu0 0
    %624 = vmatprep.subr.bf16.mxu0 0
    %625 = vmatpush1.bf16.msra.mxu0 0
    %626 = vmatprep.subr.bf16.mxu0 0
    %627 = vmatpush1.bf16.msra.mxu0 0
    %628 = vmatprep.subr.bf16.mxu0 0
    %629 = vmatpush1.bf16.msra.mxu0 0
    %630 = vmatprep.subr.bf16.mxu0 0
    %631 = vmatpush1.bf16.msra.mxu0 %v614
    %632 = vmatprep.subr.bf16.mxu0 0
    %633 = vmatpush2.bf16.msra.mxu0 0
    %634 = vmatprep.subr.bf16.mxu0 0
    %635 = vmatpush2.bf16.msra.mxu0 0
    %636 = vmatprep.subr.bf16.mxu0 0
    %637 = vmatpush2.bf16.msra.mxu0 0
    %638 = vmatprep.subr.bf16.mxu0 0
    %639 = vmatpush2.bf16.msra.mxu0 0
    %640 = vmatprep.subr.bf16.mxu0 0
    %641 = vmatpush2.bf16.msra.mxu0 0
    %642 = vmatprep.subr.bf16.mxu0 0
    %643 = vmatpush2.bf16.msra.mxu0 0
    %644 = vmatprep.subr.bf16.mxu0 0
    %645 = vmatpush2.bf16.msra.mxu0 0
    %646 = vmatprep.subr.bf16.mxu0 0
    %647 = vmatpush2.bf16.msra.mxu0 0
    %648 = vmatprep.mubr.bf16.mxu0 0
    %649 = vmatmul.mubr.bf16.gmra.mxu0 %v610
    %v650 = vpop.f32.mrf.mxu0
    %v651 = vadd.f32 %v601, %v650
    %v652 = vpop.f32.mrf.mxu0
    %v653 = vpop.f32.mrf.mxu0
    %v654 = vadd.f32 %v601, %v653
    %v655 = vpop.f32.mrf.mxu0
    %656 = vdwg.mxu0
    %v657 = vld [vmem:[%s7] sm:$0xff]
    %v658 = vld [vmem:[%s7 + $0x8] sm:$0xf]
    %v659 = vld [vmem:[%s7 + $0xc] sm:$0xff]
    %v660 = vld [vmem:[%s7 + $0x14] sm:$0xf]
    %v661 = vld [vmem:[%s7 + $0x18] sm:$0xff]
    %v662 = vld [vmem:[%s7 + $0x20] sm:$0xf]
    %v663 = vld [vmem:[%s7 + $0x24] sm:$0xff]
    %v664 = vld [vmem:[%s7 + $0x2c] sm:$0xf]
    %v665 = vld [vmem:[%s7 + $0x30] sm:$0xff]
    %v666 = vld [vmem:[%s7 + $0x38] sm:$0xf]
    %v667 = vld [vmem:[%s7 + $0x3c] sm:$0xff]
    %v668 = vld [vmem:[%s7 + $0x44] sm:$0xf]
    %v669 = vld [vmem:[%s7 + $0x48] sm:$0xff]
    %v670 = vld [vmem:[%s7 + $0x50] sm:$0xf]
    %v671 = vld [vmem:[%s7 + $0x54] sm:$0xff]
    %v672 = vld [vmem:[%s7 + $0x5c] sm:$0xf]
    %v673 = vld [vmem:[%s9] sm:$0x7]
    %v674 = vld [vmem:[%s11] sm:$0xf]
    %v675 = vld [vmem:[%s11 + $0x4] sm:$0xf]
    %v676 = vld [vmem:[%s11 + $0x8] sm:$0xf]
    %v677 = vld [vmem:[%s11 + $0xc] sm:$0xf]
    %v678 = vld [vmem:[%s11 + $0x10] sm:$0xf]
    %v679 = vld [vmem:[%s11 + $0x14] sm:$0xf]
    %v680 = vld [vmem:[%s11 + $0x18] sm:$0xf]
    %v681 = vld [vmem:[%s11 + $0x1c] sm:$0xf]
    %v682 = vld [vmem:[%s11 + $0x20] sm:$0xf]
    %v683 = vld [vmem:[%s11 + $0x24] sm:$0xf]
    %v684 = vld [vmem:[%s11 + $0x28] sm:$0xf]
    %v685 = vld [vmem:[%s11 + $0x2c] sm:$0xf]
    %v686 = vld [vmem:[%s11 + $0x30] sm:$0xf]
    %v687 = vld [vmem:[%s11 + $0x34] sm:$0xf]
    %v688 = vld [vmem:[%s11 + $0x38] sm:$0xf]
    %v689 = vld [vmem:[%s11 + $0x3c] sm:$0xf]
    %v690 = vld [vmem:[%s13] sm:$0x1]
    %v691 = vld [vmem:[%s15] sm:$0x1]
    %v692 = vld [vmem:[%s17] sm:$0x1]
    %v693 = vld [vmem:[%s19] sm:$0xf]
    %v694 = vld [vmem:[%s19 + $0x4] sm:$0xf]
    %v695 = vld [vmem:[%s19 + $0x8] sm:$0xf]
    %v696 = vld [vmem:[%s19 + $0xc] sm:$0xf]
    %v697 = vld [vmem:[%s19 + $0x10] sm:$0xf]
    %v698 = vld [vmem:[%s19 + $0x14] sm:$0xf]
    %v699 = vld [vmem:[%s19 + $0x18] sm:$0xf]
    %v700 = vld [vmem:[%s19 + $0x1c] sm:$0xf]
    %v701 = vld [vmem:[%s21] sm:$0x1]
    %v702 = vld [vmem:[%s23] sm:$0xf]
    %v703 = vld [vmem:[%s23 + $0x4] sm:$0xf]
    %v704 = vld [vmem:[%s23 + $0x8] sm:$0xf]
    %v705 = vld [vmem:[%s23 + $0xc] sm:$0xf]
    %v706 = vld [vmem:[%s25] sm:$0x1]
    %v707 = vpack.c.bf16 %v654, %v651
    %v709 = vlaneseq
    %v710 = vshrl.u32 %v709, 7
    %v711 = vsub.s32 0, %v710
    %v712 = vrot.slane %v673, %v711
    %v713 = vlaneseq
    %v714 = vshrl.u32 %v713, 7
    %v715 = vsub.s32 1, %v714
    %v716 = vrot.slane %v673, %v715
    %v717 = vlaneseq
    %v718 = vshrl.u32 %v717, 7
    %v719 = vsub.s32 2, %v718
    %v720 = vrot.slane %v673, %v719
    %v740 = vunpack.c.l.b16 %v657
    %v741 = vunpack.c.h.b16 %v657
    %v742 = vunpack.c.l.b16 %v658
    %v743 = vunpack.c.l.b16 %v659
    %v744 = vunpack.c.h.b16 %v659
    %v745 = vunpack.c.l.b16 %v660
    %v746 = vunpack.c.l.b16 %v661
    %v747 = vunpack.c.h.b16 %v661
    %v748 = vunpack.c.l.b16 %v662
    %v749 = vunpack.c.l.b16 %v663
    %v750 = vunpack.c.h.b16 %v663
    %v751 = vunpack.c.l.b16 %v664
    %v752 = vunpack.c.l.b16 %v665
    %v753 = vunpack.c.h.b16 %v665
    %v754 = vunpack.c.l.b16 %v666
    %v755 = vunpack.c.l.b16 %v667
    %v756 = vunpack.c.h.b16 %v667
    %v757 = vunpack.c.l.b16 %v668
    %v758 = vunpack.c.l.b16 %v669
    %v759 = vunpack.c.h.b16 %v669
    %v760 = vunpack.c.l.b16 %v670
    %v761 = vunpack.c.l.b16 %v671
    %v762 = vunpack.c.h.b16 %v671
    %v763 = vunpack.c.l.b16 %v672
    %v764 = vpack.c.b16 %v743, %v740
    %v765 = vpack.c.b16 %v744, %v741
    %v766 = vpack.c.b16 %v745, %v742
    %v767 = vpack.c.b16 %v749, %v746
    %v768 = vpack.c.b16 %v750, %v747
    %v769 = vpack.c.b16 %v751, %v748
    %v770 = vpack.c.b16 %v755, %v752
    %v771 = vpack.c.b16 %v756, %v753
    %v772 = vpack.c.b16 %v757, %v754
    %v773 = vpack.c.b16 %v761, %v758
    %v774 = vpack.c.b16 %v762, %v759
    %v775 = vpack.c.b16 %v763, %v760
    %vm788 = vcmask 523264
    %v790 = vsel %vm788, %v707, 0
    %792 = vmatprep.subr.bf16.mxu0 0
    %793 = vmatpush1.bf16.msra.mxu0 0
    %794 = vmatprep.subr.bf16.mxu0 0
    %795 = vmatpush1.bf16.msra.mxu0 0
    %796 = vmatprep.subr.bf16.mxu0 0
    %797 = vmatpush1.bf16.msra.mxu0 0
    %798 = vmatprep.subr.bf16.mxu0 0
    %799 = vmatpush1.bf16.msra.mxu0 0
    %800 = vmatprep.subr.bf16.mxu0 %v774
    %801 = vmatpush1.bf16.msra.mxu0 %v773
    %802 = vmatprep.subr.bf16.mxu0 %v771
    %803 = vmatpush1.bf16.msra.mxu0 %v770
    %804 = vmatprep.subr.bf16.mxu0 %v768
    %805 = vmatpush1.bf16.msra.mxu0 %v767
    %806 = vmatprep.subr.bf16.mxu0 %v765
    %807 = vmatpush1.bf16.msra.mxu0 %v764
    %808 = vmatprep.subr.bf16.mxu0 0
    %809 = vmatpush2.bf16.msra.mxu0 0
    %810 = vmatprep.subr.bf16.mxu0 0
    %811 = vmatpush2.bf16.msra.mxu0 0
    %812 = vmatprep.subr.bf16.mxu0 0
    %813 = vmatpush2.bf16.msra.mxu0 0
    %814 = vmatprep.subr.bf16.mxu0 0
    %815 = vmatpush2.bf16.msra.mxu0 0
    %816 = vmatprep.subr.bf16.mxu0 0
    %817 = vmatpush2.bf16.msra.mxu0 0
    %818 = vmatprep.subr.bf16.mxu0 0
    %819 = vmatpush2.bf16.msra.mxu0 0
    %820 = vmatprep.subr.bf16.mxu0 0
    %821 = vmatpush2.bf16.msra.mxu0 0
    %822 = vmatprep.subr.bf16.mxu0 0
    %823 = vmatpush2.bf16.msra.mxu0 0
    %824 = vmatprep.mubr.bf16.mxu0 0
    %825 = vmatmul.mubr.bf16.gmra.mxu0 %v790
    %v826 = vpop.f32.mrf.mxu0
    %v827 = vadd.f32 %v712, %v826
    %v828 = vpop.f32.mrf.mxu0
    %v829 = vadd.f32 %v716, %v828
    %v830 = vpop.f32.mrf.mxu0
    %v831 = vadd.f32 %v712, %v830
    %v832 = vpop.f32.mrf.mxu0
    %v833 = vadd.f32 %v716, %v832
    %834 = vdwg.mxu0
    %835 = vmatprep.subr.bf16.mxu0 0
    %836 = vmatpush1.bf16.msra.mxu0 0
    %837 = vmatprep.subr.bf16.mxu0 0
    %838 = vmatpush1.bf16.msra.mxu0 0
    %839 = vmatprep.subr.bf16.mxu0 0
    %840 = vmatpush1.bf16.msra.mxu0 0
    %841 = vmatprep.subr.bf16.mxu0 0
    %842 = vmatpush1.bf16.msra.mxu0 0
    %843 = vmatprep.subr.bf16.mxu0 0
    %844 = vmatpush1.bf16.msra.mxu0 %v775
    %845 = vmatprep.subr.bf16.mxu0 0
    %846 = vmatpush1.bf16.msra.mxu0 %v772
    %847 = vmatprep.subr.bf16.mxu0 0
    %848 = vmatpush1.bf16.msra.mxu0 %v769
    %849 = vmatprep.subr.bf16.mxu0 0
    %850 = vmatpush1.bf16.msra.mxu0 %v766
    %851 = vmatprep.subr.bf16.mxu0 0
    %852 = vmatpush2.bf16.msra.mxu0 0
    %853 = vmatprep.subr.bf16.mxu0 0
    %854 = vmatpush2.bf16.msra.mxu0 0
    %855 = vmatprep.subr.bf16.mxu0 0
    %856 = vmatpush2.bf16.msra.mxu0 0
    %857 = vmatprep.subr.bf16.mxu0 0
    %858 = vmatpush2.bf16.msra.mxu0 0
    %859 = vmatprep.subr.bf16.mxu0 0
    %860 = vmatpush2.bf16.msra.mxu0 0
    %861 = vmatprep.subr.bf16.mxu0 0
    %862 = vmatpush2.bf16.msra.mxu0 0
    %863 = vmatprep.subr.bf16.mxu0 0
    %864 = vmatpush2.bf16.msra.mxu0 0
    %865 = vmatprep.subr.bf16.mxu0 0
    %866 = vmatpush2.bf16.msra.mxu0 0
    %867 = vmatprep.mubr.bf16.mxu0 0
    %868 = vmatmul.mubr.bf16.gmra.mxu0 %v790
    %v869 = vpop.f32.mrf.mxu0
    %v870 = vadd.f32 %v720, %v869
    %v871 = vpop.f32.mrf.mxu0
    %v872 = vpop.f32.mrf.mxu0
    %v873 = vadd.f32 %v720, %v872
    %v874 = vpop.f32.mrf.mxu0
    %875 = vdwg.mxu0
    %v876 = vmul.f32 %v827, 0.25
    %v877 = vmul.f32 %v831, 0.25
    %v878 = vlaneseq
    %v879 = vand.u32 %v878, 127
    %vm880 = vcmp.ge.s32.totalorder %v879, 0
    %vm881 = vcmp.lt.s32.totalorder %v879, 16
    %vm882 = vmand %vm880, %vm881
    %v883 = vsel %vm882, %v876, 0.0
    %v884 = vsel %vm882, %v877, 0.0
    %vm885 = vcmp.ge.s32.totalorder %v879, 16
    %vm886 = vcmp.lt.s32.totalorder %v879, 32
    %vm887 = vmand %vm885, %vm886
    %v888 = vsel %vm887, %v876, 0.0
    %v889 = vsel %vm887, %v877, 0.0
    %vm890 = vcmp.ge.s32.totalorder %v879, 32
    %vm891 = vcmp.lt.s32.totalorder %v879, 48
    %vm892 = vmand %vm890, %vm891
    %v893 = vsel %vm892, %v876, 0.0
    %v894 = vsel %vm892, %v877, 0.0
    %vm895 = vcmp.ge.s32.totalorder %v879, 48
    %vm896 = vcmp.lt.s32.totalorder %v879, 64
    %vm897 = vmand %vm895, %vm896
    %v898 = vsel %vm897, %v876, 0.0
    %v899 = vsel %vm897, %v877, 0.0
    %v900 = vsel %vm882, %v829, 0.0
    %v901 = vsel %vm882, %v833, 0.0
    %v902 = vsel %vm887, %v829, 0.0
    %v903 = vsel %vm887, %v833, 0.0
    %v904 = vsel %vm892, %v829, 0.0
    %v905 = vsel %vm892, %v833, 0.0
    %v906 = vsel %vm897, %v829, 0.0
    %v907 = vsel %vm897, %v833, 0.0
    %v908 = vsel %vm882, %v870, 0.0
    %v909 = vsel %vm882, %v873, 0.0
    %v910 = vsel %vm887, %v870, 0.0
    %v911 = vsel %vm887, %v873, 0.0
    %v912 = vsel %vm892, %v870, 0.0
    %v913 = vsel %vm892, %v873, 0.0
    %v914 = vsel %vm897, %v870, 0.0
    %v915 = vsel %vm897, %v873, 0.0
    %v916 = vlaneseq
    %v917 = vshrl.u32 %v916, 7
    %v918 = vadd.s32 %v917, 8
    %v919 = vadd.s32 %v917, 16
    %v920 = vadd.s32 %v917, 24
    %v921 = vadd.s32 %v917, 32
    %v922 = vadd.s32 %v917, 40
    %v923 = vadd.s32 %v917, 48
    %v924 = vadd.s32 %v917, 56
    %v925 = vshra.s32 %v917, 4
    %v926 = vshra.s32 %v918, 4
    %v927 = vshra.s32 %v919, 4
    %v928 = vshra.s32 %v920, 4
    %v929 = vshra.s32 %v921, 4
    %v930 = vshra.s32 %v922, 4
    %v931 = vshra.s32 %v923, 4
    %v932 = vshra.s32 %v924, 4
    %v933 = vshra.s32 %v879, 4
    %vm934 = vcmp.eq.s32.totalorder %v925, %v933
    %vm935 = vcmp.eq.s32.totalorder %v926, %v933
    %vm936 = vcmp.eq.s32.totalorder %v927, %v933
    %vm937 = vcmp.eq.s32.totalorder %v928, %v933
    %vm938 = vcmp.eq.s32.totalorder %v929, %v933
    %vm939 = vcmp.eq.s32.totalorder %v930, %v933
    %vm940 = vcmp.eq.s32.totalorder %v931, %v933
    %vm941 = vcmp.eq.s32.totalorder %v932, %v933
    %v942 = vand.u32 %v917, 1
    %v943 = vand.u32 %v918, 1
    %v944 = vand.u32 %v919, 1
    %v945 = vand.u32 %v920, 1
    %v946 = vand.u32 %v921, 1
    %v947 = vand.u32 %v922, 1
    %v948 = vand.u32 %v923, 1
    %v949 = vand.u32 %v924, 1
    %v950 = vand.u32 %v879, 1
    %vm951 = vcmp.eq.s32.totalorder %v942, %v950
    %vm952 = vcmp.eq.s32.totalorder %v943, %v950
    %vm953 = vcmp.eq.s32.totalorder %v944, %v950
    %vm954 = vcmp.eq.s32.totalorder %v945, %v950
    %vm955 = vcmp.eq.s32.totalorder %v946, %v950
    %vm956 = vcmp.eq.s32.totalorder %v947, %v950
    %vm957 = vcmp.eq.s32.totalorder %v948, %v950
    %vm958 = vcmp.eq.s32.totalorder %v949, %v950
    %vm959 = vmand %vm934, %vm951
    %vm960 = vmand %vm935, %vm952
    %vm961 = vmand %vm936, %vm953
    %vm962 = vmand %vm937, %vm954
    %vm963 = vmand %vm938, %vm955
    %vm964 = vmand %vm939, %vm956
    %vm965 = vmand %vm940, %vm957
    %vm966 = vmand %vm941, %vm958
    %v967 = vpack.c.bf16 %v884, %v883
    %v968 = vpack.c.bf16 %v889, %v888
    %v969 = vpack.c.bf16 %v894, %v893
    %v970 = vpack.c.bf16 %v899, %v898
    %v971 = vpack.c.bf16 %v901, %v900
    %v972 = vpack.c.bf16 %v903, %v902
    %v973 = vpack.c.bf16 %v905, %v904
    %v974 = vpack.c.bf16 %v907, %v906
    %975 = vmatprep.subr.bf16.mxu0 0
    %976 = vmatpush1.bf16.xpose.msra.mxu0 0
    %977 = vmatprep.subr.bf16.mxu0 0
    %978 = vmatpush1.bf16.xpose.msra.mxu0 0
    %979 = vmatprep.subr.bf16.mxu0 0
    %980 = vmatpush1.bf16.xpose.msra.mxu0 0
    %981 = vmatprep.subr.bf16.mxu0 0
    %982 = vmatpush1.bf16.xpose.msra.mxu0 0
    %983 = vmatprep.subr.bf16.mxu0 0
    %984 = vmatpush1.bf16.xpose.msra.mxu0 %v974
    %985 = vmatprep.subr.bf16.mxu0 0
    %986 = vmatpush1.bf16.xpose.msra.mxu0 %v973
    %987 = vmatprep.subr.bf16.mxu0 0
    %988 = vmatpush1.bf16.xpose.msra.mxu0 %v972
    %989 = vmatprep.subr.bf16.mxu0 0
    %990 = vmatpush1.bf16.xpose.msra.mxu0 %v971
    %991 = vmatprep.subr.bf16.mxu0 0
    %992 = vmatpush2.bf16.xpose.msra.mxu0 0
    %993 = vmatprep.subr.bf16.mxu0 0
    %994 = vmatpush2.bf16.xpose.msra.mxu0 0
    %995 = vmatprep.subr.bf16.mxu0 0
    %996 = vmatpush2.bf16.xpose.msra.mxu0 0
    %997 = vmatprep.subr.bf16.mxu0 0
    %998 = vmatpush2.bf16.xpose.msra.mxu0 0
    %999 = vmatprep.subr.bf16.mxu0 0
    %1000 = vmatpush2.bf16.xpose.msra.mxu0 0
    %1001 = vmatprep.subr.bf16.mxu0 0
    %1002 = vmatpush2.bf16.xpose.msra.mxu0 0
    %1003 = vmatprep.subr.bf16.mxu0 0
    %1004 = vmatpush2.bf16.xpose.msra.mxu0 0
    %1005 = vmatprep.subr.bf16.mxu0 0
    %1006 = vmatpush2.bf16.xpose.msra.mxu0 0
    %1007 = vmatprep.mubr.bf16.mxu0 0
    %1008 = vmatmul.mubr.bf16.gmra.mxu0 %v967
    %v1009 = vpop.f32.mrf.mxu0
    %v1010 = vadd.f32 0.0, %v1009
    %v1011 = vpop.f32.mrf.mxu0
    %v1012 = vpop.f32.mrf.mxu0
    %v1013 = vadd.f32 0.0, %v1012
    %v1014 = vpop.f32.mrf.mxu0
    %1015 = vmatprep.mubr.bf16.mxu0 0
    %1016 = vmatmul.mubr.bf16.gmra.mxu0 %v968
    %v1017 = vpop.f32.mrf.mxu0
    %v1018 = vadd.f32 0.0, %v1017
    %v1019 = vpop.f32.mrf.mxu0
    %v1020 = vpop.f32.mrf.mxu0
    %v1021 = vadd.f32 0.0, %v1020
    %v1022 = vpop.f32.mrf.mxu0
    %1023 = vmatprep.mubr.bf16.mxu0 0
    %1024 = vmatmul.mubr.bf16.gmra.mxu0 %v969
    %v1025 = vpop.f32.mrf.mxu0
    %v1026 = vadd.f32 0.0, %v1025
    %v1027 = vpop.f32.mrf.mxu0
    %v1028 = vpop.f32.mrf.mxu0
    %v1029 = vadd.f32 0.0, %v1028
    %v1030 = vpop.f32.mrf.mxu0
    %1031 = vmatprep.mubr.bf16.mxu0 0
    %1032 = vmatmul.mubr.bf16.gmra.mxu0 %v970
    %v1033 = vpop.f32.mrf.mxu0
    %v1034 = vadd.f32 0.0, %v1033
    %v1035 = vpop.f32.mrf.mxu0
    %v1036 = vpop.f32.mrf.mxu0
    %v1037 = vadd.f32 0.0, %v1036
    %v1038 = vpop.f32.mrf.mxu0
    %1039 = vdwg.mxu0
    %v1040 = vsel %vm959, %v1010, -1e+30
    %v1041 = vsel %vm960, %v1013, -1e+30
    %v1042 = vsel %vm961, %v1018, -1e+30
    %v1043 = vsel %vm962, %v1021, -1e+30
    %v1044 = vsel %vm963, %v1026, -1e+30
    %v1045 = vsel %vm964, %v1029, -1e+30
    %v1046 = vsel %vm965, %v1034, -1e+30
    %v1047 = vsel %vm966, %v1037, -1e+30
    %v1048 = vsel %vm788, %v1040, -inf
    %1049 = vmax.xlane.f32.xlu0 %v1048
    %v1050 = vpop.xlane.xlu0 %1049
    %v1051 = vsel %vm788, %v1041, -inf
    %1052 = vmax.xlane.f32.xlu0 %v1051
    %v1053 = vpop.xlane.xlu0 %1052
    %v1054 = vsel %vm788, %v1042, -inf
    %1055 = vmax.xlane.f32.xlu0 %v1054
    %v1056 = vpop.xlane.xlu0 %1055
    %v1057 = vsel %vm788, %v1043, -inf
    %1058 = vmax.xlane.f32.xlu0 %v1057
    %v1059 = vpop.xlane.xlu0 %1058
    %v1060 = vsel %vm788, %v1044, -inf
    %1061 = vmax.xlane.f32.xlu0 %v1060
    %v1062 = vpop.xlane.xlu0 %1061
    %v1063 = vsel %vm788, %v1045, -inf
    %1064 = vmax.xlane.f32.xlu0 %v1063
    %v1065 = vpop.xlane.xlu0 %1064
    %v1066 = vsel %vm788, %v1046, -inf
    %1067 = vmax.xlane.f32.xlu0 %v1066
    %v1068 = vpop.xlane.xlu0 %1067
    %v1069 = vsel %vm788, %v1047, -inf
    %1070 = vmax.xlane.f32.xlu0 %v1069
    %v1071 = vpop.xlane.xlu0 %1070
    %v1072 = vsub.f32 %v1040, %v1050
    %v1073 = vsub.f32 %v1041, %v1053
    %v1074 = vsub.f32 %v1042, %v1056
    %v1075 = vsub.f32 %v1043, %v1059
    %v1076 = vsub.f32 %v1044, %v1062
    %v1077 = vsub.f32 %v1045, %v1065
    %v1078 = vsub.f32 %v1046, %v1068
    %v1079 = vsub.f32 %v1047, %v1071
    %v1080 = vmul.f32 %v1072, 1.442695
    %v1081 = vpow.pop %v1080
    %v1082 = vmul.f32 %v1073, 1.442695
    %v1083 = vpow.pop %v1082
    %v1084 = vmul.f32 %v1074, 1.442695
    %v1085 = vpow.pop %v1084
    %v1086 = vmul.f32 %v1075, 1.442695
    %v1087 = vpow.pop %v1086
    %v1088 = vmul.f32 %v1076, 1.442695
    %v1089 = vpow.pop %v1088
    %v1090 = vmul.f32 %v1077, 1.442695
    %v1091 = vpow.pop %v1090
    %v1092 = vmul.f32 %v1078, 1.442695
    %v1093 = vpow.pop %v1092
    %v1094 = vmul.f32 %v1079, 1.442695
    %v1095 = vpow.pop %v1094
    %v1096 = vsel %vm788, %v1081, 0.0
    %1097 = vadd.xlane.f32.xlu0 %v1096
    %v1098 = vpop.xlane.xlu0 %1097
    %v1099 = vsel %vm788, %v1083, 0.0
    %1100 = vadd.xlane.f32.xlu0 %v1099
    %v1101 = vpop.xlane.xlu0 %1100
    %v1102 = vsel %vm788, %v1085, 0.0
    %1103 = vadd.xlane.f32.xlu0 %v1102
    %v1104 = vpop.xlane.xlu0 %1103
    %v1105 = vsel %vm788, %v1087, 0.0
    %1106 = vadd.xlane.f32.xlu0 %v1105
    %v1107 = vpop.xlane.xlu0 %1106
    %v1108 = vsel %vm788, %v1089, 0.0
    %1109 = vadd.xlane.f32.xlu0 %v1108
    %v1110 = vpop.xlane.xlu0 %1109
    %v1111 = vsel %vm788, %v1091, 0.0
    %1112 = vadd.xlane.f32.xlu0 %v1111
    %v1113 = vpop.xlane.xlu0 %1112
    %v1114 = vsel %vm788, %v1093, 0.0
    %1115 = vadd.xlane.f32.xlu0 %v1114
    %v1116 = vpop.xlane.xlu0 %1115
    %v1117 = vsel %vm788, %v1095, 0.0
    %1118 = vadd.xlane.f32.xlu0 %v1117
    %v1119 = vpop.xlane.xlu0 %1118
    %v1120 = vrcp.pop %v1098
    %v1121 = vrcp.pop %v1101
    %v1122 = vrcp.pop %v1104
    %v1123 = vrcp.pop %v1107
    %v1124 = vrcp.pop %v1110
    %v1125 = vrcp.pop %v1113
    %v1126 = vrcp.pop %v1116
    %v1127 = vrcp.pop %v1119
    %v1128 = vmul.f32 %v1081, %v1120
    %v1129 = vmul.f32 %v1083, %v1121
    %v1130 = vmul.f32 %v1085, %v1122
    %v1131 = vmul.f32 %v1087, %v1123
    %v1132 = vmul.f32 %v1089, %v1124
    %v1133 = vmul.f32 %v1091, %v1125
    %v1134 = vmul.f32 %v1093, %v1126
    %v1135 = vmul.f32 %v1095, %v1127
    %v1136 = vpack.c.bf16 %v1129, %v1128
    %v1137 = vpack.c.bf16 %v1131, %v1130
    %v1138 = vpack.c.bf16 %v1133, %v1132
    %v1139 = vpack.c.bf16 %v1135, %v1134
    %v1140 = vpack.c.bf16 %v909, %v908
    %v1141 = vpack.c.bf16 %v911, %v910
    %v1142 = vpack.c.bf16 %v913, %v912
    %v1143 = vpack.c.bf16 %v915, %v914
    %v1145 = vsel %vm788, %v1136, 0
    %v1148 = vsel %vm788, %v1137, 0
    %v1151 = vsel %vm788, %v1138, 0
    %v1154 = vsel %vm788, %v1139, 0
    %1156 = vmatprep.subr.bf16.mxu0 0
    %1157 = vmatpush1.bf16.msra.mxu0 0
    %1158 = vmatprep.subr.bf16.mxu0 0
    %1159 = vmatpush1.bf16.msra.mxu0 0
    %1160 = vmatprep.subr.bf16.mxu0 0
    %1161 = vmatpush1.bf16.msra.mxu0 0
    %1162 = vmatprep.subr.bf16.mxu0 0
    %1163 = vmatpush1.bf16.msra.mxu0 0
    %1164 = vmatprep.subr.bf16.mxu0 0
    %1165 = vmatpush1.bf16.msra.mxu0 %v1143
    %1166 = vmatprep.subr.bf16.mxu0 0
    %1167 = vmatpush1.bf16.msra.mxu0 %v1142
    %1168 = vmatprep.subr.bf16.mxu0 0
    %1169 = vmatpush1.bf16.msra.mxu0 %v1141
    %1170 = vmatprep.subr.bf16.mxu0 0
    %1171 = vmatpush1.bf16.msra.mxu0 %v1140
    %1172 = vmatprep.subr.bf16.mxu0 0
    %1173 = vmatpush2.bf16.msra.mxu0 0
    %1174 = vmatprep.subr.bf16.mxu0 0
    %1175 = vmatpush2.bf16.msra.mxu0 0
    %1176 = vmatprep.subr.bf16.mxu0 0
    %1177 = vmatpush2.bf16.msra.mxu0 0
    %1178 = vmatprep.subr.bf16.mxu0 0
    %1179 = vmatpush2.bf16.msra.mxu0 0
    %1180 = vmatprep.subr.bf16.mxu0 0
    %1181 = vmatpush2.bf16.msra.mxu0 0
    %1182 = vmatprep.subr.bf16.mxu0 0
    %1183 = vmatpush2.bf16.msra.mxu0 0
    %1184 = vmatprep.subr.bf16.mxu0 0
    %1185 = vmatpush2.bf16.msra.mxu0 0
    %1186 = vmatprep.subr.bf16.mxu0 0
    %1187 = vmatpush2.bf16.msra.mxu0 0
    %1188 = vmatprep.mubr.bf16.mxu0 0
    %1189 = vmatmul.mubr.bf16.gmra.mxu0 %v1145
    %v1190 = vpop.f32.mrf.mxu0
    %v1191 = vadd.f32 0.0, %v1190
    %v1192 = vpop.f32.mrf.mxu0
    %v1193 = vpop.f32.mrf.mxu0
    %v1194 = vadd.f32 0.0, %v1193
    %v1195 = vpop.f32.mrf.mxu0
    %1196 = vmatprep.mubr.bf16.mxu0 0
    %1197 = vmatmul.mubr.bf16.gmra.mxu0 %v1148
    %v1198 = vpop.f32.mrf.mxu0
    %v1199 = vadd.f32 0.0, %v1198
    %v1200 = vpop.f32.mrf.mxu0
    %v1201 = vpop.f32.mrf.mxu0
    %v1202 = vadd.f32 0.0, %v1201
    %v1203 = vpop.f32.mrf.mxu0
    %1204 = vmatprep.mubr.bf16.mxu0 0
    %1205 = vmatmul.mubr.bf16.gmra.mxu0 %v1151
    %v1206 = vpop.f32.mrf.mxu0
    %v1207 = vadd.f32 0.0, %v1206
    %v1208 = vpop.f32.mrf.mxu0
    %v1209 = vpop.f32.mrf.mxu0
    %v1210 = vadd.f32 0.0, %v1209
    %v1211 = vpop.f32.mrf.mxu0
    %1212 = vmatprep.mubr.bf16.mxu0 0
    %1213 = vmatmul.mubr.bf16.gmra.mxu0 %v1154
    %v1214 = vpop.f32.mrf.mxu0
    %v1215 = vadd.f32 0.0, %v1214
    %v1216 = vpop.f32.mrf.mxu0
    %v1217 = vpop.f32.mrf.mxu0
    %v1218 = vadd.f32 0.0, %v1217
    %v1219 = vpop.f32.mrf.mxu0
    %1220 = vdwg.mxu0
    %v1221 = vadd.f32 %v1191, %v1199
    %v1222 = vadd.f32 %v1194, %v1202
    %v1223 = vadd.f32 %v1221, %v1207
    %v1224 = vadd.f32 %v1222, %v1210
    %v1225 = vadd.f32 %v1223, %v1215
    %v1226 = vadd.f32 %v1224, %v1218
    %v1227 = vpack.c.bf16 %v1226, %v1225
    %v1229 = vlaneseq
    %v1230 = vshrl.u32 %v1229, 7
    %v1231 = vsub.s32 0, %v1230
    %v1232 = vrot.slane %v690, %v1231
    %v1250 = vunpack.c.l.b16 %v674
    %v1251 = vunpack.c.l.b16 %v675
    %v1252 = vunpack.c.l.b16 %v676
    %v1253 = vunpack.c.l.b16 %v677
    %v1254 = vunpack.c.l.b16 %v678
    %v1255 = vunpack.c.l.b16 %v679
    %v1256 = vunpack.c.l.b16 %v680
    %v1257 = vunpack.c.l.b16 %v681
    %v1258 = vunpack.c.l.b16 %v682
    %v1259 = vunpack.c.l.b16 %v683
    %v1260 = vunpack.c.l.b16 %v684
    %v1261 = vunpack.c.l.b16 %v685
    %v1262 = vunpack.c.l.b16 %v686
    %v1263 = vunpack.c.l.b16 %v687
    %v1264 = vunpack.c.l.b16 %v688
    %v1265 = vunpack.c.l.b16 %v689
    %v1266 = vpack.c.b16 %v1251, %v1250
    %v1267 = vpack.c.b16 %v1253, %v1252
    %v1268 = vpack.c.b16 %v1255, %v1254
    %v1269 = vpack.c.b16 %v1257, %v1256
    %v1270 = vpack.c.b16 %v1259, %v1258
    %v1271 = vpack.c.b16 %v1261, %v1260
    %v1272 = vpack.c.b16 %v1263, %v1262
    %v1273 = vpack.c.b16 %v1265, %v1264
    %1282 = vmatprep.subr.bf16.mxu0 0
    %1283 = vmatpush1.bf16.msra.mxu0 %v1273
    %1284 = vmatprep.subr.bf16.mxu0 0
    %1285 = vmatpush1.bf16.msra.mxu0 %v1272
    %1286 = vmatprep.subr.bf16.mxu0 0
    %1287 = vmatpush1.bf16.msra.mxu0 %v1271
    %1288 = vmatprep.subr.bf16.mxu0 0
    %1289 = vmatpush1.bf16.msra.mxu0 %v1270
    %1290 = vmatprep.subr.bf16.mxu0 0
    %1291 = vmatpush1.bf16.msra.mxu0 %v1269
    %1292 = vmatprep.subr.bf16.mxu0 0
    %1293 = vmatpush1.bf16.msra.mxu0 %v1268
    %1294 = vmatprep.subr.bf16.mxu0 0
    %1295 = vmatpush1.bf16.msra.mxu0 %v1267
    %1296 = vmatprep.subr.bf16.mxu0 0
    %1297 = vmatpush1.bf16.msra.mxu0 %v1266
    %1298 = vmatprep.subr.bf16.mxu0 0
    %1299 = vmatpush2.bf16.msra.mxu0 0
    %1300 = vmatprep.subr.bf16.mxu0 0
    %1301 = vmatpush2.bf16.msra.mxu0 0
    %1302 = vmatprep.subr.bf16.mxu0 0
    %1303 = vmatpush2.bf16.msra.mxu0 0
    %1304 = vmatprep.subr.bf16.mxu0 0
    %1305 = vmatpush2.bf16.msra.mxu0 0
    %1306 = vmatprep.subr.bf16.mxu0 0
    %1307 = vmatpush2.bf16.msra.mxu0 0
    %1308 = vmatprep.subr.bf16.mxu0 0
    %1309 = vmatpush2.bf16.msra.mxu0 0
    %1310 = vmatprep.subr.bf16.mxu0 0
    %1311 = vmatpush2.bf16.msra.mxu0 0
    %1312 = vmatprep.subr.bf16.mxu0 0
    %1313 = vmatpush2.bf16.msra.mxu0 0
    %1314 = vmatprep.mubr.bf16.mxu0 0
    %1315 = vmatmul.mubr.bf16.gmra.mxu0 %v1227
    %v1316 = vpop.f32.mrf.mxu0
    %v1317 = vadd.f32 %v1232, %v1316
    %v1318 = vpop.f32.mrf.mxu0
    %v1319 = vpop.f32.mrf.mxu0
    %v1320 = vadd.f32 %v1232, %v1319
    %v1321 = vpop.f32.mrf.mxu0
    %1322 = vdwg.mxu0
    %v1323 = vadd.f32 %v651, %v1317
    %v1324 = vadd.f32 %v654, %v1320
    %v1325 = vsel %vm788, %v1323, 0.0
    %1326 = vadd.xlane.f32.xlu0 %v1325
    %v1327 = vpop.xlane.xlu0 %1326
    %v1328 = vsel %vm788, %v1324, 0.0
    %1329 = vadd.xlane.f32.xlu0 %v1328
    %v1330 = vpop.xlane.xlu0 %1329
    %v1331 = vrcp.pop 64.0
    %v1332 = vmul.f32 %v1327, %v1331
    %v1333 = vmul.f32 %v1330, %v1331
    %v1334 = vsub.f32 %v1323, %v1332
    %v1335 = vsub.f32 %v1324, %v1333
    %v1336 = vmul.f32 %v1334, %v1334
    %v1337 = vmul.f32 %v1335, %v1335
    %v1338 = vsel %vm788, %v1336, 0.0
    %1339 = vadd.xlane.f32.xlu0 %v1338
    %v1340 = vpop.xlane.xlu0 %1339
    %v1341 = vsel %vm788, %v1337, 0.0
    %1342 = vadd.xlane.f32.xlu0 %v1341
    %v1343 = vpop.xlane.xlu0 %1342
    %v1344 = vmul.f32 %v1340, %v1331
    %v1345 = vmul.f32 %v1343, %v1331
    %v1346 = vadd.f32 %v1344, 1e-05
    %v1347 = vadd.f32 %v1345, 1e-05
    %v1348 = vrsqrt.pop %v1346
    %v1349 = vrsqrt.pop %v1347
    %v1350 = vmul.f32 %v1334, %v1348
    %v1351 = vmul.f32 %v1335, %v1349
    %v1353 = vlaneseq
    %v1354 = vshrl.u32 %v1353, 7
    %v1355 = vsub.s32 0, %v1354
    %v1356 = vrot.slane %v691, %v1355
    %v1358 = vmul.f32 %v1350, %v1356
    %v1359 = vmul.f32 %v1351, %v1356
    %v1361 = vlaneseq
    %v1362 = vshrl.u32 %v1361, 7
    %v1363 = vsub.s32 0, %v1362
    %v1364 = vrot.slane %v692, %v1363
    %v1366 = vadd.f32 %v1358, %v1364
    %v1367 = vadd.f32 %v1359, %v1364
    %v1368 = vpack.c.bf16 %v1367, %v1366
    %v1370 = vlaneseq
    %v1371 = vshrl.u32 %v1370, 7
    %v1372 = vsub.s32 0, %v1371
    %v1373 = vrot.slane %v701, %v1372
    %v1383 = vunpack.c.l.b16 %v693
    %v1384 = vunpack.c.l.b16 %v694
    %v1385 = vunpack.c.l.b16 %v695
    %v1386 = vunpack.c.l.b16 %v696
    %v1387 = vunpack.c.l.b16 %v697
    %v1388 = vunpack.c.l.b16 %v698
    %v1389 = vunpack.c.l.b16 %v699
    %v1390 = vunpack.c.l.b16 %v700
    %v1391 = vpack.c.b16 %v1384, %v1383
    %v1392 = vpack.c.b16 %v1386, %v1385
    %v1393 = vpack.c.b16 %v1388, %v1387
    %v1394 = vpack.c.b16 %v1390, %v1389
    %v1400 = vsel %vm788, %v1368, 0
    %1402 = vmatprep.subr.bf16.mxu0 0
    %1403 = vmatpush1.bf16.msra.mxu0 0
    %1404 = vmatprep.subr.bf16.mxu0 0
    %1405 = vmatpush1.bf16.msra.mxu0 0
    %1406 = vmatprep.subr.bf16.mxu0 0
    %1407 = vmatpush1.bf16.msra.mxu0 0
    %1408 = vmatprep.subr.bf16.mxu0 0
    %1409 = vmatpush1.bf16.msra.mxu0 0
    %1410 = vmatprep.subr.bf16.mxu0 0
    %1411 = vmatpush1.bf16.msra.mxu0 %v1394
    %1412 = vmatprep.subr.bf16.mxu0 0
    %1413 = vmatpush1.bf16.msra.mxu0 %v1393
    %1414 = vmatprep.subr.bf16.mxu0 0
    %1415 = vmatpush1.bf16.msra.mxu0 %v1392
    %1416 = vmatprep.subr.bf16.mxu0 0
    %1417 = vmatpush1.bf16.msra.mxu0 %v1391
    %1418 = vmatprep.subr.bf16.mxu0 0
    %1419 = vmatpush2.bf16.msra.mxu0 0
    %1420 = vmatprep.subr.bf16.mxu0 0
    %1421 = vmatpush2.bf16.msra.mxu0 0
    %1422 = vmatprep.subr.bf16.mxu0 0
    %1423 = vmatpush2.bf16.msra.mxu0 0
    %1424 = vmatprep.subr.bf16.mxu0 0
    %1425 = vmatpush2.bf16.msra.mxu0 0
    %1426 = vmatprep.subr.bf16.mxu0 0
    %1427 = vmatpush2.bf16.msra.mxu0 0
    %1428 = vmatprep.subr.bf16.mxu0 0
    %1429 = vmatpush2.bf16.msra.mxu0 0
    %1430 = vmatprep.subr.bf16.mxu0 0
    %1431 = vmatpush2.bf16.msra.mxu0 0
    %1432 = vmatprep.subr.bf16.mxu0 0
    %1433 = vmatpush2.bf16.msra.mxu0 0
    %1434 = vmatprep.mubr.bf16.mxu0 0
    %1435 = vmatmul.mubr.bf16.gmra.mxu0 %v1400
    %v1436 = vpop.f32.mrf.mxu0
    %v1437 = vadd.f32 %v1373, %v1436
    %v1438 = vpop.f32.mrf.mxu0
    %v1439 = vpop.f32.mrf.mxu0
    %v1440 = vadd.f32 %v1373, %v1439
    %v1441 = vpop.f32.mrf.mxu0
    %1442 = vdwg.mxu0
    %v1443 = vmul.f32 %v1437, 0.5
    %v1444 = vmul.f32 %v1440, 0.5
    %v1445 = vmul.f32 %v1437, 0.70710677
    %v1446 = vmul.f32 %v1440, 0.70710677
    %v1447 = vmax.f32 %v1445, -4.0
    %v1448 = vmax.f32 %v1446, -4.0
    %v1449 = vmin.f32 %v1447, 4.0
    %v1450 = vmin.f32 %v1448, 4.0
    %v1451 = vmul.f32 %v1449, %v1449
    %v1452 = vmul.f32 %v1450, %v1450
    %v1453 = vmul.f32 %v1451, -2.7261424e-10
    %v1454 = vmul.f32 %v1452, -2.7261424e-10
    %v1455 = vadd.f32 %v1453, 2.7706815e-08
    %v1456 = vadd.f32 %v1454, 2.7706815e-08
    %v1457 = vmul.f32 %v1455, %v1451
    %v1458 = vmul.f32 %v1456, %v1452
    %v1459 = vadd.f32 %v1457, -2.101024e-06
    %v1460 = vadd.f32 %v1458, -2.101024e-06
    %v1461 = vmul.f32 %v1459, %v1451
    %v1462 = vmul.f32 %v1460, %v1452
    %v1463 = vadd.f32 %v1461, -5.6925062e-05
    %v1464 = vadd.f32 %v1462, -5.6925062e-05
    %v1465 = vmul.f32 %v1463, %v1451
    %v1466 = vmul.f32 %v1464, %v1452
    %v1467 = vadd.f32 %v1465, -0.00073499064
    %v1468 = vadd.f32 %v1466, -0.00073499064
    %v1469 = vmul.f32 %v1467, %v1451
    %v1470 = vmul.f32 %v1468, %v1452
    %v1471 = vadd.f32 %v1469, -0.0029546
    %v1472 = vadd.f32 %v1470, -0.0029546
    %v1473 = vmul.f32 %v1471, %v1451
    %v1474 = vmul.f32 %v1472, %v1452
    %v1475 = vadd.f32 %v1473, -0.016096033
    %v1476 = vadd.f32 %v1474, -0.016096033
    %v1477 = vmul.f32 %v1451, -1.45660715e-05
    %v1478 = vmul.f32 %v1452, -1.45660715e-05
    %v1479 = vadd.f32 %v1477, -0.00021337405
    %v1480 = vadd.f32 %v1478, -0.00021337405
    %v1481 = vmul.f32 %v1479, %v1451
    %v1482 = vmul.f32 %v1480, %v1452
    %v1483 = vadd.f32 %v1481, -0.001682827
    %v1484 = vadd.f32 %v1482, -0.001682827
    %v1485 = vmul.f32 %v1483, %v1451
    %v1486 = vmul.f32 %v1484, %v1452
    %v1487 = vadd.f32 %v1485, -0.0073733293
    %v1488 = vadd.f32 %v1486, -0.0073733293
    %v1489 = vmul.f32 %v1487, %v1451
    %v1490 = vmul.f32 %v1488, %v1452
    %v1491 = vadd.f32 %v1489, -0.014264739
    %v1492 = vadd.f32 %v1490, -0.014264739
    %v1493 = vmul.f32 %v1449, %v1475
    %v1494 = vmul.f32 %v1450, %v1476
    %v1495 = vrcp.pop %v1491
    %v1496 = vmul.f32 %v1493, %v1495
    %v1497 = vrcp.pop %v1492
    %v1498 = vmul.f32 %v1494, %v1497
    %v1499 = vadd.f32 %v1496, 1.0
    %v1500 = vadd.f32 %v1498, 1.0
    %v1501 = vmul.f32 %v1443, %v1499
    %v1502 = vmul.f32 %v1444, %v1500
    %v1503 = vpack.c.bf16 %v1502, %v1501
    %v1505 = vlaneseq
    %v1506 = vshrl.u32 %v1505, 7
    %v1507 = vsub.s32 0, %v1506
    %v1508 = vrot.slane %v706, %v1507
    %v1514 = vunpack.c.l.b16 %v702
    %v1515 = vunpack.c.l.b16 %v703
    %v1516 = vunpack.c.l.b16 %v704
    %v1517 = vunpack.c.l.b16 %v705
    %v1518 = vpack.c.b16 %v1515, %v1514
    %v1519 = vpack.c.b16 %v1517, %v1516
    %vm1522 = vcmask 261120
    %v1524 = vsel %vm1522, %v1503, 0
    %1526 = vmatprep.subr.bf16.mxu0 0
    %1527 = vmatpush1.bf16.msra.mxu0 0
    %1528 = vmatprep.subr.bf16.mxu0 0
    %1529 = vmatpush1.bf16.msra.mxu0 0
    %1530 = vmatprep.subr.bf16.mxu0 0
    %1531 = vmatpush1.bf16.msra.mxu0 0
    %1532 = vmatprep.subr.bf16.mxu0 0
    %1533 = vmatpush1.bf16.msra.mxu0 0
    %1534 = vmatprep.subr.bf16.mxu0 0
    %1535 = vmatpush1.bf16.msra.mxu0 0
    %1536 = vmatprep.subr.bf16.mxu0 0
    %1537 = vmatpush1.bf16.msra.mxu0 0
    %1538 = vmatprep.subr.bf16.mxu0 0
    %1539 = vmatpush1.bf16.msra.mxu0 %v1519
    %1540 = vmatprep.subr.bf16.mxu0 0
    %1541 = vmatpush1.bf16.msra.mxu0 %v1518
    %1542 = vmatprep.subr.bf16.mxu0 0
    %1543 = vmatpush2.bf16.msra.mxu0 0
    %1544 = vmatprep.subr.bf16.mxu0 0
    %1545 = vmatpush2.bf16.msra.mxu0 0
    %1546 = vmatprep.subr.bf16.mxu0 0
    %1547 = vmatpush2.bf16.msra.mxu0 0
    %1548 = vmatprep.subr.bf16.mxu0 0
    %1549 = vmatpush2.bf16.msra.mxu0 0
    %1550 = vmatprep.subr.bf16.mxu0 0
    %1551 = vmatpush2.bf16.msra.mxu0 0
    %1552 = vmatprep.subr.bf16.mxu0 0
    %1553 = vmatpush2.bf16.msra.mxu0 0
    %1554 = vmatprep.subr.bf16.mxu0 0
    %1555 = vmatpush2.bf16.msra.mxu0 0
    %1556 = vmatprep.subr.bf16.mxu0 0
    %1557 = vmatpush2.bf16.msra.mxu0 0
    %1558 = vmatprep.mubr.bf16.mxu0 0
    %1559 = vmatmul.mubr.bf16.gmra.mxu0 %v1524
    %v1560 = vpop.f32.mrf.mxu0
    %v1561 = vadd.f32 %v1508, %v1560
    %v1562 = vpop.f32.mrf.mxu0
    %v1563 = vpop.f32.mrf.mxu0
    %v1564 = vadd.f32 %v1508, %v1563
    %v1565 = vpop.f32.mrf.mxu0
    %1566 = vdwg.mxu0
    %v1567 = vld [vmem:[%s27] sm:$0xff]
    %v1568 = vld [vmem:[%s27 + $0x8] sm:$0xf]
    %v1569 = vld [vmem:[%s27 + $0xc] sm:$0xff]
    %v1570 = vld [vmem:[%s27 + $0x14] sm:$0xf]
    %v1571 = vld [vmem:[%s27 + $0x18] sm:$0xff]
    %v1572 = vld [vmem:[%s27 + $0x20] sm:$0xf]
    %v1573 = vld [vmem:[%s27 + $0x24] sm:$0xff]
    %v1574 = vld [vmem:[%s27 + $0x2c] sm:$0xf]
    %v1575 = vld [vmem:[%s29] sm:$0x7]
    %v1576 = vld [vmem:[%s31] sm:$0xf]
    %v1577 = vld [vmem:[%s31 + $0x4] sm:$0xf]
    %v1578 = vld [vmem:[%s31 + $0x8] sm:$0xf]
    %v1579 = vld [vmem:[%s31 + $0xc] sm:$0xf]
    %v1580 = vld [vmem:[%s31 + $0x10] sm:$0xf]
    %v1581 = vld [vmem:[%s31 + $0x14] sm:$0xf]
    %v1582 = vld [vmem:[%s31 + $0x18] sm:$0xf]
    %v1583 = vld [vmem:[%s31 + $0x1c] sm:$0xf]
    %v1584 = vld [vmem:[%s31 + $0x20] sm:$0xf]
    %v1585 = vld [vmem:[%s31 + $0x24] sm:$0xf]
    %v1586 = vld [vmem:[%s31 + $0x28] sm:$0xf]
    %v1587 = vld [vmem:[%s31 + $0x2c] sm:$0xf]
    %v1588 = vld [vmem:[%s31 + $0x30] sm:$0xf]
    %v1589 = vld [vmem:[%s31 + $0x34] sm:$0xf]
    %v1590 = vld [vmem:[%s31 + $0x38] sm:$0xf]
    %v1591 = vld [vmem:[%s31 + $0x3c] sm:$0xf]
    %v1592 = vld [vmem:[#allocation2] sm:$0x1]
    %v1593 = vld [vmem:[#allocation5] sm:$0x1]
    %v1594 = vld [vmem:[#allocation7] sm:$0x1]
    %v1595 = vld [vmem:[%s39] sm:$0xf]
    %v1596 = vld [vmem:[%s39 + $0x4] sm:$0xf]
    %v1597 = vld [vmem:[%s39 + $0x8] sm:$0xf]
    %v1598 = vld [vmem:[%s39 + $0xc] sm:$0xf]
    %v1599 = vld [vmem:[#allocation8] sm:$0x1]
    %v1600 = vld [vmem:[%s43] sm:$0xf]
    %v1601 = vld [vmem:[%s43 + $0x4] sm:$0xf]
    %v1602 = vld [vmem:[%s43 + $0x8] sm:$0xf]
    %v1603 = vld [vmem:[%s43 + $0xc] sm:$0xf]
    %v1604 = vld [vmem:[#allocation10] sm:$0x1]
    %v1605 = vpack.c.bf16 %v1564, %v1561
    %v1607 = vlaneseq
    %v1608 = vshrl.u32 %v1607, 7
    %v1609 = vsub.s32 0, %v1608
    %v1610 = vrot.slane %v1575, %v1609
    %v1611 = vlaneseq
    %v1612 = vshrl.u32 %v1611, 7
    %v1613 = vsub.s32 1, %v1612
    %v1614 = vrot.slane %v1575, %v1613
    %v1615 = vlaneseq
    %v1616 = vshrl.u32 %v1615, 7
    %v1617 = vsub.s32 2, %v1616
    %v1618 = vrot.slane %v1575, %v1617
    %v1630 = vunpack.c.l.b16 %v1567
    %v1631 = vunpack.c.h.b16 %v1567
    %v1632 = vunpack.c.l.b16 %v1568
    %v1633 = vunpack.c.l.b16 %v1569
    %v1634 = vunpack.c.h.b16 %v1569
    %v1635 = vunpack.c.l.b16 %v1570
    %v1636 = vunpack.c.l.b16 %v1571
    %v1637 = vunpack.c.h.b16 %v1571
    %v1638 = vunpack.c.l.b16 %v1572
    %v1639 = vunpack.c.l.b16 %v1573
    %v1640 = vunpack.c.h.b16 %v1573
    %v1641 = vunpack.c.l.b16 %v1574
    %v1642 = vpack.c.b16 %v1633, %v1630
    %v1643 = vpack.c.b16 %v1634, %v1631
    %v1644 = vpack.c.b16 %v1635, %v1632
    %v1645 = vpack.c.b16 %v1639, %v1636
    %v1646 = vpack.c.b16 %v1640, %v1637
    %v1647 = vpack.c.b16 %v1641, %v1638
    %v1655 = vsel %vm1522, %v1605, 0
    %1657 = vmatprep.subr.bf16.mxu0 0
    %1658 = vmatpush1.bf16.msra.mxu0 0
    %1659 = vmatprep.subr.bf16.mxu0 0
    %1660 = vmatpush1.bf16.msra.mxu0 0
    %1661 = vmatprep.subr.bf16.mxu0 0
    %1662 = vmatpush1.bf16.msra.mxu0 0
    %1663 = vmatprep.subr.bf16.mxu0 0
    %1664 = vmatpush1.bf16.msra.mxu0 0
    %1665 = vmatprep.subr.bf16.mxu0 0
    %1666 = vmatpush1.bf16.msra.mxu0 0
    %1667 = vmatprep.subr.bf16.mxu0 0
    %1668 = vmatpush1.bf16.msra.mxu0 0
    %1669 = vmatprep.subr.bf16.mxu0 %v1646
    %1670 = vmatpush1.bf16.msra.mxu0 %v1645
    %1671 = vmatprep.subr.bf16.mxu0 %v1643
    %1672 = vmatpush1.bf16.msra.mxu0 %v1642
    %1673 = vmatprep.subr.bf16.mxu0 0
    %1674 = vmatpush2.bf16.msra.mxu0 0
    %1675 = vmatprep.subr.bf16.mxu0 0
    %1676 = vmatpush2.bf16.msra.mxu0 0
    %1677 = vmatprep.subr.bf16.mxu0 0
    %1678 = vmatpush2.bf16.msra.mxu0 0
    %1679 = vmatprep.subr.bf16.mxu0 0
    %1680 = vmatpush2.bf16.msra.mxu0 0
    %1681 = vmatprep.subr.bf16.mxu0 0
    %1682 = vmatpush2.bf16.msra.mxu0 0
    %1683 = vmatprep.subr.bf16.mxu0 0
    %1684 = vmatpush2.bf16.msra.mxu0 0
    %1685 = vmatprep.subr.bf16.mxu0 0
    %1686 = vmatpush2.bf16.msra.mxu0 0
    %1687 = vmatprep.subr.bf16.mxu0 0
    %1688 = vmatpush2.bf16.msra.mxu0 0
    %1689 = vmatprep.mubr.bf16.mxu0 0
    %1690 = vmatmul.mubr.bf16.gmra.mxu0 %v1655
    %v1691 = vpop.f32.mrf.mxu0
    %v1692 = vadd.f32 %v1610, %v1691
    %v1693 = vpop.f32.mrf.mxu0
    %v1694 = vadd.f32 %v1614, %v1693
    %v1695 = vpop.f32.mrf.mxu0
    %v1696 = vadd.f32 %v1610, %v1695
    %v1697 = vpop.f32.mrf.mxu0
    %v1698 = vadd.f32 %v1614, %v1697
    %1699 = vdwg.mxu0
    %1700 = vmatprep.subr.bf16.mxu0 0
    %1701 = vmatpush1.bf16.msra.mxu0 0
    %1702 = vmatprep.subr.bf16.mxu0 0
    %1703 = vmatpush1.bf16.msra.mxu0 0
    %1704 = vmatprep.subr.bf16.mxu0 0
    %1705 = vmatpush1.bf16.msra.mxu0 0
    %1706 = vmatprep.subr.bf16.mxu0 0
    %1707 = vmatpush1.bf16.msra.mxu0 0
    %1708 = vmatprep.subr.bf16.mxu0 0
    %1709 = vmatpush1.bf16.msra.mxu0 0
    %1710 = vmatprep.subr.bf16.mxu0 0
    %1711 = vmatpush1.bf16.msra.mxu0 0
    %1712 = vmatprep.subr.bf16.mxu0 0
    %1713 = vmatpush1.bf16.msra.mxu0 %v1647
    %1714 = vmatprep.subr.bf16.mxu0 0
    %1715 = vmatpush1.bf16.msra.mxu0 %v1644
    %1716 = vmatprep.subr.bf16.mxu0 0
    %1717 = vmatpush2.bf16.msra.mxu0 0
    %1718 = vmatprep.subr.bf16.mxu0 0
    %1719 = vmatpush2.bf16.msra.mxu0 0
    %1720 = vmatprep.subr.bf16.mxu0 0
    %1721 = vmatpush2.bf16.msra.mxu0 0
    %1722 = vmatprep.subr.bf16.mxu0 0
    %1723 = vmatpush2.bf16.msra.mxu0 0
    %1724 = vmatprep.subr.bf16.mxu0 0
    %1725 = vmatpush2.bf16.msra.mxu0 0
    %1726 = vmatprep.subr.bf16.mxu0 0
    %1727 = vmatpush2.bf16.msra.mxu0 0
    %1728 = vmatprep.subr.bf16.mxu0 0
    %1729 = vmatpush2.bf16.msra.mxu0 0
    %1730 = vmatprep.subr.bf16.mxu0 0
    %1731 = vmatpush2.bf16.msra.mxu0 0
    %1732 = vmatprep.mubr.bf16.mxu0 0
    %1733 = vmatmul.mubr.bf16.gmra.mxu0 %v1655
    %v1734 = vpop.f32.mrf.mxu0
    %v1735 = vadd.f32 %v1618, %v1734
    %v1736 = vpop.f32.mrf.mxu0
    %v1737 = vpop.f32.mrf.mxu0
    %v1738 = vadd.f32 %v1618, %v1737
    %v1739 = vpop.f32.mrf.mxu0
    %1740 = vdwg.mxu0
    %v1741 = vmul.f32 %v1692, 0.35355338
    %v1742 = vmul.f32 %v1696, 0.35355338
    %vm1743 = vcmp.lt.s32.totalorder %v879, 8
    %vm1744 = vmand %vm880, %vm1743
    %v1745 = vsel %vm1744, %v1741, 0.0
    %v1746 = vsel %vm1744, %v1742, 0.0
    %vm1747 = vcmp.ge.s32.totalorder %v879, 8
    %vm1748 = vmand %vm1747, %vm881
    %v1749 = vsel %vm1748, %v1741, 0.0
    %v1750 = vsel %vm1748, %v1742, 0.0
    %vm1751 = vcmp.lt.s32.totalorder %v879, 24
    %vm1752 = vmand %vm885, %vm1751
    %v1753 = vsel %vm1752, %v1741, 0.0
    %v1754 = vsel %vm1752, %v1742, 0.0
    %vm1755 = vcmp.ge.s32.totalorder %v879, 24
    %vm1756 = vmand %vm1755, %vm886
    %v1757 = vsel %vm1756, %v1741, 0.0
    %v1758 = vsel %vm1756, %v1742, 0.0
    %v1759 = vsel %vm1744, %v1694, 0.0
    %v1760 = vsel %vm1744, %v1698, 0.0
    %v1761 = vsel %vm1748, %v1694, 0.0
    %v1762 = vsel %vm1748, %v1698, 0.0
    %v1763 = vsel %vm1752, %v1694, 0.0
    %v1764 = vsel %vm1752, %v1698, 0.0
    %v1765 = vsel %vm1756, %v1694, 0.0
    %v1766 = vsel %vm1756, %v1698, 0.0
    %v1767 = vsel %vm1744, %v1735, 0.0
    %v1768 = vsel %vm1744, %v1738, 0.0
    %v1769 = vsel %vm1748, %v1735, 0.0
    %v1770 = vsel %vm1748, %v1738, 0.0
    %v1771 = vsel %vm1752, %v1735, 0.0
    %v1772 = vsel %vm1752, %v1738, 0.0
    %v1773 = vsel %vm1756, %v1735, 0.0
    %v1774 = vsel %vm1756, %v1738, 0.0
    %v1775 = vpack.c.bf16 %v1746, %v1745
    %v1776 = vpack.c.bf16 %v1750, %v1749
    %v1777 = vpack.c.bf16 %v1754, %v1753
    %v1778 = vpack.c.bf16 %v1758, %v1757
    %v1779 = vpack.c.bf16 %v1760, %v1759
    %v1780 = vpack.c.bf16 %v1762, %v1761
    %v1781 = vpack.c.bf16 %v1764, %v1763
    %v1782 = vpack.c.bf16 %v1766, %v1765
    %1783 = vmatprep.subr.bf16.mxu0 0
    %1784 = vmatpush1.bf16.xpose.msra.mxu0 0
    %1785 = vmatprep.subr.bf16.mxu0 0
    %1786 = vmatpush1.bf16.xpose.msra.mxu0 0
    %1787 = vmatprep.subr.bf16.mxu0 0
    %1788 = vmatpush1.bf16.xpose.msra.mxu0 0
    %1789 = vmatprep.subr.bf16.mxu0 0
    %1790 = vmatpush1.bf16.xpose.msra.mxu0 0
    %1791 = vmatprep.subr.bf16.mxu0 0
    %1792 = vmatpush1.bf16.xpose.msra.mxu0 %v1782
    %1793 = vmatprep.subr.bf16.mxu0 0
    %1794 = vmatpush1.bf16.xpose.msra.mxu0 %v1781
    %1795 = vmatprep.subr.bf16.mxu0 0
    %1796 = vmatpush1.bf16.xpose.msra.mxu0 %v1780
    %1797 = vmatprep.subr.bf16.mxu0 0
    %1798 = vmatpush1.bf16.xpose.msra.mxu0 %v1779
    %1799 = vmatprep.subr.bf16.mxu0 0
    %1800 = vmatpush2.bf16.xpose.msra.mxu0 0
    %1801 = vmatprep.subr.bf16.mxu0 0
    %1802 = vmatpush2.bf16.xpose.msra.mxu0 0
    %1803 = vmatprep.subr.bf16.mxu0 0
    %1804 = vmatpush2.bf16.xpose.msra.mxu0 0
    %1805 = vmatprep.subr.bf16.mxu0 0
    %1806 = vmatpush2.bf16.xpose.msra.mxu0 0
    %1807 = vmatprep.subr.bf16.mxu0 0
    %1808 = vmatpush2.bf16.xpose.msra.mxu0 0
    %1809 = vmatprep.subr.bf16.mxu0 0
    %1810 = vmatpush2.bf16.xpose.msra.mxu0 0
    %1811 = vmatprep.subr.bf16.mxu0 0
    %1812 = vmatpush2.bf16.xpose.msra.mxu0 0
    %1813 = vmatprep.subr.bf16.mxu0 0
    %1814 = vmatpush2.bf16.xpose.msra.mxu0 0
    %1815 = vmatprep.mubr.bf16.mxu0 0
    %1816 = vmatmul.mubr.bf16.gmra.mxu0 %v1775
    %v1817 = vpop.f32.mrf.mxu0
    %v1818 = vadd.f32 0.0, %v1817
    %v1819 = vpop.f32.mrf.mxu0
    %v1820 = vpop.f32.mrf.mxu0
    %v1821 = vadd.f32 0.0, %v1820
    %v1822 = vpop.f32.mrf.mxu0
    %1823 = vmatprep.mubr.bf16.mxu0 0
    %1824 = vmatmul.mubr.bf16.gmra.mxu0 %v1776
    %v1825 = vpop.f32.mrf.mxu0
    %v1826 = vadd.f32 0.0, %v1825
    %v1827 = vpop.f32.mrf.mxu0
    %v1828 = vpop.f32.mrf.mxu0
    %v1829 = vadd.f32 0.0, %v1828
    %v1830 = vpop.f32.mrf.mxu0
    %1831 = vmatprep.mubr.bf16.mxu0 0
    %1832 = vmatmul.mubr.bf16.gmra.mxu0 %v1777
    %v1833 = vpop.f32.mrf.mxu0
    %v1834 = vadd.f32 0.0, %v1833
    %v1835 = vpop.f32.mrf.mxu0
    %v1836 = vpop.f32.mrf.mxu0
    %v1837 = vadd.f32 0.0, %v1836
    %v1838 = vpop.f32.mrf.mxu0
    %1839 = vmatprep.mubr.bf16.mxu0 0
    %1840 = vmatmul.mubr.bf16.gmra.mxu0 %v1778
    %v1841 = vpop.f32.mrf.mxu0
    %v1842 = vadd.f32 0.0, %v1841
    %v1843 = vpop.f32.mrf.mxu0
    %v1844 = vpop.f32.mrf.mxu0
    %v1845 = vadd.f32 0.0, %v1844
    %v1846 = vpop.f32.mrf.mxu0
    %1847 = vdwg.mxu0
    %v1848 = vsel %vm959, %v1818, -1e+30
    %v1849 = vsel %vm960, %v1821, -1e+30
    %v1850 = vsel %vm961, %v1826, -1e+30
    %v1851 = vsel %vm962, %v1829, -1e+30
    %v1852 = vsel %vm963, %v1834, -1e+30
    %v1853 = vsel %vm964, %v1837, -1e+30
    %v1854 = vsel %vm965, %v1842, -1e+30
    %v1855 = vsel %vm966, %v1845, -1e+30
    %v1856 = vsel %vm788, %v1848, -inf
    %1857 = vmax.xlane.f32.xlu0 %v1856
    %v1858 = vpop.xlane.xlu0 %1857
    %v1859 = vsel %vm788, %v1849, -inf
    %1860 = vmax.xlane.f32.xlu0 %v1859
    %v1861 = vpop.xlane.xlu0 %1860
    %v1862 = vsel %vm788, %v1850, -inf
    %1863 = vmax.xlane.f32.xlu0 %v1862
    %v1864 = vpop.xlane.xlu0 %1863
    %v1865 = vsel %vm788, %v1851, -inf
    %1866 = vmax.xlane.f32.xlu0 %v1865
    %v1867 = vpop.xlane.xlu0 %1866
    %v1868 = vsel %vm788, %v1852, -inf
    %1869 = vmax.xlane.f32.xlu0 %v1868
    %v1870 = vpop.xlane.xlu0 %1869
    %v1871 = vsel %vm788, %v1853, -inf
    %1872 = vmax.xlane.f32.xlu0 %v1871
    %v1873 = vpop.xlane.xlu0 %1872
    %v1874 = vsel %vm788, %v1854, -inf
    %1875 = vmax.xlane.f32.xlu0 %v1874
    %v1876 = vpop.xlane.xlu0 %1875
    %v1877 = vsel %vm788, %v1855, -inf
    %1878 = vmax.xlane.f32.xlu0 %v1877
    %v1879 = vpop.xlane.xlu0 %1878
    %v1880 = vsub.f32 %v1848, %v1858
    %v1881 = vsub.f32 %v1849, %v1861
    %v1882 = vsub.f32 %v1850, %v1864
    %v1883 = vsub.f32 %v1851, %v1867
    %v1884 = vsub.f32 %v1852, %v1870
    %v1885 = vsub.f32 %v1853, %v1873
    %v1886 = vsub.f32 %v1854, %v1876
    %v1887 = vsub.f32 %v1855, %v1879
    %v1888 = vmul.f32 %v1880, 1.442695
    %v1889 = vpow.pop %v1888
    %v1890 = vmul.f32 %v1881, 1.442695
    %v1891 = vpow.pop %v1890
    %v1892 = vmul.f32 %v1882, 1.442695
    %v1893 = vpow.pop %v1892
    %v1894 = vmul.f32 %v1883, 1.442695
    %v1895 = vpow.pop %v1894
    %v1896 = vmul.f32 %v1884, 1.442695
    %v1897 = vpow.pop %v1896
    %v1898 = vmul.f32 %v1885, 1.442695
    %v1899 = vpow.pop %v1898
    %v1900 = vmul.f32 %v1886, 1.442695
    %v1901 = vpow.pop %v1900
    %v1902 = vmul.f32 %v1887, 1.442695
    %v1903 = vpow.pop %v1902
    %v1904 = vsel %vm788, %v1889, 0.0
    %1905 = vadd.xlane.f32.xlu0 %v1904
    %v1906 = vpop.xlane.xlu0 %1905
    %v1907 = vsel %vm788, %v1891, 0.0
    %1908 = vadd.xlane.f32.xlu0 %v1907
    %v1909 = vpop.xlane.xlu0 %1908
    %v1910 = vsel %vm788, %v1893, 0.0
    %1911 = vadd.xlane.f32.xlu0 %v1910
    %v1912 = vpop.xlane.xlu0 %1911
    %v1913 = vsel %vm788, %v1895, 0.0
    %1914 = vadd.xlane.f32.xlu0 %v1913
    %v1915 = vpop.xlane.xlu0 %1914
    %v1916 = vsel %vm788, %v1897, 0.0
    %1917 = vadd.xlane.f32.xlu0 %v1916
    %v1918 = vpop.xlane.xlu0 %1917
    %v1919 = vsel %vm788, %v1899, 0.0
    %1920 = vadd.xlane.f32.xlu0 %v1919
    %v1921 = vpop.xlane.xlu0 %1920
    %v1922 = vsel %vm788, %v1901, 0.0
    %1923 = vadd.xlane.f32.xlu0 %v1922
    %v1924 = vpop.xlane.xlu0 %1923
    %v1925 = vsel %vm788, %v1903, 0.0
    %1926 = vadd.xlane.f32.xlu0 %v1925
    %v1927 = vpop.xlane.xlu0 %1926
    %v1928 = vrcp.pop %v1906
    %v1929 = vrcp.pop %v1909
    %v1930 = vrcp.pop %v1912
    %v1931 = vrcp.pop %v1915
    %v1932 = vrcp.pop %v1918
    %v1933 = vrcp.pop %v1921
    %v1934 = vrcp.pop %v1924
    %v1935 = vrcp.pop %v1927
    %v1936 = vmul.f32 %v1889, %v1928
    %v1937 = vmul.f32 %v1891, %v1929
    %v1938 = vmul.f32 %v1893, %v1930
    %v1939 = vmul.f32 %v1895, %v1931
    %v1940 = vmul.f32 %v1897, %v1932
    %v1941 = vmul.f32 %v1899, %v1933
    %v1942 = vmul.f32 %v1901, %v1934
    %v1943 = vmul.f32 %v1903, %v1935
    %v1944 = vpack.c.bf16 %v1937, %v1936
    %v1945 = vpack.c.bf16 %v1939, %v1938
    %v1946 = vpack.c.bf16 %v1941, %v1940
    %v1947 = vpack.c.bf16 %v1943, %v1942
    %v1948 = vpack.c.bf16 %v1768, %v1767
    %v1949 = vpack.c.bf16 %v1770, %v1769
    %v1950 = vpack.c.bf16 %v1772, %v1771
    %v1951 = vpack.c.bf16 %v1774, %v1773
    %v1953 = vsel %vm788, %v1944, 0
    %v1956 = vsel %vm788, %v1945, 0
    %v1959 = vsel %vm788, %v1946, 0
    %v1962 = vsel %vm788, %v1947, 0
    %1964 = vmatprep.subr.bf16.mxu0 0
    %1965 = vmatpush1.bf16.msra.mxu0 0
    %1966 = vmatprep.subr.bf16.mxu0 0
    %1967 = vmatpush1.bf16.msra.mxu0 0
    %1968 = vmatprep.subr.bf16.mxu0 0
    %1969 = vmatpush1.bf16.msra.mxu0 0
    %1970 = vmatprep.subr.bf16.mxu0 0
    %1971 = vmatpush1.bf16.msra.mxu0 0
    %1972 = vmatprep.subr.bf16.mxu0 0
    %1973 = vmatpush1.bf16.msra.mxu0 %v1951
    %1974 = vmatprep.subr.bf16.mxu0 0
    %1975 = vmatpush1.bf16.msra.mxu0 %v1950
    %1976 = vmatprep.subr.bf16.mxu0 0
    %1977 = vmatpush1.bf16.msra.mxu0 %v1949
    %1978 = vmatprep.subr.bf16.mxu0 0
    %1979 = vmatpush1.bf16.msra.mxu0 %v1948
    %1980 = vmatprep.subr.bf16.mxu0 0
    %1981 = vmatpush2.bf16.msra.mxu0 0
    %1982 = vmatprep.subr.bf16.mxu0 0
    %1983 = vmatpush2.bf16.msra.mxu0 0
    %1984 = vmatprep.subr.bf16.mxu0 0
    %1985 = vmatpush2.bf16.msra.mxu0 0
    %1986 = vmatprep.subr.bf16.mxu0 0
    %1987 = vmatpush2.bf16.msra.mxu0 0
    %1988 = vmatprep.subr.bf16.mxu0 0
    %1989 = vmatpush2.bf16.msra.mxu0 0
    %1990 = vmatprep.subr.bf16.mxu0 0
    %1991 = vmatpush2.bf16.msra.mxu0 0
    %1992 = vmatprep.subr.bf16.mxu0 0
    %1993 = vmatpush2.bf16.msra.mxu0 0
    %1994 = vmatprep.subr.bf16.mxu0 0
    %1995 = vmatpush2.bf16.msra.mxu0 0
    %1996 = vmatprep.mubr.bf16.mxu0 0
    %1997 = vmatmul.mubr.bf16.gmra.mxu0 %v1953
    %v1998 = vpop.f32.mrf.mxu0
    %v1999 = vadd.f32 0.0, %v1998
    %v2000 = vpop.f32.mrf.mxu0
    %v2001 = vpop.f32.mrf.mxu0
    %v2002 = vadd.f32 0.0, %v2001
    %v2003 = vpop.f32.mrf.mxu0
    %2004 = vmatprep.mubr.bf16.mxu0 0
    %2005 = vmatmul.mubr.bf16.gmra.mxu0 %v1956
    %v2006 = vpop.f32.mrf.mxu0
    %v2007 = vadd.f32 0.0, %v2006
    %v2008 = vpop.f32.mrf.mxu0
    %v2009 = vpop.f32.mrf.mxu0
    %v2010 = vadd.f32 0.0, %v2009
    %v2011 = vpop.f32.mrf.mxu0
    %2012 = vmatprep.mubr.bf16.mxu0 0
    %2013 = vmatmul.mubr.bf16.gmra.mxu0 %v1959
    %v2014 = vpop.f32.mrf.mxu0
    %v2015 = vadd.f32 0.0, %v2014
    %v2016 = vpop.f32.mrf.mxu0
    %v2017 = vpop.f32.mrf.mxu0
    %v2018 = vadd.f32 0.0, %v2017
    %v2019 = vpop.f32.mrf.mxu0
    %2020 = vmatprep.mubr.bf16.mxu0 0
    %2021 = vmatmul.mubr.bf16.gmra.mxu0 %v1962
    %v2022 = vpop.f32.mrf.mxu0
    %v2023 = vadd.f32 0.0, %v2022
    %v2024 = vpop.f32.mrf.mxu0
    %v2025 = vpop.f32.mrf.mxu0
    %v2026 = vadd.f32 0.0, %v2025
    %v2027 = vpop.f32.mrf.mxu0
    %2028 = vdwg.mxu0
    %v2029 = vadd.f32 %v1999, %v2007
    %v2030 = vadd.f32 %v2002, %v2010
    %v2031 = vadd.f32 %v2029, %v2015
    %v2032 = vadd.f32 %v2030, %v2018
    %v2033 = vadd.f32 %v2031, %v2023
    %v2034 = vadd.f32 %v2032, %v2026
    %v2035 = vpack.c.bf16 %v2034, %v2033
    %v2037 = vlaneseq
    %v2038 = vshrl.u32 %v2037, 7
    %v2039 = vsub.s32 0, %v2038
    %v2040 = vrot.slane %v1592, %v2039
    %v2058 = vunpack.c.l.b16 %v1576
    %v2059 = vunpack.c.l.b16 %v1577
    %v2060 = vunpack.c.l.b16 %v1578
    %v2061 = vunpack.c.l.b16 %v1579
    %v2062 = vunpack.c.l.b16 %v1580
    %v2063 = vunpack.c.l.b16 %v1581
    %v2064 = vunpack.c.l.b16 %v1582
    %v2065 = vunpack.c.l.b16 %v1583
    %v2066 = vunpack.c.l.b16 %v1584
    %v2067 = vunpack.c.l.b16 %v1585
    %v2068 = vunpack.c.l.b16 %v1586
    %v2069 = vunpack.c.l.b16 %v1587
    %v2070 = vunpack.c.l.b16 %v1588
    %v2071 = vunpack.c.l.b16 %v1589
    %v2072 = vunpack.c.l.b16 %v1590
    %v2073 = vunpack.c.l.b16 %v1591
    %v2074 = vpack.c.b16 %v2059, %v2058
    %v2075 = vpack.c.b16 %v2061, %v2060
    %v2076 = vpack.c.b16 %v2063, %v2062
    %v2077 = vpack.c.b16 %v2065, %v2064
    %v2078 = vpack.c.b16 %v2067, %v2066
    %v2079 = vpack.c.b16 %v2069, %v2068
    %v2080 = vpack.c.b16 %v2071, %v2070
    %v2081 = vpack.c.b16 %v2073, %v2072
    %2090 = vmatprep.subr.bf16.mxu0 0
    %2091 = vmatpush1.bf16.msra.mxu0 %v2081
    %2092 = vmatprep.subr.bf16.mxu0 0
    %2093 = vmatpush1.bf16.msra.mxu0 %v2080
    %2094 = vmatprep.subr.bf16.mxu0 0
    %2095 = vmatpush1.bf16.msra.mxu0 %v2079
    %2096 = vmatprep.subr.bf16.mxu0 0
    %2097 = vmatpush1.bf16.msra.mxu0 %v2078
    %2098 = vmatprep.subr.bf16.mxu0 0
    %2099 = vmatpush1.bf16.msra.mxu0 %v2077
    %2100 = vmatprep.subr.bf16.mxu0 0
    %2101 = vmatpush1.bf16.msra.mxu0 %v2076
    %2102 = vmatprep.subr.bf16.mxu0 0
    %2103 = vmatpush1.bf16.msra.mxu0 %v2075
    %2104 = vmatprep.subr.bf16.mxu0 0
    %2105 = vmatpush1.bf16.msra.mxu0 %v2074
    %2106 = vmatprep.subr.bf16.mxu0 0
    %2107 = vmatpush2.bf16.msra.mxu0 0
    %2108 = vmatprep.subr.bf16.mxu0 0
    %2109 = vmatpush2.bf16.msra.mxu0 0
    %2110 = vmatprep.subr.bf16.mxu0 0
    %2111 = vmatpush2.bf16.msra.mxu0 0
    %2112 = vmatprep.subr.bf16.mxu0 0
    %2113 = vmatpush2.bf16.msra.mxu0 0
    %2114 = vmatprep.subr.bf16.mxu0 0
    %2115 = vmatpush2.bf16.msra.mxu0 0
    %2116 = vmatprep.subr.bf16.mxu0 0
    %2117 = vmatpush2.bf16.msra.mxu0 0
    %2118 = vmatprep.subr.bf16.mxu0 0
    %2119 = vmatpush2.bf16.msra.mxu0 0
    %2120 = vmatprep.subr.bf16.mxu0 0
    %2121 = vmatpush2.bf16.msra.mxu0 0
    %2122 = vmatprep.mubr.bf16.mxu0 0
    %2123 = vmatmul.mubr.bf16.gmra.mxu0 %v2035
    %v2124 = vpop.f32.mrf.mxu0
    %v2125 = vadd.f32 %v2040, %v2124
    %v2126 = vpop.f32.mrf.mxu0
    %v2127 = vpop.f32.mrf.mxu0
    %v2128 = vadd.f32 %v2040, %v2127
    %v2129 = vpop.f32.mrf.mxu0
    %2130 = vdwg.mxu0
    %v2131 = vadd.f32 %v1561, %v2125
    %v2132 = vadd.f32 %v1564, %v2128
    %v2133 = vsel %vm1522, %v2131, 0.0
    %2134 = vadd.xlane.f32.xlu0 %v2133
    %v2135 = vpop.xlane.xlu0 %2134
    %v2136 = vsel %vm1522, %v2132, 0.0
    %2137 = vadd.xlane.f32.xlu0 %v2136
    %v2138 = vpop.xlane.xlu0 %2137
    %v2139 = vrcp.pop 32.0
    %v2140 = vmul.f32 %v2135, %v2139
    %v2141 = vmul.f32 %v2138, %v2139
    %v2142 = vsub.f32 %v2131, %v2140
    %v2143 = vsub.f32 %v2132, %v2141
    %v2144 = vmul.f32 %v2142, %v2142
    %v2145 = vmul.f32 %v2143, %v2143
    %v2146 = vsel %vm1522, %v2144, 0.0
    %2147 = vadd.xlane.f32.xlu0 %v2146
    %v2148 = vpop.xlane.xlu0 %2147
    %v2149 = vsel %vm1522, %v2145, 0.0
    %2150 = vadd.xlane.f32.xlu0 %v2149
    %v2151 = vpop.xlane.xlu0 %2150
    %v2152 = vmul.f32 %v2148, %v2139
    %v2153 = vmul.f32 %v2151, %v2139
    %v2154 = vadd.f32 %v2152, 1e-05
    %v2155 = vadd.f32 %v2153, 1e-05
    %v2156 = vrsqrt.pop %v2154
    %v2157 = vrsqrt.pop %v2155
    %v2158 = vmul.f32 %v2142, %v2156
    %v2159 = vmul.f32 %v2143, %v2157
    %v2161 = vlaneseq
    %v2162 = vshrl.u32 %v2161, 7
    %v2163 = vsub.s32 0, %v2162
    %v2164 = vrot.slane %v1593, %v2163
    %v2166 = vmul.f32 %v2158, %v2164
    %v2167 = vmul.f32 %v2159, %v2164
    %v2169 = vlaneseq
    %v2170 = vshrl.u32 %v2169, 7
    %v2171 = vsub.s32 0, %v2170
    %v2172 = vrot.slane %v1594, %v2171
    %v2174 = vadd.f32 %v2166, %v2172
    %v2175 = vadd.f32 %v2167, %v2172
    %v2176 = vpack.c.bf16 %v2175, %v2174
    %v2178 = vlaneseq
    %v2179 = vshrl.u32 %v2178, 7
    %v2180 = vsub.s32 0, %v2179
    %v2181 = vrot.slane %v1599, %v2180
    %v2187 = vunpack.c.l.b16 %v1595
    %v2188 = vunpack.c.l.b16 %v1596
    %v2189 = vunpack.c.l.b16 %v1597
    %v2190 = vunpack.c.l.b16 %v1598
    %v2191 = vpack.c.b16 %v2188, %v2187
    %v2192 = vpack.c.b16 %v2190, %v2189
    %v2196 = vsel %vm1522, %v2176, 0
    %2198 = vmatprep.subr.bf16.mxu0 0
    %2199 = vmatpush1.bf16.msra.mxu0 0
    %2200 = vmatprep.subr.bf16.mxu0 0
    %2201 = vmatpush1.bf16.msra.mxu0 0
    %2202 = vmatprep.subr.bf16.mxu0 0
    %2203 = vmatpush1.bf16.msra.mxu0 0
    %2204 = vmatprep.subr.bf16.mxu0 0
    %2205 = vmatpush1.bf16.msra.mxu0 0
    %2206 = vmatprep.subr.bf16.mxu0 0
    %2207 = vmatpush1.bf16.msra.mxu0 0
    %2208 = vmatprep.subr.bf16.mxu0 0
    %2209 = vmatpush1.bf16.msra.mxu0 0
    %2210 = vmatprep.subr.bf16.mxu0 0
    %2211 = vmatpush1.bf16.msra.mxu0 %v2192
    %2212 = vmatprep.subr.bf16.mxu0 0
    %2213 = vmatpush1.bf16.msra.mxu0 %v2191
    %2214 = vmatprep.subr.bf16.mxu0 0
    %2215 = vmatpush2.bf16.msra.mxu0 0
    %2216 = vmatprep.subr.bf16.mxu0 0
    %2217 = vmatpush2.bf16.msra.mxu0 0
    %2218 = vmatprep.subr.bf16.mxu0 0
    %2219 = vmatpush2.bf16.msra.mxu0 0
    %2220 = vmatprep.subr.bf16.mxu0 0
    %2221 = vmatpush2.bf16.msra.mxu0 0
    %2222 = vmatprep.subr.bf16.mxu0 0
    %2223 = vmatpush2.bf16.msra.mxu0 0
    %2224 = vmatprep.subr.bf16.mxu0 0
    %2225 = vmatpush2.bf16.msra.mxu0 0
    %2226 = vmatprep.subr.bf16.mxu0 0
    %2227 = vmatpush2.bf16.msra.mxu0 0
    %2228 = vmatprep.subr.bf16.mxu0 0
    %2229 = vmatpush2.bf16.msra.mxu0 0
    %2230 = vmatprep.mubr.bf16.mxu0 0
    %2231 = vmatmul.mubr.bf16.gmra.mxu0 %v2196
    %v2232 = vpop.f32.mrf.mxu0
    %v2233 = vadd.f32 %v2181, %v2232
    %v2234 = vpop.f32.mrf.mxu0
    %v2235 = vpop.f32.mrf.mxu0
    %v2236 = vadd.f32 %v2181, %v2235
    %v2237 = vpop.f32.mrf.mxu0
    %2238 = vdwg.mxu0
    %v2239 = vmul.f32 %v2233, 0.5
    %v2240 = vmul.f32 %v2236, 0.5
    %v2241 = vmul.f32 %v2233, 0.70710677
    %v2242 = vmul.f32 %v2236, 0.70710677
    %v2243 = vmax.f32 %v2241, -4.0
    %v2244 = vmax.f32 %v2242, -4.0
    %v2245 = vmin.f32 %v2243, 4.0
    %v2246 = vmin.f32 %v2244, 4.0
    %v2247 = vmul.f32 %v2245, %v2245
    %v2248 = vmul.f32 %v2246, %v2246
    %v2249 = vmul.f32 %v2247, -2.7261424e-10
    %v2250 = vmul.f32 %v2248, -2.7261424e-10
    %v2251 = vadd.f32 %v2249, 2.7706815e-08
    %v2252 = vadd.f32 %v2250, 2.7706815e-08
    %v2253 = vmul.f32 %v2251, %v2247
    %v2254 = vmul.f32 %v2252, %v2248
    %v2255 = vadd.f32 %v2253, -2.101024e-06
    %v2256 = vadd.f32 %v2254, -2.101024e-06
    %v2257 = vmul.f32 %v2255, %v2247
    %v2258 = vmul.f32 %v2256, %v2248
    %v2259 = vadd.f32 %v2257, -5.6925062e-05
    %v2260 = vadd.f32 %v2258, -5.6925062e-05
    %v2261 = vmul.f32 %v2259, %v2247
    %v2262 = vmul.f32 %v2260, %v2248
    %v2263 = vadd.f32 %v2261, -0.00073499064
    %v2264 = vadd.f32 %v2262, -0.00073499064
    %v2265 = vmul.f32 %v2263, %v2247
    %v2266 = vmul.f32 %v2264, %v2248
    %v2267 = vadd.f32 %v2265, -0.0029546
    %v2268 = vadd.f32 %v2266, -0.0029546
    %v2269 = vmul.f32 %v2267, %v2247
    %v2270 = vmul.f32 %v2268, %v2248
    %v2271 = vadd.f32 %v2269, -0.016096033
    %v2272 = vadd.f32 %v2270, -0.016096033
    %v2273 = vmul.f32 %v2247, -1.45660715e-05
    %v2274 = vmul.f32 %v2248, -1.45660715e-05
    %v2275 = vadd.f32 %v2273, -0.00021337405
    %v2276 = vadd.f32 %v2274, -0.00021337405
    %v2277 = vmul.f32 %v2275, %v2247
    %v2278 = vmul.f32 %v2276, %v2248
    %v2279 = vadd.f32 %v2277, -0.001682827
    %v2280 = vadd.f32 %v2278, -0.001682827
    %v2281 = vmul.f32 %v2279, %v2247
    %v2282 = vmul.f32 %v2280, %v2248
    %v2283 = vadd.f32 %v2281, -0.0073733293
    %v2284 = vadd.f32 %v2282, -0.0073733293
    %v2285 = vmul.f32 %v2283, %v2247
    %v2286 = vmul.f32 %v2284, %v2248
    %v2287 = vadd.f32 %v2285, -0.014264739
    %v2288 = vadd.f32 %v2286, -0.014264739
    %v2289 = vmul.f32 %v2245, %v2271
    %v2290 = vmul.f32 %v2246, %v2272
    %v2291 = vrcp.pop %v2287
    %v2292 = vmul.f32 %v2289, %v2291
    %v2293 = vrcp.pop %v2288
    %v2294 = vmul.f32 %v2290, %v2293
    %v2295 = vadd.f32 %v2292, 1.0
    %v2296 = vadd.f32 %v2294, 1.0
    %v2297 = vmul.f32 %v2239, %v2295
    %v2298 = vmul.f32 %v2240, %v2296
    %v2299 = vpack.c.bf16 %v2298, %v2297
    %v2301 = vlaneseq
    %v2302 = vshrl.u32 %v2301, 7
    %v2303 = vsub.s32 0, %v2302
    %v2304 = vrot.slane %v1604, %v2303
    %v2310 = vunpack.c.l.b16 %v1600
    %v2311 = vunpack.c.l.b16 %v1601
    %v2312 = vunpack.c.l.b16 %v1602
    %v2313 = vunpack.c.l.b16 %v1603
    %v2314 = vpack.c.b16 %v2311, %v2310
    %v2315 = vpack.c.b16 %v2313, %v2312
    %v2319 = vsel %vm1522, %v2299, 0
    %2321 = vmatprep.subr.bf16.mxu0 0
    %2322 = vmatpush1.bf16.msra.mxu0 0
    %2323 = vmatprep.subr.bf16.mxu0 0
    %2324 = vmatpush1.bf16.msra.mxu0 0
    %2325 = vmatprep.subr.bf16.mxu0 0
    %2326 = vmatpush1.bf16.msra.mxu0 0
    %2327 = vmatprep.subr.bf16.mxu0 0
    %2328 = vmatpush1.bf16.msra.mxu0 0
    %2329 = vmatprep.subr.bf16.mxu0 0
    %2330 = vmatpush1.bf16.msra.mxu0 0
    %2331 = vmatprep.subr.bf16.mxu0 0
    %2332 = vmatpush1.bf16.msra.mxu0 0
    %2333 = vmatprep.subr.bf16.mxu0 0
    %2334 = vmatpush1.bf16.msra.mxu0 %v2315
    %2335 = vmatprep.subr.bf16.mxu0 0
    %2336 = vmatpush1.bf16.msra.mxu0 %v2314
    %2337 = vmatprep.subr.bf16.mxu0 0
    %2338 = vmatpush2.bf16.msra.mxu0 0
    %2339 = vmatprep.subr.bf16.mxu0 0
    %2340 = vmatpush2.bf16.msra.mxu0 0
    %2341 = vmatprep.subr.bf16.mxu0 0
    %2342 = vmatpush2.bf16.msra.mxu0 0
    %2343 = vmatprep.subr.bf16.mxu0 0
    %2344 = vmatpush2.bf16.msra.mxu0 0
    %2345 = vmatprep.subr.bf16.mxu0 0
    %2346 = vmatpush2.bf16.msra.mxu0 0
    %2347 = vmatprep.subr.bf16.mxu0 0
    %2348 = vmatpush2.bf16.msra.mxu0 0
    %2349 = vmatprep.subr.bf16.mxu0 0
    %2350 = vmatpush2.bf16.msra.mxu0 0
    %2351 = vmatprep.subr.bf16.mxu0 0
    %2352 = vmatpush2.bf16.msra.mxu0 0
    %2353 = vmatprep.mubr.bf16.mxu0 0
    %2354 = vmatmul.mubr.bf16.gmra.mxu0 %v2319
    %v2355 = vpop.f32.mrf.mxu0
    %v2356 = vadd.f32 %v2304, %v2355
    %v2357 = vpop.f32.mrf.mxu0
    %v2358 = vpop.f32.mrf.mxu0
    %v2359 = vadd.f32 %v2304, %v2358
    %v2360 = vpop.f32.mrf.mxu0
    %2361 = vdwg.mxu0
    %v2362 = vld [vmem:[%s47] sm:$0xff]
    %v2363 = vld [vmem:[%s47 + $0x8] sm:$0xf]
    %v2364 = vld [vmem:[%s47 + $0xc] sm:$0xff]
    %v2365 = vld [vmem:[%s47 + $0x14] sm:$0xf]
    %v2366 = vld [vmem:[%s49] sm:$0x7]
    %v2367 = vld [vmem:[%s51] sm:$0xf]
    %v2368 = vld [vmem:[%s51 + $0x4] sm:$0xf]
    %v2369 = vld [vmem:[%s51 + $0x8] sm:$0xf]
    %v2370 = vld [vmem:[%s51 + $0xc] sm:$0xf]
    %v2371 = vld [vmem:[%s51 + $0x10] sm:$0xf]
    %v2372 = vld [vmem:[%s51 + $0x14] sm:$0xf]
    %v2373 = vld [vmem:[%s51 + $0x18] sm:$0xf]
    %v2374 = vld [vmem:[%s51 + $0x1c] sm:$0xf]
    %v2375 = vld [vmem:[%s51 + $0x20] sm:$0xf]
    %v2376 = vld [vmem:[%s51 + $0x24] sm:$0xf]
    %v2377 = vld [vmem:[%s51 + $0x28] sm:$0xf]
    %v2378 = vld [vmem:[%s51 + $0x2c] sm:$0xf]
    %v2379 = vld [vmem:[%s51 + $0x30] sm:$0xf]
    %v2380 = vld [vmem:[%s51 + $0x34] sm:$0xf]
    %v2381 = vld [vmem:[%s51 + $0x38] sm:$0xf]
    %v2382 = vld [vmem:[%s51 + $0x3c] sm:$0xf]
    %v2383 = vld [vmem:[#allocation11] sm:$0x1]
    %v2384 = vld [vmem:[#allocation13] sm:$0x1]
    %v2385 = vld [vmem:[#allocation14] sm:$0x1]
    %v2386 = vld [vmem:[%s59] sm:$0xf]
    %v2387 = vld [vmem:[%s59 + $0x4] sm:$0xf]
    %v2388 = vld [vmem:[#allocation16] sm:$0x1]
    %v2389 = vld [vmem:[%s63] sm:$0xf]
    %v2390 = vld [vmem:[%s63 + $0x4] sm:$0xf]
    %v2391 = vld [vmem:[%s63 + $0x8] sm:$0xf]
    %v2392 = vld [vmem:[%s63 + $0xc] sm:$0xf]
    %v2393 = vld [vmem:[#allocation17] sm:$0x1]
    %v2394 = vpack.c.bf16 %v2359, %v2356
    %v2396 = vlaneseq
    %v2397 = vshrl.u32 %v2396, 7
    %v2398 = vsub.s32 0, %v2397
    %v2399 = vrot.slane %v2366, %v2398
    %v2400 = vlaneseq
    %v2401 = vshrl.u32 %v2400, 7
    %v2402 = vsub.s32 1, %v2401
    %v2403 = vrot.slane %v2366, %v2402
    %v2404 = vlaneseq
    %v2405 = vshrl.u32 %v2404, 7
    %v2406 = vsub.s32 2, %v2405
    %v2407 = vrot.slane %v2366, %v2406
    %v2415 = vunpack.c.l.b16 %v2362
    %v2416 = vunpack.c.h.b16 %v2362
    %v2417 = vunpack.c.l.b16 %v2363
    %v2418 = vunpack.c.l.b16 %v2364
    %v2419 = vunpack.c.h.b16 %v2364
    %v2420 = vunpack.c.l.b16 %v2365
    %v2421 = vpack.c.b16 %v2418, %v2415
    %v2422 = vpack.c.b16 %v2419, %v2416
    %v2423 = vpack.c.b16 %v2420, %v2417
    %vm2427 = vcmask 130048
    %v2429 = vsel %vm2427, %v2394, 0
    %2431 = vmatprep.subr.bf16.mxu0 0
    %2432 = vmatpush1.bf16.msra.mxu0 0
    %2433 = vmatprep.subr.bf16.mxu0 0
    %2434 = vmatpush1.bf16.msra.mxu0 0
    %2435 = vmatprep.subr.bf16.mxu0 0
    %2436 = vmatpush1.bf16.msra.mxu0 0
    %2437 = vmatprep.subr.bf16.mxu0 0
    %2438 = vmatpush1.bf16.msra.mxu0 0
    %2439 = vmatprep.subr.bf16.mxu0 0
    %2440 = vmatpush1.bf16.msra.mxu0 0
    %2441 = vmatprep.subr.bf16.mxu0 0
    %2442 = vmatpush1.bf16.msra.mxu0 0
    %2443 = vmatprep.subr.bf16.mxu0 0
    %2444 = vmatpush1.bf16.msra.mxu0 0
    %2445 = vmatprep.subr.bf16.mxu0 %v2422
    %2446 = vmatpush1.bf16.msra.mxu0 %v2421
    %2447 = vmatprep.subr.bf16.mxu0 0
    %2448 = vmatpush2.bf16.msra.mxu0 0
    %2449 = vmatprep.subr.bf16.mxu0 0
    %2450 = vmatpush2.bf16.msra.mxu0 0
    %2451 = vmatprep.subr.bf16.mxu0 0
    %2452 = vmatpush2.bf16.msra.mxu0 0
    %2453 = vmatprep.subr.bf16.mxu0 0
    %2454 = vmatpush2.bf16.msra.mxu0 0
    %2455 = vmatprep.subr.bf16.mxu0 0
    %2456 = vmatpush2.bf16.msra.mxu0 0
    %2457 = vmatprep.subr.bf16.mxu0 0
    %2458 = vmatpush2.bf16.msra.mxu0 0
    %2459 = vmatprep.subr.bf16.mxu0 0
    %2460 = vmatpush2.bf16.msra.mxu0 0
    %2461 = vmatprep.subr.bf16.mxu0 0
    %2462 = vmatpush2.bf16.msra.mxu0 0
    %2463 = vmatprep.mubr.bf16.mxu0 0
    %2464 = vmatmul.mubr.bf16.gmra.mxu0 %v2429
    %v2465 = vpop.f32.mrf.mxu0
    %v2466 = vadd.f32 %v2399, %v2465
    %v2467 = vpop.f32.mrf.mxu0
    %v2468 = vadd.f32 %v2403, %v2467
    %v2469 = vpop.f32.mrf.mxu0
    %v2470 = vadd.f32 %v2399, %v2469
    %v2471 = vpop.f32.mrf.mxu0
    %v2472 = vadd.f32 %v2403, %v2471
    %2473 = vdwg.mxu0
    %2474 = vmatprep.subr.bf16.mxu0 0
    %2475 = vmatpush1.bf16.msra.mxu0 0
    %2476 = vmatprep.subr.bf16.mxu0 0
    %2477 = vmatpush1.bf16.msra.mxu0 0
    %2478 = vmatprep.subr.bf16.mxu0 0
    %2479 = vmatpush1.bf16.msra.mxu0 0
    %2480 = vmatprep.subr.bf16.mxu0 0
    %2481 = vmatpush1.bf16.msra.mxu0 0
    %2482 = vmatprep.subr.bf16.mxu0 0
    %2483 = vmatpush1.bf16.msra.mxu0 0
    %2484 = vmatprep.subr.bf16.mxu0 0
    %2485 = vmatpush1.bf16.msra.mxu0 0
    %2486 = vmatprep.subr.bf16.mxu0 0
    %2487 = vmatpush1.bf16.msra.mxu0 0
    %2488 = vmatprep.subr.bf16.mxu0 0
    %2489 = vmatpush1.bf16.msra.mxu0 %v2423
    %2490 = vmatprep.subr.bf16.mxu0 0
    %2491 = vmatpush2.bf16.msra.mxu0 0
    %2492 = vmatprep.subr.bf16.mxu0 0
    %2493 = vmatpush2.bf16.msra.mxu0 0
    %2494 = vmatprep.subr.bf16.mxu0 0
    %2495 = vmatpush2.bf16.msra.mxu0 0
    %2496 = vmatprep.subr.bf16.mxu0 0
    %2497 = vmatpush2.bf16.msra.mxu0 0
    %2498 = vmatprep.subr.bf16.mxu0 0
    %2499 = vmatpush2.bf16.msra.mxu0 0
    %2500 = vmatprep.subr.bf16.mxu0 0
    %2501 = vmatpush2.bf16.msra.mxu0 0
    %2502 = vmatprep.subr.bf16.mxu0 0
    %2503 = vmatpush2.bf16.msra.mxu0 0
    %2504 = vmatprep.subr.bf16.mxu0 0
    %2505 = vmatpush2.bf16.msra.mxu0 0
    %2506 = vmatprep.mubr.bf16.mxu0 0
    %2507 = vmatmul.mubr.bf16.gmra.mxu0 %v2429
    %v2508 = vpop.f32.mrf.mxu0
    %v2509 = vadd.f32 %v2407, %v2508
    %v2510 = vpop.f32.mrf.mxu0
    %v2511 = vpop.f32.mrf.mxu0
    %v2512 = vadd.f32 %v2407, %v2511
    %v2513 = vpop.f32.mrf.mxu0
    %2514 = vdwg.mxu0
    %v2515 = vmul.f32 %v2466, 0.5
    %v2516 = vmul.f32 %v2470, 0.5
    %vm2517 = vcmp.lt.s32.totalorder %v879, 4
    %vm2518 = vmand %vm880, %vm2517
    %v2519 = vsel %vm2518, %v2515, 0.0
    %v2520 = vsel %vm2518, %v2516, 0.0
    %vm2521 = vcmp.ge.s32.totalorder %v879, 4
    %vm2522 = vmand %vm2521, %vm1743
    %v2523 = vsel %vm2522, %v2515, 0.0
    %v2524 = vsel %vm2522, %v2516, 0.0
    %vm2525 = vcmp.lt.s32.totalorder %v879, 12
    %vm2526 = vmand %vm1747, %vm2525
    %v2527 = vsel %vm2526, %v2515, 0.0
    %v2528 = vsel %vm2526, %v2516, 0.0
    %vm2529 = vcmp.ge.s32.totalorder %v879, 12
    %vm2530 = vmand %vm2529, %vm881
    %v2531 = vsel %vm2530, %v2515, 0.0
    %v2532 = vsel %vm2530, %v2516, 0.0
    %v2533 = vsel %vm2518, %v2468, 0.0
    %v2534 = vsel %vm2518, %v2472, 0.0
    %v2535 = vsel %vm2522, %v2468, 0.0
    %v2536 = vsel %vm2522, %v2472, 0.0
    %v2537 = vsel %vm2526, %v2468, 0.0
    %v2538 = vsel %vm2526, %v2472, 0.0
    %v2539 = vsel %vm2530, %v2468, 0.0
    %v2540 = vsel %vm2530, %v2472, 0.0
    %v2541 = vsel %vm2518, %v2509, 0.0
    %v2542 = vsel %vm2518, %v2512, 0.0
    %v2543 = vsel %vm2522, %v2509, 0.0
    %v2544 = vsel %vm2522, %v2512, 0.0
    %v2545 = vsel %vm2526, %v2509, 0.0
    %v2546 = vsel %vm2526, %v2512, 0.0
    %v2547 = vsel %vm2530, %v2509, 0.0
    %v2548 = vsel %vm2530, %v2512, 0.0
    %v2549 = vpack.c.bf16 %v2520, %v2519
    %v2550 = vpack.c.bf16 %v2524, %v2523
    %v2551 = vpack.c.bf16 %v2528, %v2527
    %v2552 = vpack.c.bf16 %v2532, %v2531
    %v2553 = vpack.c.bf16 %v2534, %v2533
    %v2554 = vpack.c.bf16 %v2536, %v2535
    %v2555 = vpack.c.bf16 %v2538, %v2537
    %v2556 = vpack.c.bf16 %v2540, %v2539
    %2557 = vmatprep.subr.bf16.mxu0 0
    %2558 = vmatpush1.bf16.xpose.msra.mxu0 0
    %2559 = vmatprep.subr.bf16.mxu0 0
    %2560 = vmatpush1.bf16.xpose.msra.mxu0 0
    %2561 = vmatprep.subr.bf16.mxu0 0
    %2562 = vmatpush1.bf16.xpose.msra.mxu0 0
    %2563 = vmatprep.subr.bf16.mxu0 0
    %2564 = vmatpush1.bf16.xpose.msra.mxu0 0
    %2565 = vmatprep.subr.bf16.mxu0 0
    %2566 = vmatpush1.bf16.xpose.msra.mxu0 %v2556
    %2567 = vmatprep.subr.bf16.mxu0 0
    %2568 = vmatpush1.bf16.xpose.msra.mxu0 %v2555
    %2569 = vmatprep.subr.bf16.mxu0 0
    %2570 = vmatpush1.bf16.xpose.msra.mxu0 %v2554
    %2571 = vmatprep.subr.bf16.mxu0 0
    %2572 = vmatpush1.bf16.xpose.msra.mxu0 %v2553
    %2573 = vmatprep.subr.bf16.mxu0 0
    %2574 = vmatpush2.bf16.xpose.msra.mxu0 0
    %2575 = vmatprep.subr.bf16.mxu0 0
    %2576 = vmatpush2.bf16.xpose.msra.mxu0 0
    %2577 = vmatprep.subr.bf16.mxu0 0
    %2578 = vmatpush2.bf16.xpose.msra.mxu0 0
    %2579 = vmatprep.subr.bf16.mxu0 0
    %2580 = vmatpush2.bf16.xpose.msra.mxu0 0
    %2581 = vmatprep.subr.bf16.mxu0 0
    %2582 = vmatpush2.bf16.xpose.msra.mxu0 0
    %2583 = vmatprep.subr.bf16.mxu0 0
    %2584 = vmatpush2.bf16.xpose.msra.mxu0 0
    %2585 = vmatprep.subr.bf16.mxu0 0
    %2586 = vmatpush2.bf16.xpose.msra.mxu0 0
    %2587 = vmatprep.subr.bf16.mxu0 0
    %2588 = vmatpush2.bf16.xpose.msra.mxu0 0
    %2589 = vmatprep.mubr.bf16.mxu0 0
    %2590 = vmatmul.mubr.bf16.gmra.mxu0 %v2549
    %v2591 = vpop.f32.mrf.mxu0
    %v2592 = vadd.f32 0.0, %v2591
    %v2593 = vpop.f32.mrf.mxu0
    %v2594 = vpop.f32.mrf.mxu0
    %v2595 = vadd.f32 0.0, %v2594
    %v2596 = vpop.f32.mrf.mxu0
    %2597 = vmatprep.mubr.bf16.mxu0 0
    %2598 = vmatmul.mubr.bf16.gmra.mxu0 %v2550
    %v2599 = vpop.f32.mrf.mxu0
    %v2600 = vadd.f32 0.0, %v2599
    %v2601 = vpop.f32.mrf.mxu0
    %v2602 = vpop.f32.mrf.mxu0
    %v2603 = vadd.f32 0.0, %v2602
    %v2604 = vpop.f32.mrf.mxu0
    %2605 = vmatprep.mubr.bf16.mxu0 0
    %2606 = vmatmul.mubr.bf16.gmra.mxu0 %v2551
    %v2607 = vpop.f32.mrf.mxu0
    %v2608 = vadd.f32 0.0, %v2607
    %v2609 = vpop.f32.mrf.mxu0
    %v2610 = vpop.f32.mrf.mxu0
    %v2611 = vadd.f32 0.0, %v2610
    %v2612 = vpop.f32.mrf.mxu0
    %2613 = vmatprep.mubr.bf16.mxu0 0
    %2614 = vmatmul.mubr.bf16.gmra.mxu0 %v2552
    %v2615 = vpop.f32.mrf.mxu0
    %v2616 = vadd.f32 0.0, %v2615
    %v2617 = vpop.f32.mrf.mxu0
    %v2618 = vpop.f32.mrf.mxu0
    %v2619 = vadd.f32 0.0, %v2618
    %v2620 = vpop.f32.mrf.mxu0
    %2621 = vdwg.mxu0
    %v2622 = vsel %vm959, %v2592, -1e+30
    %v2623 = vsel %vm960, %v2595, -1e+30
    %v2624 = vsel %vm961, %v2600, -1e+30
    %v2625 = vsel %vm962, %v2603, -1e+30
    %v2626 = vsel %vm963, %v2608, -1e+30
    %v2627 = vsel %vm964, %v2611, -1e+30
    %v2628 = vsel %vm965, %v2616, -1e+30
    %v2629 = vsel %vm966, %v2619, -1e+30
    %v2630 = vsel %vm788, %v2622, -inf
    %2631 = vmax.xlane.f32.xlu0 %v2630
    %v2632 = vpop.xlane.xlu0 %2631
    %v2633 = vsel %vm788, %v2623, -inf
    %2634 = vmax.xlane.f32.xlu0 %v2633
    %v2635 = vpop.xlane.xlu0 %2634
    %v2636 = vsel %vm788, %v2624, -inf
    %2637 = vmax.xlane.f32.xlu0 %v2636
    %v2638 = vpop.xlane.xlu0 %2637
    %v2639 = vsel %vm788, %v2625, -inf
    %2640 = vmax.xlane.f32.xlu0 %v2639
    %v2641 = vpop.xlane.xlu0 %2640
    %v2642 = vsel %vm788, %v2626, -inf
    %2643 = vmax.xlane.f32.xlu0 %v2642
    %v2644 = vpop.xlane.xlu0 %2643
    %v2645 = vsel %vm788, %v2627, -inf
    %2646 = vmax.xlane.f32.xlu0 %v2645
    %v2647 = vpop.xlane.xlu0 %2646
    %v2648 = vsel %vm788, %v2628, -inf
    %2649 = vmax.xlane.f32.xlu0 %v2648
    %v2650 = vpop.xlane.xlu0 %2649
    %v2651 = vsel %vm788, %v2629, -inf
    %2652 = vmax.xlane.f32.xlu0 %v2651
    %v2653 = vpop.xlane.xlu0 %2652
    %v2654 = vsub.f32 %v2622, %v2632
    %v2655 = vsub.f32 %v2623, %v2635
    %v2656 = vsub.f32 %v2624, %v2638
    %v2657 = vsub.f32 %v2625, %v2641
    %v2658 = vsub.f32 %v2626, %v2644
    %v2659 = vsub.f32 %v2627, %v2647
    %v2660 = vsub.f32 %v2628, %v2650
    %v2661 = vsub.f32 %v2629, %v2653
    %v2662 = vmul.f32 %v2654, 1.442695
    %v2663 = vpow.pop %v2662
    %v2664 = vmul.f32 %v2655, 1.442695
    %v2665 = vpow.pop %v2664
    %v2666 = vmul.f32 %v2656, 1.442695
    %v2667 = vpow.pop %v2666
    %v2668 = vmul.f32 %v2657, 1.442695
    %v2669 = vpow.pop %v2668
    %v2670 = vmul.f32 %v2658, 1.442695
    %v2671 = vpow.pop %v2670
    %v2672 = vmul.f32 %v2659, 1.442695
    %v2673 = vpow.pop %v2672
    %v2674 = vmul.f32 %v2660, 1.442695
    %v2675 = vpow.pop %v2674
    %v2676 = vmul.f32 %v2661, 1.442695
    %v2677 = vpow.pop %v2676
    %v2678 = vsel %vm788, %v2663, 0.0
    %2679 = vadd.xlane.f32.xlu0 %v2678
    %v2680 = vpop.xlane.xlu0 %2679
    %v2681 = vsel %vm788, %v2665, 0.0
    %2682 = vadd.xlane.f32.xlu0 %v2681
    %v2683 = vpop.xlane.xlu0 %2682
    %v2684 = vsel %vm788, %v2667, 0.0
    %2685 = vadd.xlane.f32.xlu0 %v2684
    %v2686 = vpop.xlane.xlu0 %2685
    %v2687 = vsel %vm788, %v2669, 0.0
    %2688 = vadd.xlane.f32.xlu0 %v2687
    %v2689 = vpop.xlane.xlu0 %2688
    %v2690 = vsel %vm788, %v2671, 0.0
    %2691 = vadd.xlane.f32.xlu0 %v2690
    %v2692 = vpop.xlane.xlu0 %2691
    %v2693 = vsel %vm788, %v2673, 0.0
    %2694 = vadd.xlane.f32.xlu0 %v2693
    %v2695 = vpop.xlane.xlu0 %2694
    %v2696 = vsel %vm788, %v2675, 0.0
    %2697 = vadd.xlane.f32.xlu0 %v2696
    %v2698 = vpop.xlane.xlu0 %2697
    %v2699 = vsel %vm788, %v2677, 0.0
    %2700 = vadd.xlane.f32.xlu0 %v2699
    %v2701 = vpop.xlane.xlu0 %2700
    %v2702 = vrcp.pop %v2680
    %v2703 = vrcp.pop %v2683
    %v2704 = vrcp.pop %v2686
    %v2705 = vrcp.pop %v2689
    %v2706 = vrcp.pop %v2692
    %v2707 = vrcp.pop %v2695
    %v2708 = vrcp.pop %v2698
    %v2709 = vrcp.pop %v2701
    %v2710 = vmul.f32 %v2663, %v2702
    %v2711 = vmul.f32 %v2665, %v2703
    %v2712 = vmul.f32 %v2667, %v2704
    %v2713 = vmul.f32 %v2669, %v2705
    %v2714 = vmul.f32 %v2671, %v2706
    %v2715 = vmul.f32 %v2673, %v2707
    %v2716 = vmul.f32 %v2675, %v2708
    %v2717 = vmul.f32 %v2677, %v2709
    %v2718 = vpack.c.bf16 %v2711, %v2710
    %v2719 = vpack.c.bf16 %v2713, %v2712
    %v2720 = vpack.c.bf16 %v2715, %v2714
    %v2721 = vpack.c.bf16 %v2717, %v2716
    %v2722 = vpack.c.bf16 %v2542, %v2541
    %v2723 = vpack.c.bf16 %v2544, %v2543
    %v2724 = vpack.c.bf16 %v2546, %v2545
    %v2725 = vpack.c.bf16 %v2548, %v2547
    %v2727 = vsel %vm788, %v2718, 0
    %v2730 = vsel %vm788, %v2719, 0
    %v2733 = vsel %vm788, %v2720, 0
    %v2736 = vsel %vm788, %v2721, 0
    %2738 = vmatprep.subr.bf16.mxu0 0
    %2739 = vmatpush1.bf16.msra.mxu0 0
    %2740 = vmatprep.subr.bf16.mxu0 0
    %2741 = vmatpush1.bf16.msra.mxu0 0
    %2742 = vmatprep.subr.bf16.mxu0 0
    %2743 = vmatpush1.bf16.msra.mxu0 0
    %2744 = vmatprep.subr.bf16.mxu0 0
    %2745 = vmatpush1.bf16.msra.mxu0 0
    %2746 = vmatprep.subr.bf16.mxu0 0
    %2747 = vmatpush1.bf16.msra.mxu0 %v2725
    %2748 = vmatprep.subr.bf16.mxu0 0
    %2749 = vmatpush1.bf16.msra.mxu0 %v2724
    %2750 = vmatprep.subr.bf16.mxu0 0
    %2751 = vmatpush1.bf16.msra.mxu0 %v2723
    %2752 = vmatprep.subr.bf16.mxu0 0
    %2753 = vmatpush1.bf16.msra.mxu0 %v2722
    %2754 = vmatprep.subr.bf16.mxu0 0
    %2755 = vmatpush2.bf16.msra.mxu0 0
    %2756 = vmatprep.subr.bf16.mxu0 0
    %2757 = vmatpush2.bf16.msra.mxu0 0
    %2758 = vmatprep.subr.bf16.mxu0 0
    %2759 = vmatpush2.bf16.msra.mxu0 0
    %2760 = vmatprep.subr.bf16.mxu0 0
    %2761 = vmatpush2.bf16.msra.mxu0 0
    %2762 = vmatprep.subr.bf16.mxu0 0
    %2763 = vmatpush2.bf16.msra.mxu0 0
    %2764 = vmatprep.subr.bf16.mxu0 0
    %2765 = vmatpush2.bf16.msra.mxu0 0
    %2766 = vmatprep.subr.bf16.mxu0 0
    %2767 = vmatpush2.bf16.msra.mxu0 0
    %2768 = vmatprep.subr.bf16.mxu0 0
    %2769 = vmatpush2.bf16.msra.mxu0 0
    %2770 = vmatprep.mubr.bf16.mxu0 0
    %2771 = vmatmul.mubr.bf16.gmra.mxu0 %v2727
    %v2772 = vpop.f32.mrf.mxu0
    %v2773 = vadd.f32 0.0, %v2772
    %v2774 = vpop.f32.mrf.mxu0
    %v2775 = vpop.f32.mrf.mxu0
    %v2776 = vadd.f32 0.0, %v2775
    %v2777 = vpop.f32.mrf.mxu0
    %2778 = vmatprep.mubr.bf16.mxu0 0
    %2779 = vmatmul.mubr.bf16.gmra.mxu0 %v2730
    %v2780 = vpop.f32.mrf.mxu0
    %v2781 = vadd.f32 0.0, %v2780
    %v2782 = vpop.f32.mrf.mxu0
    %v2783 = vpop.f32.mrf.mxu0
    %v2784 = vadd.f32 0.0, %v2783
    %v2785 = vpop.f32.mrf.mxu0
    %2786 = vmatprep.mubr.bf16.mxu0 0
    %2787 = vmatmul.mubr.bf16.gmra.mxu0 %v2733
    %v2788 = vpop.f32.mrf.mxu0
    %v2789 = vadd.f32 0.0, %v2788
    %v2790 = vpop.f32.mrf.mxu0
    %v2791 = vpop.f32.mrf.mxu0
    %v2792 = vadd.f32 0.0, %v2791
    %v2793 = vpop.f32.mrf.mxu0
    %2794 = vmatprep.mubr.bf16.mxu0 0
    %2795 = vmatmul.mubr.bf16.gmra.mxu0 %v2736
    %v2796 = vpop.f32.mrf.mxu0
    %v2797 = vadd.f32 0.0, %v2796
    %v2798 = vpop.f32.mrf.mxu0
    %v2799 = vpop.f32.mrf.mxu0
    %v2800 = vadd.f32 0.0, %v2799
    %v2801 = vpop.f32.mrf.mxu0
    %2802 = vdwg.mxu0
    %v2803 = vadd.f32 %v2773, %v2781
    %v2804 = vadd.f32 %v2776, %v2784
    %v2805 = vadd.f32 %v2803, %v2789
    %v2806 = vadd.f32 %v2804, %v2792
    %v2807 = vadd.f32 %v2805, %v2797
    %v2808 = vadd.f32 %v2806, %v2800
    %v2809 = vpack.c.bf16 %v2808, %v2807
    %v2811 = vlaneseq
    %v2812 = vshrl.u32 %v2811, 7
    %v2813 = vsub.s32 0, %v2812
    %v2814 = vrot.slane %v2383, %v2813
    %v2832 = vunpack.c.l.b16 %v2367
    %v2833 = vunpack.c.l.b16 %v2368
    %v2834 = vunpack.c.l.b16 %v2369
    %v2835 = vunpack.c.l.b16 %v2370
    %v2836 = vunpack.c.l.b16 %v2371
    %v2837 = vunpack.c.l.b16 %v2372
    %v2838 = vunpack.c.l.b16 %v2373
    %v2839 = vunpack.c.l.b16 %v2374
    %v2840 = vunpack.c.l.b16 %v2375
    %v2841 = vunpack.c.l.b16 %v2376
    %v2842 = vunpack.c.l.b16 %v2377
    %v2843 = vunpack.c.l.b16 %v2378
    %v2844 = vunpack.c.l.b16 %v2379
    %v2845 = vunpack.c.l.b16 %v2380
    %v2846 = vunpack.c.l.b16 %v2381
    %v2847 = vunpack.c.l.b16 %v2382
    %v2848 = vpack.c.b16 %v2833, %v2832
    %v2849 = vpack.c.b16 %v2835, %v2834
    %v2850 = vpack.c.b16 %v2837, %v2836
    %v2851 = vpack.c.b16 %v2839, %v2838
    %v2852 = vpack.c.b16 %v2841, %v2840
    %v2853 = vpack.c.b16 %v2843, %v2842
    %v2854 = vpack.c.b16 %v2845, %v2844
    %v2855 = vpack.c.b16 %v2847, %v2846
    %2864 = vmatprep.subr.bf16.mxu0 0
    %2865 = vmatpush1.bf16.msra.mxu0 %v2855
    %2866 = vmatprep.subr.bf16.mxu0 0
    %2867 = vmatpush1.bf16.msra.mxu0 %v2854
    %2868 = vmatprep.subr.bf16.mxu0 0
    %2869 = vmatpush1.bf16.msra.mxu0 %v2853
    %2870 = vmatprep.subr.bf16.mxu0 0
    %2871 = vmatpush1.bf16.msra.mxu0 %v2852
    %2872 = vmatprep.subr.bf16.mxu0 0
    %2873 = vmatpush1.bf16.msra.mxu0 %v2851
    %2874 = vmatprep.subr.bf16.mxu0 0
    %2875 = vmatpush1.bf16.msra.mxu0 %v2850
    %2876 = vmatprep.subr.bf16.mxu0 0
    %2877 = vmatpush1.bf16.msra.mxu0 %v2849
    %2878 = vmatprep.subr.bf16.mxu0 0
    %2879 = vmatpush1.bf16.msra.mxu0 %v2848
    %2880 = vmatprep.subr.bf16.mxu0 0
    %2881 = vmatpush2.bf16.msra.mxu0 0
    %2882 = vmatprep.subr.bf16.mxu0 0
    %2883 = vmatpush2.bf16.msra.mxu0 0
    %2884 = vmatprep.subr.bf16.mxu0 0
    %2885 = vmatpush2.bf16.msra.mxu0 0
    %2886 = vmatprep.subr.bf16.mxu0 0
    %2887 = vmatpush2.bf16.msra.mxu0 0
    %2888 = vmatprep.subr.bf16.mxu0 0
    %2889 = vmatpush2.bf16.msra.mxu0 0
    %2890 = vmatprep.subr.bf16.mxu0 0
    %2891 = vmatpush2.bf16.msra.mxu0 0
    %2892 = vmatprep.subr.bf16.mxu0 0
    %2893 = vmatpush2.bf16.msra.mxu0 0
    %2894 = vmatprep.subr.bf16.mxu0 0
    %2895 = vmatpush2.bf16.msra.mxu0 0
    %2896 = vmatprep.mubr.bf16.mxu0 0
    %2897 = vmatmul.mubr.bf16.gmra.mxu0 %v2809
    %v2898 = vpop.f32.mrf.mxu0
    %v2899 = vadd.f32 %v2814, %v2898
    %v2900 = vpop.f32.mrf.mxu0
    %v2901 = vpop.f32.mrf.mxu0
    %v2902 = vadd.f32 %v2814, %v2901
    %v2903 = vpop.f32.mrf.mxu0
    %2904 = vdwg.mxu0
    %v2905 = vadd.f32 %v2356, %v2899
    %v2906 = vadd.f32 %v2359, %v2902
    %v2907 = vsel %vm2427, %v2905, 0.0
    %2908 = vadd.xlane.f32.xlu0 %v2907
    %v2909 = vpop.xlane.xlu0 %2908
    %v2910 = vsel %vm2427, %v2906, 0.0
    %2911 = vadd.xlane.f32.xlu0 %v2910
    %v2912 = vpop.xlane.xlu0 %2911
    %v2913 = vrcp.pop 16.0
    %v2914 = vmul.f32 %v2909, %v2913
    %v2915 = vmul.f32 %v2912, %v2913
    %v2916 = vsub.f32 %v2905, %v2914
    %v2917 = vsub.f32 %v2906, %v2915
    %v2918 = vmul.f32 %v2916, %v2916
    %v2919 = vmul.f32 %v2917, %v2917
    %v2920 = vsel %vm2427, %v2918, 0.0
    %2921 = vadd.xlane.f32.xlu0 %v2920
    %v2922 = vpop.xlane.xlu0 %2921
    %v2923 = vsel %vm2427, %v2919, 0.0
    %2924 = vadd.xlane.f32.xlu0 %v2923
    %v2925 = vpop.xlane.xlu0 %2924
    %v2926 = vmul.f32 %v2922, %v2913
    %v2927 = vmul.f32 %v2925, %v2913
    %v2928 = vadd.f32 %v2926, 1e-05
    %v2929 = vadd.f32 %v2927, 1e-05
    %v2930 = vrsqrt.pop %v2928
    %v2931 = vrsqrt.pop %v2929
    %v2932 = vmul.f32 %v2916, %v2930
    %v2933 = vmul.f32 %v2917, %v2931
    %v2935 = vlaneseq
    %v2936 = vshrl.u32 %v2935, 7
    %v2937 = vsub.s32 0, %v2936
    %v2938 = vrot.slane %v2384, %v2937
    %v2940 = vmul.f32 %v2932, %v2938
    %v2941 = vmul.f32 %v2933, %v2938
    %v2943 = vlaneseq
    %v2944 = vshrl.u32 %v2943, 7
    %v2945 = vsub.s32 0, %v2944
    %v2946 = vrot.slane %v2385, %v2945
    %v2948 = vadd.f32 %v2940, %v2946
    %v2949 = vadd.f32 %v2941, %v2946
    %v2950 = vpack.c.bf16 %v2949, %v2948
    %v2952 = vlaneseq
    %v2953 = vshrl.u32 %v2952, 7
    %v2954 = vsub.s32 0, %v2953
    %v2955 = vrot.slane %v2388, %v2954
    %v2959 = vunpack.c.l.b16 %v2386
    %v2960 = vunpack.c.l.b16 %v2387
    %v2961 = vpack.c.b16 %v2960, %v2959
    %v2964 = vsel %vm2427, %v2950, 0
    %2966 = vmatprep.subr.bf16.mxu0 0
    %2967 = vmatpush1.bf16.msra.mxu0 0
    %2968 = vmatprep.subr.bf16.mxu0 0
    %2969 = vmatpush1.bf16.msra.mxu0 0
    %2970 = vmatprep.subr.bf16.mxu0 0
    %2971 = vmatpush1.bf16.msra.mxu0 0
    %2972 = vmatprep.subr.bf16.mxu0 0
    %2973 = vmatpush1.bf16.msra.mxu0 0
    %2974 = vmatprep.subr.bf16.mxu0 0
    %2975 = vmatpush1.bf16.msra.mxu0 0
    %2976 = vmatprep.subr.bf16.mxu0 0
    %2977 = vmatpush1.bf16.msra.mxu0 0
    %2978 = vmatprep.subr.bf16.mxu0 0
    %2979 = vmatpush1.bf16.msra.mxu0 0
    %2980 = vmatprep.subr.bf16.mxu0 0
    %2981 = vmatpush1.bf16.msra.mxu0 %v2961
    %2982 = vmatprep.subr.bf16.mxu0 0
    %2983 = vmatpush2.bf16.msra.mxu0 0
    %2984 = vmatprep.subr.bf16.mxu0 0
    %2985 = vmatpush2.bf16.msra.mxu0 0
    %2986 = vmatprep.subr.bf16.mxu0 0
    %2987 = vmatpush2.bf16.msra.mxu0 0
    %2988 = vmatprep.subr.bf16.mxu0 0
    %2989 = vmatpush2.bf16.msra.mxu0 0
    %2990 = vmatprep.subr.bf16.mxu0 0
    %2991 = vmatpush2.bf16.msra.mxu0 0
    %2992 = vmatprep.subr.bf16.mxu0 0
    %2993 = vmatpush2.bf16.msra.mxu0 0
    %2994 = vmatprep.subr.bf16.mxu0 0
    %2995 = vmatpush2.bf16.msra.mxu0 0
    %2996 = vmatprep.subr.bf16.mxu0 0
    %2997 = vmatpush2.bf16.msra.mxu0 0
    %2998 = vmatprep.mubr.bf16.mxu0 0
    %2999 = vmatmul.mubr.bf16.gmra.mxu0 %v2964
    %v3000 = vpop.f32.mrf.mxu0
    %v3001 = vadd.f32 %v2955, %v3000
    %v3002 = vpop.f32.mrf.mxu0
    %v3003 = vpop.f32.mrf.mxu0
    %v3004 = vadd.f32 %v2955, %v3003
    %v3005 = vpop.f32.mrf.mxu0
    %3006 = vdwg.mxu0
    %v3007 = vmul.f32 %v3001, 0.5
    %v3008 = vmul.f32 %v3004, 0.5
    %v3009 = vmul.f32 %v3001, 0.70710677
    %v3010 = vmul.f32 %v3004, 0.70710677
    %v3011 = vmax.f32 %v3009, -4.0
    %v3012 = vmax.f32 %v3010, -4.0
    %v3013 = vmin.f32 %v3011, 4.0
    %v3014 = vmin.f32 %v3012, 4.0
    %v3015 = vmul.f32 %v3013, %v3013
    %v3016 = vmul.f32 %v3014, %v3014
    %v3017 = vmul.f32 %v3015, -2.7261424e-10
    %v3018 = vmul.f32 %v3016, -2.7261424e-10
    %v3019 = vadd.f32 %v3017, 2.7706815e-08
    %v3020 = vadd.f32 %v3018, 2.7706815e-08
    %v3021 = vmul.f32 %v3019, %v3015
    %v3022 = vmul.f32 %v3020, %v3016
    %v3023 = vadd.f32 %v3021, -2.101024e-06
    %v3024 = vadd.f32 %v3022, -2.101024e-06
    %v3025 = vmul.f32 %v3023, %v3015
    %v3026 = vmul.f32 %v3024, %v3016
    %v3027 = vadd.f32 %v3025, -5.6925062e-05
    %v3028 = vadd.f32 %v3026, -5.6925062e-05
    %v3029 = vmul.f32 %v3027, %v3015
    %v3030 = vmul.f32 %v3028, %v3016
    %v3031 = vadd.f32 %v3029, -0.00073499064
    %v3032 = vadd.f32 %v3030, -0.00073499064
    %v3033 = vmul.f32 %v3031, %v3015
    %v3034 = vmul.f32 %v3032, %v3016
    %v3035 = vadd.f32 %v3033, -0.0029546
    %v3036 = vadd.f32 %v3034, -0.0029546
    %v3037 = vmul.f32 %v3035, %v3015
    %v3038 = vmul.f32 %v3036, %v3016
    %v3039 = vadd.f32 %v3037, -0.016096033
    %v3040 = vadd.f32 %v3038, -0.016096033
    %v3041 = vmul.f32 %v3015, -1.45660715e-05
    %v3042 = vmul.f32 %v3016, -1.45660715e-05
    %v3043 = vadd.f32 %v3041, -0.00021337405
    %v3044 = vadd.f32 %v3042, -0.00021337405
    %v3045 = vmul.f32 %v3043, %v3015
    %v3046 = vmul.f32 %v3044, %v3016
    %v3047 = vadd.f32 %v3045, -0.001682827
    %v3048 = vadd.f32 %v3046, -0.001682827
    %v3049 = vmul.f32 %v3047, %v3015
    %v3050 = vmul.f32 %v3048, %v3016
    %v3051 = vadd.f32 %v3049, -0.0073733293
    %v3052 = vadd.f32 %v3050, -0.0073733293
    %v3053 = vmul.f32 %v3051, %v3015
    %v3054 = vmul.f32 %v3052, %v3016
    %v3055 = vadd.f32 %v3053, -0.014264739
    %v3056 = vadd.f32 %v3054, -0.014264739
    %v3057 = vmul.f32 %v3013, %v3039
    %v3058 = vmul.f32 %v3014, %v3040
    %v3059 = vrcp.pop %v3055
    %v3060 = vmul.f32 %v3057, %v3059
    %v3061 = vrcp.pop %v3056
    %v3062 = vmul.f32 %v3058, %v3061
    %v3063 = vadd.f32 %v3060, 1.0
    %v3064 = vadd.f32 %v3062, 1.0
    %v3065 = vmul.f32 %v3007, %v3063
    %v3066 = vmul.f32 %v3008, %v3064
    %v3067 = vpack.c.bf16 %v3066, %v3065
    %v3069 = vlaneseq
    %v3070 = vshrl.u32 %v3069, 7
    %v3071 = vsub.s32 0, %v3070
    %v3072 = vrot.slane %v2393, %v3071
    %v3078 = vunpack.c.l.b16 %v2389
    %v3079 = vunpack.c.l.b16 %v2390
    %v3080 = vunpack.c.l.b16 %v2391
    %v3081 = vunpack.c.l.b16 %v2392
    %v3082 = vpack.c.b16 %v3079, %v3078
    %v3083 = vpack.c.b16 %v3081, %v3080
    %v3087 = vsel %vm1522, %v3067, 0
    %3089 = vmatprep.subr.bf16.mxu0 0
    %3090 = vmatpush1.bf16.msra.mxu0 0
    %3091 = vmatprep.subr.bf16.mxu0 0
    %3092 = vmatpush1.bf16.msra.mxu0 0
    %3093 = vmatprep.subr.bf16.mxu0 0
    %3094 = vmatpush1.bf16.msra.mxu0 0
    %3095 = vmatprep.subr.bf16.mxu0 0
    %3096 = vmatpush1.bf16.msra.mxu0 0
    %3097 = vmatprep.subr.bf16.mxu0 0
    %3098 = vmatpush1.bf16.msra.mxu0 0
    %3099 = vmatprep.subr.bf16.mxu0 0
    %3100 = vmatpush1.bf16.msra.mxu0 0
    %3101 = vmatprep.subr.bf16.mxu0 0
    %3102 = vmatpush1.bf16.msra.mxu0 %v3083
    %3103 = vmatprep.subr.bf16.mxu0 0
    %3104 = vmatpush1.bf16.msra.mxu0 %v3082
    %3105 = vmatprep.subr.bf16.mxu0 0
    %3106 = vmatpush2.bf16.msra.mxu0 0
    %3107 = vmatprep.subr.bf16.mxu0 0
    %3108 = vmatpush2.bf16.msra.mxu0 0
    %3109 = vmatprep.subr.bf16.mxu0 0
    %3110 = vmatpush2.bf16.msra.mxu0 0
    %3111 = vmatprep.subr.bf16.mxu0 0
    %3112 = vmatpush2.bf16.msra.mxu0 0
    %3113 = vmatprep.subr.bf16.mxu0 0
    %3114 = vmatpush2.bf16.msra.mxu0 0
    %3115 = vmatprep.subr.bf16.mxu0 0
    %3116 = vmatpush2.bf16.msra.mxu0 0
    %3117 = vmatprep.subr.bf16.mxu0 0
    %3118 = vmatpush2.bf16.msra.mxu0 0
    %3119 = vmatprep.subr.bf16.mxu0 0
    %3120 = vmatpush2.bf16.msra.mxu0 0
    %3121 = vmatprep.mubr.bf16.mxu0 0
    %3122 = vmatmul.mubr.bf16.gmra.mxu0 %v3087
    %v3123 = vpop.f32.mrf.mxu0
    %v3124 = vadd.f32 %v3072, %v3123
    %v3125 = vpop.f32.mrf.mxu0
    %v3126 = vpop.f32.mrf.mxu0
    %v3127 = vadd.f32 %v3072, %v3126
    %v3128 = vpop.f32.mrf.mxu0
    %3129 = vdwg.mxu0
    %v3130 = vld [vmem:[%s127] sm:$0xf]
    %v3131 = vld [vmem:[%s127 + $0x4] sm:$0xf]
    %v3132 = vpack.c.bf16 %v3127, %v3124
    %v3133 = vld [vmem:[#allocation41] sm:$0x1]
    %v3135 = vlaneseq
    %v3136 = vshrl.u32 %v3135, 7
    %v3137 = vsub.s32 0, %v3136
    %v3138 = vrot.slane %v3133, %v3137
    %v3142 = vunpack.c.l.b16 %v3130
    %v3143 = vunpack.c.l.b16 %v3131
    %v3144 = vpack.c.b16 %v3143, %v3142
    %v3147 = vsel %vm2427, %v3132, 0
    %3149 = vmatprep.subr.bf16.mxu0 0
    %3150 = vmatpush1.bf16.msra.mxu0 0
    %3151 = vmatprep.subr.bf16.mxu0 0
    %3152 = vmatpush1.bf16.msra.mxu0 0
    %3153 = vmatprep.subr.bf16.mxu0 0
    %3154 = vmatpush1.bf16.msra.mxu0 0
    %3155 = vmatprep.subr.bf16.mxu0 0
    %3156 = vmatpush1.bf16.msra.mxu0 0
    %3157 = vmatprep.subr.bf16.mxu0 0
    %3158 = vmatpush1.bf16.msra.mxu0 0
    %3159 = vmatprep.subr.bf16.mxu0 0
    %3160 = vmatpush1.bf16.msra.mxu0 0
    %3161 = vmatprep.subr.bf16.mxu0 0
    %3162 = vmatpush1.bf16.msra.mxu0 0
    %3163 = vmatprep.subr.bf16.mxu0 0
    %3164 = vmatpush1.bf16.msra.mxu0 %v3144
    %3165 = vmatprep.subr.bf16.mxu0 0
    %3166 = vmatpush2.bf16.msra.mxu0 0
    %3167 = vmatprep.subr.bf16.mxu0 0
    %3168 = vmatpush2.bf16.msra.mxu0 0
    %3169 = vmatprep.subr.bf16.mxu0 0
    %3170 = vmatpush2.bf16.msra.mxu0 0
    %3171 = vmatprep.subr.bf16.mxu0 0
    %3172 = vmatpush2.bf16.msra.mxu0 0
    %3173 = vmatprep.subr.bf16.mxu0 0
    %3174 = vmatpush2.bf16.msra.mxu0 0
    %3175 = vmatprep.subr.bf16.mxu0 0
    %3176 = vmatpush2.bf16.msra.mxu0 0
    %3177 = vmatprep.subr.bf16.mxu0 0
    %3178 = vmatpush2.bf16.msra.mxu0 0
    %3179 = vmatprep.subr.bf16.mxu0 0
    %3180 = vmatpush2.bf16.msra.mxu0 0
    %3181 = vmatprep.mubr.bf16.mxu0 0
    %3182 = vmatmul.mubr.bf16.gmra.mxu0 %v3147
    %v3183 = vpop.f32.mrf.mxu0
    %v3184 = vadd.f32 %v3138, %v3183
    %v3185 = vpop.f32.mrf.mxu0
    %v3186 = vpop.f32.mrf.mxu0
    %v3187 = vadd.f32 %v3138, %v3186
    %v3188 = vpop.f32.mrf.mxu0
    %3189 = vdwg.mxu0
    %3190 = vst [vmem:[#allocation45] sm:$0xff] %v3184
    %3191 = vst [vmem:[#allocation45 + $0x8] sm:$0xff] %v3187
    %v3192 = vld [vmem:[%s67] sm:$0xff]
    %v3193 = vld [vmem:[%s67 + $0x8] sm:$0xf]
    %v3194 = vld [vmem:[%s67 + $0xc] sm:$0xff]
    %v3195 = vld [vmem:[%s67 + $0x14] sm:$0xf]
    %v3196 = vld [vmem:[%s69] sm:$0x7]
    %v3197 = vld [vmem:[%s71] sm:$0xf]
    %v3198 = vld [vmem:[%s71 + $0x4] sm:$0xf]
    %v3199 = vld [vmem:[%s71 + $0x8] sm:$0xf]
    %v3200 = vld [vmem:[%s71 + $0xc] sm:$0xf]
    %v3201 = vld [vmem:[%s71 + $0x10] sm:$0xf]
    %v3202 = vld [vmem:[%s71 + $0x14] sm:$0xf]
    %v3203 = vld [vmem:[%s71 + $0x18] sm:$0xf]
    %v3204 = vld [vmem:[%s71 + $0x1c] sm:$0xf]
    %v3205 = vld [vmem:[%s71 + $0x20] sm:$0xf]
    %v3206 = vld [vmem:[%s71 + $0x24] sm:$0xf]
    %v3207 = vld [vmem:[%s71 + $0x28] sm:$0xf]
    %v3208 = vld [vmem:[%s71 + $0x2c] sm:$0xf]
    %v3209 = vld [vmem:[%s71 + $0x30] sm:$0xf]
    %v3210 = vld [vmem:[%s71 + $0x34] sm:$0xf]
    %v3211 = vld [vmem:[%s71 + $0x38] sm:$0xf]
    %v3212 = vld [vmem:[%s71 + $0x3c] sm:$0xf]
    %v3213 = vld [vmem:[#allocation19] sm:$0x1]
    %v3214 = vld [vmem:[#allocation20] sm:$0x1]
    %v3215 = vld [vmem:[#allocation22] sm:$0x1]
    %v3216 = vld [vmem:[%s79] sm:$0xf]
    %v3217 = vld [vmem:[%s79 + $0x4] sm:$0xf]
    %v3218 = vld [vmem:[#allocation23] sm:$0x1]
    %v3219 = vld [vmem:[%s83] sm:$0xf]
    %v3220 = vld [vmem:[%s83 + $0x4] sm:$0xf]
    %v3221 = vld [vmem:[%s83 + $0x8] sm:$0xf]
    %v3222 = vld [vmem:[%s83 + $0xc] sm:$0xf]
    %v3223 = vld [vmem:[#allocation25] sm:$0x1]
    %v3225 = vlaneseq
    %v3226 = vshrl.u32 %v3225, 7
    %v3227 = vsub.s32 0, %v3226
    %v3228 = vrot.slane %v3196, %v3227
    %v3229 = vlaneseq
    %v3230 = vshrl.u32 %v3229, 7
    %v3231 = vsub.s32 1, %v3230
    %v3232 = vrot.slane %v3196, %v3231
    %v3233 = vlaneseq
    %v3234 = vshrl.u32 %v3233, 7
    %v3235 = vsub.s32 2, %v3234
    %v3236 = vrot.slane %v3196, %v3235
    %v3244 = vunpack.c.l.b16 %v3192
    %v3245 = vunpack.c.h.b16 %v3192
    %v3246 = vunpack.c.l.b16 %v3193
    %v3247 = vunpack.c.l.b16 %v3194
    %v3248 = vunpack.c.h.b16 %v3194
    %v3249 = vunpack.c.l.b16 %v3195
    %v3250 = vpack.c.b16 %v3247, %v3244
    %v3251 = vpack.c.b16 %v3248, %v3245
    %v3252 = vpack.c.b16 %v3249, %v3246
    %3256 = vmatprep.subr.bf16.mxu0 0
    %3257 = vmatpush1.bf16.msra.mxu0 0
    %3258 = vmatprep.subr.bf16.mxu0 0
    %3259 = vmatpush1.bf16.msra.mxu0 0
    %3260 = vmatprep.subr.bf16.mxu0 0
    %3261 = vmatpush1.bf16.msra.mxu0 0
    %3262 = vmatprep.subr.bf16.mxu0 0
    %3263 = vmatpush1.bf16.msra.mxu0 0
    %3264 = vmatprep.subr.bf16.mxu0 0
    %3265 = vmatpush1.bf16.msra.mxu0 0
    %3266 = vmatprep.subr.bf16.mxu0 0
    %3267 = vmatpush1.bf16.msra.mxu0 0
    %3268 = vmatprep.subr.bf16.mxu0 0
    %3269 = vmatpush1.bf16.msra.mxu0 0
    %3270 = vmatprep.subr.bf16.mxu0 %v3251
    %3271 = vmatpush1.bf16.msra.mxu0 %v3250
    %3272 = vmatprep.subr.bf16.mxu0 0
    %3273 = vmatpush2.bf16.msra.mxu0 0
    %3274 = vmatprep.subr.bf16.mxu0 0
    %3275 = vmatpush2.bf16.msra.mxu0 0
    %3276 = vmatprep.subr.bf16.mxu0 0
    %3277 = vmatpush2.bf16.msra.mxu0 0
    %3278 = vmatprep.subr.bf16.mxu0 0
    %3279 = vmatpush2.bf16.msra.mxu0 0
    %3280 = vmatprep.subr.bf16.mxu0 0
    %3281 = vmatpush2.bf16.msra.mxu0 0
    %3282 = vmatprep.subr.bf16.mxu0 0
    %3283 = vmatpush2.bf16.msra.mxu0 0
    %3284 = vmatprep.subr.bf16.mxu0 0
    %3285 = vmatpush2.bf16.msra.mxu0 0
    %3286 = vmatprep.subr.bf16.mxu0 0
    %3287 = vmatpush2.bf16.msra.mxu0 0
    %3288 = vmatprep.mubr.bf16.mxu0 0
    %3289 = vmatmul.mubr.bf16.gmra.mxu0 %v3147
    %v3290 = vpop.f32.mrf.mxu0
    %v3291 = vadd.f32 %v3228, %v3290
    %v3292 = vpop.f32.mrf.mxu0
    %v3293 = vadd.f32 %v3232, %v3292
    %v3294 = vpop.f32.mrf.mxu0
    %v3295 = vadd.f32 %v3228, %v3294
    %v3296 = vpop.f32.mrf.mxu0
    %v3297 = vadd.f32 %v3232, %v3296
    %3298 = vdwg.mxu0
    %3299 = vmatprep.subr.bf16.mxu0 0
    %3300 = vmatpush1.bf16.msra.mxu0 0
    %3301 = vmatprep.subr.bf16.mxu0 0
    %3302 = vmatpush1.bf16.msra.mxu0 0
    %3303 = vmatprep.subr.bf16.mxu0 0
    %3304 = vmatpush1.bf16.msra.mxu0 0
    %3305 = vmatprep.subr.bf16.mxu0 0
    %3306 = vmatpush1.bf16.msra.mxu0 0
    %3307 = vmatprep.subr.bf16.mxu0 0
    %3308 = vmatpush1.bf16.msra.mxu0 0
    %3309 = vmatprep.subr.bf16.mxu0 0
    %3310 = vmatpush1.bf16.msra.mxu0 0
    %3311 = vmatprep.subr.bf16.mxu0 0
    %3312 = vmatpush1.bf16.msra.mxu0 0
    %3313 = vmatprep.subr.bf16.mxu0 0
    %3314 = vmatpush1.bf16.msra.mxu0 %v3252
    %3315 = vmatprep.subr.bf16.mxu0 0
    %3316 = vmatpush2.bf16.msra.mxu0 0
    %3317 = vmatprep.subr.bf16.mxu0 0
    %3318 = vmatpush2.bf16.msra.mxu0 0
    %3319 = vmatprep.subr.bf16.mxu0 0
    %3320 = vmatpush2.bf16.msra.mxu0 0
    %3321 = vmatprep.subr.bf16.mxu0 0
    %3322 = vmatpush2.bf16.msra.mxu0 0
    %3323 = vmatprep.subr.bf16.mxu0 0
    %3324 = vmatpush2.bf16.msra.mxu0 0
    %3325 = vmatprep.subr.bf16.mxu0 0
    %3326 = vmatpush2.bf16.msra.mxu0 0
    %3327 = vmatprep.subr.bf16.mxu0 0
    %3328 = vmatpush2.bf16.msra.mxu0 0
    %3329 = vmatprep.subr.bf16.mxu0 0
    %3330 = vmatpush2.bf16.msra.mxu0 0
    %3331 = vmatprep.mubr.bf16.mxu0 0
    %3332 = vmatmul.mubr.bf16.gmra.mxu0 %v3147
    %v3333 = vpop.f32.mrf.mxu0
    %v3334 = vadd.f32 %v3236, %v3333
    %v3335 = vpop.f32.mrf.mxu0
    %v3336 = vpop.f32.mrf.mxu0
    %v3337 = vadd.f32 %v3236, %v3336
    %v3338 = vpop.f32.mrf.mxu0
    %3339 = vdwg.mxu0
    %v3340 = vmul.f32 %v3291, 0.25
    %v3341 = vmul.f32 %v3295, 0.25
    %v3342 = vsel %vm882, %v3340, 0.0
    %v3343 = vsel %vm882, %v3341, 0.0
    %v3344 = vsel %vm882, %v3293, 0.0
    %v3345 = vsel %vm882, %v3297, 0.0
    %v3346 = vsel %vm882, %v3334, 0.0
    %v3347 = vsel %vm882, %v3337, 0.0
    %v3348 = vpack.c.bf16 %v3343, %v3342
    %v3349 = vpack.c.bf16 %v3345, %v3344
    %3350 = vmatprep.subr.bf16.mxu0 0
    %3351 = vmatpush1.bf16.xpose.msra.mxu0 0
    %3352 = vmatprep.subr.bf16.mxu0 0
    %3353 = vmatpush1.bf16.xpose.msra.mxu0 0
    %3354 = vmatprep.subr.bf16.mxu0 0
    %3355 = vmatpush1.bf16.xpose.msra.mxu0 0
    %3356 = vmatprep.subr.bf16.mxu0 0
    %3357 = vmatpush1.bf16.xpose.msra.mxu0 0
    %3358 = vmatprep.subr.bf16.mxu0 0
    %3359 = vmatpush1.bf16.xpose.msra.mxu0 0
    %3360 = vmatprep.subr.bf16.mxu0 0
    %3361 = vmatpush1.bf16.xpose.msra.mxu0 0
    %3362 = vmatprep.subr.bf16.mxu0 0
    %3363 = vmatpush1.bf16.xpose.msra.mxu0 0
    %3364 = vmatprep.subr.bf16.mxu0 0
    %3365 = vmatpush1.bf16.xpose.msra.mxu0 %v3349
    %3366 = vmatprep.subr.bf16.mxu0 0
    %3367 = vmatpush2.bf16.xpose.msra.mxu0 0
    %3368 = vmatprep.subr.bf16.mxu0 0
    %3369 = vmatpush2.bf16.xpose.msra.mxu0 0
    %3370 = vmatprep.subr.bf16.mxu0 0
    %3371 = vmatpush2.bf16.xpose.msra.mxu0 0
    %3372 = vmatprep.subr.bf16.mxu0 0
    %3373 = vmatpush2.bf16.xpose.msra.mxu0 0
    %3374 = vmatprep.subr.bf16.mxu0 0
    %3375 = vmatpush2.bf16.xpose.msra.mxu0 0
    %3376 = vmatprep.subr.bf16.mxu0 0
    %3377 = vmatpush2.bf16.xpose.msra.mxu0 0
    %3378 = vmatprep.subr.bf16.mxu0 0
    %3379 = vmatpush2.bf16.xpose.msra.mxu0 0
    %3380 = vmatprep.subr.bf16.mxu0 0
    %3381 = vmatpush2.bf16.xpose.msra.mxu0 0
    %3382 = vmatprep.mubr.bf16.mxu0 0
    %3383 = vmatmul.mubr.bf16.gmra.mxu0 %v3348
    %v3384 = vpop.f32.mrf.mxu0
    %v3385 = vadd.f32 0.0, %v3384
    %v3386 = vpop.f32.mrf.mxu0
    %v3387 = vpop.f32.mrf.mxu0
    %v3388 = vadd.f32 0.0, %v3387
    %v3389 = vpop.f32.mrf.mxu0
    %3390 = vdwg.mxu0
    %v3391 = vsel %vm959, %v3385, -1e+30
    %v3392 = vsel %vm960, %v3388, -1e+30
    %v3393 = vsel %vm2427, %v3391, -inf
    %3394 = vmax.xlane.f32.xlu0 %v3393
    %v3395 = vpop.xlane.xlu0 %3394
    %v3396 = vsel %vm2427, %v3392, -inf
    %3397 = vmax.xlane.f32.xlu0 %v3396
    %v3398 = vpop.xlane.xlu0 %3397
    %v3399 = vsub.f32 %v3391, %v3395
    %v3400 = vsub.f32 %v3392, %v3398
    %v3401 = vmul.f32 %v3399, 1.442695
    %v3402 = vpow.pop %v3401
    %v3403 = vmul.f32 %v3400, 1.442695
    %v3404 = vpow.pop %v3403
    %v3405 = vsel %vm2427, %v3402, 0.0
    %3406 = vadd.xlane.f32.xlu0 %v3405
    %v3407 = vpop.xlane.xlu0 %3406
    %v3408 = vsel %vm2427, %v3404, 0.0
    %3409 = vadd.xlane.f32.xlu0 %v3408
    %v3410 = vpop.xlane.xlu0 %3409
    %v3411 = vrcp.pop %v3407
    %v3412 = vrcp.pop %v3410
    %v3413 = vmul.f32 %v3402, %v3411
    %v3414 = vmul.f32 %v3404, %v3412
    %v3415 = vpack.c.bf16 %v3414, %v3413
    %v3416 = vpack.c.bf16 %v3347, %v3346
    %v3418 = vsel %vm2427, %v3415, 0
    %3420 = vmatprep.subr.bf16.mxu0 0
    %3421 = vmatpush1.bf16.msra.mxu0 0
    %3422 = vmatprep.subr.bf16.mxu0 0
    %3423 = vmatpush1.bf16.msra.mxu0 0
    %3424 = vmatprep.subr.bf16.mxu0 0
    %3425 = vmatpush1.bf16.msra.mxu0 0
    %3426 = vmatprep.subr.bf16.mxu0 0
    %3427 = vmatpush1.bf16.msra.mxu0 0
    %3428 = vmatprep.subr.bf16.mxu0 0
    %3429 = vmatpush1.bf16.msra.mxu0 0
    %3430 = vmatprep.subr.bf16.mxu0 0
    %3431 = vmatpush1.bf16.msra.mxu0 0
    %3432 = vmatprep.subr.bf16.mxu0 0
    %3433 = vmatpush1.bf16.msra.mxu0 0
    %3434 = vmatprep.subr.bf16.mxu0 0
    %3435 = vmatpush1.bf16.msra.mxu0 %v3416
    %3436 = vmatprep.subr.bf16.mxu0 0
    %3437 = vmatpush2.bf16.msra.mxu0 0
    %3438 = vmatprep.subr.bf16.mxu0 0
    %3439 = vmatpush2.bf16.msra.mxu0 0
    %3440 = vmatprep.subr.bf16.mxu0 0
    %3441 = vmatpush2.bf16.msra.mxu0 0
    %3442 = vmatprep.subr.bf16.mxu0 0
    %3443 = vmatpush2.bf16.msra.mxu0 0
    %3444 = vmatprep.subr.bf16.mxu0 0
    %3445 = vmatpush2.bf16.msra.mxu0 0
    %3446 = vmatprep.subr.bf16.mxu0 0
    %3447 = vmatpush2.bf16.msra.mxu0 0
    %3448 = vmatprep.subr.bf16.mxu0 0
    %3449 = vmatpush2.bf16.msra.mxu0 0
    %3450 = vmatprep.subr.bf16.mxu0 0
    %3451 = vmatpush2.bf16.msra.mxu0 0
    %3452 = vmatprep.mubr.bf16.mxu0 0
    %3453 = vmatmul.mubr.bf16.gmra.mxu0 %v3418
    %v3454 = vpop.f32.mrf.mxu0
    %v3455 = vadd.f32 0.0, %v3454
    %v3456 = vpop.f32.mrf.mxu0
    %v3457 = vpop.f32.mrf.mxu0
    %v3458 = vadd.f32 0.0, %v3457
    %v3459 = vpop.f32.mrf.mxu0
    %3460 = vdwg.mxu0
    %v3461 = vpack.c.bf16 %v3458, %v3455
    %v3463 = vlaneseq
    %v3464 = vshrl.u32 %v3463, 7
    %v3465 = vsub.s32 0, %v3464
    %v3466 = vrot.slane %v3213, %v3465
    %v3484 = vunpack.c.l.b16 %v3197
    %v3485 = vunpack.c.l.b16 %v3198
    %v3486 = vunpack.c.l.b16 %v3199
    %v3487 = vunpack.c.l.b16 %v3200
    %v3488 = vunpack.c.l.b16 %v3201
    %v3489 = vunpack.c.l.b16 %v3202
    %v3490 = vunpack.c.l.b16 %v3203
    %v3491 = vunpack.c.l.b16 %v3204
    %v3492 = vunpack.c.l.b16 %v3205
    %v3493 = vunpack.c.l.b16 %v3206
    %v3494 = vunpack.c.l.b16 %v3207
    %v3495 = vunpack.c.l.b16 %v3208
    %v3496 = vunpack.c.l.b16 %v3209
    %v3497 = vunpack.c.l.b16 %v3210
    %v3498 = vunpack.c.l.b16 %v3211
    %v3499 = vunpack.c.l.b16 %v3212
    %v3500 = vpack.c.b16 %v3485, %v3484
    %v3501 = vpack.c.b16 %v3487, %v3486
    %v3502 = vpack.c.b16 %v3489, %v3488
    %v3503 = vpack.c.b16 %v3491, %v3490
    %v3504 = vpack.c.b16 %v3493, %v3492
    %v3505 = vpack.c.b16 %v3495, %v3494
    %v3506 = vpack.c.b16 %v3497, %v3496
    %v3507 = vpack.c.b16 %v3499, %v3498
    %3516 = vmatprep.subr.bf16.mxu0 0
    %3517 = vmatpush1.bf16.msra.mxu0 %v3507
    %3518 = vmatprep.subr.bf16.mxu0 0
    %3519 = vmatpush1.bf16.msra.mxu0 %v3506
    %3520 = vmatprep.subr.bf16.mxu0 0
    %3521 = vmatpush1.bf16.msra.mxu0 %v3505
    %3522 = vmatprep.subr.bf16.mxu0 0
    %3523 = vmatpush1.bf16.msra.mxu0 %v3504
    %3524 = vmatprep.subr.bf16.mxu0 0
    %3525 = vmatpush1.bf16.msra.mxu0 %v3503
    %3526 = vmatprep.subr.bf16.mxu0 0
    %3527 = vmatpush1.bf16.msra.mxu0 %v3502
    %3528 = vmatprep.subr.bf16.mxu0 0
    %3529 = vmatpush1.bf16.msra.mxu0 %v3501
    %3530 = vmatprep.subr.bf16.mxu0 0
    %3531 = vmatpush1.bf16.msra.mxu0 %v3500
    %3532 = vmatprep.subr.bf16.mxu0 0
    %3533 = vmatpush2.bf16.msra.mxu0 0
    %3534 = vmatprep.subr.bf16.mxu0 0
    %3535 = vmatpush2.bf16.msra.mxu0 0
    %3536 = vmatprep.subr.bf16.mxu0 0
    %3537 = vmatpush2.bf16.msra.mxu0 0
    %3538 = vmatprep.subr.bf16.mxu0 0
    %3539 = vmatpush2.bf16.msra.mxu0 0
    %3540 = vmatprep.subr.bf16.mxu0 0
    %3541 = vmatpush2.bf16.msra.mxu0 0
    %3542 = vmatprep.subr.bf16.mxu0 0
    %3543 = vmatpush2.bf16.msra.mxu0 0
    %3544 = vmatprep.subr.bf16.mxu0 0
    %3545 = vmatpush2.bf16.msra.mxu0 0
    %3546 = vmatprep.subr.bf16.mxu0 0
    %3547 = vmatpush2.bf16.msra.mxu0 0
    %3548 = vmatprep.mubr.bf16.mxu0 0
    %3549 = vmatmul.mubr.bf16.gmra.mxu0 %v3461
    %v3550 = vpop.f32.mrf.mxu0
    %v3551 = vadd.f32 %v3466, %v3550
    %v3552 = vpop.f32.mrf.mxu0
    %v3553 = vpop.f32.mrf.mxu0
    %v3554 = vadd.f32 %v3466, %v3553
    %v3555 = vpop.f32.mrf.mxu0
    %3556 = vdwg.mxu0
    %v3557 = vadd.f32 %v3124, %v3551
    %v3558 = vadd.f32 %v3127, %v3554
    %v3559 = vsel %vm2427, %v3557, 0.0
    %3560 = vadd.xlane.f32.xlu0 %v3559
    %v3561 = vpop.xlane.xlu0 %3560
    %v3562 = vsel %vm2427, %v3558, 0.0
    %3563 = vadd.xlane.f32.xlu0 %v3562
    %v3564 = vpop.xlane.xlu0 %3563
    %v3565 = vmul.f32 %v3561, %v2913
    %v3566 = vmul.f32 %v3564, %v2913
    %v3567 = vsub.f32 %v3557, %v3565
    %v3568 = vsub.f32 %v3558, %v3566
    %v3569 = vmul.f32 %v3567, %v3567
    %v3570 = vmul.f32 %v3568, %v3568
    %v3571 = vsel %vm2427, %v3569, 0.0
    %3572 = vadd.xlane.f32.xlu0 %v3571
    %v3573 = vpop.xlane.xlu0 %3572
    %v3574 = vsel %vm2427, %v3570, 0.0
    %3575 = vadd.xlane.f32.xlu0 %v3574
    %v3576 = vpop.xlane.xlu0 %3575
    %v3577 = vmul.f32 %v3573, %v2913
    %v3578 = vmul.f32 %v3576, %v2913
    %v3579 = vadd.f32 %v3577, 1e-05
    %v3580 = vadd.f32 %v3578, 1e-05
    %v3581 = vrsqrt.pop %v3579
    %v3582 = vrsqrt.pop %v3580
    %v3583 = vmul.f32 %v3567, %v3581
    %v3584 = vmul.f32 %v3568, %v3582
    %v3586 = vlaneseq
    %v3587 = vshrl.u32 %v3586, 7
    %v3588 = vsub.s32 0, %v3587
    %v3589 = vrot.slane %v3214, %v3588
    %v3591 = vmul.f32 %v3583, %v3589
    %v3592 = vmul.f32 %v3584, %v3589
    %v3594 = vlaneseq
    %v3595 = vshrl.u32 %v3594, 7
    %v3596 = vsub.s32 0, %v3595
    %v3597 = vrot.slane %v3215, %v3596
    %v3599 = vadd.f32 %v3591, %v3597
    %v3600 = vadd.f32 %v3592, %v3597
    %v3601 = vpack.c.bf16 %v3600, %v3599
    %v3603 = vlaneseq
    %v3604 = vshrl.u32 %v3603, 7
    %v3605 = vsub.s32 0, %v3604
    %v3606 = vrot.slane %v3218, %v3605
    %v3610 = vunpack.c.l.b16 %v3216
    %v3611 = vunpack.c.l.b16 %v3217
    %v3612 = vpack.c.b16 %v3611, %v3610
    %v3615 = vsel %vm2427, %v3601, 0
    %3617 = vmatprep.subr.bf16.mxu0 0
    %3618 = vmatpush1.bf16.msra.mxu0 0
    %3619 = vmatprep.subr.bf16.mxu0 0
    %3620 = vmatpush1.bf16.msra.mxu0 0
    %3621 = vmatprep.subr.bf16.mxu0 0
    %3622 = vmatpush1.bf16.msra.mxu0 0
    %3623 = vmatprep.subr.bf16.mxu0 0
    %3624 = vmatpush1.bf16.msra.mxu0 0
    %3625 = vmatprep.subr.bf16.mxu0 0
    %3626 = vmatpush1.bf16.msra.mxu0 0
    %3627 = vmatprep.subr.bf16.mxu0 0
    %3628 = vmatpush1.bf16.msra.mxu0 0
    %3629 = vmatprep.subr.bf16.mxu0 0
    %3630 = vmatpush1.bf16.msra.mxu0 0
    %3631 = vmatprep.subr.bf16.mxu0 0
    %3632 = vmatpush1.bf16.msra.mxu0 %v3612
    %3633 = vmatprep.subr.bf16.mxu0 0
    %3634 = vmatpush2.bf16.msra.mxu0 0
    %3635 = vmatprep.subr.bf16.mxu0 0
    %3636 = vmatpush2.bf16.msra.mxu0 0
    %3637 = vmatprep.subr.bf16.mxu0 0
    %3638 = vmatpush2.bf16.msra.mxu0 0
    %3639 = vmatprep.subr.bf16.mxu0 0
    %3640 = vmatpush2.bf16.msra.mxu0 0
    %3641 = vmatprep.subr.bf16.mxu0 0
    %3642 = vmatpush2.bf16.msra.mxu0 0
    %3643 = vmatprep.subr.bf16.mxu0 0
    %3644 = vmatpush2.bf16.msra.mxu0 0
    %3645 = vmatprep.subr.bf16.mxu0 0
    %3646 = vmatpush2.bf16.msra.mxu0 0
    %3647 = vmatprep.subr.bf16.mxu0 0
    %3648 = vmatpush2.bf16.msra.mxu0 0
    %3649 = vmatprep.mubr.bf16.mxu0 0
    %3650 = vmatmul.mubr.bf16.gmra.mxu0 %v3615
    %v3651 = vpop.f32.mrf.mxu0
    %v3652 = vadd.f32 %v3606, %v3651
    %v3653 = vpop.f32.mrf.mxu0
    %v3654 = vpop.f32.mrf.mxu0
    %v3655 = vadd.f32 %v3606, %v3654
    %v3656 = vpop.f32.mrf.mxu0
    %3657 = vdwg.mxu0
    %v3658 = vmul.f32 %v3652, 0.5
    %v3659 = vmul.f32 %v3655, 0.5
    %v3660 = vmul.f32 %v3652, 0.70710677
    %v3661 = vmul.f32 %v3655, 0.70710677
    %v3662 = vmax.f32 %v3660, -4.0
    %v3663 = vmax.f32 %v3661, -4.0
    %v3664 = vmin.f32 %v3662, 4.0
    %v3665 = vmin.f32 %v3663, 4.0
    %v3666 = vmul.f32 %v3664, %v3664
    %v3667 = vmul.f32 %v3665, %v3665
    %v3668 = vmul.f32 %v3666, -2.7261424e-10
    %v3669 = vmul.f32 %v3667, -2.7261424e-10
    %v3670 = vadd.f32 %v3668, 2.7706815e-08
    %v3671 = vadd.f32 %v3669, 2.7706815e-08
    %v3672 = vmul.f32 %v3670, %v3666
    %v3673 = vmul.f32 %v3671, %v3667
    %v3674 = vadd.f32 %v3672, -2.101024e-06
    %v3675 = vadd.f32 %v3673, -2.101024e-06
    %v3676 = vmul.f32 %v3674, %v3666
    %v3677 = vmul.f32 %v3675, %v3667
    %v3678 = vadd.f32 %v3676, -5.6925062e-05
    %v3679 = vadd.f32 %v3677, -5.6925062e-05
    %v3680 = vmul.f32 %v3678, %v3666
    %v3681 = vmul.f32 %v3679, %v3667
    %v3682 = vadd.f32 %v3680, -0.00073499064
    %v3683 = vadd.f32 %v3681, -0.00073499064
    %v3684 = vmul.f32 %v3682, %v3666
    %v3685 = vmul.f32 %v3683, %v3667
    %v3686 = vadd.f32 %v3684, -0.0029546
    %v3687 = vadd.f32 %v3685, -0.0029546
    %v3688 = vmul.f32 %v3686, %v3666
    %v3689 = vmul.f32 %v3687, %v3667
    %v3690 = vadd.f32 %v3688, -0.016096033
    %v3691 = vadd.f32 %v3689, -0.016096033
    %v3692 = vmul.f32 %v3666, -1.45660715e-05
    %v3693 = vmul.f32 %v3667, -1.45660715e-05
    %v3694 = vadd.f32 %v3692, -0.00021337405
    %v3695 = vadd.f32 %v3693, -0.00021337405
    %v3696 = vmul.f32 %v3694, %v3666
    %v3697 = vmul.f32 %v3695, %v3667
    %v3698 = vadd.f32 %v3696, -0.001682827
    %v3699 = vadd.f32 %v3697, -0.001682827
    %v3700 = vmul.f32 %v3698, %v3666
    %v3701 = vmul.f32 %v3699, %v3667
    %v3702 = vadd.f32 %v3700, -0.0073733293
    %v3703 = vadd.f32 %v3701, -0.0073733293
    %v3704 = vmul.f32 %v3702, %v3666
    %v3705 = vmul.f32 %v3703, %v3667
    %v3706 = vadd.f32 %v3704, -0.014264739
    %v3707 = vadd.f32 %v3705, -0.014264739
    %v3708 = vmul.f32 %v3664, %v3690
    %v3709 = vmul.f32 %v3665, %v3691
    %v3710 = vrcp.pop %v3706
    %v3711 = vmul.f32 %v3708, %v3710
    %v3712 = vrcp.pop %v3707
    %v3713 = vmul.f32 %v3709, %v3712
    %v3714 = vadd.f32 %v3711, 1.0
    %v3715 = vadd.f32 %v3713, 1.0
    %v3716 = vmul.f32 %v3658, %v3714
    %v3717 = vmul.f32 %v3659, %v3715
    %v3718 = vpack.c.bf16 %v3717, %v3716
    %v3720 = vlaneseq
    %v3721 = vshrl.u32 %v3720, 7
    %v3722 = vsub.s32 0, %v3721
    %v3723 = vrot.slane %v3223, %v3722
    %v3729 = vunpack.c.l.b16 %v3219
    %v3730 = vunpack.c.l.b16 %v3220
    %v3731 = vunpack.c.l.b16 %v3221
    %v3732 = vunpack.c.l.b16 %v3222
    %v3733 = vpack.c.b16 %v3730, %v3729
    %v3734 = vpack.c.b16 %v3732, %v3731
    %v3738 = vsel %vm1522, %v3718, 0
    %3740 = vmatprep.subr.bf16.mxu0 0
    %3741 = vmatpush1.bf16.msra.mxu0 0
    %3742 = vmatprep.subr.bf16.mxu0 0
    %3743 = vmatpush1.bf16.msra.mxu0 0
    %3744 = vmatprep.subr.bf16.mxu0 0
    %3745 = vmatpush1.bf16.msra.mxu0 0
    %3746 = vmatprep.subr.bf16.mxu0 0
    %3747 = vmatpush1.bf16.msra.mxu0 0
    %3748 = vmatprep.subr.bf16.mxu0 0
    %3749 = vmatpush1.bf16.msra.mxu0 0
    %3750 = vmatprep.subr.bf16.mxu0 0
    %3751 = vmatpush1.bf16.msra.mxu0 0
    %3752 = vmatprep.subr.bf16.mxu0 0
    %3753 = vmatpush1.bf16.msra.mxu0 %v3734
    %3754 = vmatprep.subr.bf16.mxu0 0
    %3755 = vmatpush1.bf16.msra.mxu0 %v3733
    %3756 = vmatprep.subr.bf16.mxu0 0
    %3757 = vmatpush2.bf16.msra.mxu0 0
    %3758 = vmatprep.subr.bf16.mxu0 0
    %3759 = vmatpush2.bf16.msra.mxu0 0
    %3760 = vmatprep.subr.bf16.mxu0 0
    %3761 = vmatpush2.bf16.msra.mxu0 0
    %3762 = vmatprep.subr.bf16.mxu0 0
    %3763 = vmatpush2.bf16.msra.mxu0 0
    %3764 = vmatprep.subr.bf16.mxu0 0
    %3765 = vmatpush2.bf16.msra.mxu0 0
    %3766 = vmatprep.subr.bf16.mxu0 0
    %3767 = vmatpush2.bf16.msra.mxu0 0
    %3768 = vmatprep.subr.bf16.mxu0 0
    %3769 = vmatpush2.bf16.msra.mxu0 0
    %3770 = vmatprep.subr.bf16.mxu0 0
    %3771 = vmatpush2.bf16.msra.mxu0 0
    %3772 = vmatprep.mubr.bf16.mxu0 0
    %3773 = vmatmul.mubr.bf16.gmra.mxu0 %v3738
    %v3774 = vpop.f32.mrf.mxu0
    %v3775 = vadd.f32 %v3723, %v3774
    %v3776 = vpop.f32.mrf.mxu0
    %v3777 = vpop.f32.mrf.mxu0
    %v3778 = vadd.f32 %v3723, %v3777
    %v3779 = vpop.f32.mrf.mxu0
    %3780 = vdwg.mxu0
    %v3781 = vld [vmem:[%s87] sm:$0xff]
    %v3782 = vld [vmem:[%s87 + $0x8] sm:$0xf]
    %v3783 = vld [vmem:[%s87 + $0xc] sm:$0xff]
    %v3784 = vld [vmem:[%s87 + $0x14] sm:$0xf]
    %v3785 = vld [vmem:[%s89] sm:$0x7]
    %v3786 = vld [vmem:[%s91] sm:$0xf]
    %v3787 = vld [vmem:[%s91 + $0x4] sm:$0xf]
    %v3788 = vld [vmem:[%s91 + $0x8] sm:$0xf]
    %v3789 = vld [vmem:[%s91 + $0xc] sm:$0xf]
    %v3790 = vld [vmem:[%s91 + $0x10] sm:$0xf]
    %v3791 = vld [vmem:[%s91 + $0x14] sm:$0xf]
    %v3792 = vld [vmem:[%s91 + $0x18] sm:$0xf]
    %v3793 = vld [vmem:[%s91 + $0x1c] sm:$0xf]
    %v3794 = vld [vmem:[%s91 + $0x20] sm:$0xf]
    %v3795 = vld [vmem:[%s91 + $0x24] sm:$0xf]
    %v3796 = vld [vmem:[%s91 + $0x28] sm:$0xf]
    %v3797 = vld [vmem:[%s91 + $0x2c] sm:$0xf]
    %v3798 = vld [vmem:[%s91 + $0x30] sm:$0xf]
    %v3799 = vld [vmem:[%s91 + $0x34] sm:$0xf]
    %v3800 = vld [vmem:[%s91 + $0x38] sm:$0xf]
    %v3801 = vld [vmem:[%s91 + $0x3c] sm:$0xf]
    %v3802 = vld [vmem:[#allocation26] sm:$0x1]
    %v3803 = vld [vmem:[#allocation28] sm:$0x1]
    %v3804 = vld [vmem:[#allocation29] sm:$0x1]
    %v3805 = vld [vmem:[%s99] sm:$0xf]
    %v3806 = vld [vmem:[%s99 + $0x4] sm:$0xf]
    %v3807 = vld [vmem:[#allocation31] sm:$0x1]
    %v3808 = vld [vmem:[%s103] sm:$0xf]
    %v3809 = vld [vmem:[%s103 + $0x4] sm:$0xf]
    %v3810 = vld [vmem:[%s103 + $0x8] sm:$0xf]
    %v3811 = vld [vmem:[%s103 + $0xc] sm:$0xf]
    %v3812 = vld [vmem:[#allocation32] sm:$0x1]
    %v3813 = vpack.c.bf16 %v3778, %v3775
    %v3815 = vlaneseq
    %v3816 = vshrl.u32 %v3815, 7
    %v3817 = vsub.s32 0, %v3816
    %v3818 = vrot.slane %v3785, %v3817
    %v3819 = vlaneseq
    %v3820 = vshrl.u32 %v3819, 7
    %v3821 = vsub.s32 1, %v3820
    %v3822 = vrot.slane %v3785, %v3821
    %v3823 = vlaneseq
    %v3824 = vshrl.u32 %v3823, 7
    %v3825 = vsub.s32 2, %v3824
    %v3826 = vrot.slane %v3785, %v3825
    %v3834 = vunpack.c.l.b16 %v3781
    %v3835 = vunpack.c.h.b16 %v3781
    %v3836 = vunpack.c.l.b16 %v3782
    %v3837 = vunpack.c.l.b16 %v3783
    %v3838 = vunpack.c.h.b16 %v3783
    %v3839 = vunpack.c.l.b16 %v3784
    %v3840 = vpack.c.b16 %v3837, %v3834
    %v3841 = vpack.c.b16 %v3838, %v3835
    %v3842 = vpack.c.b16 %v3839, %v3836
    %v3847 = vsel %vm2427, %v3813, 0
    %3849 = vmatprep.subr.bf16.mxu0 0
    %3850 = vmatpush1.bf16.msra.mxu0 0
    %3851 = vmatprep.subr.bf16.mxu0 0
    %3852 = vmatpush1.bf16.msra.mxu0 0
    %3853 = vmatprep.subr.bf16.mxu0 0
    %3854 = vmatpush1.bf16.msra.mxu0 0
    %3855 = vmatprep.subr.bf16.mxu0 0
    %3856 = vmatpush1.bf16.msra.mxu0 0
    %3857 = vmatprep.subr.bf16.mxu0 0
    %3858 = vmatpush1.bf16.msra.mxu0 0
    %3859 = vmatprep.subr.bf16.mxu0 0
    %3860 = vmatpush1.bf16.msra.mxu0 0
    %3861 = vmatprep.subr.bf16.mxu0 0
    %3862 = vmatpush1.bf16.msra.mxu0 0
    %3863 = vmatprep.subr.bf16.mxu0 %v3841
    %3864 = vmatpush1.bf16.msra.mxu0 %v3840
    %3865 = vmatprep.subr.bf16.mxu0 0
    %3866 = vmatpush2.bf16.msra.mxu0 0
    %3867 = vmatprep.subr.bf16.mxu0 0
    %3868 = vmatpush2.bf16.msra.mxu0 0
    %3869 = vmatprep.subr.bf16.mxu0 0
    %3870 = vmatpush2.bf16.msra.mxu0 0
    %3871 = vmatprep.subr.bf16.mxu0 0
    %3872 = vmatpush2.bf16.msra.mxu0 0
    %3873 = vmatprep.subr.bf16.mxu0 0
    %3874 = vmatpush2.bf16.msra.mxu0 0
    %3875 = vmatprep.subr.bf16.mxu0 0
    %3876 = vmatpush2.bf16.msra.mxu0 0
    %3877 = vmatprep.subr.bf16.mxu0 0
    %3878 = vmatpush2.bf16.msra.mxu0 0
    %3879 = vmatprep.subr.bf16.mxu0 0
    %3880 = vmatpush2.bf16.msra.mxu0 0
    %3881 = vmatprep.mubr.bf16.mxu0 0
    %3882 = vmatmul.mubr.bf16.gmra.mxu0 %v3847
    %v3883 = vpop.f32.mrf.mxu0
    %v3884 = vadd.f32 %v3818, %v3883
    %v3885 = vpop.f32.mrf.mxu0
    %v3886 = vadd.f32 %v3822, %v3885
    %v3887 = vpop.f32.mrf.mxu0
    %v3888 = vadd.f32 %v3818, %v3887
    %v3889 = vpop.f32.mrf.mxu0
    %v3890 = vadd.f32 %v3822, %v3889
    %3891 = vdwg.mxu0
    %3892 = vmatprep.subr.bf16.mxu0 0
    %3893 = vmatpush1.bf16.msra.mxu0 0
    %3894 = vmatprep.subr.bf16.mxu0 0
    %3895 = vmatpush1.bf16.msra.mxu0 0
    %3896 = vmatprep.subr.bf16.mxu0 0
    %3897 = vmatpush1.bf16.msra.mxu0 0
    %3898 = vmatprep.subr.bf16.mxu0 0
    %3899 = vmatpush1.bf16.msra.mxu0 0
    %3900 = vmatprep.subr.bf16.mxu0 0
    %3901 = vmatpush1.bf16.msra.mxu0 0
    %3902 = vmatprep.subr.bf16.mxu0 0
    %3903 = vmatpush1.bf16.msra.mxu0 0
    %3904 = vmatprep.subr.bf16.mxu0 0
    %3905 = vmatpush1.bf16.msra.mxu0 0
    %3906 = vmatprep.subr.bf16.mxu0 0
    %3907 = vmatpush1.bf16.msra.mxu0 %v3842
    %3908 = vmatprep.subr.bf16.mxu0 0
    %3909 = vmatpush2.bf16.msra.mxu0 0
    %3910 = vmatprep.subr.bf16.mxu0 0
    %3911 = vmatpush2.bf16.msra.mxu0 0
    %3912 = vmatprep.subr.bf16.mxu0 0
    %3913 = vmatpush2.bf16.msra.mxu0 0
    %3914 = vmatprep.subr.bf16.mxu0 0
    %3915 = vmatpush2.bf16.msra.mxu0 0
    %3916 = vmatprep.subr.bf16.mxu0 0
    %3917 = vmatpush2.bf16.msra.mxu0 0
    %3918 = vmatprep.subr.bf16.mxu0 0
    %3919 = vmatpush2.bf16.msra.mxu0 0
    %3920 = vmatprep.subr.bf16.mxu0 0
    %3921 = vmatpush2.bf16.msra.mxu0 0
    %3922 = vmatprep.subr.bf16.mxu0 0
    %3923 = vmatpush2.bf16.msra.mxu0 0
    %3924 = vmatprep.mubr.bf16.mxu0 0
    %3925 = vmatmul.mubr.bf16.gmra.mxu0 %v3847
    %v3926 = vpop.f32.mrf.mxu0
    %v3927 = vadd.f32 %v3826, %v3926
    %v3928 = vpop.f32.mrf.mxu0
    %v3929 = vpop.f32.mrf.mxu0
    %v3930 = vadd.f32 %v3826, %v3929
    %v3931 = vpop.f32.mrf.mxu0
    %3932 = vdwg.mxu0
    %v3933 = vmul.f32 %v3884, 0.5
    %v3934 = vmul.f32 %v3888, 0.5
    %v3935 = vsel %vm2518, %v3933, 0.0
    %v3936 = vsel %vm2518, %v3934, 0.0
    %v3937 = vsel %vm2522, %v3933, 0.0
    %v3938 = vsel %vm2522, %v3934, 0.0
    %v3939 = vsel %vm2526, %v3933, 0.0
    %v3940 = vsel %vm2526, %v3934, 0.0
    %v3941 = vsel %vm2530, %v3933, 0.0
    %v3942 = vsel %vm2530, %v3934, 0.0
    %v3943 = vsel %vm2518, %v3886, 0.0
    %v3944 = vsel %vm2518, %v3890, 0.0
    %v3945 = vsel %vm2522, %v3886, 0.0
    %v3946 = vsel %vm2522, %v3890, 0.0
    %v3947 = vsel %vm2526, %v3886, 0.0
    %v3948 = vsel %vm2526, %v3890, 0.0
    %v3949 = vsel %vm2530, %v3886, 0.0
    %v3950 = vsel %vm2530, %v3890, 0.0
    %v3951 = vsel %vm2518, %v3927, 0.0
    %v3952 = vsel %vm2518, %v3930, 0.0
    %v3953 = vsel %vm2522, %v3927, 0.0
    %v3954 = vsel %vm2522, %v3930, 0.0
    %v3955 = vsel %vm2526, %v3927, 0.0
    %v3956 = vsel %vm2526, %v3930, 0.0
    %v3957 = vsel %vm2530, %v3927, 0.0
    %v3958 = vsel %vm2530, %v3930, 0.0
    %v3959 = vpack.c.bf16 %v3936, %v3935
    %v3960 = vpack.c.bf16 %v3938, %v3937
    %v3961 = vpack.c.bf16 %v3940, %v3939
    %v3962 = vpack.c.bf16 %v3942, %v3941
    %v3963 = vpack.c.bf16 %v3944, %v3943
    %v3964 = vpack.c.bf16 %v3946, %v3945
    %v3965 = vpack.c.bf16 %v3948, %v3947
    %v3966 = vpack.c.bf16 %v3950, %v3949
    %3967 = vmatprep.subr.bf16.mxu0 0
    %3968 = vmatpush1.bf16.xpose.msra.mxu0 0
    %3969 = vmatprep.subr.bf16.mxu0 0
    %3970 = vmatpush1.bf16.xpose.msra.mxu0 0
    %3971 = vmatprep.subr.bf16.mxu0 0
    %3972 = vmatpush1.bf16.xpose.msra.mxu0 0
    %3973 = vmatprep.subr.bf16.mxu0 0
    %3974 = vmatpush1.bf16.xpose.msra.mxu0 0
    %3975 = vmatprep.subr.bf16.mxu0 0
    %3976 = vmatpush1.bf16.xpose.msra.mxu0 %v3966
    %3977 = vmatprep.subr.bf16.mxu0 0
    %3978 = vmatpush1.bf16.xpose.msra.mxu0 %v3965
    %3979 = vmatprep.subr.bf16.mxu0 0
    %3980 = vmatpush1.bf16.xpose.msra.mxu0 %v3964
    %3981 = vmatprep.subr.bf16.mxu0 0
    %3982 = vmatpush1.bf16.xpose.msra.mxu0 %v3963
    %3983 = vmatprep.subr.bf16.mxu0 0
    %3984 = vmatpush2.bf16.xpose.msra.mxu0 0
    %3985 = vmatprep.subr.bf16.mxu0 0
    %3986 = vmatpush2.bf16.xpose.msra.mxu0 0
    %3987 = vmatprep.subr.bf16.mxu0 0
    %3988 = vmatpush2.bf16.xpose.msra.mxu0 0
    %3989 = vmatprep.subr.bf16.mxu0 0
    %3990 = vmatpush2.bf16.xpose.msra.mxu0 0
    %3991 = vmatprep.subr.bf16.mxu0 0
    %3992 = vmatpush2.bf16.xpose.msra.mxu0 0
    %3993 = vmatprep.subr.bf16.mxu0 0
    %3994 = vmatpush2.bf16.xpose.msra.mxu0 0
    %3995 = vmatprep.subr.bf16.mxu0 0
    %3996 = vmatpush2.bf16.xpose.msra.mxu0 0
    %3997 = vmatprep.subr.bf16.mxu0 0
    %3998 = vmatpush2.bf16.xpose.msra.mxu0 0
    %3999 = vmatprep.mubr.bf16.mxu0 0
    %4000 = vmatmul.mubr.bf16.gmra.mxu0 %v3959
    %v4001 = vpop.f32.mrf.mxu0
    %v4002 = vadd.f32 0.0, %v4001
    %v4003 = vpop.f32.mrf.mxu0
    %v4004 = vpop.f32.mrf.mxu0
    %v4005 = vadd.f32 0.0, %v4004
    %v4006 = vpop.f32.mrf.mxu0
    %4007 = vmatprep.mubr.bf16.mxu0 0
    %4008 = vmatmul.mubr.bf16.gmra.mxu0 %v3960
    %v4009 = vpop.f32.mrf.mxu0
    %v4010 = vadd.f32 0.0, %v4009
    %v4011 = vpop.f32.mrf.mxu0
    %v4012 = vpop.f32.mrf.mxu0
    %v4013 = vadd.f32 0.0, %v4012
    %v4014 = vpop.f32.mrf.mxu0
    %4015 = vmatprep.mubr.bf16.mxu0 0
    %4016 = vmatmul.mubr.bf16.gmra.mxu0 %v3961
    %v4017 = vpop.f32.mrf.mxu0
    %v4018 = vadd.f32 0.0, %v4017
    %v4019 = vpop.f32.mrf.mxu0
    %v4020 = vpop.f32.mrf.mxu0
    %v4021 = vadd.f32 0.0, %v4020
    %v4022 = vpop.f32.mrf.mxu0
    %4023 = vmatprep.mubr.bf16.mxu0 0
    %4024 = vmatmul.mubr.bf16.gmra.mxu0 %v3962
    %v4025 = vpop.f32.mrf.mxu0
    %v4026 = vadd.f32 0.0, %v4025
    %v4027 = vpop.f32.mrf.mxu0
    %v4028 = vpop.f32.mrf.mxu0
    %v4029 = vadd.f32 0.0, %v4028
    %v4030 = vpop.f32.mrf.mxu0
    %4031 = vdwg.mxu0
    %v4032 = vsel %vm959, %v4002, -1e+30
    %v4033 = vsel %vm960, %v4005, -1e+30
    %v4034 = vsel %vm961, %v4010, -1e+30
    %v4035 = vsel %vm962, %v4013, -1e+30
    %v4036 = vsel %vm963, %v4018, -1e+30
    %v4037 = vsel %vm964, %v4021, -1e+30
    %v4038 = vsel %vm965, %v4026, -1e+30
    %v4039 = vsel %vm966, %v4029, -1e+30
    %v4040 = vsel %vm788, %v4032, -inf
    %4041 = vmax.xlane.f32.xlu0 %v4040
    %v4042 = vpop.xlane.xlu0 %4041
    %v4043 = vsel %vm788, %v4033, -inf
    %4044 = vmax.xlane.f32.xlu0 %v4043
    %v4045 = vpop.xlane.xlu0 %4044
    %v4046 = vsel %vm788, %v4034, -inf
    %4047 = vmax.xlane.f32.xlu0 %v4046
    %v4048 = vpop.xlane.xlu0 %4047
    %v4049 = vsel %vm788, %v4035, -inf
    %4050 = vmax.xlane.f32.xlu0 %v4049
    %v4051 = vpop.xlane.xlu0 %4050
    %v4052 = vsel %vm788, %v4036, -inf
    %4053 = vmax.xlane.f32.xlu0 %v4052
    %v4054 = vpop.xlane.xlu0 %4053
    %v4055 = vsel %vm788, %v4037, -inf
    %4056 = vmax.xlane.f32.xlu0 %v4055
    %v4057 = vpop.xlane.xlu0 %4056
    %v4058 = vsel %vm788, %v4038, -inf
    %4059 = vmax.xlane.f32.xlu0 %v4058
    %v4060 = vpop.xlane.xlu0 %4059
    %v4061 = vsel %vm788, %v4039, -inf
    %4062 = vmax.xlane.f32.xlu0 %v4061
    %v4063 = vpop.xlane.xlu0 %4062
    %v4064 = vsub.f32 %v4032, %v4042
    %v4065 = vsub.f32 %v4033, %v4045
    %v4066 = vsub.f32 %v4034, %v4048
    %v4067 = vsub.f32 %v4035, %v4051
    %v4068 = vsub.f32 %v4036, %v4054
    %v4069 = vsub.f32 %v4037, %v4057
    %v4070 = vsub.f32 %v4038, %v4060
    %v4071 = vsub.f32 %v4039, %v4063
    %v4072 = vmul.f32 %v4064, 1.442695
    %v4073 = vpow.pop %v4072
    %v4074 = vmul.f32 %v4065, 1.442695
    %v4075 = vpow.pop %v4074
    %v4076 = vmul.f32 %v4066, 1.442695
    %v4077 = vpow.pop %v4076
    %v4078 = vmul.f32 %v4067, 1.442695
    %v4079 = vpow.pop %v4078
    %v4080 = vmul.f32 %v4068, 1.442695
    %v4081 = vpow.pop %v4080
    %v4082 = vmul.f32 %v4069, 1.442695
    %v4083 = vpow.pop %v4082
    %v4084 = vmul.f32 %v4070, 1.442695
    %v4085 = vpow.pop %v4084
    %v4086 = vmul.f32 %v4071, 1.442695
    %v4087 = vpow.pop %v4086
    %v4088 = vsel %vm788, %v4073, 0.0
    %4089 = vadd.xlane.f32.xlu0 %v4088
    %v4090 = vpop.xlane.xlu0 %4089
    %v4091 = vsel %vm788, %v4075, 0.0
    %4092 = vadd.xlane.f32.xlu0 %v4091
    %v4093 = vpop.xlane.xlu0 %4092
    %v4094 = vsel %vm788, %v4077, 0.0
    %4095 = vadd.xlane.f32.xlu0 %v4094
    %v4096 = vpop.xlane.xlu0 %4095
    %v4097 = vsel %vm788, %v4079, 0.0
    %4098 = vadd.xlane.f32.xlu0 %v4097
    %v4099 = vpop.xlane.xlu0 %4098
    %v4100 = vsel %vm788, %v4081, 0.0
    %4101 = vadd.xlane.f32.xlu0 %v4100
    %v4102 = vpop.xlane.xlu0 %4101
    %v4103 = vsel %vm788, %v4083, 0.0
    %4104 = vadd.xlane.f32.xlu0 %v4103
    %v4105 = vpop.xlane.xlu0 %4104
    %v4106 = vsel %vm788, %v4085, 0.0
    %4107 = vadd.xlane.f32.xlu0 %v4106
    %v4108 = vpop.xlane.xlu0 %4107
    %v4109 = vsel %vm788, %v4087, 0.0
    %4110 = vadd.xlane.f32.xlu0 %v4109
    %v4111 = vpop.xlane.xlu0 %4110
    %v4112 = vrcp.pop %v4090
    %v4113 = vrcp.pop %v4093
    %v4114 = vrcp.pop %v4096
    %v4115 = vrcp.pop %v4099
    %v4116 = vrcp.pop %v4102
    %v4117 = vrcp.pop %v4105
    %v4118 = vrcp.pop %v4108
    %v4119 = vrcp.pop %v4111
    %v4120 = vmul.f32 %v4073, %v4112
    %v4121 = vmul.f32 %v4075, %v4113
    %v4122 = vmul.f32 %v4077, %v4114
    %v4123 = vmul.f32 %v4079, %v4115
    %v4124 = vmul.f32 %v4081, %v4116
    %v4125 = vmul.f32 %v4083, %v4117
    %v4126 = vmul.f32 %v4085, %v4118
    %v4127 = vmul.f32 %v4087, %v4119
    %v4128 = vpack.c.bf16 %v4121, %v4120
    %v4129 = vpack.c.bf16 %v4123, %v4122
    %v4130 = vpack.c.bf16 %v4125, %v4124
    %v4131 = vpack.c.bf16 %v4127, %v4126
    %v4132 = vpack.c.bf16 %v3952, %v3951
    %v4133 = vpack.c.bf16 %v3954, %v3953
    %v4134 = vpack.c.bf16 %v3956, %v3955
    %v4135 = vpack.c.bf16 %v3958, %v3957
    %v4137 = vsel %vm788, %v4128, 0
    %v4140 = vsel %vm788, %v4129, 0
    %v4143 = vsel %vm788, %v4130, 0
    %v4146 = vsel %vm788, %v4131, 0
    %4148 = vmatprep.subr.bf16.mxu0 0
    %4149 = vmatpush1.bf16.msra.mxu0 0
    %4150 = vmatprep.subr.bf16.mxu0 0
    %4151 = vmatpush1.bf16.msra.mxu0 0
    %4152 = vmatprep.subr.bf16.mxu0 0
    %4153 = vmatpush1.bf16.msra.mxu0 0
    %4154 = vmatprep.subr.bf16.mxu0 0
    %4155 = vmatpush1.bf16.msra.mxu0 0
    %4156 = vmatprep.subr.bf16.mxu0 0
    %4157 = vmatpush1.bf16.msra.mxu0 %v4135
    %4158 = vmatprep.subr.bf16.mxu0 0
    %4159 = vmatpush1.bf16.msra.mxu0 %v4134
    %4160 = vmatprep.subr.bf16.mxu0 0
    %4161 = vmatpush1.bf16.msra.mxu0 %v4133
    %4162 = vmatprep.subr.bf16.mxu0 0
    %4163 = vmatpush1.bf16.msra.mxu0 %v4132
    %4164 = vmatprep.subr.bf16.mxu0 0
    %4165 = vmatpush2.bf16.msra.mxu0 0
    %4166 = vmatprep.subr.bf16.mxu0 0
    %4167 = vmatpush2.bf16.msra.mxu0 0
    %4168 = vmatprep.subr.bf16.mxu0 0
    %4169 = vmatpush2.bf16.msra.mxu0 0
    %4170 = vmatprep.subr.bf16.mxu0 0
    %4171 = vmatpush2.bf16.msra.mxu0 0
    %4172 = vmatprep.subr.bf16.mxu0 0
    %4173 = vmatpush2.bf16.msra.mxu0 0
    %4174 = vmatprep.subr.bf16.mxu0 0
    %4175 = vmatpush2.bf16.msra.mxu0 0
    %4176 = vmatprep.subr.bf16.mxu0 0
    %4177 = vmatpush2.bf16.msra.mxu0 0
    %4178 = vmatprep.subr.bf16.mxu0 0
    %4179 = vmatpush2.bf16.msra.mxu0 0
    %4180 = vmatprep.mubr.bf16.mxu0 0
    %4181 = vmatmul.mubr.bf16.gmra.mxu0 %v4137
    %v4182 = vpop.f32.mrf.mxu0
    %v4183 = vadd.f32 0.0, %v4182
    %v4184 = vpop.f32.mrf.mxu0
    %v4185 = vpop.f32.mrf.mxu0
    %v4186 = vadd.f32 0.0, %v4185
    %v4187 = vpop.f32.mrf.mxu0
    %4188 = vmatprep.mubr.bf16.mxu0 0
    %4189 = vmatmul.mubr.bf16.gmra.mxu0 %v4140
    %v4190 = vpop.f32.mrf.mxu0
    %v4191 = vadd.f32 0.0, %v4190
    %v4192 = vpop.f32.mrf.mxu0
    %v4193 = vpop.f32.mrf.mxu0
    %v4194 = vadd.f32 0.0, %v4193
    %v4195 = vpop.f32.mrf.mxu0
    %4196 = vmatprep.mubr.bf16.mxu0 0
    %4197 = vmatmul.mubr.bf16.gmra.mxu0 %v4143
    %v4198 = vpop.f32.mrf.mxu0
    %v4199 = vadd.f32 0.0, %v4198
    %v4200 = vpop.f32.mrf.mxu0
    %v4201 = vpop.f32.mrf.mxu0
    %v4202 = vadd.f32 0.0, %v4201
    %v4203 = vpop.f32.mrf.mxu0
    %4204 = vmatprep.mubr.bf16.mxu0 0
    %4205 = vmatmul.mubr.bf16.gmra.mxu0 %v4146
    %v4206 = vpop.f32.mrf.mxu0
    %v4207 = vadd.f32 0.0, %v4206
    %v4208 = vpop.f32.mrf.mxu0
    %v4209 = vpop.f32.mrf.mxu0
    %v4210 = vadd.f32 0.0, %v4209
    %v4211 = vpop.f32.mrf.mxu0
    %4212 = vdwg.mxu0
    %v4213 = vadd.f32 %v4183, %v4191
    %v4214 = vadd.f32 %v4186, %v4194
    %v4215 = vadd.f32 %v4213, %v4199
    %v4216 = vadd.f32 %v4214, %v4202
    %v4217 = vadd.f32 %v4215, %v4207
    %v4218 = vadd.f32 %v4216, %v4210
    %v4219 = vpack.c.bf16 %v4218, %v4217
    %v4221 = vlaneseq
    %v4222 = vshrl.u32 %v4221, 7
    %v4223 = vsub.s32 0, %v4222
    %v4224 = vrot.slane %v3802, %v4223
    %v4242 = vunpack.c.l.b16 %v3786
    %v4243 = vunpack.c.l.b16 %v3787
    %v4244 = vunpack.c.l.b16 %v3788
    %v4245 = vunpack.c.l.b16 %v3789
    %v4246 = vunpack.c.l.b16 %v3790
    %v4247 = vunpack.c.l.b16 %v3791
    %v4248 = vunpack.c.l.b16 %v3792
    %v4249 = vunpack.c.l.b16 %v3793
    %v4250 = vunpack.c.l.b16 %v3794
    %v4251 = vunpack.c.l.b16 %v3795
    %v4252 = vunpack.c.l.b16 %v3796
    %v4253 = vunpack.c.l.b16 %v3797
    %v4254 = vunpack.c.l.b16 %v3798
    %v4255 = vunpack.c.l.b16 %v3799
    %v4256 = vunpack.c.l.b16 %v3800
    %v4257 = vunpack.c.l.b16 %v3801
    %v4258 = vpack.c.b16 %v4243, %v4242
    %v4259 = vpack.c.b16 %v4245, %v4244
    %v4260 = vpack.c.b16 %v4247, %v4246
    %v4261 = vpack.c.b16 %v4249, %v4248
    %v4262 = vpack.c.b16 %v4251, %v4250
    %v4263 = vpack.c.b16 %v4253, %v4252
    %v4264 = vpack.c.b16 %v4255, %v4254
    %v4265 = vpack.c.b16 %v4257, %v4256
    %4274 = vmatprep.subr.bf16.mxu0 0
    %4275 = vmatpush1.bf16.msra.mxu0 %v4265
    %4276 = vmatprep.subr.bf16.mxu0 0
    %4277 = vmatpush1.bf16.msra.mxu0 %v4264
    %4278 = vmatprep.subr.bf16.mxu0 0
    %4279 = vmatpush1.bf16.msra.mxu0 %v4263
    %4280 = vmatprep.subr.bf16.mxu0 0
    %4281 = vmatpush1.bf16.msra.mxu0 %v4262
    %4282 = vmatprep.subr.bf16.mxu0 0
    %4283 = vmatpush1.bf16.msra.mxu0 %v4261
    %4284 = vmatprep.subr.bf16.mxu0 0
    %4285 = vmatpush1.bf16.msra.mxu0 %v4260
    %4286 = vmatprep.subr.bf16.mxu0 0
    %4287 = vmatpush1.bf16.msra.mxu0 %v4259
    %4288 = vmatprep.subr.bf16.mxu0 0
    %4289 = vmatpush1.bf16.msra.mxu0 %v4258
    %4290 = vmatprep.subr.bf16.mxu0 0
    %4291 = vmatpush2.bf16.msra.mxu0 0
    %4292 = vmatprep.subr.bf16.mxu0 0
    %4293 = vmatpush2.bf16.msra.mxu0 0
    %4294 = vmatprep.subr.bf16.mxu0 0
    %4295 = vmatpush2.bf16.msra.mxu0 0
    %4296 = vmatprep.subr.bf16.mxu0 0
    %4297 = vmatpush2.bf16.msra.mxu0 0
    %4298 = vmatprep.subr.bf16.mxu0 0
    %4299 = vmatpush2.bf16.msra.mxu0 0
    %4300 = vmatprep.subr.bf16.mxu0 0
    %4301 = vmatpush2.bf16.msra.mxu0 0
    %4302 = vmatprep.subr.bf16.mxu0 0
    %4303 = vmatpush2.bf16.msra.mxu0 0
    %4304 = vmatprep.subr.bf16.mxu0 0
    %4305 = vmatpush2.bf16.msra.mxu0 0
    %4306 = vmatprep.mubr.bf16.mxu0 0
    %4307 = vmatmul.mubr.bf16.gmra.mxu0 %v4219
    %v4308 = vpop.f32.mrf.mxu0
    %v4309 = vadd.f32 %v4224, %v4308
    %v4310 = vpop.f32.mrf.mxu0
    %v4311 = vpop.f32.mrf.mxu0
    %v4312 = vadd.f32 %v4224, %v4311
    %v4313 = vpop.f32.mrf.mxu0
    %4314 = vdwg.mxu0
    %v4315 = vadd.f32 %v3775, %v4309
    %v4316 = vadd.f32 %v3778, %v4312
    %v4317 = vsel %vm2427, %v4315, 0.0
    %4318 = vadd.xlane.f32.xlu0 %v4317
    %v4319 = vpop.xlane.xlu0 %4318
    %v4320 = vsel %vm2427, %v4316, 0.0
    %4321 = vadd.xlane.f32.xlu0 %v4320
    %v4322 = vpop.xlane.xlu0 %4321
    %v4323 = vmul.f32 %v4319, %v2913
    %v4324 = vmul.f32 %v4322, %v2913
    %v4325 = vsub.f32 %v4315, %v4323
    %v4326 = vsub.f32 %v4316, %v4324
    %v4327 = vmul.f32 %v4325, %v4325
    %v4328 = vmul.f32 %v4326, %v4326
    %v4329 = vsel %vm2427, %v4327, 0.0
    %4330 = vadd.xlane.f32.xlu0 %v4329
    %v4331 = vpop.xlane.xlu0 %4330
    %v4332 = vsel %vm2427, %v4328, 0.0
    %4333 = vadd.xlane.f32.xlu0 %v4332
    %v4334 = vpop.xlane.xlu0 %4333
    %v4335 = vmul.f32 %v4331, %v2913
    %v4336 = vmul.f32 %v4334, %v2913
    %v4337 = vadd.f32 %v4335, 1e-05
    %v4338 = vadd.f32 %v4336, 1e-05
    %v4339 = vrsqrt.pop %v4337
    %v4340 = vrsqrt.pop %v4338
    %v4341 = vmul.f32 %v4325, %v4339
    %v4342 = vmul.f32 %v4326, %v4340
    %v4344 = vlaneseq
    %v4345 = vshrl.u32 %v4344, 7
    %v4346 = vsub.s32 0, %v4345
    %v4347 = vrot.slane %v3803, %v4346
    %v4349 = vmul.f32 %v4341, %v4347
    %v4350 = vmul.f32 %v4342, %v4347
    %v4352 = vlaneseq
    %v4353 = vshrl.u32 %v4352, 7
    %v4354 = vsub.s32 0, %v4353
    %v4355 = vrot.slane %v3804, %v4354
    %v4357 = vadd.f32 %v4349, %v4355
    %v4358 = vadd.f32 %v4350, %v4355
    %v4359 = vpack.c.bf16 %v4358, %v4357
    %v4361 = vlaneseq
    %v4362 = vshrl.u32 %v4361, 7
    %v4363 = vsub.s32 0, %v4362
    %v4364 = vrot.slane %v3807, %v4363
    %v4368 = vunpack.c.l.b16 %v3805
    %v4369 = vunpack.c.l.b16 %v3806
    %v4370 = vpack.c.b16 %v4369, %v4368
    %v4373 = vsel %vm2427, %v4359, 0
    %4375 = vmatprep.subr.bf16.mxu0 0
    %4376 = vmatpush1.bf16.msra.mxu0 0
    %4377 = vmatprep.subr.bf16.mxu0 0
    %4378 = vmatpush1.bf16.msra.mxu0 0
    %4379 = vmatprep.subr.bf16.mxu0 0
    %4380 = vmatpush1.bf16.msra.mxu0 0
    %4381 = vmatprep.subr.bf16.mxu0 0
    %4382 = vmatpush1.bf16.msra.mxu0 0
    %4383 = vmatprep.subr.bf16.mxu0 0
    %4384 = vmatpush1.bf16.msra.mxu0 0
    %4385 = vmatprep.subr.bf16.mxu0 0
    %4386 = vmatpush1.bf16.msra.mxu0 0
    %4387 = vmatprep.subr.bf16.mxu0 0
    %4388 = vmatpush1.bf16.msra.mxu0 0
    %4389 = vmatprep.subr.bf16.mxu0 0
    %4390 = vmatpush1.bf16.msra.mxu0 %v4370
    %4391 = vmatprep.subr.bf16.mxu0 0
    %4392 = vmatpush2.bf16.msra.mxu0 0
    %4393 = vmatprep.subr.bf16.mxu0 0
    %4394 = vmatpush2.bf16.msra.mxu0 0
    %4395 = vmatprep.subr.bf16.mxu0 0
    %4396 = vmatpush2.bf16.msra.mxu0 0
    %4397 = vmatprep.subr.bf16.mxu0 0
    %4398 = vmatpush2.bf16.msra.mxu0 0
    %4399 = vmatprep.subr.bf16.mxu0 0
    %4400 = vmatpush2.bf16.msra.mxu0 0
    %4401 = vmatprep.subr.bf16.mxu0 0
    %4402 = vmatpush2.bf16.msra.mxu0 0
    %4403 = vmatprep.subr.bf16.mxu0 0
    %4404 = vmatpush2.bf16.msra.mxu0 0
    %4405 = vmatprep.subr.bf16.mxu0 0
    %4406 = vmatpush2.bf16.msra.mxu0 0
    %4407 = vmatprep.mubr.bf16.mxu0 0
    %4408 = vmatmul.mubr.bf16.gmra.mxu0 %v4373
    %v4409 = vpop.f32.mrf.mxu0
    %v4410 = vadd.f32 %v4364, %v4409
    %v4411 = vpop.f32.mrf.mxu0
    %v4412 = vpop.f32.mrf.mxu0
    %v4413 = vadd.f32 %v4364, %v4412
    %v4414 = vpop.f32.mrf.mxu0
    %4415 = vdwg.mxu0
    %v4416 = vmul.f32 %v4410, 0.5
    %v4417 = vmul.f32 %v4413, 0.5
    %v4418 = vmul.f32 %v4410, 0.70710677
    %v4419 = vmul.f32 %v4413, 0.70710677
    %v4420 = vmax.f32 %v4418, -4.0
    %v4421 = vmax.f32 %v4419, -4.0
    %v4422 = vmin.f32 %v4420, 4.0
    %v4423 = vmin.f32 %v4421, 4.0
    %v4424 = vmul.f32 %v4422, %v4422
    %v4425 = vmul.f32 %v4423, %v4423
    %v4426 = vmul.f32 %v4424, -2.7261424e-10
    %v4427 = vmul.f32 %v4425, -2.7261424e-10
    %v4428 = vadd.f32 %v4426, 2.7706815e-08
    %v4429 = vadd.f32 %v4427, 2.7706815e-08
    %v4430 = vmul.f32 %v4428, %v4424
    %v4431 = vmul.f32 %v4429, %v4425
    %v4432 = vadd.f32 %v4430, -2.101024e-06
    %v4433 = vadd.f32 %v4431, -2.101024e-06
    %v4434 = vmul.f32 %v4432, %v4424
    %v4435 = vmul.f32 %v4433, %v4425
    %v4436 = vadd.f32 %v4434, -5.6925062e-05
    %v4437 = vadd.f32 %v4435, -5.6925062e-05
    %v4438 = vmul.f32 %v4436, %v4424
    %v4439 = vmul.f32 %v4437, %v4425
    %v4440 = vadd.f32 %v4438, -0.00073499064
    %v4441 = vadd.f32 %v4439, -0.00073499064
    %v4442 = vmul.f32 %v4440, %v4424
    %v4443 = vmul.f32 %v4441, %v4425
    %v4444 = vadd.f32 %v4442, -0.0029546
    %v4445 = vadd.f32 %v4443, -0.0029546
    %v4446 = vmul.f32 %v4444, %v4424
    %v4447 = vmul.f32 %v4445, %v4425
    %v4448 = vadd.f32 %v4446, -0.016096033
    %v4449 = vadd.f32 %v4447, -0.016096033
    %v4450 = vmul.f32 %v4424, -1.45660715e-05
    %v4451 = vmul.f32 %v4425, -1.45660715e-05
    %v4452 = vadd.f32 %v4450, -0.00021337405
    %v4453 = vadd.f32 %v4451, -0.00021337405
    %v4454 = vmul.f32 %v4452, %v4424
    %v4455 = vmul.f32 %v4453, %v4425
    %v4456 = vadd.f32 %v4454, -0.001682827
    %v4457 = vadd.f32 %v4455, -0.001682827
    %v4458 = vmul.f32 %v4456, %v4424
    %v4459 = vmul.f32 %v4457, %v4425
    %v4460 = vadd.f32 %v4458, -0.0073733293
    %v4461 = vadd.f32 %v4459, -0.0073733293
    %v4462 = vmul.f32 %v4460, %v4424
    %v4463 = vmul.f32 %v4461, %v4425
    %v4464 = vadd.f32 %v4462, -0.014264739
    %v4465 = vadd.f32 %v4463, -0.014264739
    %v4466 = vmul.f32 %v4422, %v4448
    %v4467 = vmul.f32 %v4423, %v4449
    %v4468 = vrcp.pop %v4464
    %v4469 = vmul.f32 %v4466, %v4468
    %v4470 = vrcp.pop %v4465
    %v4471 = vmul.f32 %v4467, %v4470
    %v4472 = vadd.f32 %v4469, 1.0
    %v4473 = vadd.f32 %v4471, 1.0
    %v4474 = vmul.f32 %v4416, %v4472
    %v4475 = vmul.f32 %v4417, %v4473
    %v4476 = vpack.c.bf16 %v4475, %v4474
    %v4478 = vlaneseq
    %v4479 = vshrl.u32 %v4478, 7
    %v4480 = vsub.s32 0, %v4479
    %v4481 = vrot.slane %v3812, %v4480
    %v4487 = vunpack.c.l.b16 %v3808
    %v4488 = vunpack.c.l.b16 %v3809
    %v4489 = vunpack.c.l.b16 %v3810
    %v4490 = vunpack.c.l.b16 %v3811
    %v4491 = vpack.c.b16 %v4488, %v4487
    %v4492 = vpack.c.b16 %v4490, %v4489
    %v4496 = vsel %vm1522, %v4476, 0
    %4498 = vmatprep.subr.bf16.mxu0 0
    %4499 = vmatpush1.bf16.msra.mxu0 0
    %4500 = vmatprep.subr.bf16.mxu0 0
    %4501 = vmatpush1.bf16.msra.mxu0 0
    %4502 = vmatprep.subr.bf16.mxu0 0
    %4503 = vmatpush1.bf16.msra.mxu0 0
    %4504 = vmatprep.subr.bf16.mxu0 0
    %4505 = vmatpush1.bf16.msra.mxu0 0
    %4506 = vmatprep.subr.bf16.mxu0 0
    %4507 = vmatpush1.bf16.msra.mxu0 0
    %4508 = vmatprep.subr.bf16.mxu0 0
    %4509 = vmatpush1.bf16.msra.mxu0 0
    %4510 = vmatprep.subr.bf16.mxu0 0
    %4511 = vmatpush1.bf16.msra.mxu0 %v4492
    %4512 = vmatprep.subr.bf16.mxu0 0
    %4513 = vmatpush1.bf16.msra.mxu0 %v4491
    %4514 = vmatprep.subr.bf16.mxu0 0
    %4515 = vmatpush2.bf16.msra.mxu0 0
    %4516 = vmatprep.subr.bf16.mxu0 0
    %4517 = vmatpush2.bf16.msra.mxu0 0
    %4518 = vmatprep.subr.bf16.mxu0 0
    %4519 = vmatpush2.bf16.msra.mxu0 0
    %4520 = vmatprep.subr.bf16.mxu0 0
    %4521 = vmatpush2.bf16.msra.mxu0 0
    %4522 = vmatprep.subr.bf16.mxu0 0
    %4523 = vmatpush2.bf16.msra.mxu0 0
    %4524 = vmatprep.subr.bf16.mxu0 0
    %4525 = vmatpush2.bf16.msra.mxu0 0
    %4526 = vmatprep.subr.bf16.mxu0 0
    %4527 = vmatpush2.bf16.msra.mxu0 0
    %4528 = vmatprep.subr.bf16.mxu0 0
    %4529 = vmatpush2.bf16.msra.mxu0 0
    %4530 = vmatprep.mubr.bf16.mxu0 0
    %4531 = vmatmul.mubr.bf16.gmra.mxu0 %v4496
    %v4532 = vpop.f32.mrf.mxu0
    %v4533 = vadd.f32 %v4481, %v4532
    %v4534 = vpop.f32.mrf.mxu0
    %v4535 = vpop.f32.mrf.mxu0
    %v4536 = vadd.f32 %v4481, %v4535
    %v4537 = vpop.f32.mrf.mxu0
    %4538 = vdwg.mxu0
    %v4539 = vld [vmem:[%s107] sm:$0xff]
    %v4540 = vld [vmem:[%s107 + $0x8] sm:$0xf]
    %v4541 = vld [vmem:[%s107 + $0xc] sm:$0xff]
    %v4542 = vld [vmem:[%s107 + $0x14] sm:$0xf]
    %v4543 = vld [vmem:[%s107 + $0x18] sm:$0xff]
    %v4544 = vld [vmem:[%s107 + $0x20] sm:$0xf]
    %v4545 = vld [vmem:[%s107 + $0x24] sm:$0xff]
    %v4546 = vld [vmem:[%s107 + $0x2c] sm:$0xf]
    %v4547 = vld [vmem:[%s109] sm:$0x7]
    %v4548 = vld [vmem:[%s111] sm:$0xf]
    %v4549 = vld [vmem:[%s111 + $0x4] sm:$0xf]
    %v4550 = vld [vmem:[%s111 + $0x8] sm:$0xf]
    %v4551 = vld [vmem:[%s111 + $0xc] sm:$0xf]
    %v4552 = vld [vmem:[%s111 + $0x10] sm:$0xf]
    %v4553 = vld [vmem:[%s111 + $0x14] sm:$0xf]
    %v4554 = vld [vmem:[%s111 + $0x18] sm:$0xf]
    %v4555 = vld [vmem:[%s111 + $0x1c] sm:$0xf]
    %v4556 = vld [vmem:[%s111 + $0x20] sm:$0xf]
    %v4557 = vld [vmem:[%s111 + $0x24] sm:$0xf]
    %v4558 = vld [vmem:[%s111 + $0x28] sm:$0xf]
    %v4559 = vld [vmem:[%s111 + $0x2c] sm:$0xf]
    %v4560 = vld [vmem:[%s111 + $0x30] sm:$0xf]
    %v4561 = vld [vmem:[%s111 + $0x34] sm:$0xf]
    %v4562 = vld [vmem:[%s111 + $0x38] sm:$0xf]
    %v4563 = vld [vmem:[%s111 + $0x3c] sm:$0xf]
    %v4564 = vld [vmem:[#allocation34] sm:$0x1]
    %v4565 = vld [vmem:[#allocation35] sm:$0x1]
    %v4566 = vld [vmem:[#allocation37] sm:$0x1]
    %v4567 = vld [vmem:[%s119] sm:$0xf]
    %v4568 = vld [vmem:[%s119 + $0x4] sm:$0xf]
    %v4569 = vld [vmem:[%s119 + $0x8] sm:$0xf]
    %v4570 = vld [vmem:[%s119 + $0xc] sm:$0xf]
    %v4571 = vld [vmem:[#allocation38] sm:$0x1]
    %v4572 = vld [vmem:[%s123] sm:$0xf]
    %v4573 = vld [vmem:[%s123 + $0x4] sm:$0xf]
    %v4574 = vld [vmem:[%s123 + $0x8] sm:$0xf]
    %v4575 = vld [vmem:[%s123 + $0xc] sm:$0xf]
    %v4576 = vld [vmem:[#allocation40] sm:$0x1]
    %v4577 = vpack.c.bf16 %v4536, %v4533
    %v4579 = vlaneseq
    %v4580 = vshrl.u32 %v4579, 7
    %v4581 = vsub.s32 0, %v4580
    %v4582 = vrot.slane %v4547, %v4581
    %v4583 = vlaneseq
    %v4584 = vshrl.u32 %v4583, 7
    %v4585 = vsub.s32 1, %v4584
    %v4586 = vrot.slane %v4547, %v4585
    %v4587 = vlaneseq
    %v4588 = vshrl.u32 %v4587, 7
    %v4589 = vsub.s32 2, %v4588
    %v4590 = vrot.slane %v4547, %v4589
    %v4602 = vunpack.c.l.b16 %v4539
    %v4603 = vunpack.c.h.b16 %v4539
    %v4604 = vunpack.c.l.b16 %v4540
    %v4605 = vunpack.c.l.b16 %v4541
    %v4606 = vunpack.c.h.b16 %v4541
    %v4607 = vunpack.c.l.b16 %v4542
    %v4608 = vunpack.c.l.b16 %v4543
    %v4609 = vunpack.c.h.b16 %v4543
    %v4610 = vunpack.c.l.b16 %v4544
    %v4611 = vunpack.c.l.b16 %v4545
    %v4612 = vunpack.c.h.b16 %v4545
    %v4613 = vunpack.c.l.b16 %v4546
    %v4614 = vpack.c.b16 %v4605, %v4602
    %v4615 = vpack.c.b16 %v4606, %v4603
    %v4616 = vpack.c.b16 %v4607, %v4604
    %v4617 = vpack.c.b16 %v4611, %v4608
    %v4618 = vpack.c.b16 %v4612, %v4609
    %v4619 = vpack.c.b16 %v4613, %v4610
    %v4627 = vsel %vm1522, %v4577, 0
    %4629 = vmatprep.subr.bf16.mxu0 0
    %4630 = vmatpush1.bf16.msra.mxu0 0
    %4631 = vmatprep.subr.bf16.mxu0 0
    %4632 = vmatpush1.bf16.msra.mxu0 0
    %4633 = vmatprep.subr.bf16.mxu0 0
    %4634 = vmatpush1.bf16.msra.mxu0 0
    %4635 = vmatprep.subr.bf16.mxu0 0
    %4636 = vmatpush1.bf16.msra.mxu0 0
    %4637 = vmatprep.subr.bf16.mxu0 0
    %4638 = vmatpush1.bf16.msra.mxu0 0
    %4639 = vmatprep.subr.bf16.mxu0 0
    %4640 = vmatpush1.bf16.msra.mxu0 0
    %4641 = vmatprep.subr.bf16.mxu0 %v4618
    %4642 = vmatpush1.bf16.msra.mxu0 %v4617
    %4643 = vmatprep.subr.bf16.mxu0 %v4615
    %4644 = vmatpush1.bf16.msra.mxu0 %v4614
    %4645 = vmatprep.subr.bf16.mxu0 0
    %4646 = vmatpush2.bf16.msra.mxu0 0
    %4647 = vmatprep.subr.bf16.mxu0 0
    %4648 = vmatpush2.bf16.msra.mxu0 0
    %4649 = vmatprep.subr.bf16.mxu0 0
    %4650 = vmatpush2.bf16.msra.mxu0 0
    %4651 = vmatprep.subr.bf16.mxu0 0
    %4652 = vmatpush2.bf16.msra.mxu0 0
    %4653 = vmatprep.subr.bf16.mxu0 0
    %4654 = vmatpush2.bf16.msra.mxu0 0
    %4655 = vmatprep.subr.bf16.mxu0 0
    %4656 = vmatpush2.bf16.msra.mxu0 0
    %4657 = vmatprep.subr.bf16.mxu0 0
    %4658 = vmatpush2.bf16.msra.mxu0 0
    %4659 = vmatprep.subr.bf16.mxu0 0
    %4660 = vmatpush2.bf16.msra.mxu0 0
    %4661 = vmatprep.mubr.bf16.mxu0 0
    %4662 = vmatmul.mubr.bf16.gmra.mxu0 %v4627
    %v4663 = vpop.f32.mrf.mxu0
    %v4664 = vadd.f32 %v4582, %v4663
    %v4665 = vpop.f32.mrf.mxu0
    %v4666 = vadd.f32 %v4586, %v4665
    %v4667 = vpop.f32.mrf.mxu0
    %v4668 = vadd.f32 %v4582, %v4667
    %v4669 = vpop.f32.mrf.mxu0
    %v4670 = vadd.f32 %v4586, %v4669
    %4671 = vdwg.mxu0
    %4672 = vmatprep.subr.bf16.mxu0 0
    %4673 = vmatpush1.bf16.msra.mxu0 0
    %4674 = vmatprep.subr.bf16.mxu0 0
    %4675 = vmatpush1.bf16.msra.mxu0 0
    %4676 = vmatprep.subr.bf16.mxu0 0
    %4677 = vmatpush1.bf16.msra.mxu0 0
    %4678 = vmatprep.subr.bf16.mxu0 0
    %4679 = vmatpush1.bf16.msra.mxu0 0
    %4680 = vmatprep.subr.bf16.mxu0 0
    %4681 = vmatpush1.bf16.msra.mxu0 0
    %4682 = vmatprep.subr.bf16.mxu0 0
    %4683 = vmatpush1.bf16.msra.mxu0 0
    %4684 = vmatprep.subr.bf16.mxu0 0
    %4685 = vmatpush1.bf16.msra.mxu0 %v4619
    %4686 = vmatprep.subr.bf16.mxu0 0
    %4687 = vmatpush1.bf16.msra.mxu0 %v4616
    %4688 = vmatprep.subr.bf16.mxu0 0
    %4689 = vmatpush2.bf16.msra.mxu0 0
    %4690 = vmatprep.subr.bf16.mxu0 0
    %4691 = vmatpush2.bf16.msra.mxu0 0
    %4692 = vmatprep.subr.bf16.mxu0 0
    %4693 = vmatpush2.bf16.msra.mxu0 0
    %4694 = vmatprep.subr.bf16.mxu0 0
    %4695 = vmatpush2.bf16.msra.mxu0 0
    %4696 = vmatprep.subr.bf16.mxu0 0
    %4697 = vmatpush2.bf16.msra.mxu0 0
    %4698 = vmatprep.subr.bf16.mxu0 0
    %4699 = vmatpush2.bf16.msra.mxu0 0
    %4700 = vmatprep.subr.bf16.mxu0 0
    %4701 = vmatpush2.bf16.msra.mxu0 0
    %4702 = vmatprep.subr.bf16.mxu0 0
    %4703 = vmatpush2.bf16.msra.mxu0 0
    %4704 = vmatprep.mubr.bf16.mxu0 0
    %4705 = vmatmul.mubr.bf16.gmra.mxu0 %v4627
    %v4706 = vpop.f32.mrf.mxu0
    %v4707 = vadd.f32 %v4590, %v4706
    %v4708 = vpop.f32.mrf.mxu0
    %v4709 = vpop.f32.mrf.mxu0
    %v4710 = vadd.f32 %v4590, %v4709
    %v4711 = vpop.f32.mrf.mxu0
    %4712 = vdwg.mxu0
    %v4713 = vmul.f32 %v4664, 0.35355338
    %v4714 = vmul.f32 %v4668, 0.35355338
    %v4715 = vsel %vm1744, %v4713, 0.0
    %v4716 = vsel %vm1744, %v4714, 0.0
    %v4717 = vsel %vm1748, %v4713, 0.0
    %v4718 = vsel %vm1748, %v4714, 0.0
    %v4719 = vsel %vm1752, %v4713, 0.0
    %v4720 = vsel %vm1752, %v4714, 0.0
    %v4721 = vsel %vm1756, %v4713, 0.0
    %v4722 = vsel %vm1756, %v4714, 0.0
    %v4723 = vsel %vm1744, %v4666, 0.0
    %v4724 = vsel %vm1744, %v4670, 0.0
    %v4725 = vsel %vm1748, %v4666, 0.0
    %v4726 = vsel %vm1748, %v4670, 0.0
    %v4727 = vsel %vm1752, %v4666, 0.0
    %v4728 = vsel %vm1752, %v4670, 0.0
    %v4729 = vsel %vm1756, %v4666, 0.0
    %v4730 = vsel %vm1756, %v4670, 0.0
    %v4731 = vsel %vm1744, %v4707, 0.0
    %v4732 = vsel %vm1744, %v4710, 0.0
    %v4733 = vsel %vm1748, %v4707, 0.0
    %v4734 = vsel %vm1748, %v4710, 0.0
    %v4735 = vsel %vm1752, %v4707, 0.0
    %v4736 = vsel %vm1752, %v4710, 0.0
    %v4737 = vsel %vm1756, %v4707, 0.0
    %v4738 = vsel %vm1756, %v4710, 0.0
    %v4739 = vpack.c.bf16 %v4716, %v4715
    %v4740 = vpack.c.bf16 %v4718, %v4717
    %v4741 = vpack.c.bf16 %v4720, %v4719
    %v4742 = vpack.c.bf16 %v4722, %v4721
    %v4743 = vpack.c.bf16 %v4724, %v4723
    %v4744 = vpack.c.bf16 %v4726, %v4725
    %v4745 = vpack.c.bf16 %v4728, %v4727
    %v4746 = vpack.c.bf16 %v4730, %v4729
    %4747 = vmatprep.subr.bf16.mxu0 0
    %4748 = vmatpush1.bf16.xpose.msra.mxu0 0
    %4749 = vmatprep.subr.bf16.mxu0 0
    %4750 = vmatpush1.bf16.xpose.msra.mxu0 0
    %4751 = vmatprep.subr.bf16.mxu0 0
    %4752 = vmatpush1.bf16.xpose.msra.mxu0 0
    %4753 = vmatprep.subr.bf16.mxu0 0
    %4754 = vmatpush1.bf16.xpose.msra.mxu0 0
    %4755 = vmatprep.subr.bf16.mxu0 0
    %4756 = vmatpush1.bf16.xpose.msra.mxu0 %v4746
    %4757 = vmatprep.subr.bf16.mxu0 0
    %4758 = vmatpush1.bf16.xpose.msra.mxu0 %v4745
    %4759 = vmatprep.subr.bf16.mxu0 0
    %4760 = vmatpush1.bf16.xpose.msra.mxu0 %v4744
    %4761 = vmatprep.subr.bf16.mxu0 0
    %4762 = vmatpush1.bf16.xpose.msra.mxu0 %v4743
    %4763 = vmatprep.subr.bf16.mxu0 0
    %4764 = vmatpush2.bf16.xpose.msra.mxu0 0
    %4765 = vmatprep.subr.bf16.mxu0 0
    %4766 = vmatpush2.bf16.xpose.msra.mxu0 0
    %4767 = vmatprep.subr.bf16.mxu0 0
    %4768 = vmatpush2.bf16.xpose.msra.mxu0 0
    %4769 = vmatprep.subr.bf16.mxu0 0
    %4770 = vmatpush2.bf16.xpose.msra.mxu0 0
    %4771 = vmatprep.subr.bf16.mxu0 0
    %4772 = vmatpush2.bf16.xpose.msra.mxu0 0
    %4773 = vmatprep.subr.bf16.mxu0 0
    %4774 = vmatpush2.bf16.xpose.msra.mxu0 0
    %4775 = vmatprep.subr.bf16.mxu0 0
    %4776 = vmatpush2.bf16.xpose.msra.mxu0 0
    %4777 = vmatprep.subr.bf16.mxu0 0
    %4778 = vmatpush2.bf16.xpose.msra.mxu0 0
    %4779 = vmatprep.mubr.bf16.mxu0 0
    %4780 = vmatmul.mubr.bf16.gmra.mxu0 %v4739
    %v4781 = vpop.f32.mrf.mxu0
    %v4782 = vadd.f32 0.0, %v4781
    %v4783 = vpop.f32.mrf.mxu0
    %v4784 = vpop.f32.mrf.mxu0
    %v4785 = vadd.f32 0.0, %v4784
    %v4786 = vpop.f32.mrf.mxu0
    %4787 = vmatprep.mubr.bf16.mxu0 0
    %4788 = vmatmul.mubr.bf16.gmra.mxu0 %v4740
    %v4789 = vpop.f32.mrf.mxu0
    %v4790 = vadd.f32 0.0, %v4789
    %v4791 = vpop.f32.mrf.mxu0
    %v4792 = vpop.f32.mrf.mxu0
    %v4793 = vadd.f32 0.0, %v4792
    %v4794 = vpop.f32.mrf.mxu0
    %4795 = vmatprep.mubr.bf16.mxu0 0
    %4796 = vmatmul.mubr.bf16.gmra.mxu0 %v4741
    %v4797 = vpop.f32.mrf.mxu0
    %v4798 = vadd.f32 0.0, %v4797
    %v4799 = vpop.f32.mrf.mxu0
    %v4800 = vpop.f32.mrf.mxu0
    %v4801 = vadd.f32 0.0, %v4800
    %v4802 = vpop.f32.mrf.mxu0
    %4803 = vmatprep.mubr.bf16.mxu0 0
    %4804 = vmatmul.mubr.bf16.gmra.mxu0 %v4742
    %v4805 = vpop.f32.mrf.mxu0
    %v4806 = vadd.f32 0.0, %v4805
    %v4807 = vpop.f32.mrf.mxu0
    %v4808 = vpop.f32.mrf.mxu0
    %v4809 = vadd.f32 0.0, %v4808
    %v4810 = vpop.f32.mrf.mxu0
    %4811 = vdwg.mxu0
    %v4812 = vsel %vm959, %v4782, -1e+30
    %v4813 = vsel %vm960, %v4785, -1e+30
    %v4814 = vsel %vm961, %v4790, -1e+30
    %v4815 = vsel %vm962, %v4793, -1e+30
    %v4816 = vsel %vm963, %v4798, -1e+30
    %v4817 = vsel %vm964, %v4801, -1e+30
    %v4818 = vsel %vm965, %v4806, -1e+30
    %v4819 = vsel %vm966, %v4809, -1e+30
    %v4820 = vsel %vm788, %v4812, -inf
    %4821 = vmax.xlane.f32.xlu0 %v4820
    %v4822 = vpop.xlane.xlu0 %4821
    %v4823 = vsel %vm788, %v4813, -inf
    %4824 = vmax.xlane.f32.xlu0 %v4823
    %v4825 = vpop.xlane.xlu0 %4824
    %v4826 = vsel %vm788, %v4814, -inf
    %4827 = vmax.xlane.f32.xlu0 %v4826
    %v4828 = vpop.xlane.xlu0 %4827
    %v4829 = vsel %vm788, %v4815, -inf
    %4830 = vmax.xlane.f32.xlu0 %v4829
    %v4831 = vpop.xlane.xlu0 %4830
    %v4832 = vsel %vm788, %v4816, -inf
    %4833 = vmax.xlane.f32.xlu0 %v4832
    %v4834 = vpop.xlane.xlu0 %4833
    %v4835 = vsel %vm788, %v4817, -inf
    %4836 = vmax.xlane.f32.xlu0 %v4835
    %v4837 = vpop.xlane.xlu0 %4836
    %v4838 = vsel %vm788, %v4818, -inf
    %4839 = vmax.xlane.f32.xlu0 %v4838
    %v4840 = vpop.xlane.xlu0 %4839
    %v4841 = vsel %vm788, %v4819, -inf
    %4842 = vmax.xlane.f32.xlu0 %v4841
    %v4843 = vpop.xlane.xlu0 %4842
    %v4844 = vsub.f32 %v4812, %v4822
    %v4845 = vsub.f32 %v4813, %v4825
    %v4846 = vsub.f32 %v4814, %v4828
    %v4847 = vsub.f32 %v4815, %v4831
    %v4848 = vsub.f32 %v4816, %v4834
    %v4849 = vsub.f32 %v4817, %v4837
    %v4850 = vsub.f32 %v4818, %v4840
    %v4851 = vsub.f32 %v4819, %v4843
    %v4852 = vmul.f32 %v4844, 1.442695
    %v4853 = vpow.pop %v4852
    %v4854 = vmul.f32 %v4845, 1.442695
    %v4855 = vpow.pop %v4854
    %v4856 = vmul.f32 %v4846, 1.442695
    %v4857 = vpow.pop %v4856
    %v4858 = vmul.f32 %v4847, 1.442695
    %v4859 = vpow.pop %v4858
    %v4860 = vmul.f32 %v4848, 1.442695
    %v4861 = vpow.pop %v4860
    %v4862 = vmul.f32 %v4849, 1.442695
    %v4863 = vpow.pop %v4862
    %v4864 = vmul.f32 %v4850, 1.442695
    %v4865 = vpow.pop %v4864
    %v4866 = vmul.f32 %v4851, 1.442695
    %v4867 = vpow.pop %v4866
    %v4868 = vsel %vm788, %v4853, 0.0
    %4869 = vadd.xlane.f32.xlu0 %v4868
    %v4870 = vpop.xlane.xlu0 %4869
    %v4871 = vsel %vm788, %v4855, 0.0
    %4872 = vadd.xlane.f32.xlu0 %v4871
    %v4873 = vpop.xlane.xlu0 %4872
    %v4874 = vsel %vm788, %v4857, 0.0
    %4875 = vadd.xlane.f32.xlu0 %v4874
    %v4876 = vpop.xlane.xlu0 %4875
    %v4877 = vsel %vm788, %v4859, 0.0
    %4878 = vadd.xlane.f32.xlu0 %v4877
    %v4879 = vpop.xlane.xlu0 %4878
    %v4880 = vsel %vm788, %v4861, 0.0
    %4881 = vadd.xlane.f32.xlu0 %v4880
    %v4882 = vpop.xlane.xlu0 %4881
    %v4883 = vsel %vm788, %v4863, 0.0
    %4884 = vadd.xlane.f32.xlu0 %v4883
    %v4885 = vpop.xlane.xlu0 %4884
    %v4886 = vsel %vm788, %v4865, 0.0
    %4887 = vadd.xlane.f32.xlu0 %v4886
    %v4888 = vpop.xlane.xlu0 %4887
    %v4889 = vsel %vm788, %v4867, 0.0
    %4890 = vadd.xlane.f32.xlu0 %v4889
    %v4891 = vpop.xlane.xlu0 %4890
    %v4892 = vrcp.pop %v4870
    %v4893 = vrcp.pop %v4873
    %v4894 = vrcp.pop %v4876
    %v4895 = vrcp.pop %v4879
    %v4896 = vrcp.pop %v4882
    %v4897 = vrcp.pop %v4885
    %v4898 = vrcp.pop %v4888
    %v4899 = vrcp.pop %v4891
    %v4900 = vmul.f32 %v4853, %v4892
    %v4901 = vmul.f32 %v4855, %v4893
    %v4902 = vmul.f32 %v4857, %v4894
    %v4903 = vmul.f32 %v4859, %v4895
    %v4904 = vmul.f32 %v4861, %v4896
    %v4905 = vmul.f32 %v4863, %v4897
    %v4906 = vmul.f32 %v4865, %v4898
    %v4907 = vmul.f32 %v4867, %v4899
    %v4908 = vpack.c.bf16 %v4901, %v4900
    %v4909 = vpack.c.bf16 %v4903, %v4902
    %v4910 = vpack.c.bf16 %v4905, %v4904
    %v4911 = vpack.c.bf16 %v4907, %v4906
    %v4912 = vpack.c.bf16 %v4732, %v4731
    %v4913 = vpack.c.bf16 %v4734, %v4733
    %v4914 = vpack.c.bf16 %v4736, %v4735
    %v4915 = vpack.c.bf16 %v4738, %v4737
    %v4917 = vsel %vm788, %v4908, 0
    %v4920 = vsel %vm788, %v4909, 0
    %v4923 = vsel %vm788, %v4910, 0
    %v4926 = vsel %vm788, %v4911, 0
    %4928 = vmatprep.subr.bf16.mxu0 0
    %4929 = vmatpush1.bf16.msra.mxu0 0
    %4930 = vmatprep.subr.bf16.mxu0 0
    %4931 = vmatpush1.bf16.msra.mxu0 0
    %4932 = vmatprep.subr.bf16.mxu0 0
    %4933 = vmatpush1.bf16.msra.mxu0 0
    %4934 = vmatprep.subr.bf16.mxu0 0
    %4935 = vmatpush1.bf16.msra.mxu0 0
    %4936 = vmatprep.subr.bf16.mxu0 0
    %4937 = vmatpush1.bf16.msra.mxu0 %v4915
    %4938 = vmatprep.subr.bf16.mxu0 0
    %4939 = vmatpush1.bf16.msra.mxu0 %v4914
    %4940 = vmatprep.subr.bf16.mxu0 0
    %4941 = vmatpush1.bf16.msra.mxu0 %v4913
    %4942 = vmatprep.subr.bf16.mxu0 0
    %4943 = vmatpush1.bf16.msra.mxu0 %v4912
    %4944 = vmatprep.subr.bf16.mxu0 0
    %4945 = vmatpush2.bf16.msra.mxu0 0
    %4946 = vmatprep.subr.bf16.mxu0 0
    %4947 = vmatpush2.bf16.msra.mxu0 0
    %4948 = vmatprep.subr.bf16.mxu0 0
    %4949 = vmatpush2.bf16.msra.mxu0 0
    %4950 = vmatprep.subr.bf16.mxu0 0
    %4951 = vmatpush2.bf16.msra.mxu0 0
    %4952 = vmatprep.subr.bf16.mxu0 0
    %4953 = vmatpush2.bf16.msra.mxu0 0
    %4954 = vmatprep.subr.bf16.mxu0 0
    %4955 = vmatpush2.bf16.msra.mxu0 0
    %4956 = vmatprep.subr.bf16.mxu0 0
    %4957 = vmatpush2.bf16.msra.mxu0 0
    %4958 = vmatprep.subr.bf16.mxu0 0
    %4959 = vmatpush2.bf16.msra.mxu0 0
    %4960 = vmatprep.mubr.bf16.mxu0 0
    %4961 = vmatmul.mubr.bf16.gmra.mxu0 %v4917
    %v4962 = vpop.f32.mrf.mxu0
    %v4963 = vadd.f32 0.0, %v4962
    %v4964 = vpop.f32.mrf.mxu0
    %v4965 = vpop.f32.mrf.mxu0
    %v4966 = vadd.f32 0.0, %v4965
    %v4967 = vpop.f32.mrf.mxu0
    %4968 = vmatprep.mubr.bf16.mxu0 0
    %4969 = vmatmul.mubr.bf16.gmra.mxu0 %v4920
    %v4970 = vpop.f32.mrf.mxu0
    %v4971 = vadd.f32 0.0, %v4970
    %v4972 = vpop.f32.mrf.mxu0
    %v4973 = vpop.f32.mrf.mxu0
    %v4974 = vadd.f32 0.0, %v4973
    %v4975 = vpop.f32.mrf.mxu0
    %4976 = vmatprep.mubr.bf16.mxu0 0
    %4977 = vmatmul.mubr.bf16.gmra.mxu0 %v4923
    %v4978 = vpop.f32.mrf.mxu0
    %v4979 = vadd.f32 0.0, %v4978
    %v4980 = vpop.f32.mrf.mxu0
    %v4981 = vpop.f32.mrf.mxu0
    %v4982 = vadd.f32 0.0, %v4981
    %v4983 = vpop.f32.mrf.mxu0
    %4984 = vmatprep.mubr.bf16.mxu0 0
    %4985 = vmatmul.mubr.bf16.gmra.mxu0 %v4926
    %v4986 = vpop.f32.mrf.mxu0
    %v4987 = vadd.f32 0.0, %v4986
    %v4988 = vpop.f32.mrf.mxu0
    %v4989 = vpop.f32.mrf.mxu0
    %v4990 = vadd.f32 0.0, %v4989
    %v4991 = vpop.f32.mrf.mxu0
    %4992 = vdwg.mxu0
    %v4993 = vadd.f32 %v4963, %v4971
    %v4994 = vadd.f32 %v4966, %v4974
    %v4995 = vadd.f32 %v4993, %v4979
    %v4996 = vadd.f32 %v4994, %v4982
    %v4997 = vadd.f32 %v4995, %v4987
    %v4998 = vadd.f32 %v4996, %v4990
    %v4999 = vpack.c.bf16 %v4998, %v4997
    %v5001 = vlaneseq
    %v5002 = vshrl.u32 %v5001, 7
    %v5003 = vsub.s32 0, %v5002
    %v5004 = vrot.slane %v4564, %v5003
    %v5022 = vunpack.c.l.b16 %v4548
    %v5023 = vunpack.c.l.b16 %v4549
    %v5024 = vunpack.c.l.b16 %v4550
    %v5025 = vunpack.c.l.b16 %v4551
    %v5026 = vunpack.c.l.b16 %v4552
    %v5027 = vunpack.c.l.b16 %v4553
    %v5028 = vunpack.c.l.b16 %v4554
    %v5029 = vunpack.c.l.b16 %v4555
    %v5030 = vunpack.c.l.b16 %v4556
    %v5031 = vunpack.c.l.b16 %v4557
    %v5032 = vunpack.c.l.b16 %v4558
    %v5033 = vunpack.c.l.b16 %v4559
    %v5034 = vunpack.c.l.b16 %v4560
    %v5035 = vunpack.c.l.b16 %v4561
    %v5036 = vunpack.c.l.b16 %v4562
    %v5037 = vunpack.c.l.b16 %v4563
    %v5038 = vpack.c.b16 %v5023, %v5022
    %v5039 = vpack.c.b16 %v5025, %v5024
    %v5040 = vpack.c.b16 %v5027, %v5026
    %v5041 = vpack.c.b16 %v5029, %v5028
    %v5042 = vpack.c.b16 %v5031, %v5030
    %v5043 = vpack.c.b16 %v5033, %v5032
    %v5044 = vpack.c.b16 %v5035, %v5034
    %v5045 = vpack.c.b16 %v5037, %v5036
    %5054 = vmatprep.subr.bf16.mxu0 0
    %5055 = vmatpush1.bf16.msra.mxu0 %v5045
    %5056 = vmatprep.subr.bf16.mxu0 0
    %5057 = vmatpush1.bf16.msra.mxu0 %v5044
    %5058 = vmatprep.subr.bf16.mxu0 0
    %5059 = vmatpush1.bf16.msra.mxu0 %v5043
    %5060 = vmatprep.subr.bf16.mxu0 0
    %5061 = vmatpush1.bf16.msra.mxu0 %v5042
    %5062 = vmatprep.subr.bf16.mxu0 0
    %5063 = vmatpush1.bf16.msra.mxu0 %v5041
    %5064 = vmatprep.subr.bf16.mxu0 0
    %5065 = vmatpush1.bf16.msra.mxu0 %v5040
    %5066 = vmatprep.subr.bf16.mxu0 0
    %5067 = vmatpush1.bf16.msra.mxu0 %v5039
    %5068 = vmatprep.subr.bf16.mxu0 0
    %5069 = vmatpush1.bf16.msra.mxu0 %v5038
    %5070 = vmatprep.subr.bf16.mxu0 0
    %5071 = vmatpush2.bf16.msra.mxu0 0
    %5072 = vmatprep.subr.bf16.mxu0 0
    %5073 = vmatpush2.bf16.msra.mxu0 0
    %5074 = vmatprep.subr.bf16.mxu0 0
    %5075 = vmatpush2.bf16.msra.mxu0 0
    %5076 = vmatprep.subr.bf16.mxu0 0
    %5077 = vmatpush2.bf16.msra.mxu0 0
    %5078 = vmatprep.subr.bf16.mxu0 0
    %5079 = vmatpush2.bf16.msra.mxu0 0
    %5080 = vmatprep.subr.bf16.mxu0 0
    %5081 = vmatpush2.bf16.msra.mxu0 0
    %5082 = vmatprep.subr.bf16.mxu0 0
    %5083 = vmatpush2.bf16.msra.mxu0 0
    %5084 = vmatprep.subr.bf16.mxu0 0
    %5085 = vmatpush2.bf16.msra.mxu0 0
    %5086 = vmatprep.mubr.bf16.mxu0 0
    %5087 = vmatmul.mubr.bf16.gmra.mxu0 %v4999
    %v5088 = vpop.f32.mrf.mxu0
    %v5089 = vadd.f32 %v5004, %v5088
    %v5090 = vpop.f32.mrf.mxu0
    %v5091 = vpop.f32.mrf.mxu0
    %v5092 = vadd.f32 %v5004, %v5091
    %v5093 = vpop.f32.mrf.mxu0
    %5094 = vdwg.mxu0
    %v5095 = vadd.f32 %v4533, %v5089
    %v5096 = vadd.f32 %v4536, %v5092
    %v5097 = vsel %vm1522, %v5095, 0.0
    %5098 = vadd.xlane.f32.xlu0 %v5097
    %v5099 = vpop.xlane.xlu0 %5098
    %v5100 = vsel %vm1522, %v5096, 0.0
    %5101 = vadd.xlane.f32.xlu0 %v5100
    %v5102 = vpop.xlane.xlu0 %5101
    %v5103 = vmul.f32 %v5099, %v2139
    %v5104 = vmul.f32 %v5102, %v2139
    %v5105 = vsub.f32 %v5095, %v5103
    %v5106 = vsub.f32 %v5096, %v5104
    %v5107 = vmul.f32 %v5105, %v5105
    %v5108 = vmul.f32 %v5106, %v5106
    %v5109 = vsel %vm1522, %v5107, 0.0
    %5110 = vadd.xlane.f32.xlu0 %v5109
    %v5111 = vpop.xlane.xlu0 %5110
    %v5112 = vsel %vm1522, %v5108, 0.0
    %5113 = vadd.xlane.f32.xlu0 %v5112
    %v5114 = vpop.xlane.xlu0 %5113
    %v5115 = vmul.f32 %v5111, %v2139
    %v5116 = vmul.f32 %v5114, %v2139
    %v5117 = vadd.f32 %v5115, 1e-05
    %v5118 = vadd.f32 %v5116, 1e-05
    %v5119 = vrsqrt.pop %v5117
    %v5120 = vrsqrt.pop %v5118
    %v5121 = vmul.f32 %v5105, %v5119
    %v5122 = vmul.f32 %v5106, %v5120
    %v5124 = vlaneseq
    %v5125 = vshrl.u32 %v5124, 7
    %v5126 = vsub.s32 0, %v5125
    %v5127 = vrot.slane %v4565, %v5126
    %v5129 = vmul.f32 %v5121, %v5127
    %v5130 = vmul.f32 %v5122, %v5127
    %v5132 = vlaneseq
    %v5133 = vshrl.u32 %v5132, 7
    %v5134 = vsub.s32 0, %v5133
    %v5135 = vrot.slane %v4566, %v5134
    %v5137 = vadd.f32 %v5129, %v5135
    %v5138 = vadd.f32 %v5130, %v5135
    %v5139 = vpack.c.bf16 %v5138, %v5137
    %v5141 = vlaneseq
    %v5142 = vshrl.u32 %v5141, 7
    %v5143 = vsub.s32 0, %v5142
    %v5144 = vrot.slane %v4571, %v5143
    %v5150 = vunpack.c.l.b16 %v4567
    %v5151 = vunpack.c.l.b16 %v4568
    %v5152 = vunpack.c.l.b16 %v4569
    %v5153 = vunpack.c.l.b16 %v4570
    %v5154 = vpack.c.b16 %v5151, %v5150
    %v5155 = vpack.c.b16 %v5153, %v5152
    %v5159 = vsel %vm1522, %v5139, 0
    %5161 = vmatprep.subr.bf16.mxu0 0
    %5162 = vmatpush1.bf16.msra.mxu0 0
    %5163 = vmatprep.subr.bf16.mxu0 0
    %5164 = vmatpush1.bf16.msra.mxu0 0
    %5165 = vmatprep.subr.bf16.mxu0 0
    %5166 = vmatpush1.bf16.msra.mxu0 0
    %5167 = vmatprep.subr.bf16.mxu0 0
    %5168 = vmatpush1.bf16.msra.mxu0 0
    %5169 = vmatprep.subr.bf16.mxu0 0
    %5170 = vmatpush1.bf16.msra.mxu0 0
    %5171 = vmatprep.subr.bf16.mxu0 0
    %5172 = vmatpush1.bf16.msra.mxu0 0
    %5173 = vmatprep.subr.bf16.mxu0 0
    %5174 = vmatpush1.bf16.msra.mxu0 %v5155
    %5175 = vmatprep.subr.bf16.mxu0 0
    %5176 = vmatpush1.bf16.msra.mxu0 %v5154
    %5177 = vmatprep.subr.bf16.mxu0 0
    %5178 = vmatpush2.bf16.msra.mxu0 0
    %5179 = vmatprep.subr.bf16.mxu0 0
    %5180 = vmatpush2.bf16.msra.mxu0 0
    %5181 = vmatprep.subr.bf16.mxu0 0
    %5182 = vmatpush2.bf16.msra.mxu0 0
    %5183 = vmatprep.subr.bf16.mxu0 0
    %5184 = vmatpush2.bf16.msra.mxu0 0
    %5185 = vmatprep.subr.bf16.mxu0 0
    %5186 = vmatpush2.bf16.msra.mxu0 0
    %5187 = vmatprep.subr.bf16.mxu0 0
    %5188 = vmatpush2.bf16.msra.mxu0 0
    %5189 = vmatprep.subr.bf16.mxu0 0
    %5190 = vmatpush2.bf16.msra.mxu0 0
    %5191 = vmatprep.subr.bf16.mxu0 0
    %5192 = vmatpush2.bf16.msra.mxu0 0
    %5193 = vmatprep.mubr.bf16.mxu0 0
    %5194 = vmatmul.mubr.bf16.gmra.mxu0 %v5159
    %v5195 = vpop.f32.mrf.mxu0
    %v5196 = vadd.f32 %v5144, %v5195
    %v5197 = vpop.f32.mrf.mxu0
    %v5198 = vpop.f32.mrf.mxu0
    %v5199 = vadd.f32 %v5144, %v5198
    %v5200 = vpop.f32.mrf.mxu0
    %5201 = vdwg.mxu0
    %v5202 = vmul.f32 %v5196, 0.5
    %v5203 = vmul.f32 %v5199, 0.5
    %v5204 = vmul.f32 %v5196, 0.70710677
    %v5205 = vmul.f32 %v5199, 0.70710677
    %v5206 = vmax.f32 %v5204, -4.0
    %v5207 = vmax.f32 %v5205, -4.0
    %v5208 = vmin.f32 %v5206, 4.0
    %v5209 = vmin.f32 %v5207, 4.0
    %v5210 = vmul.f32 %v5208, %v5208
    %v5211 = vmul.f32 %v5209, %v5209
    %v5212 = vmul.f32 %v5210, -2.7261424e-10
    %v5213 = vmul.f32 %v5211, -2.7261424e-10
    %v5214 = vadd.f32 %v5212, 2.7706815e-08
    %v5215 = vadd.f32 %v5213, 2.7706815e-08
    %v5216 = vmul.f32 %v5214, %v5210
    %v5217 = vmul.f32 %v5215, %v5211
    %v5218 = vadd.f32 %v5216, -2.101024e-06
    %v5219 = vadd.f32 %v5217, -2.101024e-06
    %v5220 = vmul.f32 %v5218, %v5210
    %v5221 = vmul.f32 %v5219, %v5211
    %v5222 = vadd.f32 %v5220, -5.6925062e-05
    %v5223 = vadd.f32 %v5221, -5.6925062e-05
    %v5224 = vmul.f32 %v5222, %v5210
    %v5225 = vmul.f32 %v5223, %v5211
    %v5226 = vadd.f32 %v5224, -0.00073499064
    %v5227 = vadd.f32 %v5225, -0.00073499064
    %v5228 = vmul.f32 %v5226, %v5210
    %v5229 = vmul.f32 %v5227, %v5211
    %v5230 = vadd.f32 %v5228, -0.0029546
    %v5231 = vadd.f32 %v5229, -0.0029546
    %v5232 = vmul.f32 %v5230, %v5210
    %v5233 = vmul.f32 %v5231, %v5211
    %v5234 = vadd.f32 %v5232, -0.016096033
    %v5235 = vadd.f32 %v5233, -0.016096033
    %v5236 = vmul.f32 %v5210, -1.45660715e-05
    %v5237 = vmul.f32 %v5211, -1.45660715e-05
    %v5238 = vadd.f32 %v5236, -0.00021337405
    %v5239 = vadd.f32 %v5237, -0.00021337405
    %v5240 = vmul.f32 %v5238, %v5210
    %v5241 = vmul.f32 %v5239, %v5211
    %v5242 = vadd.f32 %v5240, -0.001682827
    %v5243 = vadd.f32 %v5241, -0.001682827
    %v5244 = vmul.f32 %v5242, %v5210
    %v5245 = vmul.f32 %v5243, %v5211
    %v5246 = vadd.f32 %v5244, -0.0073733293
    %v5247 = vadd.f32 %v5245, -0.0073733293
    %v5248 = vmul.f32 %v5246, %v5210
    %v5249 = vmul.f32 %v5247, %v5211
    %v5250 = vadd.f32 %v5248, -0.014264739
    %v5251 = vadd.f32 %v5249, -0.014264739
    %v5252 = vmul.f32 %v5208, %v5234
    %v5253 = vmul.f32 %v5209, %v5235
    %v5254 = vrcp.pop %v5250
    %v5255 = vmul.f32 %v5252, %v5254
    %v5256 = vrcp.pop %v5251
    %v5257 = vmul.f32 %v5253, %v5256
    %v5258 = vadd.f32 %v5255, 1.0
    %v5259 = vadd.f32 %v5257, 1.0
    %v5260 = vmul.f32 %v5202, %v5258
    %v5261 = vmul.f32 %v5203, %v5259
    %v5262 = vpack.c.bf16 %v5261, %v5260
    %v5264 = vlaneseq
    %v5265 = vshrl.u32 %v5264, 7
    %v5266 = vsub.s32 0, %v5265
    %v5267 = vrot.slane %v4576, %v5266
    %v5273 = vunpack.c.l.b16 %v4572
    %v5274 = vunpack.c.l.b16 %v4573
    %v5275 = vunpack.c.l.b16 %v4574
    %v5276 = vunpack.c.l.b16 %v4575
    %v5277 = vpack.c.b16 %v5274, %v5273
    %v5278 = vpack.c.b16 %v5276, %v5275
    %v5282 = vsel %vm1522, %v5262, 0
    %5284 = vmatprep.subr.bf16.mxu0 0
    %5285 = vmatpush1.bf16.msra.mxu0 0
    %5286 = vmatprep.subr.bf16.mxu0 0
    %5287 = vmatpush1.bf16.msra.mxu0 0
    %5288 = vmatprep.subr.bf16.mxu0 0
    %5289 = vmatpush1.bf16.msra.mxu0 0
    %5290 = vmatprep.subr.bf16.mxu0 0
    %5291 = vmatpush1.bf16.msra.mxu0 0
    %5292 = vmatprep.subr.bf16.mxu0 0
    %5293 = vmatpush1.bf16.msra.mxu0 0
    %5294 = vmatprep.subr.bf16.mxu0 0
    %5295 = vmatpush1.bf16.msra.mxu0 0
    %5296 = vmatprep.subr.bf16.mxu0 0
    %5297 = vmatpush1.bf16.msra.mxu0 %v5278
    %5298 = vmatprep.subr.bf16.mxu0 0
    %5299 = vmatpush1.bf16.msra.mxu0 %v5277
    %5300 = vmatprep.subr.bf16.mxu0 0
    %5301 = vmatpush2.bf16.msra.mxu0 0
    %5302 = vmatprep.subr.bf16.mxu0 0
    %5303 = vmatpush2.bf16.msra.mxu0 0
    %5304 = vmatprep.subr.bf16.mxu0 0
    %5305 = vmatpush2.bf16.msra.mxu0 0
    %5306 = vmatprep.subr.bf16.mxu0 0
    %5307 = vmatpush2.bf16.msra.mxu0 0
    %5308 = vmatprep.subr.bf16.mxu0 0
    %5309 = vmatpush2.bf16.msra.mxu0 0
    %5310 = vmatprep.subr.bf16.mxu0 0
    %5311 = vmatpush2.bf16.msra.mxu0 0
    %5312 = vmatprep.subr.bf16.mxu0 0
    %5313 = vmatpush2.bf16.msra.mxu0 0
    %5314 = vmatprep.subr.bf16.mxu0 0
    %5315 = vmatpush2.bf16.msra.mxu0 0
    %5316 = vmatprep.mubr.bf16.mxu0 0
    %5317 = vmatmul.mubr.bf16.gmra.mxu0 %v5282
    %v5318 = vpop.f32.mrf.mxu0
    %v5319 = vadd.f32 %v5267, %v5318
    %v5320 = vpop.f32.mrf.mxu0
    %v5321 = vpop.f32.mrf.mxu0
    %v5322 = vadd.f32 %v5267, %v5321
    %v5323 = vpop.f32.mrf.mxu0
    %5324 = vdwg.mxu0
    %v5325 = vld [vmem:[%s131] sm:$0xf]
    %v5326 = vld [vmem:[%s131 + $0x4] sm:$0xf]
    %v5327 = vld [vmem:[%s131 + $0x8] sm:$0xf]
    %v5328 = vld [vmem:[%s131 + $0xc] sm:$0xf]
    %v5329 = vld [vmem:[%s131 + $0x10] sm:$0xf]
    %v5330 = vld [vmem:[%s131 + $0x14] sm:$0xf]
    %v5331 = vld [vmem:[%s131 + $0x18] sm:$0xf]
    %v5332 = vld [vmem:[%s131 + $0x1c] sm:$0xf]
    %v5333 = vpack.c.bf16 %v5322, %v5319
    %v5334 = vld [vmem:[#allocation43] sm:$0x1]
    %v5336 = vlaneseq
    %v5337 = vshrl.u32 %v5336, 7
    %v5338 = vsub.s32 0, %v5337
    %v5339 = vrot.slane %v5334, %v5338
    %v5349 = vunpack.c.l.b16 %v5325
    %v5350 = vunpack.c.l.b16 %v5326
    %v5351 = vunpack.c.l.b16 %v5327
    %v5352 = vunpack.c.l.b16 %v5328
    %v5353 = vunpack.c.l.b16 %v5329
    %v5354 = vunpack.c.l.b16 %v5330
    %v5355 = vunpack.c.l.b16 %v5331
    %v5356 = vunpack.c.l.b16 %v5332
    %v5357 = vpack.c.b16 %v5350, %v5349
    %v5358 = vpack.c.b16 %v5352, %v5351
    %v5359 = vpack.c.b16 %v5354, %v5353
    %v5360 = vpack.c.b16 %v5356, %v5355
    %v5366 = vsel %vm788, %v5333, 0
    %5368 = vmatprep.subr.bf16.mxu0 0
    %5369 = vmatpush1.bf16.msra.mxu0 0
    %5370 = vmatprep.subr.bf16.mxu0 0
    %5371 = vmatpush1.bf16.msra.mxu0 0
    %5372 = vmatprep.subr.bf16.mxu0 0
    %5373 = vmatpush1.bf16.msra.mxu0 0
    %5374 = vmatprep.subr.bf16.mxu0 0
    %5375 = vmatpush1.bf16.msra.mxu0 0
    %5376 = vmatprep.subr.bf16.mxu0 0
    %5377 = vmatpush1.bf16.msra.mxu0 %v5360
    %5378 = vmatprep.subr.bf16.mxu0 0
    %5379 = vmatpush1.bf16.msra.mxu0 %v5359
    %5380 = vmatprep.subr.bf16.mxu0 0
    %5381 = vmatpush1.bf16.msra.mxu0 %v5358
    %5382 = vmatprep.subr.bf16.mxu0 0
    %5383 = vmatpush1.bf16.msra.mxu0 %v5357
    %5384 = vmatprep.subr.bf16.mxu0 0
    %5385 = vmatpush2.bf16.msra.mxu0 0
    %5386 = vmatprep.subr.bf16.mxu0 0
    %5387 = vmatpush2.bf16.msra.mxu0 0
    %5388 = vmatprep.subr.bf16.mxu0 0
    %5389 = vmatpush2.bf16.msra.mxu0 0
    %5390 = vmatprep.subr.bf16.mxu0 0
    %5391 = vmatpush2.bf16.msra.mxu0 0
    %5392 = vmatprep.subr.bf16.mxu0 0
    %5393 = vmatpush2.bf16.msra.mxu0 0
    %5394 = vmatprep.subr.bf16.mxu0 0
    %5395 = vmatpush2.bf16.msra.mxu0 0
    %5396 = vmatprep.subr.bf16.mxu0 0
    %5397 = vmatpush2.bf16.msra.mxu0 0
    %5398 = vmatprep.subr.bf16.mxu0 0
    %5399 = vmatpush2.bf16.msra.mxu0 0
    %5400 = vmatprep.mubr.bf16.mxu0 0
    %5401 = vmatmul.mubr.bf16.gmra.mxu0 %v5366
    %v5402 = vpop.f32.mrf.mxu0
    %v5403 = vadd.f32 %v5339, %v5402
    %v5404 = vpop.f32.mrf.mxu0
    %v5405 = vpop.f32.mrf.mxu0
    %v5406 = vadd.f32 %v5339, %v5405
    %v5407 = vpop.f32.mrf.mxu0
    %5408 = vdwg.mxu0
    %5409 = vst [vmem:[#allocation44] sm:$0xff] %v5403
    %5410 = vst [vmem:[#allocation44 + $0x8] sm:$0xff] %v5406
    // Predicated region
    $region378: #{tpu_custom_call.1} parent=1 // pred_check
      _
    $region379: #{tpu_custom_call.1} parent=1 // pred_check_branch
      %5412 = sbr.rel (0) target = $region381
    $region380: #{tpu_custom_call.1} parent=1 // pred_region
      %s5414 = ssub.s32 256, 256
      %5415 = vsyncadd [#allocation4], %s5414
      %s5416 = sshll.u32 [#allocation44], 4
      %s5417 = int_to_ptr.vmem [resolvable:$true] %s5416
      %5422 = dma.vmem_to_hbm [thread:$0]  %s5417, 256, %s135, [#allocation4], 128, 128, 8
    $region381: #{tpu_custom_call.1} parent=1 // pred_fallthru
      _
    // Predicated region
    $region382: #{tpu_custom_call.1} parent=1 // pred_check
      _
    $region383: #{tpu_custom_call.1} parent=1 // pred_check_branch
      %5424 = sbr.rel (0) target = $region385
    $region384: #{tpu_custom_call.1} parent=1 // pred_region
      %s5426 = ssub.s32 256, 256
      %5427 = vsyncadd [#allocation46], %s5426
      %s5428 = sshll.u32 [#allocation45], 4
      %s5429 = int_to_ptr.vmem [resolvable:$true] %s5428
      %5434 = dma.vmem_to_hbm [thread:$0]  %s5429, 256, %s137, [#allocation46], 128, 128, 8
    $region385: #{tpu_custom_call.1} parent=1 // pred_fallthru
      _
    // Predicated region
    $region386: #{tpu_custom_call.1} parent=1 // pred_check
      _
    $region387: #{tpu_custom_call.1} parent=1 // pred_check_branch
      %5436 = sbr.rel (0) target = $region389
    $region388: #{tpu_custom_call.1} parent=1 // pred_region
      %5437 = dma.done [#allocation4], 256
    $region389: #{tpu_custom_call.1} parent=1 // pred_fallthru
      _
    // Predicated region
    $region390: #{tpu_custom_call.1} parent=1 // pred_check
      _
    $region391: #{tpu_custom_call.1} parent=1 // pred_check_branch
      %5439 = sbr.rel (0) target = $region393
    $region392: #{tpu_custom_call.1} parent=1 // pred_region
      %5440 = dma.done [#allocation46], 256
    $region393: #{tpu_custom_call.1} parent=1 // pred_fallthru
      _
    %5441 = vsyncpa [#allocation3], 1
    %5442 = vsyncpa [#allocation6], 1
    %5443 = vsyncpa [#allocation9], 1
    %5444 = vsyncpa [#allocation12], 1
    %5445 = vsyncpa [#allocation15], 1
    %5446 = vsyncpa [#allocation18], 1
    %5447 = vsyncpa [#allocation21], 1
    %5448 = vsyncpa [#allocation24], 1
    %5449 = vsyncpa [#allocation27], 1
    %5450 = vsyncpa [#allocation30], 1
    %5451 = vsyncpa [#allocation33], 1
    %5452 = vsyncpa [#allocation36], 1
    %5453 = vsyncpa [#allocation39], 1
    %5454 = vsyncpa [#allocation42], 1
    %5455 = vsyncpa [#allocation4], 1
    %5456 = vsyncpa [#allocation46], 1

</llo_original>
